<compile_context>
chip_gen: v7x
topology: tpu7x:2x2x1
jax: 0.10.0
libtpu: 0.0.40
codegen_flags: <defaults>
</compile_context>

<pallas_src>
import functools

import jax
import jax.numpy as jnp
import numpy as np
from jax.experimental import pallas as pl
from jax.experimental.pallas import tpu as pltpu

EPS = 1e-5    # nn.BatchNorm2d default eps
LANE = 128    # TPU lane width; channel dims are zero-padded to a multiple of this


def _ceil_to(x, m):
    return ((x + m - 1) // m) * m


def _pick_tile(total, candidates):
    for c in candidates:
        if c <= total and total % c == 0:
            return c
    return total


# ---------------------------------------------------------------------------
# Pallas kernels
# ---------------------------------------------------------------------------
def _conv3x3_stats_kernel(v0_ref, v1_ref, v2_ref, w_ref, y_ref, s1_ref, s2_ref):
    """3x3 SAME conv (9 shifted bf16 MXU matmuls, f32 accumulation) + fused
    per-channel sum / sum-of-squares for the BatchNorm batch statistics.

    Grid: (n, h_tile, k).  The conv output block (f32) accumulates over the
    Cin-reduction axis k; partial stats are emitted once per (n, h_tile) block
    on the last k step (single E[x^2] sweep, no second (x-mean)^2 pass).
    """
    k = pl.program_id(2)
    nk = pl.num_programs(2)
    _, th, w, co = y_ref.shape

    @pl.when(k == 0)
    def _init():
        y_ref[...] = jnp.zeros_like(y_ref)

    acc = jnp.zeros((th * w, co), jnp.float32)
    for dy, v_ref in enumerate((v0_ref, v1_ref, v2_ref)):
        v = v_ref[...]                                    # (1, th, W+2, tk) bf16
        for dx in range(3):
            slab = v[0, :, dx:dx + w, :].reshape(th * w, v.shape[-1])
            acc = acc + jnp.dot(slab, w_ref[dy, dx],
                                preferred_element_type=jnp.float32)
    y_ref[...] += acc.reshape(y_ref.shape)

    @pl.when(k == nk - 1)
    def _stats():
        y = y_ref[...]
        s = jnp.sum(y, axis=(0, 1, 2), keepdims=True)         # (1, 1, 1, Co)
        sq = jnp.sum(y * y, axis=(0, 1, 2), keepdims=True)
        s1_ref[...] = jnp.broadcast_to(s, s1_ref.shape)
        s2_ref[...] = jnp.broadcast_to(sq, s2_ref.shape)


def _affine_relu_kernel(y_ref, scale_ref, shift_ref, o_ref):
    """BatchNorm pass 2: y * scale + shift, then ReLU (tiled over M, parallel)."""
    v = y_ref[...] * scale_ref[...] + shift_ref[...]
    o_ref[...] = jnp.maximum(v, 0.0).astype(o_ref.dtype)


def _tconv_kernel(x_ref, w_ref, b_ref, o_ref):
    """stride == kernel ConvTranspose2d, one dy-row per grid step.

    Output block (th, 1, W, r*C) inside an (N*H, r, W, r*C) array whose
    row-major order already equals the upsampled (N, H*r, W*r, C) image, so the
    wrapper only needs a free reshape (no 6-D transpose / extra HBM pass)."""
    _, th, w, c = x_ref.shape
    x = x_ref[...].reshape(th * w, c).astype(jnp.bfloat16)
    y = jnp.dot(x, w_ref[0], preferred_element_type=jnp.float32) + b_ref[...]
    o_ref[...] = y.reshape(o_ref.shape).astype(o_ref.dtype)


# ---------------------------------------------------------------------------
# Wrappers (tiling / BlockSpecs / tiny stat reductions)
# ---------------------------------------------------------------------------
def _conv3x3_bn_relu(x, w_p, gamma_p, beta_p):
    """One Block: Conv2d(3x3, pad=1; bias dropped — cancelled by train-mode BN)
    + BatchNorm2d (batch statistics) + ReLU.   x: (N, H, W, Cin_p) f32 NHWC."""
    n, h, w, ci = x.shape
    co = w_p.shape[-1]
    th = _pick_tile(h, (8, 4, 2))          # rows per conv tile  (th*W rows / matmul)
    tk = LANE if ci % LANE == 0 else ci    # Cin reduction tile
    nh, nk = h // th, ci // tk

    # 1-pixel zero halo; three dy-shifted bf16 views give every row-tile its halo
    # without overlapping BlockSpecs (~3x input reads instead of 9x im2col).
    xp = jnp.pad(x, ((0, 0), (1, 1), (1, 1), (0, 0))).astype(jnp.bfloat16)
    views = [xp[:, dy:dy + h] for dy in range(3)]          # each (N, H, W+2, Ci)

    view_spec = pl.BlockSpec((1, th, w + 2, tk), lambda nn, i, k: (nn, i, 0, k))
    y, s1, s2 = pl.pallas_call(
        _conv3x3_stats_kernel,
        grid=(n, nh, nk),
        in_specs=[view_spec, view_spec, view_spec,
                  pl.BlockSpec((3, 3, tk, co), lambda nn, i, k: (0, 0, k, 0))],
        out_specs=[pl.BlockSpec((1, th, w, co), lambda nn, i, k: (nn, i, 0, 0)),
                   pl.BlockSpec((1, 1, 8, co), lambda nn, i, k: (nn, i, 0, 0)),
                   pl.BlockSpec((1, 1, 8, co), lambda nn, i, k: (nn, i, 0, 0))],
        out_shape=[jax.ShapeDtypeStruct((n, h, w, co), jnp.float32),
                   jax.ShapeDtypeStruct((n, nh, 8, co), jnp.float32),
                   jax.ShapeDtypeStruct((n, nh, 8, co), jnp.float32)],
        compiler_params=pltpu.CompilerParams(
            dimension_semantics=("parallel", "parallel", "arbitrary")),
    )(*views, w_p)

    # Tiny per-channel reduction of the per-tile partial stats (JAX glue).
    cnt = float(n * h * w)
    mean = jnp.sum(s1[:, :, 0, :], axis=(0, 1)) / cnt
    var = jnp.sum(s2[:, :, 0, :], axis=(0, 1)) / cnt - mean * mean   # E[x^2]-mean^2
    scale = gamma_p * jax.lax.rsqrt(var + EPS)
    shift = beta_p - mean * scale

    m = n * h * w
    tm = _pick_tile(m, (256, 512, 128, 64, 32, 16, 8))
    act = pl.pallas_call(
        _affine_relu_kernel,
        grid=(m // tm,),
        in_specs=[pl.BlockSpec((tm, co), lambda i: (i, 0)),
                  pl.BlockSpec((1, co), lambda i: (0, 0)),
                  pl.BlockSpec((1, co), lambda i: (0, 0))],
        out_specs=pl.BlockSpec((tm, co), lambda i: (i, 0)),
        out_shape=jax.ShapeDtypeStruct((m, co), jnp.float32),
        compiler_params=pltpu.CompilerParams(dimension_semantics=("parallel",)),
    )(y.reshape(m, co), scale.reshape(1, co), shift.reshape(1, co))
    return act.reshape(n, h, w, co)


def _tconv_upsample(x, wt_p, bt_p, ratio):
    """ConvTranspose2d(C, C, r, stride=r) + bias, lane-dense output layout."""
    n, h, w, c = x.shape
    rc = wt_p.shape[-1]
    th = _pick_tile(h, (8, 4, 2))
    nh = h // th

    def _o_map(nn, i, d):
        return (nn * nh + i, d, 0, 0)

    out4 = pl.pallas_call(
        _tconv_kernel,
        grid=(n, nh, ratio),
        in_specs=[pl.BlockSpec((1, th, w, c), lambda nn, i, d: (nn, i, 0, 0)),
                  pl.BlockSpec((1, c, rc), lambda nn, i, d: (d, 0, 0)),
                  pl.BlockSpec((1, rc), lambda nn, i, d: (0, 0))],
        out_specs=pl.BlockSpec((th, 1, w, rc), _o_map),
        out_shape=jax.ShapeDtypeStruct((n * h, ratio, w, rc), jnp.float32),
        compiler_params=pltpu.CompilerParams(
            dimension_semantics=("parallel", "parallel", "arbitrary")),
    )(x, wt_p, bt_p)
    # (n, y, dy, x, (dx, c)) row-major == (n, y*r+dy, x*r+dx, c): free reshape.
    return out4.reshape(n, h * ratio, w * ratio, c)


@functools.partial(jax.jit, static_argnames=("out_channels", "ratio"))
def fcn_decode_forward(x_nchw, params, *, out_channels, ratio):
    blocks = params["blocks"]
    cin_p = blocks[0][0].shape[2]                     # static from weight shape
    x = jnp.transpose(x_nchw, (0, 2, 3, 1))           # NCHW -> NHWC
    x = jnp.pad(x, ((0, 0), (0, 0), (0, 0), (0, cin_p - x.shape[-1])))
    for (w_p, gamma_p, beta_p) in blocks:
        x = _conv3x3_bn_relu(x, w_p, gamma_p, beta_p)
    y = _tconv_upsample(x, params["wt"], params["bt"], ratio)
    y = y[..., :out_channels]                         # drop channel padding
    return jnp.transpose(y, (0, 3, 1, 2))             # NHWC -> NCHW (module API)


# ---------------------------------------------------------------------------
# Parameters (PyTorch layouts for the reference + padded Pallas layouts)
# ---------------------------------------------------------------------------
def init_params(key, n_blocks, in_channels, out_channels, ratio):
    cout_p = _ceil_to(out_channels, LANE)
    raw_blocks, pal_blocks = [], []
    ci, ci_p = in_channels, in_channels
    for _ in range(n_blocks):
        key, k1, k2, k3, k4 = jax.random.split(key, 5)
        w = jax.random.normal(k1, (out_channels, ci, 3, 3), jnp.float32) * 0.1  # OIHW
        b = jax.random.normal(k2, (out_channels,), jnp.float32) * 0.1           # conv bias
        g = 1.0 + 0.5 * jax.random.normal(k3, (out_channels,), jnp.float32)     # BN weight
        beta = 0.1 * jax.random.normal(k4, (out_channels,), jnp.float32)        # BN bias
        raw_blocks.append((w, b, g, beta))
        # (kh, kw, cin, cout), channels zero-padded to 128 lanes, bf16 MXU operand.
        # NOTE: the conv bias `b` is *not* given to the kernel — with training-mode
        # BatchNorm it is exactly cancelled by the mean subtraction (perf feedback).
        w_p = jnp.transpose(w, (2, 3, 1, 0))
        w_p = jnp.pad(w_p, ((0, 0), (0, 0), (0, ci_p - ci),
                            (0, cout_p - out_channels)))
        pal_blocks.append((w_p.astype(jnp.bfloat16),
                           jnp.pad(g, (0, cout_p - out_channels)),
                           jnp.pad(beta, (0, cout_p - out_channels))))
        ci, ci_p = out_channels, cout_p

    key, k1, k2 = jax.random.split(key, 3)
    r = ratio
    wt = jax.random.normal(k1, (out_channels, out_channels, r, r), jnp.float32) * 0.1
    bt = jax.random.normal(k2, (out_channels,), jnp.float32) * 0.1
    # (ci, co, dy, dx) -> (dy, ci, dx, co) -> (r, Cp, r*Cp): columns ordered (dx, co)
    # so the kernel output slab is already in upsampled row-major order.
    wt_p = jnp.pad(wt, ((0, cout_p - out_channels), (0, cout_p - out_channels),
                        (0, 0), (0, 0)))
    wt_p = jnp.transpose(wt_p, (2, 0, 3, 1)).reshape(r, cout_p, r * cout_p)
    bt_p = jnp.tile(jnp.pad(bt, (0, cout_p - out_channels)), r).reshape(1, r * cout_p)

    params = {"blocks": pal_blocks, "wt": wt_p.astype(jnp.bfloat16), "bt": bt_p}
    raw = {"blocks": raw_blocks, "tconv": (wt, bt)}
    return params, raw


# ---------------------------------------------------------------------------
# Pure-JAX reference of the PyTorch forward (keeps the conv bias!)
# ---------------------------------------------------------------------------
def ref_forward(x_nchw, raw, ratio):
    out = x_nchw
    for (w, b, g, beta) in raw["blocks"]:
        out = jax.lax.conv_general_dilated(
            out, w, window_strides=(1, 1), padding="SAME",
            dimension_numbers=("NCHW", "OIHW", "NCHW"))
        out = out + b.reshape(1, -1, 1, 1)
        mean = jnp.mean(out, axis=(0, 2, 3), keepdims=True)
        var = jnp.mean((out - mean) ** 2, axis=(0, 2, 3), keepdims=True)
        out = (out - mean) * jax.lax.rsqrt(var + EPS)
        out = out * g.reshape(1, -1, 1, 1) + beta.reshape(1, -1, 1, 1)
        out = jnp.maximum(out, 0.0)
    wt, bt = raw["tconv"]
    n, _, h, w_ = out.shape
    o_ch = wt.shape[1]
    t = jnp.einsum("nchw,coyx->nohywx", out, wt)
    t = t.reshape(n, o_ch, h * ratio, w_ * ratio) + bt.reshape(1, -1, 1, 1)
    return t


if __name__ == "__main__":
    # FCNDecode(n=2, in_channels=512, out_channels=32, upsample_ratio=2)
    # (inside FCNSeg the decoder consumes the 512-channel VGG 'f5' feature map).
    N, IN_CH, OUT_CH, SPATIAL = 2, 512, 32, 16
    NUM_BLOCKS, RATIO = 2, 2

    key = jax.random.PRNGKey(0)
    key, kx = jax.random.split(key)
    x = jax.random.normal(kx, (N, IN_CH, SPATIAL, SPATIAL), jnp.float32)
    params, raw = init_params(key, NUM_BLOCKS, IN_CH, OUT_CH, RATIO)

    out = fcn_decode_forward(x, params, out_channels=OUT_CH, ratio=RATIO)
    out = jax.block_until_ready(out)
    assert out.shape == (N, OUT_CH, SPATIAL * RATIO, SPATIAL * RATIO), out.shape

    ref = jax.block_until_ready(ref_forward(x, raw, RATIO))
    # bf16 MXU operands (per TPU guidance) => slightly looser tolerance than pure f32.
    np.testing.assert_allclose(np.asarray(out), np.asarray(ref), atol=3e-2, rtol=3e-2)
    print("KERNEL_OK")
</pallas_src>

<mosaic_0001>
module attributes {stable_mosaic.version = 11 : i64} {
  func.func @_conv3x3_stats_kernel(%arg0: i32, %arg1: i32, %arg2: i32, %arg3: memref<1x8x18x128xbf16, #tpu.memory_space<vmem>>, %arg4: memref<1x8x18x128xbf16, #tpu.memory_space<vmem>>, %arg5: memref<1x8x18x128xbf16, #tpu.memory_space<vmem>>, %arg6: memref<3x3x128x128xbf16, #tpu.memory_space<vmem>>, %arg7: memref<1x8x16x128xf32, #tpu.memory_space<vmem>>, %arg8: memref<1x1x8x128xf32, #tpu.memory_space<vmem>>, %arg9: memref<1x1x8x128xf32, #tpu.memory_space<vmem>>) attributes {dimension_semantics = [#tpu.dimension_semantics<parallel>, #tpu.dimension_semantics<parallel>, #tpu.dimension_semantics<arbitrary>], iteration_bounds = array<i64: 2, 2, 4>, scalar_prefetch = 0 : i64, scratch_operands = 0 : i64, tpu.core_type = #tpu.core_type<tc>, window_params = [{transform_indices = @transform_0, window_bounds = array<i64: 1, 8, 18, 128>}, {transform_indices = @transform_1, window_bounds = array<i64: 1, 8, 18, 128>}, {transform_indices = @transform_2, window_bounds = array<i64: 1, 8, 18, 128>}, {transform_indices = @transform_3, window_bounds = array<i64: 3, 3, 128, 128>}, {transform_indices = @transform_4, window_bounds = array<i64: 1, 8, 16, 128>}, {transform_indices = @transform_5, window_bounds = array<i64: 1, 1, 8, 128>}, {transform_indices = @transform_6, window_bounds = array<i64: 1, 1, 8, 128>}]} {
    %c0_i32 = arith.constant 0 : i32
    %0 = arith.cmpi eq, %arg2, %c0_i32 : i32
    %1 = arith.extui %0 : i1 to i32
    %c0_i32_0 = arith.constant 0 : i32
    %2 = arith.cmpi ne, %1, %c0_i32_0 : i32
    scf.if %2 {
      %cst_64 = arith.constant 0.000000e+00 : f32
      %77 = vector.broadcast %cst_64 : f32 to vector<1x8x16x128xf32>
      %c0_65 = arith.constant 0 : index
      %c0_66 = arith.constant 0 : index
      %c0_67 = arith.constant 0 : index
      %c0_68 = arith.constant 0 : index
      %78 = vector.load %arg7[%c0_65, %c0_66, %c0_67, %c0_68] : memref<1x8x16x128xf32, #tpu.memory_space<vmem>>, vector<1x8x16x128xf32>
      tpu.vector_store %arg7[%c0_65, %c0_66, %c0_67, %c0_68], %77 {strides = array<i32>} : memref<1x8x16x128xf32, #tpu.memory_space<vmem>>, vector<1x8x16x128xf32>,
    } else {
    }
    %cst = arith.constant 0.000000e+00 : f32
    %3 = vector.broadcast %cst : f32 to vector<128x128xf32>
    %c0 = arith.constant 0 : index
    %c0_1 = arith.constant 0 : index
    %c0_2 = arith.constant 0 : index
    %c0_3 = arith.constant 0 : index
    %4 = vector.load %arg3[%c0, %c0_1, %c0_2, %c0_3] : memref<1x8x18x128xbf16, #tpu.memory_space<vmem>>, vector<1x8x18x128xbf16>
    %5 = vector.extract_strided_slice %4 {offsets = [0, 0, 0, 0], sizes = [1, 8, 16, 128], strides = [1, 1, 1, 1]} : vector<1x8x18x128xbf16> to vector<1x8x16x128xbf16>
    %6 = vector.shape_cast %5 : vector<1x8x16x128xbf16> to vector<8x16x128xbf16>
    %7 = vector.shape_cast %6 : vector<8x16x128xbf16> to vector<128x128xbf16>
    %c0_4 = arith.constant 0 : index
    %c0_5 = arith.constant 0 : index
    %c0_6 = arith.constant 0 : index
    %c0_7 = arith.constant 0 : index
    %8 = vector.load %arg6[%c0_4, %c0_5, %c0_6, %c0_7] : memref<3x3x128x128xbf16, #tpu.memory_space<vmem>>, vector<1x1x128x128xbf16>
    %9 = vector.shape_cast %8 : vector<1x1x128x128xbf16> to vector<128x128xbf16>
    %cst_8 = arith.constant dense<0.000000e+00> : vector<128x128xf32>
    %10 = tpu.matmul %7, %9, %cst_8 {dimension_numbers = #tpu.dot_dimension_numbers<[1], [0], [0], [1], [0, 0, 1, 1], [], []>} : vector<128x128xbf16>, vector<128x128xbf16>, vector<128x128xf32> -> vector<128x128xf32>
    %11 = arith.addf %3, %10 : vector<128x128xf32>
    %12 = vector.extract_strided_slice %4 {offsets = [0, 0, 1, 0], sizes = [1, 8, 16, 128], strides = [1, 1, 1, 1]} : vector<1x8x18x128xbf16> to vector<1x8x16x128xbf16>
    %13 = vector.shape_cast %12 : vector<1x8x16x128xbf16> to vector<8x16x128xbf16>
    %14 = vector.shape_cast %13 : vector<8x16x128xbf16> to vector<128x128xbf16>
    %c0_9 = arith.constant 0 : index
    %c1 = arith.constant 1 : index
    %c0_10 = arith.constant 0 : index
    %c0_11 = arith.constant 0 : index
    %15 = vector.load %arg6[%c0_9, %c1, %c0_10, %c0_11] : memref<3x3x128x128xbf16, #tpu.memory_space<vmem>>, vector<1x1x128x128xbf16>
    %16 = vector.shape_cast %15 : vector<1x1x128x128xbf16> to vector<128x128xbf16>
    %cst_12 = arith.constant dense<0.000000e+00> : vector<128x128xf32>
    %17 = tpu.matmul %14, %16, %cst_12 {dimension_numbers = #tpu.dot_dimension_numbers<[1], [0], [0], [1], [0, 0, 1, 1], [], []>} : vector<128x128xbf16>, vector<128x128xbf16>, vector<128x128xf32> -> vector<128x128xf32>
    %18 = arith.addf %11, %17 : vector<128x128xf32>
    %19 = vector.extract_strided_slice %4 {offsets = [0, 0, 2, 0], sizes = [1, 8, 16, 128], strides = [1, 1, 1, 1]} : vector<1x8x18x128xbf16> to vector<1x8x16x128xbf16>
    %20 = vector.shape_cast %19 : vector<1x8x16x128xbf16> to vector<8x16x128xbf16>
    %21 = vector.shape_cast %20 : vector<8x16x128xbf16> to vector<128x128xbf16>
    %c0_13 = arith.constant 0 : index
    %c2 = arith.constant 2 : index
    %c0_14 = arith.constant 0 : index
    %c0_15 = arith.constant 0 : index
    %22 = vector.load %arg6[%c0_13, %c2, %c0_14, %c0_15] : memref<3x3x128x128xbf16, #tpu.memory_space<vmem>>, vector<1x1x128x128xbf16>
    %23 = vector.shape_cast %22 : vector<1x1x128x128xbf16> to vector<128x128xbf16>
    %cst_16 = arith.constant dense<0.000000e+00> : vector<128x128xf32>
    %24 = tpu.matmul %21, %23, %cst_16 {dimension_numbers = #tpu.dot_dimension_numbers<[1], [0], [0], [1], [0, 0, 1, 1], [], []>} : vector<128x128xbf16>, vector<128x128xbf16>, vector<128x128xf32> -> vector<128x128xf32>
    %25 = arith.addf %18, %24 : vector<128x128xf32>
    %c0_17 = arith.constant 0 : index
    %c0_18 = arith.constant 0 : index
    %c0_19 = arith.constant 0 : index
    %c0_20 = arith.constant 0 : index
    %26 = vector.load %arg4[%c0_17, %c0_18, %c0_19, %c0_20] : memref<1x8x18x128xbf16, #tpu.memory_space<vmem>>, vector<1x8x18x128xbf16>
    %27 = vector.extract_strided_slice %26 {offsets = [0, 0, 0, 0], sizes = [1, 8, 16, 128], strides = [1, 1, 1, 1]} : vector<1x8x18x128xbf16> to vector<1x8x16x128xbf16>
    %28 = vector.shape_cast %27 : vector<1x8x16x128xbf16> to vector<8x16x128xbf16>
    %29 = vector.shape_cast %28 : vector<8x16x128xbf16> to vector<128x128xbf16>
    %c1_21 = arith.constant 1 : index
    %c0_22 = arith.constant 0 : index
    %c0_23 = arith.constant 0 : index
    %c0_24 = arith.constant 0 : index
    %30 = vector.load %arg6[%c1_21, %c0_22, %c0_23, %c0_24] : memref<3x3x128x128xbf16, #tpu.memory_space<vmem>>, vector<1x1x128x128xbf16>
    %31 = vector.shape_cast %30 : vector<1x1x128x128xbf16> to vector<128x128xbf16>
    %cst_25 = arith.constant dense<0.000000e+00> : vector<128x128xf32>
    %32 = tpu.matmul %29, %31, %cst_25 {dimension_numbers = #tpu.dot_dimension_numbers<[1], [0], [0], [1], [0, 0, 1, 1], [], []>} : vector<128x128xbf16>, vector<128x128xbf16>, vector<128x128xf32> -> vector<128x128xf32>
    %33 = arith.addf %25, %32 : vector<128x128xf32>
    %34 = vector.extract_strided_slice %26 {offsets = [0, 0, 1, 0], sizes = [1, 8, 16, 128], strides = [1, 1, 1, 1]} : vector<1x8x18x128xbf16> to vector<1x8x16x128xbf16>
    %35 = vector.shape_cast %34 : vector<1x8x16x128xbf16> to vector<8x16x128xbf16>
    %36 = vector.shape_cast %35 : vector<8x16x128xbf16> to vector<128x128xbf16>
    %c1_26 = arith.constant 1 : index
    %c1_27 = arith.constant 1 : index
    %c0_28 = arith.constant 0 : index
    %c0_29 = arith.constant 0 : index
    %37 = vector.load %arg6[%c1_26, %c1_27, %c0_28, %c0_29] : memref<3x3x128x128xbf16, #tpu.memory_space<vmem>>, vector<1x1x128x128xbf16>
    %38 = vector.shape_cast %37 : vector<1x1x128x128xbf16> to vector<128x128xbf16>
    %cst_30 = arith.constant dense<0.000000e+00> : vector<128x128xf32>
    %39 = tpu.matmul %36, %38, %cst_30 {dimension_numbers = #tpu.dot_dimension_numbers<[1], [0], [0], [1], [0, 0, 1, 1], [], []>} : vector<128x128xbf16>, vector<128x128xbf16>, vector<128x128xf32> -> vector<128x128xf32>
    %40 = arith.addf %33, %39 : vector<128x128xf32>
    %41 = vector.extract_strided_slice %26 {offsets = [0, 0, 2, 0], sizes = [1, 8, 16, 128], strides = [1, 1, 1, 1]} : vector<1x8x18x128xbf16> to vector<1x8x16x128xbf16>
    %42 = vector.shape_cast %41 : vector<1x8x16x128xbf16> to vector<8x16x128xbf16>
    %43 = vector.shape_cast %42 : vector<8x16x128xbf16> to vector<128x128xbf16>
    %c1_31 = arith.constant 1 : index
    %c2_32 = arith.constant 2 : index
    %c0_33 = arith.constant 0 : index
    %c0_34 = arith.constant 0 : index
    %44 = vector.load %arg6[%c1_31, %c2_32, %c0_33, %c0_34] : memref<3x3x128x128xbf16, #tpu.memory_space<vmem>>, vector<1x1x128x128xbf16>
    %45 = vector.shape_cast %44 : vector<1x1x128x128xbf16> to vector<128x128xbf16>
    %cst_35 = arith.constant dense<0.000000e+00> : vector<128x128xf32>
    %46 = tpu.matmul %43, %45, %cst_35 {dimension_numbers = #tpu.dot_dimension_numbers<[1], [0], [0], [1], [0, 0, 1, 1], [], []>} : vector<128x128xbf16>, vector<128x128xbf16>, vector<128x128xf32> -> vector<128x128xf32>
    %47 = arith.addf %40, %46 : vector<128x128xf32>
    %c0_36 = arith.constant 0 : index
    %c0_37 = arith.constant 0 : index
    %c0_38 = arith.constant 0 : index
    %c0_39 = arith.constant 0 : index
    %48 = vector.load %arg5[%c0_36, %c0_37, %c0_38, %c0_39] : memref<1x8x18x128xbf16, #tpu.memory_space<vmem>>, vector<1x8x18x128xbf16>
    %49 = vector.extract_strided_slice %48 {offsets = [0, 0, 0, 0], sizes = [1, 8, 16, 128], strides = [1, 1, 1, 1]} : vector<1x8x18x128xbf16> to vector<1x8x16x128xbf16>
    %50 = vector.shape_cast %49 : vector<1x8x16x128xbf16> to vector<8x16x128xbf16>
    %51 = vector.shape_cast %50 : vector<8x16x128xbf16> to vector<128x128xbf16>
    %c2_40 = arith.constant 2 : index
    %c0_41 = arith.constant 0 : index
    %c0_42 = arith.constant 0 : index
    %c0_43 = arith.constant 0 : index
    %52 = vector.load %arg6[%c2_40, %c0_41, %c0_42, %c0_43] : memref<3x3x128x128xbf16, #tpu.memory_space<vmem>>, vector<1x1x128x128xbf16>
    %53 = vector.shape_cast %52 : vector<1x1x128x128xbf16> to vector<128x128xbf16>
    %cst_44 = arith.constant dense<0.000000e+00> : vector<128x128xf32>
    %54 = tpu.matmul %51, %53, %cst_44 {dimension_numbers = #tpu.dot_dimension_numbers<[1], [0], [0], [1], [0, 0, 1, 1], [], []>} : vector<128x128xbf16>, vector<128x128xbf16>, vector<128x128xf32> -> vector<128x128xf32>
    %55 = arith.addf %47, %54 : vector<128x128xf32>
    %56 = vector.extract_strided_slice %48 {offsets = [0, 0, 1, 0], sizes = [1, 8, 16, 128], strides = [1, 1, 1, 1]} : vector<1x8x18x128xbf16> to vector<1x8x16x128xbf16>
    %57 = vector.shape_cast %56 : vector<1x8x16x128xbf16> to vector<8x16x128xbf16>
    %58 = vector.shape_cast %57 : vector<8x16x128xbf16> to vector<128x128xbf16>
    %c2_45 = arith.constant 2 : index
    %c1_46 = arith.constant 1 : index
    %c0_47 = arith.constant 0 : index
    %c0_48 = arith.constant 0 : index
    %59 = vector.load %arg6[%c2_45, %c1_46, %c0_47, %c0_48] : memref<3x3x128x128xbf16, #tpu.memory_space<vmem>>, vector<1x1x128x128xbf16>
    %60 = vector.shape_cast %59 : vector<1x1x128x128xbf16> to vector<128x128xbf16>
    %cst_49 = arith.constant dense<0.000000e+00> : vector<128x128xf32>
    %61 = tpu.matmul %58, %60, %cst_49 {dimension_numbers = #tpu.dot_dimension_numbers<[1], [0], [0], [1], [0, 0, 1, 1], [], []>} : vector<128x128xbf16>, vector<128x128xbf16>, vector<128x128xf32> -> vector<128x128xf32>
    %62 = arith.addf %55, %61 : vector<128x128xf32>
    %63 = vector.extract_strided_slice %48 {offsets = [0, 0, 2, 0], sizes = [1, 8, 16, 128], strides = [1, 1, 1, 1]} : vector<1x8x18x128xbf16> to vector<1x8x16x128xbf16>
    %64 = vector.shape_cast %63 : vector<1x8x16x128xbf16> to vector<8x16x128xbf16>
    %65 = vector.shape_cast %64 : vector<8x16x128xbf16> to vector<128x128xbf16>
    %c2_50 = arith.constant 2 : index
    %c2_51 = arith.constant 2 : index
    %c0_52 = arith.constant 0 : index
    %c0_53 = arith.constant 0 : index
    %66 = vector.load %arg6[%c2_50, %c2_51, %c0_52, %c0_53] : memref<3x3x128x128xbf16, #tpu.memory_space<vmem>>, vector<1x1x128x128xbf16>
    %67 = vector.shape_cast %66 : vector<1x1x128x128xbf16> to vector<128x128xbf16>
    %cst_54 = arith.constant dense<0.000000e+00> : vector<128x128xf32>
    %68 = tpu.matmul %65, %67, %cst_54 {dimension_numbers = #tpu.dot_dimension_numbers<[1], [0], [0], [1], [0, 0, 1, 1], [], []>} : vector<128x128xbf16>, vector<128x128xbf16>, vector<128x128xf32> -> vector<128x128xf32>
    %69 = arith.addf %62, %68 : vector<128x128xf32>
    %c0_55 = arith.constant 0 : index
    %c0_56 = arith.constant 0 : index
    %c0_57 = arith.constant 0 : index
    %c0_58 = arith.constant 0 : index
    %70 = vector.load %arg7[%c0_55, %c0_56, %c0_57, %c0_58] : memref<1x8x16x128xf32, #tpu.memory_space<vmem>>, vector<1x8x16x128xf32>
    %71 = vector.shape_cast %69 : vector<128x128xf32> to vector<1x8x16x128xf32>
    %72 = arith.addf %70, %71 : vector<1x8x16x128xf32>
    %c0_59 = arith.constant 0 : index
    %c0_60 = arith.constant 0 : index
    %c0_61 = arith.constant 0 : index
    %c0_62 = arith.constant 0 : index
    %73 = vector.load %arg7[%c0_59, %c0_60, %c0_61, %c0_62] : memref<1x8x16x128xf32, #tpu.memory_space<vmem>>, vector<1x8x16x128xf32>
    tpu.vector_store %arg7[%c0_59, %c0_60, %c0_61, %c0_62], %72 {strides = array<i32>} : memref<1x8x16x128xf32, #tpu.memory_space<vmem>>, vector<1x8x16x128xf32>,
    %c3_i32 = arith.constant 3 : i32
    %74 = arith.cmpi eq, %arg2, %c3_i32 : i32
    %75 = arith.extui %74 : i1 to i32
    %c0_i32_63 = arith.constant 0 : i32
    %76 = arith.cmpi ne, %75, %c0_i32_63 : i32
    scf.if %76 {
      %c0_64 = arith.constant 0 : index
      %c0_65 = arith.constant 0 : index
      %c0_66 = arith.constant 0 : index
      %c0_67 = arith.constant 0 : index
      %77 = vector.load %arg7[%c0_64, %c0_65, %c0_66, %c0_67] : memref<1x8x16x128xf32, #tpu.memory_space<vmem>>, vector<1x8x16x128xf32>
      %cst_68 = arith.constant dense<0.000000e+00> : vector<128xf32>
      %78 = vector.multi_reduction <add>, %77, %cst_68 [0, 1, 2] : vector<1x8x16x128xf32> to vector<128xf32>
      %79 = vector.shape_cast %78 : vector<128xf32> to vector<1x1x1x128xf32>
      %80 = arith.mulf %77, %77 : vector<1x8x16x128xf32>
      %cst_69 = arith.constant dense<0.000000e+00> : vector<128xf32>
      %81 = vector.multi_reduction <add>, %80, %cst_69 [0, 1, 2] : vector<1x8x16x128xf32> to vector<128xf32>
      %82 = vector.shape_cast %81 : vector<128xf32> to vector<1x1x1x128xf32>
      %83 = vector.shape_cast %79 : vector<1x1x1x128xf32> to vector<1x1x1x128xf32>
      %84 = vector.broadcast %83 : vector<1x1x1x128xf32> to vector<1x1x8x128xf32>
      %c0_70 = arith.constant 0 : index
      %c0_71 = arith.constant 0 : index
      %c0_72 = arith.constant 0 : index
      %c0_73 = arith.constant 0 : index
      %85 = vector.load %arg8[%c0_70, %c0_71, %c0_72, %c0_73] : memref<1x1x8x128xf32, #tpu.memory_space<vmem>>, vector<1x1x8x128xf32>
      tpu.vector_store %arg8[%c0_70, %c0_71, %c0_72, %c0_73], %84 {strides = array<i32>} : memref<1x1x8x128xf32, #tpu.memory_space<vmem>>, vector<1x1x8x128xf32>,
      %86 = vector.shape_cast %82 : vector<1x1x1x128xf32> to vector<1x1x1x128xf32>
      %87 = vector.broadcast %86 : vector<1x1x1x128xf32> to vector<1x1x8x128xf32>
      %c0_74 = arith.constant 0 : index
      %c0_75 = arith.constant 0 : index
      %c0_76 = arith.constant 0 : index
      %c0_77 = arith.constant 0 : index
      %88 = vector.load %arg9[%c0_74, %c0_75, %c0_76, %c0_77] : memref<1x1x8x128xf32, #tpu.memory_space<vmem>>, vector<1x1x8x128xf32>
      tpu.vector_store %arg9[%c0_74, %c0_75, %c0_76, %c0_77], %87 {strides = array<i32>} : memref<1x1x8x128xf32, #tpu.memory_space<vmem>>, vector<1x1x8x128xf32>,
    } else {
    }
    return
  }
  func.func @transform_0(%arg0: i32, %arg1: i32, %arg2: i32) -> (i32, i32, i32, i32) {
    %c0_i32 = arith.constant 0 : i32
    %c0_i32_0 = arith.constant 0 : i32
    return %arg0, %arg1, %c0_i32, %arg2 : i32, i32, i32, i32
  }
  func.func @transform_1(%arg0: i32, %arg1: i32, %arg2: i32) -> (i32, i32, i32, i32) {
    %c0_i32 = arith.constant 0 : i32
    %c0_i32_0 = arith.constant 0 : i32
    return %arg0, %arg1, %c0_i32, %arg2 : i32, i32, i32, i32
  }
  func.func @transform_2(%arg0: i32, %arg1: i32, %arg2: i32) -> (i32, i32, i32, i32) {
    %c0_i32 = arith.constant 0 : i32
    %c0_i32_0 = arith.constant 0 : i32
    return %arg0, %arg1, %c0_i32, %arg2 : i32, i32, i32, i32
  }
  func.func @transform_3(%arg0: i32, %arg1: i32, %arg2: i32) -> (i32, i32, i32, i32) {
    %c0_i32 = arith.constant 0 : i32
    %c0_i32_0 = arith.constant 0 : i32
    %c0_i32_1 = arith.constant 0 : i32
    %c0_i32_2 = arith.constant 0 : i32
    return %c0_i32, %c0_i32_0, %arg2, %c0_i32_1 : i32, i32, i32, i32
  }
  func.func @transform_4(%arg0: i32, %arg1: i32, %arg2: i32) -> (i32, i32, i32, i32) {
    %c0_i32 = arith.constant 0 : i32
    %c0_i32_0 = arith.constant 0 : i32
    %c0_i32_1 = arith.constant 0 : i32
    return %arg0, %arg1, %c0_i32, %c0_i32_0 : i32, i32, i32, i32
  }
  func.func @transform_5(%arg0: i32, %arg1: i32, %arg2: i32) -> (i32, i32, i32, i32) {
    %c0_i32 = arith.constant 0 : i32
    %c0_i32_0 = arith.constant 0 : i32
    %c0_i32_1 = arith.constant 0 : i32
    return %arg0, %arg1, %c0_i32, %c0_i32_0 : i32, i32, i32, i32
  }
  func.func @transform_6(%arg0: i32, %arg1: i32, %arg2: i32) -> (i32, i32, i32, i32) {
    %c0_i32 = arith.constant 0 : i32
    %c0_i32_0 = arith.constant 0 : i32
    %c0_i32_1 = arith.constant 0 : i32
    return %arg0, %arg1, %c0_i32, %c0_i32_0 : i32, i32, i32, i32
  }
}

module attributes {stable_mosaic.version = 11 : i64} {
  func.func @_affine_relu_kernel(%arg0: i32, %arg1: memref<256x128xf32, #tpu.memory_space<vmem>>, %arg2: memref<1x128xf32, #tpu.memory_space<vmem>>, %arg3: memref<1x128xf32, #tpu.memory_space<vmem>>, %arg4: memref<256x128xf32, #tpu.memory_space<vmem>>) attributes {dimension_semantics = [#tpu.dimension_semantics<parallel>], iteration_bounds = array<i64: 2>, scalar_prefetch = 0 : i64, scratch_operands = 0 : i64, tpu.core_type = #tpu.core_type<tc>, window_params = [{transform_indices = @transform_0, window_bounds = array<i64: 256, 128>}, {pipeline_mode = #tpu.pipeline_mode<synchronous>, transform_indices = @transform_1, window_bounds = array<i64: 1, 128>}, {pipeline_mode = #tpu.pipeline_mode<synchronous>, transform_indices = @transform_2, window_bounds = array<i64: 1, 128>}, {transform_indices = @transform_3, window_bounds = array<i64: 256, 128>}]} {
    %c0 = arith.constant 0 : index
    %c0_0 = arith.constant 0 : index
    %0 = vector.load %arg1[%c0, %c0_0] : memref<256x128xf32, #tpu.memory_space<vmem>>, vector<256x128xf32>
    %c0_1 = arith.constant 0 : index
    %c0_2 = arith.constant 0 : index
    %1 = vector.load %arg2[%c0_1, %c0_2] : memref<1x128xf32, #tpu.memory_space<vmem>>, vector<1x128xf32>
    %2 = vector.broadcast %1 : vector<1x128xf32> to vector<256x128xf32>
    %3 = arith.mulf %0, %2 : vector<256x128xf32>
    %c0_3 = arith.constant 0 : index
    %c0_4 = arith.constant 0 : index
    %4 = vector.load %arg3[%c0_3, %c0_4] : memref<1x128xf32, #tpu.memory_space<vmem>>, vector<1x128xf32>
    %5 = vector.broadcast %4 : vector<1x128xf32> to vector<256x128xf32>
    %6 = arith.addf %3, %5 : vector<256x128xf32>
    %cst = arith.constant 0.000000e+00 : f32
    %7 = vector.broadcast %cst : f32 to vector<256x128xf32>
    %8 = arith.maximumf %6, %7 : vector<256x128xf32>
    %c0_5 = arith.constant 0 : index
    %c0_6 = arith.constant 0 : index
    %9 = vector.load %arg4[%c0_5, %c0_6] : memref<256x128xf32, #tpu.memory_space<vmem>>, vector<256x128xf32>
    tpu.vector_store %arg4[%c0_5, %c0_6], %8 {strides = array<i32>} : memref<256x128xf32, #tpu.memory_space<vmem>>, vector<256x128xf32>,
    return
  }
  func.func @transform_0(%arg0: i32) -> (i32, i32) {
    %c0_i32 = arith.constant 0 : i32
    %c0_i32_0 = arith.constant 0 : i32
    return %arg0, %c0_i32 : i32, i32
  }
  func.func @transform_1(%arg0: i32) -> (i32, i32) {
    %c0_i32 = arith.constant 0 : i32
    %c0_i32_0 = arith.constant 0 : i32
    %c0_i32_1 = arith.constant 0 : i32
    return %c0_i32, %c0_i32_0 : i32, i32
  }
  func.func @transform_2(%arg0: i32) -> (i32, i32) {
    %c0_i32 = arith.constant 0 : i32
    %c0_i32_0 = arith.constant 0 : i32
    %c0_i32_1 = arith.constant 0 : i32
    return %c0_i32, %c0_i32_0 : i32, i32
  }
  func.func @transform_3(%arg0: i32) -> (i32, i32) {
    %c0_i32 = arith.constant 0 : i32
    %c0_i32_0 = arith.constant 0 : i32
    return %arg0, %c0_i32 : i32, i32
  }
}

module attributes {stable_mosaic.version = 11 : i64} {
  func.func @_conv3x3_stats_kernel(%arg0: i32, %arg1: i32, %arg2: i32, %arg3: memref<1x8x18x128xbf16, #tpu.memory_space<vmem>>, %arg4: memref<1x8x18x128xbf16, #tpu.memory_space<vmem>>, %arg5: memref<1x8x18x128xbf16, #tpu.memory_space<vmem>>, %arg6: memref<3x3x128x128xbf16, #tpu.memory_space<vmem>>, %arg7: memref<1x8x16x128xf32, #tpu.memory_space<vmem>>, %arg8: memref<1x1x8x128xf32, #tpu.memory_space<vmem>>, %arg9: memref<1x1x8x128xf32, #tpu.memory_space<vmem>>) attributes {dimension_semantics = [#tpu.dimension_semantics<parallel>, #tpu.dimension_semantics<parallel>, #tpu.dimension_semantics<arbitrary>], iteration_bounds = array<i64: 2, 2, 1>, scalar_prefetch = 0 : i64, scratch_operands = 0 : i64, tpu.core_type = #tpu.core_type<tc>, window_params = [{transform_indices = @transform_0, window_bounds = array<i64: 1, 8, 18, 128>}, {transform_indices = @transform_1, window_bounds = array<i64: 1, 8, 18, 128>}, {transform_indices = @transform_2, window_bounds = array<i64: 1, 8, 18, 128>}, {transform_indices = @transform_3, window_bounds = array<i64: 3, 3, 128, 128>}, {transform_indices = @transform_4, window_bounds = array<i64: 1, 8, 16, 128>}, {transform_indices = @transform_5, window_bounds = array<i64: 1, 1, 8, 128>}, {transform_indices = @transform_6, window_bounds = array<i64: 1, 1, 8, 128>}]} {
    %c0_i32 = arith.constant 0 : i32
    %0 = arith.cmpi eq, %arg2, %c0_i32 : i32
    %1 = arith.extui %0 : i1 to i32
    %c0_i32_0 = arith.constant 0 : i32
    %2 = arith.cmpi ne, %1, %c0_i32_0 : i32
    scf.if %2 {
      %cst_65 = arith.constant 0.000000e+00 : f32
      %77 = vector.broadcast %cst_65 : f32 to vector<1x8x16x128xf32>
      %c0_66 = arith.constant 0 : index
      %c0_67 = arith.constant 0 : index
      %c0_68 = arith.constant 0 : index
      %c0_69 = arith.constant 0 : index
      %78 = vector.load %arg7[%c0_66, %c0_67, %c0_68, %c0_69] : memref<1x8x16x128xf32, #tpu.memory_space<vmem>>, vector<1x8x16x128xf32>
      tpu.vector_store %arg7[%c0_66, %c0_67, %c0_68, %c0_69], %77 {strides = array<i32>} : memref<1x8x16x128xf32, #tpu.memory_space<vmem>>, vector<1x8x16x128xf32>,
    } else {
    }
    %cst = arith.constant 0.000000e+00 : f32
    %3 = vector.broadcast %cst : f32 to vector<128x128xf32>
    %c0 = arith.constant 0 : index
    %c0_1 = arith.constant 0 : index
    %c0_2 = arith.constant 0 : index
    %c0_3 = arith.constant 0 : index
    %4 = vector.load %arg3[%c0, %c0_1, %c0_2, %c0_3] : memref<1x8x18x128xbf16, #tpu.memory_space<vmem>>, vector<1x8x18x128xbf16>
    %5 = vector.extract_strided_slice %4 {offsets = [0, 0, 0, 0], sizes = [1, 8, 16, 128], strides = [1, 1, 1, 1]} : vector<1x8x18x128xbf16> to vector<1x8x16x128xbf16>
    %6 = vector.shape_cast %5 : vector<1x8x16x128xbf16> to vector<8x16x128xbf16>
    %7 = vector.shape_cast %6 : vector<8x16x128xbf16> to vector<128x128xbf16>
    %c0_4 = arith.constant 0 : index
    %c0_5 = arith.constant 0 : index
    %c0_6 = arith.constant 0 : index
    %c0_7 = arith.constant 0 : index
    %8 = vector.load %arg6[%c0_4, %c0_5, %c0_6, %c0_7] : memref<3x3x128x128xbf16, #tpu.memory_space<vmem>>, vector<1x1x128x128xbf16>
    %9 = vector.shape_cast %8 : vector<1x1x128x128xbf16> to vector<128x128xbf16>
    %cst_8 = arith.constant dense<0.000000e+00> : vector<128x128xf32>
    %10 = tpu.matmul %7, %9, %cst_8 {dimension_numbers = #tpu.dot_dimension_numbers<[1], [0], [0], [1], [0, 0, 1, 1], [], []>} : vector<128x128xbf16>, vector<128x128xbf16>, vector<128x128xf32> -> vector<128x128xf32>
    %11 = arith.addf %3, %10 : vector<128x128xf32>
    %12 = vector.extract_strided_slice %4 {offsets = [0, 0, 1, 0], sizes = [1, 8, 16, 128], strides = [1, 1, 1, 1]} : vector<1x8x18x128xbf16> to vector<1x8x16x128xbf16>
    %13 = vector.shape_cast %12 : vector<1x8x16x128xbf16> to vector<8x16x128xbf16>
    %14 = vector.shape_cast %13 : vector<8x16x128xbf16> to vector<128x128xbf16>
    %c0_9 = arith.constant 0 : index
    %c1 = arith.constant 1 : index
    %c0_10 = arith.constant 0 : index
    %c0_11 = arith.constant 0 : index
    %15 = vector.load %arg6[%c0_9, %c1, %c0_10, %c0_11] : memref<3x3x128x128xbf16, #tpu.memory_space<vmem>>, vector<1x1x128x128xbf16>
    %16 = vector.shape_cast %15 : vector<1x1x128x128xbf16> to vector<128x128xbf16>
    %cst_12 = arith.constant dense<0.000000e+00> : vector<128x128xf32>
    %17 = tpu.matmul %14, %16, %cst_12 {dimension_numbers = #tpu.dot_dimension_numbers<[1], [0], [0], [1], [0, 0, 1, 1], [], []>} : vector<128x128xbf16>, vector<128x128xbf16>, vector<128x128xf32> -> vector<128x128xf32>
    %18 = arith.addf %11, %17 : vector<128x128xf32>
    %19 = vector.extract_strided_slice %4 {offsets = [0, 0, 2, 0], sizes = [1, 8, 16, 128], strides = [1, 1, 1, 1]} : vector<1x8x18x128xbf16> to vector<1x8x16x128xbf16>
    %20 = vector.shape_cast %19 : vector<1x8x16x128xbf16> to vector<8x16x128xbf16>
    %21 = vector.shape_cast %20 : vector<8x16x128xbf16> to vector<128x128xbf16>
    %c0_13 = arith.constant 0 : index
    %c2 = arith.constant 2 : index
    %c0_14 = arith.constant 0 : index
    %c0_15 = arith.constant 0 : index
    %22 = vector.load %arg6[%c0_13, %c2, %c0_14, %c0_15] : memref<3x3x128x128xbf16, #tpu.memory_space<vmem>>, vector<1x1x128x128xbf16>
    %23 = vector.shape_cast %22 : vector<1x1x128x128xbf16> to vector<128x128xbf16>
    %cst_16 = arith.constant dense<0.000000e+00> : vector<128x128xf32>
    %24 = tpu.matmul %21, %23, %cst_16 {dimension_numbers = #tpu.dot_dimension_numbers<[1], [0], [0], [1], [0, 0, 1, 1], [], []>} : vector<128x128xbf16>, vector<128x128xbf16>, vector<128x128xf32> -> vector<128x128xf32>
    %25 = arith.addf %18, %24 : vector<128x128xf32>
    %c0_17 = arith.constant 0 : index
    %c0_18 = arith.constant 0 : index
    %c0_19 = arith.constant 0 : index
    %c0_20 = arith.constant 0 : index
    %26 = vector.load %arg4[%c0_17, %c0_18, %c0_19, %c0_20] : memref<1x8x18x128xbf16, #tpu.memory_space<vmem>>, vector<1x8x18x128xbf16>
    %27 = vector.extract_strided_slice %26 {offsets = [0, 0, 0, 0], sizes = [1, 8, 16, 128], strides = [1, 1, 1, 1]} : vector<1x8x18x128xbf16> to vector<1x8x16x128xbf16>
    %28 = vector.shape_cast %27 : vector<1x8x16x128xbf16> to vector<8x16x128xbf16>
    %29 = vector.shape_cast %28 : vector<8x16x128xbf16> to vector<128x128xbf16>
    %c1_21 = arith.constant 1 : index
    %c0_22 = arith.constant 0 : index
    %c0_23 = arith.constant 0 : index
    %c0_24 = arith.constant 0 : index
    %30 = vector.load %arg6[%c1_21, %c0_22, %c0_23, %c0_24] : memref<3x3x128x128xbf16, #tpu.memory_space<vmem>>, vector<1x1x128x128xbf16>
    %31 = vector.shape_cast %30 : vector<1x1x128x128xbf16> to vector<128x128xbf16>
    %cst_25 = arith.constant dense<0.000000e+00> : vector<128x128xf32>
    %32 = tpu.matmul %29, %31, %cst_25 {dimension_numbers = #tpu.dot_dimension_numbers<[1], [0], [0], [1], [0, 0, 1, 1], [], []>} : vector<128x128xbf16>, vector<128x128xbf16>, vector<128x128xf32> -> vector<128x128xf32>
    %33 = arith.addf %25, %32 : vector<128x128xf32>
    %34 = vector.extract_strided_slice %26 {offsets = [0, 0, 1, 0], sizes = [1, 8, 16, 128], strides = [1, 1, 1, 1]} : vector<1x8x18x128xbf16> to vector<1x8x16x128xbf16>
    %35 = vector.shape_cast %34 : vector<1x8x16x128xbf16> to vector<8x16x128xbf16>
    %36 = vector.shape_cast %35 : vector<8x16x128xbf16> to vector<128x128xbf16>
    %c1_26 = arith.constant 1 : index
    %c1_27 = arith.constant 1 : index
    %c0_28 = arith.constant 0 : index
    %c0_29 = arith.constant 0 : index
    %37 = vector.load %arg6[%c1_26, %c1_27, %c0_28, %c0_29] : memref<3x3x128x128xbf16, #tpu.memory_space<vmem>>, vector<1x1x128x128xbf16>
    %38 = vector.shape_cast %37 : vector<1x1x128x128xbf16> to vector<128x128xbf16>
    %cst_30 = arith.constant dense<0.000000e+00> : vector<128x128xf32>
    %39 = tpu.matmul %36, %38, %cst_30 {dimension_numbers = #tpu.dot_dimension_numbers<[1], [0], [0], [1], [0, 0, 1, 1], [], []>} : vector<128x128xbf16>, vector<128x128xbf16>, vector<128x128xf32> -> vector<128x128xf32>
    %40 = arith.addf %33, %39 : vector<128x128xf32>
    %41 = vector.extract_strided_slice %26 {offsets = [0, 0, 2, 0], sizes = [1, 8, 16, 128], strides = [1, 1, 1, 1]} : vector<1x8x18x128xbf16> to vector<1x8x16x128xbf16>
    %42 = vector.shape_cast %41 : vector<1x8x16x128xbf16> to vector<8x16x128xbf16>
    %43 = vector.shape_cast %42 : vector<8x16x128xbf16> to vector<128x128xbf16>
    %c1_31 = arith.constant 1 : index
    %c2_32 = arith.constant 2 : index
    %c0_33 = arith.constant 0 : index
    %c0_34 = arith.constant 0 : index
    %44 = vector.load %arg6[%c1_31, %c2_32, %c0_33, %c0_34] : memref<3x3x128x128xbf16, #tpu.memory_space<vmem>>, vector<1x1x128x128xbf16>
    %45 = vector.shape_cast %44 : vector<1x1x128x128xbf16> to vector<128x128xbf16>
    %cst_35 = arith.constant dense<0.000000e+00> : vector<128x128xf32>
    %46 = tpu.matmul %43, %45, %cst_35 {dimension_numbers = #tpu.dot_dimension_numbers<[1], [0], [0], [1], [0, 0, 1, 1], [], []>} : vector<128x128xbf16>, vector<128x128xbf16>, vector<128x128xf32> -> vector<128x128xf32>
    %47 = arith.addf %40, %46 : vector<128x128xf32>
    %c0_36 = arith.constant 0 : index
    %c0_37 = arith.constant 0 : index
    %c0_38 = arith.constant 0 : index
    %c0_39 = arith.constant 0 : index
    %48 = vector.load %arg5[%c0_36, %c0_37, %c0_38, %c0_39] : memref<1x8x18x128xbf16, #tpu.memory_space<vmem>>, vector<1x8x18x128xbf16>
    %49 = vector.extract_strided_slice %48 {offsets = [0, 0, 0, 0], sizes = [1, 8, 16, 128], strides = [1, 1, 1, 1]} : vector<1x8x18x128xbf16> to vector<1x8x16x128xbf16>
    %50 = vector.shape_cast %49 : vector<1x8x16x128xbf16> to vector<8x16x128xbf16>
    %51 = vector.shape_cast %50 : vector<8x16x128xbf16> to vector<128x128xbf16>
    %c2_40 = arith.constant 2 : index
    %c0_41 = arith.constant 0 : index
    %c0_42 = arith.constant 0 : index
    %c0_43 = arith.constant 0 : index
    %52 = vector.load %arg6[%c2_40, %c0_41, %c0_42, %c0_43] : memref<3x3x128x128xbf16, #tpu.memory_space<vmem>>, vector<1x1x128x128xbf16>
    %53 = vector.shape_cast %52 : vector<1x1x128x128xbf16> to vector<128x128xbf16>
    %cst_44 = arith.constant dense<0.000000e+00> : vector<128x128xf32>
    %54 = tpu.matmul %51, %53, %cst_44 {dimension_numbers = #tpu.dot_dimension_numbers<[1], [0], [0], [1], [0, 0, 1, 1], [], []>} : vector<128x128xbf16>, vector<128x128xbf16>, vector<128x128xf32> -> vector<128x128xf32>
    %55 = arith.addf %47, %54 : vector<128x128xf32>
    %56 = vector.extract_strided_slice %48 {offsets = [0, 0, 1, 0], sizes = [1, 8, 16, 128], strides = [1, 1, 1, 1]} : vector<1x8x18x128xbf16> to vector<1x8x16x128xbf16>
    %57 = vector.shape_cast %56 : vector<1x8x16x128xbf16> to vector<8x16x128xbf16>
    %58 = vector.shape_cast %57 : vector<8x16x128xbf16> to vector<128x128xbf16>
    %c2_45 = arith.constant 2 : index
    %c1_46 = arith.constant 1 : index
    %c0_47 = arith.constant 0 : index
    %c0_48 = arith.constant 0 : index
    %59 = vector.load %arg6[%c2_45, %c1_46, %c0_47, %c0_48] : memref<3x3x128x128xbf16, #tpu.memory_space<vmem>>, vector<1x1x128x128xbf16>
    %60 = vector.shape_cast %59 : vector<1x1x128x128xbf16> to vector<128x128xbf16>
    %cst_49 = arith.constant dense<0.000000e+00> : vector<128x128xf32>
    %61 = tpu.matmul %58, %60, %cst_49 {dimension_numbers = #tpu.dot_dimension_numbers<[1], [0], [0], [1], [0, 0, 1, 1], [], []>} : vector<128x128xbf16>, vector<128x128xbf16>, vector<128x128xf32> -> vector<128x128xf32>
    %62 = arith.addf %55, %61 : vector<128x128xf32>
    %63 = vector.extract_strided_slice %48 {offsets = [0, 0, 2, 0], sizes = [1, 8, 16, 128], strides = [1, 1, 1, 1]} : vector<1x8x18x128xbf16> to vector<1x8x16x128xbf16>
    %64 = vector.shape_cast %63 : vector<1x8x16x128xbf16> to vector<8x16x128xbf16>
    %65 = vector.shape_cast %64 : vector<8x16x128xbf16> to vector<128x128xbf16>
    %c2_50 = arith.constant 2 : index
    %c2_51 = arith.constant 2 : index
    %c0_52 = arith.constant 0 : index
    %c0_53 = arith.constant 0 : index
    %66 = vector.load %arg6[%c2_50, %c2_51, %c0_52, %c0_53] : memref<3x3x128x128xbf16, #tpu.memory_space<vmem>>, vector<1x1x128x128xbf16>
    %67 = vector.shape_cast %66 : vector<1x1x128x128xbf16> to vector<128x128xbf16>
    %cst_54 = arith.constant dense<0.000000e+00> : vector<128x128xf32>
    %68 = tpu.matmul %65, %67, %cst_54 {dimension_numbers = #tpu.dot_dimension_numbers<[1], [0], [0], [1], [0, 0, 1, 1], [], []>} : vector<128x128xbf16>, vector<128x128xbf16>, vector<128x128xf32> -> vector<128x128xf32>
    %69 = arith.addf %62, %68 : vector<128x128xf32>
    %c0_55 = arith.constant 0 : index
    %c0_56 = arith.constant 0 : index
    %c0_57 = arith.constant 0 : index
    %c0_58 = arith.constant 0 : index
    %70 = vector.load %arg7[%c0_55, %c0_56, %c0_57, %c0_58] : memref<1x8x16x128xf32, #tpu.memory_space<vmem>>, vector<1x8x16x128xf32>
    %71 = vector.shape_cast %69 : vector<128x128xf32> to vector<1x8x16x128xf32>
    %72 = arith.addf %70, %71 : vector<1x8x16x128xf32>
    %c0_59 = arith.constant 0 : index
    %c0_60 = arith.constant 0 : index
    %c0_61 = arith.constant 0 : index
    %c0_62 = arith.constant 0 : index
    %73 = vector.load %arg7[%c0_59, %c0_60, %c0_61, %c0_62] : memref<1x8x16x128xf32, #tpu.memory_space<vmem>>, vector<1x8x16x128xf32>
    tpu.vector_store %arg7[%c0_59, %c0_60, %c0_61, %c0_62], %72 {strides = array<i32>} : memref<1x8x16x128xf32, #tpu.memory_space<vmem>>, vector<1x8x16x128xf32>,
    %c0_i32_63 = arith.constant 0 : i32
    %74 = arith.cmpi eq, %arg2, %c0_i32_63 : i32
    %75 = arith.extui %74 : i1 to i32
    %c0_i32_64 = arith.constant 0 : i32
    %76 = arith.cmpi ne, %75, %c0_i32_64 : i32
    scf.if %76 {
      %c0_65 = arith.constant 0 : index
      %c0_66 = arith.constant 0 : index
      %c0_67 = arith.constant 0 : index
      %c0_68 = arith.constant 0 : index
      %77 = vector.load %arg7[%c0_65, %c0_66, %c0_67, %c0_68] : memref<1x8x16x128xf32, #tpu.memory_space<vmem>>, vector<1x8x16x128xf32>
      %cst_69 = arith.constant dense<0.000000e+00> : vector<128xf32>
      %78 = vector.multi_reduction <add>, %77, %cst_69 [0, 1, 2] : vector<1x8x16x128xf32> to vector<128xf32>
      %79 = vector.shape_cast %78 : vector<128xf32> to vector<1x1x1x128xf32>
      %80 = arith.mulf %77, %77 : vector<1x8x16x128xf32>
      %cst_70 = arith.constant dense<0.000000e+00> : vector<128xf32>
      %81 = vector.multi_reduction <add>, %80, %cst_70 [0, 1, 2] : vector<1x8x16x128xf32> to vector<128xf32>
      %82 = vector.shape_cast %81 : vector<128xf32> to vector<1x1x1x128xf32>
      %83 = vector.shape_cast %79 : vector<1x1x1x128xf32> to vector<1x1x1x128xf32>
      %84 = vector.broadcast %83 : vector<1x1x1x128xf32> to vector<1x1x8x128xf32>
      %c0_71 = arith.constant 0 : index
      %c0_72 = arith.constant 0 : index
      %c0_73 = arith.constant 0 : index
      %c0_74 = arith.constant 0 : index
      %85 = vector.load %arg8[%c0_71, %c0_72, %c0_73, %c0_74] : memref<1x1x8x128xf32, #tpu.memory_space<vmem>>, vector<1x1x8x128xf32>
      tpu.vector_store %arg8[%c0_71, %c0_72, %c0_73, %c0_74], %84 {strides = array<i32>} : memref<1x1x8x128xf32, #tpu.memory_space<vmem>>, vector<1x1x8x128xf32>,
      %86 = vector.shape_cast %82 : vector<1x1x1x128xf32> to vector<1x1x1x128xf32>
      %87 = vector.broadcast %86 : vector<1x1x1x128xf32> to vector<1x1x8x128xf32>
      %c0_75 = arith.constant 0 : index
      %c0_76 = arith.constant 0 : index
      %c0_77 = arith.constant 0 : index
      %c0_78 = arith.constant 0 : index
      %88 = vector.load %arg9[%c0_75, %c0_76, %c0_77, %c0_78] : memref<1x1x8x128xf32, #tpu.memory_space<vmem>>, vector<1x1x8x128xf32>
      tpu.vector_store %arg9[%c0_75, %c0_76, %c0_77, %c0_78], %87 {strides = array<i32>} : memref<1x1x8x128xf32, #tpu.memory_space<vmem>>, vector<1x1x8x128xf32>,
    } else {
    }
    return
  }
  func.func @transform_0(%arg0: i32, %arg1: i32, %arg2: i32) -> (i32, i32, i32, i32) {
    %c0_i32 = arith.constant 0 : i32
    %c0_i32_0 = arith.constant 0 : i32
    return %arg0, %arg1, %c0_i32, %arg2 : i32, i32, i32, i32
  }
  func.func @transform_1(%arg0: i32, %arg1: i32, %arg2: i32) -> (i32, i32, i32, i32) {
    %c0_i32 = arith.constant 0 : i32
    %c0_i32_0 = arith.constant 0 : i32
    return %arg0, %arg1, %c0_i32, %arg2 : i32, i32, i32, i32
  }
  func.func @transform_2(%arg0: i32, %arg1: i32, %arg2: i32) -> (i32, i32, i32, i32) {
    %c0_i32 = arith.constant 0 : i32
    %c0_i32_0 = arith.constant 0 : i32
    return %arg0, %arg1, %c0_i32, %arg2 : i32, i32, i32, i32
  }
  func.func @transform_3(%arg0: i32, %arg1: i32, %arg2: i32) -> (i32, i32, i32, i32) {
    %c0_i32 = arith.constant 0 : i32
    %c0_i32_0 = arith.constant 0 : i32
    %c0_i32_1 = arith.constant 0 : i32
    %c0_i32_2 = arith.constant 0 : i32
    return %c0_i32, %c0_i32_0, %arg2, %c0_i32_1 : i32, i32, i32, i32
  }
  func.func @transform_4(%arg0: i32, %arg1: i32, %arg2: i32) -> (i32, i32, i32, i32) {
    %c0_i32 = arith.constant 0 : i32
    %c0_i32_0 = arith.constant 0 : i32
    %c0_i32_1 = arith.constant 0 : i32
    return %arg0, %arg1, %c0_i32, %c0_i32_0 : i32, i32, i32, i32
  }
  func.func @transform_5(%arg0: i32, %arg1: i32, %arg2: i32) -> (i32, i32, i32, i32) {
    %c0_i32 = arith.constant 0 : i32
    %c0_i32_0 = arith.constant 0 : i32
    %c0_i32_1 = arith.constant 0 : i32
    return %arg0, %arg1, %c0_i32, %c0_i32_0 : i32, i32, i32, i32
  }
  func.func @transform_6(%arg0: i32, %arg1: i32, %arg2: i32) -> (i32, i32, i32, i32) {
    %c0_i32 = arith.constant 0 : i32
    %c0_i32_0 = arith.constant 0 : i32
    %c0_i32_1 = arith.constant 0 : i32
    return %arg0, %arg1, %c0_i32, %c0_i32_0 : i32, i32, i32, i32
  }
}

module attributes {stable_mosaic.version = 11 : i64} {
  func.func @_tconv_kernel(%arg0: i32, %arg1: i32, %arg2: i32, %arg3: memref<1x8x16x128xf32, #tpu.memory_space<vmem>>, %arg4: memref<1x128x256xbf16, #tpu.memory_space<vmem>>, %arg5: memref<1x256xf32, #tpu.memory_space<vmem>>, %arg6: memref<8x1x16x256xf32, #tpu.memory_space<vmem>>) attributes {dimension_semantics = [#tpu.dimension_semantics<parallel>, #tpu.dimension_semantics<parallel>, #tpu.dimension_semantics<arbitrary>], iteration_bounds = array<i64: 2, 2, 2>, scalar_prefetch = 0 : i64, scratch_operands = 0 : i64, tpu.core_type = #tpu.core_type<tc>, window_params = [{transform_indices = @transform_0, window_bounds = array<i64: 1, 8, 16, 128>}, {transform_indices = @transform_1, window_bounds = array<i64: 1, 128, 256>}, {pipeline_mode = #tpu.pipeline_mode<synchronous>, transform_indices = @transform_2, window_bounds = array<i64: 1, 256>}, {transform_indices = @transform_3, window_bounds = array<i64: 8, 1, 16, 256>}]} {
    %c0 = arith.constant 0 : index
    %c0_0 = arith.constant 0 : index
    %c0_1 = arith.constant 0 : index
    %c0_2 = arith.constant 0 : index
    %0 = vector.load %arg3[%c0, %c0_0, %c0_1, %c0_2] : memref<1x8x16x128xf32, #tpu.memory_space<vmem>>, vector<1x8x16x128xf32>
    %1 = vector.shape_cast %0 : vector<1x8x16x128xf32> to vector<128x128xf32>
    %2 = arith.truncf %1 : vector<128x128xf32> to vector<128x128xbf16>
    %c0_3 = arith.constant 0 : index
    %c0_4 = arith.constant 0 : index
    %c0_5 = arith.constant 0 : index
    %3 = vector.load %arg4[%c0_3, %c0_4, %c0_5] : memref<1x128x256xbf16, #tpu.memory_space<vmem>>, vector<1x128x256xbf16>
    %4 = vector.shape_cast %3 : vector<1x128x256xbf16> to vector<128x256xbf16>
    %cst = arith.constant dense<0.000000e+00> : vector<128x256xf32>
    %5 = tpu.matmul %2, %4, %cst {dimension_numbers = #tpu.dot_dimension_numbers<[1], [0], [0], [1], [0, 0, 1, 1], [], []>} : vector<128x128xbf16>, vector<128x256xbf16>, vector<128x256xf32> -> vector<128x256xf32>
    %c0_6 = arith.constant 0 : index
    %c0_7 = arith.constant 0 : index
    %6 = vector.load %arg5[%c0_6, %c0_7] : memref<1x256xf32, #tpu.memory_space<vmem>>, vector<1x256xf32>
    %7 = vector.broadcast %6 : vector<1x256xf32> to vector<128x256xf32>
    %8 = arith.addf %5, %7 : vector<128x256xf32>
    %9 = vector.shape_cast %8 : vector<128x256xf32> to vector<8x1x16x256xf32>
    %c0_8 = arith.constant 0 : index
    %c0_9 = arith.constant 0 : index
    %c0_10 = arith.constant 0 : index
    %c0_11 = arith.constant 0 : index
    %10 = vector.load %arg6[%c0_8, %c0_9, %c0_10, %c0_11] : memref<8x1x16x256xf32, #tpu.memory_space<vmem>>, vector<8x1x16x256xf32>
    tpu.vector_store %arg6[%c0_8, %c0_9, %c0_10, %c0_11], %9 {strides = array<i32>} : memref<8x1x16x256xf32, #tpu.memory_space<vmem>>, vector<8x1x16x256xf32>,
    return
  }
  func.func @transform_0(%arg0: i32, %arg1: i32, %arg2: i32) -> (i32, i32, i32, i32) {
    %c0_i32 = arith.constant 0 : i32
    %c0_i32_0 = arith.constant 0 : i32
    %c0_i32_1 = arith.constant 0 : i32
    return %arg0, %arg1, %c0_i32, %c0_i32_0 : i32, i32, i32, i32
  }
  func.func @transform_1(%arg0: i32, %arg1: i32, %arg2: i32) -> (i32, i32, i32) {
    %c0_i32 = arith.constant 0 : i32
    %c0_i32_0 = arith.constant 0 : i32
    %c0_i32_1 = arith.constant 0 : i32
    return %arg2, %c0_i32, %c0_i32_0 : i32, i32, i32
  }
  func.func @transform_2(%arg0: i32, %arg1: i32, %arg2: i32) -> (i32, i32) {
    %c0_i32 = arith.constant 0 : i32
    %c0_i32_0 = arith.constant 0 : i32
    %c0_i32_1 = arith.constant 0 : i32
    return %c0_i32, %c0_i32_0 : i32, i32
  }
  func.func @transform_3(%arg0: i32, %arg1: i32, %arg2: i32) -> (i32, i32, i32, i32) {
    %c2_i32 = arith.constant 2 : i32
    %0 = arith.muli %arg0, %c2_i32 : i32
    %1 = arith.addi %0, %arg1 : i32
    %c0_i32 = arith.constant 0 : i32
    %c0_i32_0 = arith.constant 0 : i32
    %c0_i32_1 = arith.constant 0 : i32
    return %1, %arg2, %c0_i32, %c0_i32_0 : i32, i32, i32, i32
  }
}

</mosaic_0001>

<llo_original>
// kernel: fcn_decode_forward.6
$region0: #{fcn_decode_forward.6}
  #allocation0 [shape = 'u32[]', space=smem, size = 0x4, offset = 0x4, fixed_abs, tag = 'smem constant byte address 0x4 - core index']
  #allocation1 [shape = 'u32[144,128]{1,0:T(1,128)}', space=vmem, size = 0x12000, scoped, tag = 'internal scratch']
  %s0 = inlined_call_operand.vmem [shape: f32[512,128], index: 0, kind: input, shape index: {}]
  %s1 = inlined_call_operand.vmem [shape: f32[1,128], index: 1, kind: input, shape index: {}]
  %s2 = inlined_call_operand.vmem [shape: f32[1,128], index: 2, kind: input, shape index: {}]
  %s3 = inlined_call_operand.vmem [shape: f32[512,128], index: 3, kind: output, shape index: {}]
  %s4 = sld [smem:[#allocation0]]
  $region45: #{fcn_decode_forward.6} parent=0
    _
  %s6 = ssub.s32 1, %s4
  %s7 = scalar_select 0, %s6, %s4
  loop: start=0, step=1, limit=4
  $region2: #{fcn_decode_forward.6} parent=0 // loop_pre_header
    _
  $region3: #{fcn_decode_forward.6} parent=0 // loop_header
    %s9 = sphi 0, %s13
    %p10 = scmp.ge.s32.totalorder %s9, 4
    %s19 = sphi 0, %s21
    %s22 = sphi 0, %s19
    %s23 = sphi 0, %s22
    %s39 = sphi 0, %s23
    %s43 = sphi 0, %s43
    %s45 = sphi 0, %s43
    %s46 = sphi 0, %s45
    %s60 = sphi 0, %s46
    %s64 = sphi 0, %s64
    %s66 = sphi 0, %s64
    %s67 = sphi 0, %s66
    %s81 = sphi 0, %s67
    %s87 = sphi 0, %s89
    %s90 = sphi 0, %s87
    %s91 = sphi 0, %s90
    %s107 = sphi 0, %s91
  $region4: #{fcn_decode_forward.6} parent=0 // loop_header_branch
    %12 = sbr.rel (%p10) target = $region8
  $region5: #{fcn_decode_forward.6} parent=0 // loop_body
    %s14 = ssub.s32 %s9, 1
    %s15 = ssub.s32 %s9, 2
    %s16 = sadd.s32 %s9, 1
    %s17 = ssub.s32 %s9, %s16
    %p18 = scmp.eq.s32.totalorder %s17, 0
    %s20 = sadd.s32 %s19, 1
    %s21 = scalar_select %p18, %s19, %s20
    %p24 = pneg %p18
    %p25 = scmp.eq.s32.totalorder %s9, 1
    %p26 = por %p24, %p25
    %p27 = scmp.ne.s32.totalorder %s19, %s22
    %p28 = scmp.eq.s32.totalorder %s9, 0
    %p29 = por %p27, %p28
    %p30 = scmp.ne.s32.totalorder %s19, %s22
    %p31 = scmp.eq.s32.totalorder %s14, 1
    %p32 = por %p30, %p31
    %p33 = scmp.ne.s32.totalorder %s22, %s23
    %p34 = scmp.eq.s32.totalorder %s14, 0
    %p35 = por %p33, %p34
    %p36 = scmp.ne.s32.totalorder %s22, %s23
    %p37 = scmp.eq.s32.totalorder %s15, 1
    %p38 = por %p36, %p37
    %p40 = scmp.ne.s32.totalorder %s23, %s39
    %p41 = scmp.eq.s32.totalorder %s15, 0
    %p42 = por %p40, %p41
    %s44 = sadd.s32 %s43, 1
    %p47 = scmp.eq.s32.totalorder %s9, 1
    %p48 = scmp.ne.s32.totalorder %s43, %s45
    %p49 = scmp.eq.s32.totalorder %s9, 0
    %p50 = por %p48, %p49
    %p51 = scmp.ne.s32.totalorder %s43, %s45
    %p52 = scmp.eq.s32.totalorder %s14, 1
    %p53 = por %p51, %p52
    %p54 = scmp.ne.s32.totalorder %s45, %s46
    %p55 = scmp.eq.s32.totalorder %s14, 0
    %p56 = por %p54, %p55
    %p57 = scmp.ne.s32.totalorder %s45, %s46
    %p58 = scmp.eq.s32.totalorder %s15, 1
    %p59 = por %p57, %p58
    %p61 = scmp.ne.s32.totalorder %s46, %s60
    %p62 = scmp.eq.s32.totalorder %s15, 0
    %p63 = por %p61, %p62
    %s65 = sadd.s32 %s64, 1
    %p68 = scmp.eq.s32.totalorder %s9, 1
    %p69 = scmp.ne.s32.totalorder %s64, %s66
    %p70 = scmp.eq.s32.totalorder %s9, 0
    %p71 = por %p69, %p70
    %p72 = scmp.ne.s32.totalorder %s64, %s66
    %p73 = scmp.eq.s32.totalorder %s14, 1
    %p74 = por %p72, %p73
    %p75 = scmp.ne.s32.totalorder %s66, %s67
    %p76 = scmp.eq.s32.totalorder %s14, 0
    %p77 = por %p75, %p76
    %p78 = scmp.ne.s32.totalorder %s66, %s67
    %p79 = scmp.eq.s32.totalorder %s15, 1
    %p80 = por %p78, %p79
    %p82 = scmp.ne.s32.totalorder %s67, %s81
    %p83 = scmp.eq.s32.totalorder %s15, 0
    %p84 = por %p82, %p83
    %s85 = ssub.s32 %s9, %s16
    %p86 = scmp.eq.s32.totalorder %s85, 0
    %s88 = sadd.s32 %s87, 1
    %s89 = scalar_select %p86, %s87, %s88
    %p92 = pneg %p86
    %p93 = scmp.eq.s32.totalorder %s9, 1
    %p94 = por %p92, %p93
    %p95 = scmp.ne.s32.totalorder %s87, %s90
    %p96 = scmp.eq.s32.totalorder %s9, 0
    %p97 = por %p95, %p96
    %p98 = scmp.ne.s32.totalorder %s87, %s90
    %p99 = scmp.eq.s32.totalorder %s14, 1
    %p100 = por %p98, %p99
    %p101 = scmp.ne.s32.totalorder %s90, %s91
    %p102 = scmp.eq.s32.totalorder %s14, 0
    %p103 = por %p101, %p102
    %p104 = scmp.ne.s32.totalorder %s90, %s91
    %p105 = scmp.eq.s32.totalorder %s15, 1
    %p106 = por %p104, %p105
    %p108 = scmp.ne.s32.totalorder %s91, %s107
    %p109 = scmp.eq.s32.totalorder %s15, 0
    %p110 = por %p108, %p109
    %p111 = scmp.le.s32.totalorder 1, %s9
    %p112 = scmp.lt.s32.totalorder %s9, 3
    %p113 = pnand %p111, %p112
    %p114 = pneg %p113
    // Predicated region
    $region9: #{fcn_decode_forward.6} parent=5 // pred_check
      _
    $region10: #{fcn_decode_forward.6} parent=5 // pred_check_branch
      %116 = sbr.rel (%p113) target = $region12
    $region11: #{fcn_decode_forward.6} parent=5 // pred_region
      %s117 = ssub.s32 %s9, 1
      // Predicated region
      $region13: #{fcn_decode_forward.6} parent=11 // pred_check
        %p118 = pneg %p56
      $region14: #{fcn_decode_forward.6} parent=11 // pred_check_branch
        %120 = sbr.rel (%p118) target = $region16
      $region15: #{fcn_decode_forward.6} parent=11 // pred_region
        _
      $region16: #{fcn_decode_forward.6} parent=11 // pred_fallthru
        _
      // Predicated region
      $region17: #{fcn_decode_forward.6} parent=11 // pred_check
        %p121 = pneg %p77
      $region18: #{fcn_decode_forward.6} parent=11 // pred_check_branch
        %123 = sbr.rel (%p121) target = $region20
      $region19: #{fcn_decode_forward.6} parent=11 // pred_region
        _
      $region20: #{fcn_decode_forward.6} parent=11 // pred_fallthru
        _
    $region12: #{fcn_decode_forward.6} parent=5 // pred_fallthru
      _
    %p124 = scmp.lt.s32.totalorder %s9, 2
    // Predicated region
    $region21: #{fcn_decode_forward.6} parent=5 // pred_check
      %p125 = pneg %p124
    $region22: #{fcn_decode_forward.6} parent=5 // pred_check_branch
      %127 = sbr.rel (%p125) target = $region24
    $region23: #{fcn_decode_forward.6} parent=5 // pred_region
      // Predicated region
      $region25: #{fcn_decode_forward.6} parent=23 // pred_check
        %p128 = pneg %p29
      $region26: #{fcn_decode_forward.6} parent=23 // pred_check_branch
        %130 = sbr.rel (%p128) target = $region28
      $region27: #{fcn_decode_forward.6} parent=23 // pred_region
        %s131 = smul.u32 32, %s9
        %p132 = scmp.lt.s32.totalorder %s131, 63
        %s133 = scalar_select %p132, %s131, 63
        %s134 = smul.addr %s133, 8
        %s135 = scalar_lea.vmem %s0, %s134
        %s136 = smul.u32 32, %s9
      $region28: #{fcn_decode_forward.6} parent=23 // pred_fallthru
        _
    $region24: #{fcn_decode_forward.6} parent=5 // pred_fallthru
      _
    %p137 = scmp.le.s32.totalorder 1, %s9
    %p138 = scmp.lt.s32.totalorder %s9, 3
    %p139 = pnand %p137, %p138
    %p140 = pneg %p139
    // Predicated region
    $region29: #{fcn_decode_forward.6} parent=5 // pred_check
      _
    $region30: #{fcn_decode_forward.6} parent=5 // pred_check_branch
      %142 = sbr.rel (%p139) target = $region32
    $region31: #{fcn_decode_forward.6} parent=5 // pred_region
      %s143 = ssub.s32 %s9, 1
      %s144 = smul.u32 32, %s14
      %p145 = scmp.lt.s32.totalorder %s144, 63
      %s146 = scalar_select %p145, %s144, 63
      %s147 = smul.addr %s146, 8
      %s148 = scalar_lea.vmem %s0, %s147
      %p149 = pneg %p35
      %p150 = pneg %p32
      %p151 = pneg %p56
      %p152 = pneg %p53
      %p153 = pneg %p77
      %p154 = pneg %p74
      %p155 = pneg %p103
      %p156 = pneg %p100
      %s157 = smul.u32 32, %s14
      %p158 = scmp.lt.s32.totalorder %s157, 63
      %s159 = scalar_select %p158, %s157, 63
      %s160 = smul.addr %s159, 8
      %s161 = scalar_lea.vmem %s3, %s160
      %s162 = smul.u32 32, %s14
      %p163 = scmp.lt.s32.totalorder %s162, 63
      %s164 = scalar_select %p163, %s162, 63
      %s165 = smul.addr %s164, 8
      %s166 = scalar_lea.vmem %s0, %s165
      %s167 = smul.u32 32, %s14
      %s168 = smul.u32 32, %s14
      %p169 = scmp.lt.s32.totalorder %s168, 63
      %s170 = scalar_select %p169, %s168, 63
      %s171 = smul.addr %s170, 8
      %s172 = scalar_lea.vmem %s3, %s171
      %s173 = smul.u32 32, %s14
      %v174 = vld [vmem:[%s166] sm:$0xff]
      %v175 = vld [vmem:[%s166 + $0x8] sm:$0xff]
      %v176 = vld [vmem:[%s166 + $0x10] sm:$0xff]
      %v177 = vld [vmem:[%s166 + $0x18] sm:$0xff]
      %v178 = vld [vmem:[%s166 + $0x20] sm:$0xff]
      %v179 = vld [vmem:[%s166 + $0x28] sm:$0xff]
      %v180 = vld [vmem:[%s166 + $0x30] sm:$0xff]
      %v181 = vld [vmem:[%s166 + $0x38] sm:$0xff]
      %v182 = vld [vmem:[%s166 + $0x40] sm:$0xff]
      %v183 = vld [vmem:[%s166 + $0x48] sm:$0xff]
      %v184 = vld [vmem:[%s166 + $0x50] sm:$0xff]
      %v185 = vld [vmem:[%s166 + $0x58] sm:$0xff]
      %v186 = vld [vmem:[%s166 + $0x60] sm:$0xff]
      %v187 = vld [vmem:[%s166 + $0x68] sm:$0xff]
      %v188 = vld [vmem:[%s166 + $0x70] sm:$0xff]
      %v189 = vld [vmem:[%s166 + $0x78] sm:$0xff]
      %v190 = vld [vmem:[%s166 + $0x80] sm:$0xff]
      %v191 = vld [vmem:[%s166 + $0x88] sm:$0xff]
      %v192 = vld [vmem:[%s166 + $0x90] sm:$0xff]
      %v193 = vld [vmem:[%s166 + $0x98] sm:$0xff]
      %v194 = vld [vmem:[%s166 + $0xa0] sm:$0xff]
      %v195 = vld [vmem:[%s166 + $0xa8] sm:$0xff]
      %v196 = vld [vmem:[%s166 + $0xb0] sm:$0xff]
      %v197 = vld [vmem:[%s166 + $0xb8] sm:$0xff]
      %v198 = vld [vmem:[%s166 + $0xc0] sm:$0xff]
      %v199 = vld [vmem:[%s166 + $0xc8] sm:$0xff]
      %v200 = vld [vmem:[%s166 + $0xd0] sm:$0xff]
      %v201 = vld [vmem:[%s166 + $0xd8] sm:$0xff]
      %v202 = vld [vmem:[%s166 + $0xe0] sm:$0xff]
      %v203 = vld [vmem:[%s166 + $0xe8] sm:$0xff]
      %v204 = vld [vmem:[%s166 + $0xf0] sm:$0xff]
      %v205 = vld [vmem:[%s166 + $0xf8] sm:$0xff]
      %v206 = vld [vmem:[%s1] sm:$0x1]
      %v208 = vlaneseq
      %v209 = vshrl.u32 %v208, 7
      %v210 = vsub.s32 0, %v209
      %v211 = vrot.slane %v206, %v210
      %v213 = vmul.f32 %v174, %v211
      %v214 = vmul.f32 %v175, %v211
      %v215 = vmul.f32 %v176, %v211
      %v216 = vmul.f32 %v177, %v211
      %v217 = vmul.f32 %v178, %v211
      %v218 = vmul.f32 %v179, %v211
      %v219 = vmul.f32 %v180, %v211
      %v220 = vmul.f32 %v181, %v211
      %v221 = vmul.f32 %v182, %v211
      %v222 = vmul.f32 %v183, %v211
      %v223 = vmul.f32 %v184, %v211
      %v224 = vmul.f32 %v185, %v211
      %v225 = vmul.f32 %v186, %v211
      %v226 = vmul.f32 %v187, %v211
      %v227 = vmul.f32 %v188, %v211
      %v228 = vmul.f32 %v189, %v211
      %v229 = vmul.f32 %v190, %v211
      %v230 = vmul.f32 %v191, %v211
      %v231 = vmul.f32 %v192, %v211
      %v232 = vmul.f32 %v193, %v211
      %v233 = vmul.f32 %v194, %v211
      %v234 = vmul.f32 %v195, %v211
      %v235 = vmul.f32 %v196, %v211
      %v236 = vmul.f32 %v197, %v211
      %v237 = vmul.f32 %v198, %v211
      %v238 = vmul.f32 %v199, %v211
      %v239 = vmul.f32 %v200, %v211
      %v240 = vmul.f32 %v201, %v211
      %v241 = vmul.f32 %v202, %v211
      %v242 = vmul.f32 %v203, %v211
      %v243 = vmul.f32 %v204, %v211
      %v244 = vmul.f32 %v205, %v211
      %v245 = vld [vmem:[%s2] sm:$0x1]
      %v247 = vlaneseq
      %v248 = vshrl.u32 %v247, 7
      %v249 = vsub.s32 0, %v248
      %v250 = vrot.slane %v245, %v249
      %v252 = vadd.f32 %v213, %v250
      %v253 = vadd.f32 %v214, %v250
      %v254 = vadd.f32 %v215, %v250
      %v255 = vadd.f32 %v216, %v250
      %v256 = vadd.f32 %v217, %v250
      %v257 = vadd.f32 %v218, %v250
      %v258 = vadd.f32 %v219, %v250
      %v259 = vadd.f32 %v220, %v250
      %v260 = vadd.f32 %v221, %v250
      %v261 = vadd.f32 %v222, %v250
      %v262 = vadd.f32 %v223, %v250
      %v263 = vadd.f32 %v224, %v250
      %v264 = vadd.f32 %v225, %v250
      %v265 = vadd.f32 %v226, %v250
      %v266 = vadd.f32 %v227, %v250
      %v267 = vadd.f32 %v228, %v250
      %v268 = vadd.f32 %v229, %v250
      %v269 = vadd.f32 %v230, %v250
      %v270 = vadd.f32 %v231, %v250
      %v271 = vadd.f32 %v232, %v250
      %v272 = vadd.f32 %v233, %v250
      %v273 = vadd.f32 %v234, %v250
      %v274 = vadd.f32 %v235, %v250
      %v275 = vadd.f32 %v236, %v250
      %v276 = vadd.f32 %v237, %v250
      %v277 = vadd.f32 %v238, %v250
      %v278 = vadd.f32 %v239, %v250
      %v279 = vadd.f32 %v240, %v250
      %v280 = vadd.f32 %v241, %v250
      %v281 = vadd.f32 %v242, %v250
      %v282 = vadd.f32 %v243, %v250
      %v283 = vadd.f32 %v244, %v250
      %v284 = vmax.f32 %v252, 0.0
      %v285 = vmax.f32 %v253, 0.0
      %v286 = vmax.f32 %v254, 0.0
      %v287 = vmax.f32 %v255, 0.0
      %v288 = vmax.f32 %v256, 0.0
      %v289 = vmax.f32 %v257, 0.0
      %v290 = vmax.f32 %v258, 0.0
      %v291 = vmax.f32 %v259, 0.0
      %v292 = vmax.f32 %v260, 0.0
      %v293 = vmax.f32 %v261, 0.0
      %v294 = vmax.f32 %v262, 0.0
      %v295 = vmax.f32 %v263, 0.0
      %v296 = vmax.f32 %v264, 0.0
      %v297 = vmax.f32 %v265, 0.0
      %v298 = vmax.f32 %v266, 0.0
      %v299 = vmax.f32 %v267, 0.0
      %v300 = vmax.f32 %v268, 0.0
      %v301 = vmax.f32 %v269, 0.0
      %v302 = vmax.f32 %v270, 0.0
      %v303 = vmax.f32 %v271, 0.0
      %v304 = vmax.f32 %v272, 0.0
      %v305 = vmax.f32 %v273, 0.0
      %v306 = vmax.f32 %v274, 0.0
      %v307 = vmax.f32 %v275, 0.0
      %v308 = vmax.f32 %v276, 0.0
      %v309 = vmax.f32 %v277, 0.0
      %v310 = vmax.f32 %v278, 0.0
      %v311 = vmax.f32 %v279, 0.0
      %v312 = vmax.f32 %v280, 0.0
      %v313 = vmax.f32 %v281, 0.0
      %v314 = vmax.f32 %v282, 0.0
      %v315 = vmax.f32 %v283, 0.0
      %316 = vst [vmem:[%s172] sm:$0xff] %v284
      %317 = vst [vmem:[%s172 + $0x8] sm:$0xff] %v285
      %318 = vst [vmem:[%s172 + $0x10] sm:$0xff] %v286
      %319 = vst [vmem:[%s172 + $0x18] sm:$0xff] %v287
      %320 = vst [vmem:[%s172 + $0x20] sm:$0xff] %v288
      %321 = vst [vmem:[%s172 + $0x28] sm:$0xff] %v289
      %322 = vst [vmem:[%s172 + $0x30] sm:$0xff] %v290
      %323 = vst [vmem:[%s172 + $0x38] sm:$0xff] %v291
      %324 = vst [vmem:[%s172 + $0x40] sm:$0xff] %v292
      %325 = vst [vmem:[%s172 + $0x48] sm:$0xff] %v293
      %326 = vst [vmem:[%s172 + $0x50] sm:$0xff] %v294
      %327 = vst [vmem:[%s172 + $0x58] sm:$0xff] %v295
      %328 = vst [vmem:[%s172 + $0x60] sm:$0xff] %v296
      %329 = vst [vmem:[%s172 + $0x68] sm:$0xff] %v297
      %330 = vst [vmem:[%s172 + $0x70] sm:$0xff] %v298
      %331 = vst [vmem:[%s172 + $0x78] sm:$0xff] %v299
      %332 = vst [vmem:[%s172 + $0x80] sm:$0xff] %v300
      %333 = vst [vmem:[%s172 + $0x88] sm:$0xff] %v301
      %334 = vst [vmem:[%s172 + $0x90] sm:$0xff] %v302
      %335 = vst [vmem:[%s172 + $0x98] sm:$0xff] %v303
      %336 = vst [vmem:[%s172 + $0xa0] sm:$0xff] %v304
      %337 = vst [vmem:[%s172 + $0xa8] sm:$0xff] %v305
      %338 = vst [vmem:[%s172 + $0xb0] sm:$0xff] %v306
      %339 = vst [vmem:[%s172 + $0xb8] sm:$0xff] %v307
      %340 = vst [vmem:[%s172 + $0xc0] sm:$0xff] %v308
      %341 = vst [vmem:[%s172 + $0xc8] sm:$0xff] %v309
      %342 = vst [vmem:[%s172 + $0xd0] sm:$0xff] %v310
      %343 = vst [vmem:[%s172 + $0xd8] sm:$0xff] %v311
      %344 = vst [vmem:[%s172 + $0xe0] sm:$0xff] %v312
      %345 = vst [vmem:[%s172 + $0xe8] sm:$0xff] %v313
      %346 = vst [vmem:[%s172 + $0xf0] sm:$0xff] %v314
      %347 = vst [vmem:[%s172 + $0xf8] sm:$0xff] %v315
      %s348 = smul.u32 32, %s14
      %p349 = scmp.lt.s32.totalorder %s348, 63
      %s350 = scalar_select %p349, %s348, 63
      %s351 = smul.addr %s350, 8
      %s352 = scalar_lea.vmem %s3, %s351
      // Predicated region
      $region33: #{fcn_decode_forward.6} parent=31 // pred_check
        %p353 = pneg %p100
      $region34: #{fcn_decode_forward.6} parent=31 // pred_check_branch
        %355 = sbr.rel (%p353) target = $region36
      $region35: #{fcn_decode_forward.6} parent=31 // pred_region
        %s356 = smul.u32 32, %s14
      $region36: #{fcn_decode_forward.6} parent=31 // pred_fallthru
        _
    $region32: #{fcn_decode_forward.6} parent=5 // pred_fallthru
      _
    %p357 = scmp.le.s32.totalorder 2, %s9
    // Predicated region
    $region37: #{fcn_decode_forward.6} parent=5 // pred_check
      %p358 = pneg %p357
    $region38: #{fcn_decode_forward.6} parent=5 // pred_check_branch
      %360 = sbr.rel (%p358) target = $region40
    $region39: #{fcn_decode_forward.6} parent=5 // pred_region
      %s361 = ssub.s32 %s9, 2
      // Predicated region
      $region41: #{fcn_decode_forward.6} parent=39 // pred_check
        %p362 = pneg %p106
      $region42: #{fcn_decode_forward.6} parent=39 // pred_check_branch
        %364 = sbr.rel (%p362) target = $region44
      $region43: #{fcn_decode_forward.6} parent=39 // pred_region
        %s365 = smul.u32 32, %s15
        %p366 = scmp.lt.s32.totalorder %s365, 63
        %s367 = scalar_select %p366, %s365, 63
        %s368 = smul.addr %s367, 8
        %s369 = scalar_lea.vmem %s3, %s368
      $region44: #{fcn_decode_forward.6} parent=39 // pred_fallthru
        _
    $region40: #{fcn_decode_forward.6} parent=5 // pred_fallthru
      _
  $region6: #{fcn_decode_forward.6} parent=0 // loop_footer
    %s13 = sadd.s32 1, %s9
  $region7: #{fcn_decode_forward.6} parent=0 // loop_footer_branch
    %8 = sbr.rel target = $region3
  $region8: #{fcn_decode_forward.6} parent=0 // loop_exit
    _

// kernel: fcn_decode_forward.5
$region0: #{fcn_decode_forward.5}
  #allocation0 [shape = 'u32[]', space=smem, size = 0x4, offset = 0x4, fixed_abs, tag = 'smem constant byte address 0x4 - core index']
  #allocation1 [shape = 'u32[144,128]{1,0:T(1,128)}', space=vmem, size = 0x12000, scoped, tag = 'internal scratch']
  %s0 = inlined_call_operand.vmem [shape: bf16[2,16,18,512], index: 0, kind: input, shape index: {}]
  %s1 = inlined_call_operand.vmem [shape: bf16[2,16,18,512], index: 1, kind: input, shape index: {}]
  %s2 = inlined_call_operand.vmem [shape: bf16[2,16,18,512], index: 2, kind: input, shape index: {}]
  %s3 = inlined_call_operand.vmem [shape: bf16[3,3,512,128], index: 3, kind: input, shape index: {}]
  %s4 = inlined_call_operand.vmem [shape: f32[2,16,16,128], index: 4, kind: output, shape index: {0}]
  %s5 = inlined_call_operand.vmem [shape: f32[2,2,8,128], index: 5, kind: output, shape index: {1}]
  %s6 = inlined_call_operand.vmem [shape: f32[2,2,8,128], index: 6, kind: output, shape index: {2}]
  %7 = xla_tuple %s4, %s5, %s6
  %s8 = sld [smem:[#allocation0]]
  $region237: #{fcn_decode_forward.5} parent=0
    _
  %s10 = ssub.s32 1, %s8
  %s11 = scalar_select 0, %s10, %s8
  $region1: #{fcn_decode_forward.5} parent=0
    #allocation2 [shape = 'u8[98304]{0}', space=vmem, size = 0x18000, scoped, tag = 'input window, operand 0']
    #allocation3 [shape = 'u8[98304]{0}', space=vmem, size = 0x18000, scoped, tag = 'input window, operand 1']
    #allocation4 [shape = 'u8[98304]{0}', space=vmem, size = 0x18000, scoped, tag = 'input window, operand 2']
    #allocation5 [shape = 'u8[589824]{0}', space=vmem, size = 0x90000, scoped, tag = 'input window, operand 3']
    loop: start=0, step=1, limit=18
    $region2: #{fcn_decode_forward.5} parent=1 // loop_pre_header
      _
    $region3: #{fcn_decode_forward.5} parent=1 // loop_header
      %s13 = sphi 0, %s17
      %p14 = scmp.ge.s32.totalorder %s13, 18
      %s20 = sphi 0, %s39
      %s21 = sphi 0, %s35
      %s22 = sphi 0, %s31
      %s23 = sphi 0, %s20
      %s24 = sphi 0, %s21
      %s25 = sphi 0, %s22
      %s26 = sphi 0, %s23
      %s27 = sphi 0, %s24
      %s28 = sphi 0, %s25
      %s46 = sphi 0, %s48
      %s49 = sphi 0, %s46
      %s50 = sphi 0, %s49
      %s66 = sphi 0, %s50
      %s76 = sphi 0, %s78
      %s79 = sphi 0, %s76
      %s80 = sphi 0, %s79
      %s96 = sphi 0, %s80
      %s106 = sphi 0, %s108
      %s109 = sphi 0, %s106
      %s110 = sphi 0, %s109
      %s126 = sphi 0, %s110
      %s132 = sphi 0, %s134
      %s135 = sphi 0, %s132
      %s136 = sphi 0, %s135
      %s152 = sphi 0, %s136
      %s160 = sphi 0, %s162
      %s163 = sphi 0, %s160
      %s164 = sphi 0, %s163
      %s180 = sphi 0, %s164
      %s188 = sphi 0, %s190
      %s191 = sphi 0, %s188
      %s192 = sphi 0, %s191
      %s208 = sphi 0, %s192
      %s216 = sphi 0, %s218
      %s219 = sphi 0, %s216
      %s220 = sphi 0, %s219
      %s236 = sphi 0, %s220
    $region4: #{fcn_decode_forward.5} parent=1 // loop_header_branch
      %16 = sbr.rel (%p14) target = $region8
    $region5: #{fcn_decode_forward.5} parent=1 // loop_body
      %s18 = ssub.s32 %s13, 1
      %s19 = ssub.s32 %s13, 2
      %s29 = sadd.s32 1, %s22
      %p30 = scmp.ge.s32.totalorder %s29, 4
      %s31 = scalar_select %p30, 0, %s29
      %s32 = sadd.s32 1, %s21
      %s33 = scalar_select %p30, %s32, %s21
      %p34 = scmp.ge.s32.totalorder %s33, 2
      %s35 = scalar_select %p34, 0, %s33
      %s36 = sadd.s32 1, %s20
      %s37 = scalar_select %p34, %s36, %s20
      %p38 = scmp.ge.s32.totalorder %s37, 2
      %s39 = scalar_select %p38, 0, %s37
      %s40 = ssub.s32 %s20, %s39
      %s41 = ssub.s32 %s21, %s35
      %s42 = sor.u32 %s40, %s41
      %s43 = ssub.s32 %s22, %s31
      %s44 = sor.u32 %s42, %s43
      %p45 = scmp.eq.s32.totalorder %s44, 0
      %s47 = sadd.s32 %s46, 1
      %s48 = scalar_select %p45, %s46, %s47
      %p51 = pneg %p45
      %p52 = scmp.eq.s32.totalorder %s13, 15
      %p53 = por %p51, %p52
      %p54 = scmp.ne.s32.totalorder %s46, %s49
      %p55 = scmp.eq.s32.totalorder %s13, 0
      %p56 = por %p54, %p55
      %p57 = scmp.ne.s32.totalorder %s46, %s49
      %p58 = scmp.eq.s32.totalorder %s18, 15
      %p59 = por %p57, %p58
      %p60 = scmp.ne.s32.totalorder %s49, %s50
      %p61 = scmp.eq.s32.totalorder %s18, 0
      %p62 = por %p60, %p61
      %p63 = scmp.ne.s32.totalorder %s49, %s50
      %p64 = scmp.eq.s32.totalorder %s19, 15
      %p65 = por %p63, %p64
      %p67 = scmp.ne.s32.totalorder %s50, %s66
      %p68 = scmp.eq.s32.totalorder %s19, 0
      %p69 = por %p67, %p68
      %s70 = ssub.s32 %s20, %s39
      %s71 = ssub.s32 %s21, %s35
      %s72 = sor.u32 %s70, %s71
      %s73 = ssub.s32 %s22, %s31
      %s74 = sor.u32 %s72, %s73
      %p75 = scmp.eq.s32.totalorder %s74, 0
      %s77 = sadd.s32 %s76, 1
      %s78 = scalar_select %p75, %s76, %s77
      %p81 = pneg %p75
      %p82 = scmp.eq.s32.totalorder %s13, 15
      %p83 = por %p81, %p82
      %p84 = scmp.ne.s32.totalorder %s76, %s79
      %p85 = scmp.eq.s32.totalorder %s13, 0
      %p86 = por %p84, %p85
      %p87 = scmp.ne.s32.totalorder %s76, %s79
      %p88 = scmp.eq.s32.totalorder %s18, 15
      %p89 = por %p87, %p88
      %p90 = scmp.ne.s32.totalorder %s79, %s80
      %p91 = scmp.eq.s32.totalorder %s18, 0
      %p92 = por %p90, %p91
      %p93 = scmp.ne.s32.totalorder %s79, %s80
      %p94 = scmp.eq.s32.totalorder %s19, 15
      %p95 = por %p93, %p94
      %p97 = scmp.ne.s32.totalorder %s80, %s96
      %p98 = scmp.eq.s32.totalorder %s19, 0
      %p99 = por %p97, %p98
      %s100 = ssub.s32 %s20, %s39
      %s101 = ssub.s32 %s21, %s35
      %s102 = sor.u32 %s100, %s101
      %s103 = ssub.s32 %s22, %s31
      %s104 = sor.u32 %s102, %s103
      %p105 = scmp.eq.s32.totalorder %s104, 0
      %s107 = sadd.s32 %s106, 1
      %s108 = scalar_select %p105, %s106, %s107
      %p111 = pneg %p105
      %p112 = scmp.eq.s32.totalorder %s13, 15
      %p113 = por %p111, %p112
      %p114 = scmp.ne.s32.totalorder %s106, %s109
      %p115 = scmp.eq.s32.totalorder %s13, 0
      %p116 = por %p114, %p115
      %p117 = scmp.ne.s32.totalorder %s106, %s109
      %p118 = scmp.eq.s32.totalorder %s18, 15
      %p119 = por %p117, %p118
      %p120 = scmp.ne.s32.totalorder %s109, %s110
      %p121 = scmp.eq.s32.totalorder %s18, 0
      %p122 = por %p120, %p121
      %p123 = scmp.ne.s32.totalorder %s109, %s110
      %p124 = scmp.eq.s32.totalorder %s19, 15
      %p125 = por %p123, %p124
      %p127 = scmp.ne.s32.totalorder %s110, %s126
      %p128 = scmp.eq.s32.totalorder %s19, 0
      %p129 = por %p127, %p128
      %s130 = ssub.s32 %s22, %s31
      %p131 = scmp.eq.s32.totalorder %s130, 0
      %s133 = sadd.s32 %s132, 1
      %s134 = scalar_select %p131, %s132, %s133
      %p137 = pneg %p131
      %p138 = scmp.eq.s32.totalorder %s13, 15
      %p139 = por %p137, %p138
      %p140 = scmp.ne.s32.totalorder %s132, %s135
      %p141 = scmp.eq.s32.totalorder %s13, 0
      %p142 = por %p140, %p141
      %p143 = scmp.ne.s32.totalorder %s132, %s135
      %p144 = scmp.eq.s32.totalorder %s18, 15
      %p145 = por %p143, %p144
      %p146 = scmp.ne.s32.totalorder %s135, %s136
      %p147 = scmp.eq.s32.totalorder %s18, 0
      %p148 = por %p146, %p147
      %p149 = scmp.ne.s32.totalorder %s135, %s136
      %p150 = scmp.eq.s32.totalorder %s19, 15
      %p151 = por %p149, %p150
      %p153 = scmp.ne.s32.totalorder %s136, %s152
      %p154 = scmp.eq.s32.totalorder %s19, 0
      %p155 = por %p153, %p154
      %s156 = ssub.s32 %s20, %s39
      %s157 = ssub.s32 %s21, %s35
      %s158 = sor.u32 %s156, %s157
      %p159 = scmp.eq.s32.totalorder %s158, 0
      %s161 = sadd.s32 %s160, 1
      %s162 = scalar_select %p159, %s160, %s161
      %p165 = pneg %p159
      %p166 = scmp.eq.s32.totalorder %s13, 15
      %p167 = por %p165, %p166
      %p168 = scmp.ne.s32.totalorder %s160, %s163
      %p169 = scmp.eq.s32.totalorder %s13, 0
      %p170 = por %p168, %p169
      %p171 = scmp.ne.s32.totalorder %s160, %s163
      %p172 = scmp.eq.s32.totalorder %s18, 15
      %p173 = por %p171, %p172
      %p174 = scmp.ne.s32.totalorder %s163, %s164
      %p175 = scmp.eq.s32.totalorder %s18, 0
      %p176 = por %p174, %p175
      %p177 = scmp.ne.s32.totalorder %s163, %s164
      %p178 = scmp.eq.s32.totalorder %s19, 15
      %p179 = por %p177, %p178
      %p181 = scmp.ne.s32.totalorder %s164, %s180
      %p182 = scmp.eq.s32.totalorder %s19, 0
      %p183 = por %p181, %p182
      %s184 = ssub.s32 %s20, %s39
      %s185 = ssub.s32 %s21, %s35
      %s186 = sor.u32 %s184, %s185
      %p187 = scmp.eq.s32.totalorder %s186, 0
      %s189 = sadd.s32 %s188, 1
      %s190 = scalar_select %p187, %s188, %s189
      %p193 = pneg %p187
      %p194 = scmp.eq.s32.totalorder %s13, 15
      %p195 = por %p193, %p194
      %p196 = scmp.ne.s32.totalorder %s188, %s191
      %p197 = scmp.eq.s32.totalorder %s13, 0
      %p198 = por %p196, %p197
      %p199 = scmp.ne.s32.totalorder %s188, %s191
      %p200 = scmp.eq.s32.totalorder %s18, 15
      %p201 = por %p199, %p200
      %p202 = scmp.ne.s32.totalorder %s191, %s192
      %p203 = scmp.eq.s32.totalorder %s18, 0
      %p204 = por %p202, %p203
      %p205 = scmp.ne.s32.totalorder %s191, %s192
      %p206 = scmp.eq.s32.totalorder %s19, 15
      %p207 = por %p205, %p206
      %p209 = scmp.ne.s32.totalorder %s192, %s208
      %p210 = scmp.eq.s32.totalorder %s19, 0
      %p211 = por %p209, %p210
      %s212 = ssub.s32 %s20, %s39
      %s213 = ssub.s32 %s21, %s35
      %s214 = sor.u32 %s212, %s213
      %p215 = scmp.eq.s32.totalorder %s214, 0
      %s217 = sadd.s32 %s216, 1
      %s218 = scalar_select %p215, %s216, %s217
      %p221 = pneg %p215
      %p222 = scmp.eq.s32.totalorder %s13, 15
      %p223 = por %p221, %p222
      %p224 = scmp.ne.s32.totalorder %s216, %s219
      %p225 = scmp.eq.s32.totalorder %s13, 0
      %p226 = por %p224, %p225
      %p227 = scmp.ne.s32.totalorder %s216, %s219
      %p228 = scmp.eq.s32.totalorder %s18, 15
      %p229 = por %p227, %p228
      %p230 = scmp.ne.s32.totalorder %s219, %s220
      %p231 = scmp.eq.s32.totalorder %s18, 0
      %p232 = por %p230, %p231
      %p233 = scmp.ne.s32.totalorder %s219, %s220
      %p234 = scmp.eq.s32.totalorder %s19, 15
      %p235 = por %p233, %p234
      %p237 = scmp.ne.s32.totalorder %s220, %s236
      %p238 = scmp.eq.s32.totalorder %s19, 0
      %p239 = por %p237, %p238
      %p240 = scmp.le.s32.totalorder 1, %s13
      %p241 = scmp.lt.s32.totalorder %s13, 17
      %p242 = pnand %p240, %p241
      %p243 = pneg %p242
      // Predicated region
      $region9: #{fcn_decode_forward.5} parent=5 // pred_check
        _
      $region10: #{fcn_decode_forward.5} parent=5 // pred_check_branch
        %245 = sbr.rel (%p242) target = $region12
      $region11: #{fcn_decode_forward.5} parent=5 // pred_region
        %s246 = ssub.s32 %s13, 1
      $region12: #{fcn_decode_forward.5} parent=5 // pred_fallthru
        _
      %p247 = scmp.lt.s32.totalorder %s13, 16
      // Predicated region
      $region13: #{fcn_decode_forward.5} parent=5 // pred_check
        %p248 = pneg %p247
      $region14: #{fcn_decode_forward.5} parent=5 // pred_check_branch
        %250 = sbr.rel (%p248) target = $region16
      $region15: #{fcn_decode_forward.5} parent=5 // pred_region
        // Predicated region
        $region17: #{fcn_decode_forward.5} parent=15 // pred_check
          %p251 = pneg %p56
        $region18: #{fcn_decode_forward.5} parent=15 // pred_check_branch
          %253 = sbr.rel (%p251) target = $region20
        $region19: #{fcn_decode_forward.5} parent=15 // pred_region
          %s254 = sand.u32 %s46, 1
          %s255 = sand.u32 %s46, 1
          %s256 = smul.addr %s255, 96
          %s257 = scalar_lea.vmem [#allocation2], %s256
          %s258 = smul.u32 8, %s21
          %s259 = smul.addr %s258, 12
          %s260 = sadd.s32 %s22, %s259
          %s261 = smul.addr %s20, 192
          %s262 = sadd.s32 %s260, %s261
          %s263 = smul.addr %s262, 4
          %s264 = scalar_lea.vmem %s0, %s263
          // Predicated region
          $region21: #{fcn_decode_forward.5} parent=19 // pred_check
            _
          $region22: #{fcn_decode_forward.5} parent=19 // pred_check_branch
            %266 = sbr.rel (0) target = $region24
          $region23: #{fcn_decode_forward.5} parent=19 // pred_region
            // Predicated region
            $region25: #{fcn_decode_forward.5} parent=23 // pred_check
              _
            $region26: #{fcn_decode_forward.5} parent=23 // pred_check_branch
              %268 = sbr.rel target = $region28
            $region27: #{fcn_decode_forward.5} parent=23 // pred_region
              // Predicated region
              $region40: #{fcn_decode_forward.5} parent=27 // pred_check
                _
              $region41: #{fcn_decode_forward.5} parent=27 // pred_check_branch
                %329 = sbr.rel (0) target = $region43
              $region42: #{fcn_decode_forward.5} parent=27 // pred_region
                loop: start=0, step=1, limit=1
                $region44: #{fcn_decode_forward.5} parent=42 // loop_pre_header
                  _
                $region45: #{fcn_decode_forward.5} parent=42 // loop_header
                  %s331 = sphi 0, %s335
                  %p332 = scmp.ge.s32.totalorder %s331, 1
                  %s336 = sphi %s264, %s264
                  %s337 = sphi %s257, %s257
                $region46: #{fcn_decode_forward.5} parent=42 // loop_header_branch
                  %334 = sbr.rel (%p332) target = $region50
                $region47: #{fcn_decode_forward.5} parent=42 // loop_body
                  _
                $region48: #{fcn_decode_forward.5} parent=42 // loop_footer
                  %s335 = sadd.s32 1, %s331
                $region49: #{fcn_decode_forward.5} parent=42 // loop_footer_branch
                  %330 = sbr.rel target = $region45
                $region50: #{fcn_decode_forward.5} parent=42 // loop_exit
                  _
                loop: start=0, step=1, limit=1
                $region51: #{fcn_decode_forward.5} parent=42 // loop_pre_header
                  _
                $region52: #{fcn_decode_forward.5} parent=42 // loop_header
                  %s340 = sphi 0, %s344
                  %p341 = scmp.ge.s32.totalorder %s340, 1
                  %s345 = sphi %s264, %s264
                  %s346 = sphi %s257, %s257
                $region53: #{fcn_decode_forward.5} parent=42 // loop_header_branch
                  %343 = sbr.rel (%p341) target = $region57
                $region54: #{fcn_decode_forward.5} parent=42 // loop_body
                  %v347 = vld [vmem:[%s345] sm:$0xf]
                  %348 = vst [vmem:[%s346] sm:$0xf] %v347
                  %v349 = vld [vmem:[%s345 + $0x10] sm:$0xf]
                  %350 = vst [vmem:[%s346 + $0x4] sm:$0xf] %v349
                  %v351 = vld [vmem:[%s345 + $0x20] sm:$0xf]
                  %352 = vst [vmem:[%s346 + $0x8] sm:$0xf] %v351
                  %v353 = vld [vmem:[%s345 + $0x30] sm:$0xf]
                  %354 = vst [vmem:[%s346 + $0xc] sm:$0xf] %v353
                  %v355 = vld [vmem:[%s345 + $0x40] sm:$0xf]
                  %356 = vst [vmem:[%s346 + $0x10] sm:$0xf] %v355
                  %v357 = vld [vmem:[%s345 + $0x50] sm:$0xf]
                  %358 = vst [vmem:[%s346 + $0x14] sm:$0xf] %v357
                  %v359 = vld [vmem:[%s345 + $0x60] sm:$0xf]
                  %360 = vst [vmem:[%s346 + $0x18] sm:$0xf] %v359
                  %v361 = vld [vmem:[%s345 + $0x70] sm:$0xf]
                  %362 = vst [vmem:[%s346 + $0x1c] sm:$0xf] %v361
                  %v363 = vld [vmem:[%s345 + $0x80] sm:$0xf]
                  %364 = vst [vmem:[%s346 + $0x20] sm:$0xf] %v363
                  %v365 = vld [vmem:[%s345 + $0x90] sm:$0xf]
                  %366 = vst [vmem:[%s346 + $0x24] sm:$0xf] %v365
                  %v367 = vld [vmem:[%s345 + $0xa0] sm:$0xf]
                  %368 = vst [vmem:[%s346 + $0x28] sm:$0xf] %v367
                  %v369 = vld [vmem:[%s345 + $0xb0] sm:$0xf]
                  %370 = vst [vmem:[%s346 + $0x2c] sm:$0xf] %v369
                  %v371 = vld [vmem:[%s345 + $0xc0] sm:$0xf]
                  %372 = vst [vmem:[%s346 + $0x30] sm:$0xf] %v371
                  %v373 = vld [vmem:[%s345 + $0xd0] sm:$0xf]
                  %374 = vst [vmem:[%s346 + $0x34] sm:$0xf] %v373
                  %v375 = vld [vmem:[%s345 + $0xe0] sm:$0xf]
                  %376 = vst [vmem:[%s346 + $0x38] sm:$0xf] %v375
                  %v377 = vld [vmem:[%s345 + $0xf0] sm:$0xf]
                  %378 = vst [vmem:[%s346 + $0x3c] sm:$0xf] %v377
                  %v379 = vld [vmem:[%s345 + $0x100] sm:$0xf]
                  %380 = vst [vmem:[%s346 + $0x40] sm:$0xf] %v379
                  %v381 = vld [vmem:[%s345 + $0x110] sm:$0xf]
                  %382 = vst [vmem:[%s346 + $0x44] sm:$0xf] %v381
                  %v383 = vld [vmem:[%s345 + $0x120] sm:$0xf]
                  %384 = vst [vmem:[%s346 + $0x48] sm:$0xf] %v383
                  %v385 = vld [vmem:[%s345 + $0x130] sm:$0xf]
                  %386 = vst [vmem:[%s346 + $0x4c] sm:$0xf] %v385
                  %v387 = vld [vmem:[%s345 + $0x140] sm:$0xf]
                  %388 = vst [vmem:[%s346 + $0x50] sm:$0xf] %v387
                  %v389 = vld [vmem:[%s345 + $0x150] sm:$0xf]
                  %390 = vst [vmem:[%s346 + $0x54] sm:$0xf] %v389
                  %v391 = vld [vmem:[%s345 + $0x160] sm:$0xf]
                  %392 = vst [vmem:[%s346 + $0x58] sm:$0xf] %v391
                  %v393 = vld [vmem:[%s345 + $0x170] sm:$0xf]
                  %394 = vst [vmem:[%s346 + $0x5c] sm:$0xf] %v393
                $region55: #{fcn_decode_forward.5} parent=42 // loop_footer
                  %s344 = sadd.s32 1, %s340
                $region56: #{fcn_decode_forward.5} parent=42 // loop_footer_branch
                  %339 = sbr.rel target = $region52
                $region57: #{fcn_decode_forward.5} parent=42 // loop_exit
                  _
              $region43: #{fcn_decode_forward.5} parent=27 // pred_fallthru
                _
            $region28: #{fcn_decode_forward.5} parent=23 // pred_fallthru
              _
            // Predicated region
            $region29: #{fcn_decode_forward.5} parent=23 // pred_check
              _
            $region30: #{fcn_decode_forward.5} parent=23 // pred_check_branch
              %270 = sbr.rel (0) target = $region32
            $region31: #{fcn_decode_forward.5} parent=23 // pred_region
              loop: start=0, step=1, limit=1
              $region33: #{fcn_decode_forward.5} parent=31 // loop_pre_header
                _
              $region34: #{fcn_decode_forward.5} parent=31 // loop_header
                %s273 = sphi 0, %s277
                %p274 = scmp.ge.s32.totalorder %s273, 1
                %s278 = sphi %s264, %s264
                %s279 = sphi %s257, %s257
              $region35: #{fcn_decode_forward.5} parent=31 // loop_header_branch
                %276 = sbr.rel (%p274) target = $region39
              $region36: #{fcn_decode_forward.5} parent=31 // loop_body
                %v280 = vld [vmem:[%s278] sm:$0xf]
                %281 = vst [vmem:[%s279] sm:$0xf] %v280
                %v282 = vld [vmem:[%s278 + $0x10] sm:$0xf]
                %283 = vst [vmem:[%s279 + $0x4] sm:$0xf] %v282
                %v284 = vld [vmem:[%s278 + $0x20] sm:$0xf]
                %285 = vst [vmem:[%s279 + $0x8] sm:$0xf] %v284
                %v286 = vld [vmem:[%s278 + $0x30] sm:$0xf]
                %287 = vst [vmem:[%s279 + $0xc] sm:$0xf] %v286
                %v288 = vld [vmem:[%s278 + $0x40] sm:$0xf]
                %289 = vst [vmem:[%s279 + $0x10] sm:$0xf] %v288
                %v290 = vld [vmem:[%s278 + $0x50] sm:$0xf]
                %291 = vst [vmem:[%s279 + $0x14] sm:$0xf] %v290
                %v292 = vld [vmem:[%s278 + $0x60] sm:$0xf]
                %293 = vst [vmem:[%s279 + $0x18] sm:$0xf] %v292
                %v294 = vld [vmem:[%s278 + $0x70] sm:$0xf]
                %295 = vst [vmem:[%s279 + $0x1c] sm:$0xf] %v294
                %v296 = vld [vmem:[%s278 + $0x80] sm:$0xf]
                %297 = vst [vmem:[%s279 + $0x20] sm:$0xf] %v296
                %v298 = vld [vmem:[%s278 + $0x90] sm:$0xf]
                %299 = vst [vmem:[%s279 + $0x24] sm:$0xf] %v298
                %v300 = vld [vmem:[%s278 + $0xa0] sm:$0xf]
                %301 = vst [vmem:[%s279 + $0x28] sm:$0xf] %v300
                %v302 = vld [vmem:[%s278 + $0xb0] sm:$0xf]
                %303 = vst [vmem:[%s279 + $0x2c] sm:$0xf] %v302
                %v304 = vld [vmem:[%s278 + $0xc0] sm:$0xf]
                %305 = vst [vmem:[%s279 + $0x30] sm:$0xf] %v304
                %v306 = vld [vmem:[%s278 + $0xd0] sm:$0xf]
                %307 = vst [vmem:[%s279 + $0x34] sm:$0xf] %v306
                %v308 = vld [vmem:[%s278 + $0xe0] sm:$0xf]
                %309 = vst [vmem:[%s279 + $0x38] sm:$0xf] %v308
                %v310 = vld [vmem:[%s278 + $0xf0] sm:$0xf]
                %311 = vst [vmem:[%s279 + $0x3c] sm:$0xf] %v310
                %v312 = vld [vmem:[%s278 + $0x100] sm:$0xf]
                %313 = vst [vmem:[%s279 + $0x40] sm:$0xf] %v312
                %v314 = vld [vmem:[%s278 + $0x110] sm:$0xf]
                %315 = vst [vmem:[%s279 + $0x44] sm:$0xf] %v314
                %v316 = vld [vmem:[%s278 + $0x120] sm:$0xf]
                %317 = vst [vmem:[%s279 + $0x48] sm:$0xf] %v316
                %v318 = vld [vmem:[%s278 + $0x130] sm:$0xf]
                %319 = vst [vmem:[%s279 + $0x4c] sm:$0xf] %v318
                %v320 = vld [vmem:[%s278 + $0x140] sm:$0xf]
                %321 = vst [vmem:[%s279 + $0x50] sm:$0xf] %v320
                %v322 = vld [vmem:[%s278 + $0x150] sm:$0xf]
                %323 = vst [vmem:[%s279 + $0x54] sm:$0xf] %v322
                %v324 = vld [vmem:[%s278 + $0x160] sm:$0xf]
                %325 = vst [vmem:[%s279 + $0x58] sm:$0xf] %v324
                %v326 = vld [vmem:[%s278 + $0x170] sm:$0xf]
                %327 = vst [vmem:[%s279 + $0x5c] sm:$0xf] %v326
              $region37: #{fcn_decode_forward.5} parent=31 // loop_footer
                %s277 = sadd.s32 1, %s273
              $region38: #{fcn_decode_forward.5} parent=31 // loop_footer_branch
                %272 = sbr.rel target = $region34
              $region39: #{fcn_decode_forward.5} parent=31 // loop_exit
                _
            $region32: #{fcn_decode_forward.5} parent=23 // pred_fallthru
              _
          $region24: #{fcn_decode_forward.5} parent=19 // pred_fallthru
            _
          %395 = vnop
        $region20: #{fcn_decode_forward.5} parent=15 // pred_fallthru
          _
        // Predicated region
        $region58: #{fcn_decode_forward.5} parent=15 // pred_check
          %p396 = pneg %p86
        $region59: #{fcn_decode_forward.5} parent=15 // pred_check_branch
          %398 = sbr.rel (%p396) target = $region61
        $region60: #{fcn_decode_forward.5} parent=15 // pred_region
          %s399 = sand.u32 %s76, 1
          %s400 = sand.u32 %s76, 1
          %s401 = smul.addr %s400, 96
          %s402 = scalar_lea.vmem [#allocation3], %s401
          %s403 = smul.u32 8, %s21
          %s404 = smul.addr %s403, 12
          %s405 = sadd.s32 %s22, %s404
          %s406 = smul.addr %s20, 192
          %s407 = sadd.s32 %s405, %s406
          %s408 = smul.addr %s407, 4
          %s409 = scalar_lea.vmem %s1, %s408
          // Predicated region
          $region62: #{fcn_decode_forward.5} parent=60 // pred_check
            _
          $region63: #{fcn_decode_forward.5} parent=60 // pred_check_branch
            %411 = sbr.rel (0) target = $region65
          $region64: #{fcn_decode_forward.5} parent=60 // pred_region
            // Predicated region
            $region66: #{fcn_decode_forward.5} parent=64 // pred_check
              _
            $region67: #{fcn_decode_forward.5} parent=64 // pred_check_branch
              %413 = sbr.rel target = $region69
            $region68: #{fcn_decode_forward.5} parent=64 // pred_region
              // Predicated region
              $region81: #{fcn_decode_forward.5} parent=68 // pred_check
                _
              $region82: #{fcn_decode_forward.5} parent=68 // pred_check_branch
                %474 = sbr.rel (0) target = $region84
              $region83: #{fcn_decode_forward.5} parent=68 // pred_region
                loop: start=0, step=1, limit=1
                $region85: #{fcn_decode_forward.5} parent=83 // loop_pre_header
                  _
                $region86: #{fcn_decode_forward.5} parent=83 // loop_header
                  %s476 = sphi 0, %s480
                  %p477 = scmp.ge.s32.totalorder %s476, 1
                  %s481 = sphi %s409, %s409
                  %s482 = sphi %s402, %s402
                $region87: #{fcn_decode_forward.5} parent=83 // loop_header_branch
                  %479 = sbr.rel (%p477) target = $region91
                $region88: #{fcn_decode_forward.5} parent=83 // loop_body
                  _
                $region89: #{fcn_decode_forward.5} parent=83 // loop_footer
                  %s480 = sadd.s32 1, %s476
                $region90: #{fcn_decode_forward.5} parent=83 // loop_footer_branch
                  %475 = sbr.rel target = $region86
                $region91: #{fcn_decode_forward.5} parent=83 // loop_exit
                  _
                loop: start=0, step=1, limit=1
                $region92: #{fcn_decode_forward.5} parent=83 // loop_pre_header
                  _
                $region93: #{fcn_decode_forward.5} parent=83 // loop_header
                  %s485 = sphi 0, %s489
                  %p486 = scmp.ge.s32.totalorder %s485, 1
                  %s490 = sphi %s409, %s409
                  %s491 = sphi %s402, %s402
                $region94: #{fcn_decode_forward.5} parent=83 // loop_header_branch
                  %488 = sbr.rel (%p486) target = $region98
                $region95: #{fcn_decode_forward.5} parent=83 // loop_body
                  %v492 = vld [vmem:[%s490] sm:$0xf]
                  %493 = vst [vmem:[%s491] sm:$0xf] %v492
                  %v494 = vld [vmem:[%s490 + $0x10] sm:$0xf]
                  %495 = vst [vmem:[%s491 + $0x4] sm:$0xf] %v494
                  %v496 = vld [vmem:[%s490 + $0x20] sm:$0xf]
                  %497 = vst [vmem:[%s491 + $0x8] sm:$0xf] %v496
                  %v498 = vld [vmem:[%s490 + $0x30] sm:$0xf]
                  %499 = vst [vmem:[%s491 + $0xc] sm:$0xf] %v498
                  %v500 = vld [vmem:[%s490 + $0x40] sm:$0xf]
                  %501 = vst [vmem:[%s491 + $0x10] sm:$0xf] %v500
                  %v502 = vld [vmem:[%s490 + $0x50] sm:$0xf]
                  %503 = vst [vmem:[%s491 + $0x14] sm:$0xf] %v502
                  %v504 = vld [vmem:[%s490 + $0x60] sm:$0xf]
                  %505 = vst [vmem:[%s491 + $0x18] sm:$0xf] %v504
                  %v506 = vld [vmem:[%s490 + $0x70] sm:$0xf]
                  %507 = vst [vmem:[%s491 + $0x1c] sm:$0xf] %v506
                  %v508 = vld [vmem:[%s490 + $0x80] sm:$0xf]
                  %509 = vst [vmem:[%s491 + $0x20] sm:$0xf] %v508
                  %v510 = vld [vmem:[%s490 + $0x90] sm:$0xf]
                  %511 = vst [vmem:[%s491 + $0x24] sm:$0xf] %v510
                  %v512 = vld [vmem:[%s490 + $0xa0] sm:$0xf]
                  %513 = vst [vmem:[%s491 + $0x28] sm:$0xf] %v512
                  %v514 = vld [vmem:[%s490 + $0xb0] sm:$0xf]
                  %515 = vst [vmem:[%s491 + $0x2c] sm:$0xf] %v514
                  %v516 = vld [vmem:[%s490 + $0xc0] sm:$0xf]
                  %517 = vst [vmem:[%s491 + $0x30] sm:$0xf] %v516
                  %v518 = vld [vmem:[%s490 + $0xd0] sm:$0xf]
                  %519 = vst [vmem:[%s491 + $0x34] sm:$0xf] %v518
                  %v520 = vld [vmem:[%s490 + $0xe0] sm:$0xf]
                  %521 = vst [vmem:[%s491 + $0x38] sm:$0xf] %v520
                  %v522 = vld [vmem:[%s490 + $0xf0] sm:$0xf]
                  %523 = vst [vmem:[%s491 + $0x3c] sm:$0xf] %v522
                  %v524 = vld [vmem:[%s490 + $0x100] sm:$0xf]
                  %525 = vst [vmem:[%s491 + $0x40] sm:$0xf] %v524
                  %v526 = vld [vmem:[%s490 + $0x110] sm:$0xf]
                  %527 = vst [vmem:[%s491 + $0x44] sm:$0xf] %v526
                  %v528 = vld [vmem:[%s490 + $0x120] sm:$0xf]
                  %529 = vst [vmem:[%s491 + $0x48] sm:$0xf] %v528
                  %v530 = vld [vmem:[%s490 + $0x130] sm:$0xf]
                  %531 = vst [vmem:[%s491 + $0x4c] sm:$0xf] %v530
                  %v532 = vld [vmem:[%s490 + $0x140] sm:$0xf]
                  %533 = vst [vmem:[%s491 + $0x50] sm:$0xf] %v532
                  %v534 = vld [vmem:[%s490 + $0x150] sm:$0xf]
                  %535 = vst [vmem:[%s491 + $0x54] sm:$0xf] %v534
                  %v536 = vld [vmem:[%s490 + $0x160] sm:$0xf]
                  %537 = vst [vmem:[%s491 + $0x58] sm:$0xf] %v536
                  %v538 = vld [vmem:[%s490 + $0x170] sm:$0xf]
                  %539 = vst [vmem:[%s491 + $0x5c] sm:$0xf] %v538
                $region96: #{fcn_decode_forward.5} parent=83 // loop_footer
                  %s489 = sadd.s32 1, %s485
                $region97: #{fcn_decode_forward.5} parent=83 // loop_footer_branch
                  %484 = sbr.rel target = $region93
                $region98: #{fcn_decode_forward.5} parent=83 // loop_exit
                  _
              $region84: #{fcn_decode_forward.5} parent=68 // pred_fallthru
                _
            $region69: #{fcn_decode_forward.5} parent=64 // pred_fallthru
              _
            // Predicated region
            $region70: #{fcn_decode_forward.5} parent=64 // pred_check
              _
            $region71: #{fcn_decode_forward.5} parent=64 // pred_check_branch
              %415 = sbr.rel (0) target = $region73
            $region72: #{fcn_decode_forward.5} parent=64 // pred_region
              loop: start=0, step=1, limit=1
              $region74: #{fcn_decode_forward.5} parent=72 // loop_pre_header
                _
              $region75: #{fcn_decode_forward.5} parent=72 // loop_header
                %s418 = sphi 0, %s422
                %p419 = scmp.ge.s32.totalorder %s418, 1
                %s423 = sphi %s409, %s409
                %s424 = sphi %s402, %s402
              $region76: #{fcn_decode_forward.5} parent=72 // loop_header_branch
                %421 = sbr.rel (%p419) target = $region80
              $region77: #{fcn_decode_forward.5} parent=72 // loop_body
                %v425 = vld [vmem:[%s423] sm:$0xf]
                %426 = vst [vmem:[%s424] sm:$0xf] %v425
                %v427 = vld [vmem:[%s423 + $0x10] sm:$0xf]
                %428 = vst [vmem:[%s424 + $0x4] sm:$0xf] %v427
                %v429 = vld [vmem:[%s423 + $0x20] sm:$0xf]
                %430 = vst [vmem:[%s424 + $0x8] sm:$0xf] %v429
                %v431 = vld [vmem:[%s423 + $0x30] sm:$0xf]
                %432 = vst [vmem:[%s424 + $0xc] sm:$0xf] %v431
                %v433 = vld [vmem:[%s423 + $0x40] sm:$0xf]
                %434 = vst [vmem:[%s424 + $0x10] sm:$0xf] %v433
                %v435 = vld [vmem:[%s423 + $0x50] sm:$0xf]
                %436 = vst [vmem:[%s424 + $0x14] sm:$0xf] %v435
                %v437 = vld [vmem:[%s423 + $0x60] sm:$0xf]
                %438 = vst [vmem:[%s424 + $0x18] sm:$0xf] %v437
                %v439 = vld [vmem:[%s423 + $0x70] sm:$0xf]
                %440 = vst [vmem:[%s424 + $0x1c] sm:$0xf] %v439
                %v441 = vld [vmem:[%s423 + $0x80] sm:$0xf]
                %442 = vst [vmem:[%s424 + $0x20] sm:$0xf] %v441
                %v443 = vld [vmem:[%s423 + $0x90] sm:$0xf]
                %444 = vst [vmem:[%s424 + $0x24] sm:$0xf] %v443
                %v445 = vld [vmem:[%s423 + $0xa0] sm:$0xf]
                %446 = vst [vmem:[%s424 + $0x28] sm:$0xf] %v445
                %v447 = vld [vmem:[%s423 + $0xb0] sm:$0xf]
                %448 = vst [vmem:[%s424 + $0x2c] sm:$0xf] %v447
                %v449 = vld [vmem:[%s423 + $0xc0] sm:$0xf]
                %450 = vst [vmem:[%s424 + $0x30] sm:$0xf] %v449
                %v451 = vld [vmem:[%s423 + $0xd0] sm:$0xf]
                %452 = vst [vmem:[%s424 + $0x34] sm:$0xf] %v451
                %v453 = vld [vmem:[%s423 + $0xe0] sm:$0xf]
                %454 = vst [vmem:[%s424 + $0x38] sm:$0xf] %v453
                %v455 = vld [vmem:[%s423 + $0xf0] sm:$0xf]
                %456 = vst [vmem:[%s424 + $0x3c] sm:$0xf] %v455
                %v457 = vld [vmem:[%s423 + $0x100] sm:$0xf]
                %458 = vst [vmem:[%s424 + $0x40] sm:$0xf] %v457
                %v459 = vld [vmem:[%s423 + $0x110] sm:$0xf]
                %460 = vst [vmem:[%s424 + $0x44] sm:$0xf] %v459
                %v461 = vld [vmem:[%s423 + $0x120] sm:$0xf]
                %462 = vst [vmem:[%s424 + $0x48] sm:$0xf] %v461
                %v463 = vld [vmem:[%s423 + $0x130] sm:$0xf]
                %464 = vst [vmem:[%s424 + $0x4c] sm:$0xf] %v463
                %v465 = vld [vmem:[%s423 + $0x140] sm:$0xf]
                %466 = vst [vmem:[%s424 + $0x50] sm:$0xf] %v465
                %v467 = vld [vmem:[%s423 + $0x150] sm:$0xf]
                %468 = vst [vmem:[%s424 + $0x54] sm:$0xf] %v467
                %v469 = vld [vmem:[%s423 + $0x160] sm:$0xf]
                %470 = vst [vmem:[%s424 + $0x58] sm:$0xf] %v469
                %v471 = vld [vmem:[%s423 + $0x170] sm:$0xf]
                %472 = vst [vmem:[%s424 + $0x5c] sm:$0xf] %v471
              $region78: #{fcn_decode_forward.5} parent=72 // loop_footer
                %s422 = sadd.s32 1, %s418
              $region79: #{fcn_decode_forward.5} parent=72 // loop_footer_branch
                %417 = sbr.rel target = $region75
              $region80: #{fcn_decode_forward.5} parent=72 // loop_exit
                _
            $region73: #{fcn_decode_forward.5} parent=64 // pred_fallthru
              _
          $region65: #{fcn_decode_forward.5} parent=60 // pred_fallthru
            _
          %540 = vnop
        $region61: #{fcn_decode_forward.5} parent=15 // pred_fallthru
          _
        // Predicated region
        $region99: #{fcn_decode_forward.5} parent=15 // pred_check
          %p541 = pneg %p116
        $region100: #{fcn_decode_forward.5} parent=15 // pred_check_branch
          %543 = sbr.rel (%p541) target = $region102
        $region101: #{fcn_decode_forward.5} parent=15 // pred_region
          %s544 = sand.u32 %s106, 1
          %s545 = sand.u32 %s106, 1
          %s546 = smul.addr %s545, 96
          %s547 = scalar_lea.vmem [#allocation4], %s546
          %s548 = smul.u32 8, %s21
          %s549 = smul.addr %s548, 12
          %s550 = sadd.s32 %s22, %s549
          %s551 = smul.addr %s20, 192
          %s552 = sadd.s32 %s550, %s551
          %s553 = smul.addr %s552, 4
          %s554 = scalar_lea.vmem %s2, %s553
          // Predicated region
          $region103: #{fcn_decode_forward.5} parent=101 // pred_check
            _
          $region104: #{fcn_decode_forward.5} parent=101 // pred_check_branch
            %556 = sbr.rel (0) target = $region106
          $region105: #{fcn_decode_forward.5} parent=101 // pred_region
            // Predicated region
            $region107: #{fcn_decode_forward.5} parent=105 // pred_check
              _
            $region108: #{fcn_decode_forward.5} parent=105 // pred_check_branch
              %558 = sbr.rel target = $region110
            $region109: #{fcn_decode_forward.5} parent=105 // pred_region
              // Predicated region
              $region122: #{fcn_decode_forward.5} parent=109 // pred_check
                _
              $region123: #{fcn_decode_forward.5} parent=109 // pred_check_branch
                %619 = sbr.rel (0) target = $region125
              $region124: #{fcn_decode_forward.5} parent=109 // pred_region
                loop: start=0, step=1, limit=1
                $region126: #{fcn_decode_forward.5} parent=124 // loop_pre_header
                  _
                $region127: #{fcn_decode_forward.5} parent=124 // loop_header
                  %s621 = sphi 0, %s625
                  %p622 = scmp.ge.s32.totalorder %s621, 1
                  %s626 = sphi %s554, %s554
                  %s627 = sphi %s547, %s547
                $region128: #{fcn_decode_forward.5} parent=124 // loop_header_branch
                  %624 = sbr.rel (%p622) target = $region132
                $region129: #{fcn_decode_forward.5} parent=124 // loop_body
                  _
                $region130: #{fcn_decode_forward.5} parent=124 // loop_footer
                  %s625 = sadd.s32 1, %s621
                $region131: #{fcn_decode_forward.5} parent=124 // loop_footer_branch
                  %620 = sbr.rel target = $region127
                $region132: #{fcn_decode_forward.5} parent=124 // loop_exit
                  _
                loop: start=0, step=1, limit=1
                $region133: #{fcn_decode_forward.5} parent=124 // loop_pre_header
                  _
                $region134: #{fcn_decode_forward.5} parent=124 // loop_header
                  %s630 = sphi 0, %s634
                  %p631 = scmp.ge.s32.totalorder %s630, 1
                  %s635 = sphi %s554, %s554
                  %s636 = sphi %s547, %s547
                $region135: #{fcn_decode_forward.5} parent=124 // loop_header_branch
                  %633 = sbr.rel (%p631) target = $region139
                $region136: #{fcn_decode_forward.5} parent=124 // loop_body
                  %v637 = vld [vmem:[%s635] sm:$0xf]
                  %638 = vst [vmem:[%s636] sm:$0xf] %v637
                  %v639 = vld [vmem:[%s635 + $0x10] sm:$0xf]
                  %640 = vst [vmem:[%s636 + $0x4] sm:$0xf] %v639
                  %v641 = vld [vmem:[%s635 + $0x20] sm:$0xf]
                  %642 = vst [vmem:[%s636 + $0x8] sm:$0xf] %v641
                  %v643 = vld [vmem:[%s635 + $0x30] sm:$0xf]
                  %644 = vst [vmem:[%s636 + $0xc] sm:$0xf] %v643
                  %v645 = vld [vmem:[%s635 + $0x40] sm:$0xf]
                  %646 = vst [vmem:[%s636 + $0x10] sm:$0xf] %v645
                  %v647 = vld [vmem:[%s635 + $0x50] sm:$0xf]
                  %648 = vst [vmem:[%s636 + $0x14] sm:$0xf] %v647
                  %v649 = vld [vmem:[%s635 + $0x60] sm:$0xf]
                  %650 = vst [vmem:[%s636 + $0x18] sm:$0xf] %v649
                  %v651 = vld [vmem:[%s635 + $0x70] sm:$0xf]
                  %652 = vst [vmem:[%s636 + $0x1c] sm:$0xf] %v651
                  %v653 = vld [vmem:[%s635 + $0x80] sm:$0xf]
                  %654 = vst [vmem:[%s636 + $0x20] sm:$0xf] %v653
                  %v655 = vld [vmem:[%s635 + $0x90] sm:$0xf]
                  %656 = vst [vmem:[%s636 + $0x24] sm:$0xf] %v655
                  %v657 = vld [vmem:[%s635 + $0xa0] sm:$0xf]
                  %658 = vst [vmem:[%s636 + $0x28] sm:$0xf] %v657
                  %v659 = vld [vmem:[%s635 + $0xb0] sm:$0xf]
                  %660 = vst [vmem:[%s636 + $0x2c] sm:$0xf] %v659
                  %v661 = vld [vmem:[%s635 + $0xc0] sm:$0xf]
                  %662 = vst [vmem:[%s636 + $0x30] sm:$0xf] %v661
                  %v663 = vld [vmem:[%s635 + $0xd0] sm:$0xf]
                  %664 = vst [vmem:[%s636 + $0x34] sm:$0xf] %v663
                  %v665 = vld [vmem:[%s635 + $0xe0] sm:$0xf]
                  %666 = vst [vmem:[%s636 + $0x38] sm:$0xf] %v665
                  %v667 = vld [vmem:[%s635 + $0xf0] sm:$0xf]
                  %668 = vst [vmem:[%s636 + $0x3c] sm:$0xf] %v667
                  %v669 = vld [vmem:[%s635 + $0x100] sm:$0xf]
                  %670 = vst [vmem:[%s636 + $0x40] sm:$0xf] %v669
                  %v671 = vld [vmem:[%s635 + $0x110] sm:$0xf]
                  %672 = vst [vmem:[%s636 + $0x44] sm:$0xf] %v671
                  %v673 = vld [vmem:[%s635 + $0x120] sm:$0xf]
                  %674 = vst [vmem:[%s636 + $0x48] sm:$0xf] %v673
                  %v675 = vld [vmem:[%s635 + $0x130] sm:$0xf]
                  %676 = vst [vmem:[%s636 + $0x4c] sm:$0xf] %v675
                  %v677 = vld [vmem:[%s635 + $0x140] sm:$0xf]
                  %678 = vst [vmem:[%s636 + $0x50] sm:$0xf] %v677
                  %v679 = vld [vmem:[%s635 + $0x150] sm:$0xf]
                  %680 = vst [vmem:[%s636 + $0x54] sm:$0xf] %v679
                  %v681 = vld [vmem:[%s635 + $0x160] sm:$0xf]
                  %682 = vst [vmem:[%s636 + $0x58] sm:$0xf] %v681
                  %v683 = vld [vmem:[%s635 + $0x170] sm:$0xf]
                  %684 = vst [vmem:[%s636 + $0x5c] sm:$0xf] %v683
                $region137: #{fcn_decode_forward.5} parent=124 // loop_footer
                  %s634 = sadd.s32 1, %s630
                $region138: #{fcn_decode_forward.5} parent=124 // loop_footer_branch
                  %629 = sbr.rel target = $region134
                $region139: #{fcn_decode_forward.5} parent=124 // loop_exit
                  _
              $region125: #{fcn_decode_forward.5} parent=109 // pred_fallthru
                _
            $region110: #{fcn_decode_forward.5} parent=105 // pred_fallthru
              _
            // Predicated region
            $region111: #{fcn_decode_forward.5} parent=105 // pred_check
              _
            $region112: #{fcn_decode_forward.5} parent=105 // pred_check_branch
              %560 = sbr.rel (0) target = $region114
            $region113: #{fcn_decode_forward.5} parent=105 // pred_region
              loop: start=0, step=1, limit=1
              $region115: #{fcn_decode_forward.5} parent=113 // loop_pre_header
                _
              $region116: #{fcn_decode_forward.5} parent=113 // loop_header
                %s563 = sphi 0, %s567
                %p564 = scmp.ge.s32.totalorder %s563, 1
                %s568 = sphi %s554, %s554
                %s569 = sphi %s547, %s547
              $region117: #{fcn_decode_forward.5} parent=113 // loop_header_branch
                %566 = sbr.rel (%p564) target = $region121
              $region118: #{fcn_decode_forward.5} parent=113 // loop_body
                %v570 = vld [vmem:[%s568] sm:$0xf]
                %571 = vst [vmem:[%s569] sm:$0xf] %v570
                %v572 = vld [vmem:[%s568 + $0x10] sm:$0xf]
                %573 = vst [vmem:[%s569 + $0x4] sm:$0xf] %v572
                %v574 = vld [vmem:[%s568 + $0x20] sm:$0xf]
                %575 = vst [vmem:[%s569 + $0x8] sm:$0xf] %v574
                %v576 = vld [vmem:[%s568 + $0x30] sm:$0xf]
                %577 = vst [vmem:[%s569 + $0xc] sm:$0xf] %v576
                %v578 = vld [vmem:[%s568 + $0x40] sm:$0xf]
                %579 = vst [vmem:[%s569 + $0x10] sm:$0xf] %v578
                %v580 = vld [vmem:[%s568 + $0x50] sm:$0xf]
                %581 = vst [vmem:[%s569 + $0x14] sm:$0xf] %v580
                %v582 = vld [vmem:[%s568 + $0x60] sm:$0xf]
                %583 = vst [vmem:[%s569 + $0x18] sm:$0xf] %v582
                %v584 = vld [vmem:[%s568 + $0x70] sm:$0xf]
                %585 = vst [vmem:[%s569 + $0x1c] sm:$0xf] %v584
                %v586 = vld [vmem:[%s568 + $0x80] sm:$0xf]
                %587 = vst [vmem:[%s569 + $0x20] sm:$0xf] %v586
                %v588 = vld [vmem:[%s568 + $0x90] sm:$0xf]
                %589 = vst [vmem:[%s569 + $0x24] sm:$0xf] %v588
                %v590 = vld [vmem:[%s568 + $0xa0] sm:$0xf]
                %591 = vst [vmem:[%s569 + $0x28] sm:$0xf] %v590
                %v592 = vld [vmem:[%s568 + $0xb0] sm:$0xf]
                %593 = vst [vmem:[%s569 + $0x2c] sm:$0xf] %v592
                %v594 = vld [vmem:[%s568 + $0xc0] sm:$0xf]
                %595 = vst [vmem:[%s569 + $0x30] sm:$0xf] %v594
                %v596 = vld [vmem:[%s568 + $0xd0] sm:$0xf]
                %597 = vst [vmem:[%s569 + $0x34] sm:$0xf] %v596
                %v598 = vld [vmem:[%s568 + $0xe0] sm:$0xf]
                %599 = vst [vmem:[%s569 + $0x38] sm:$0xf] %v598
                %v600 = vld [vmem:[%s568 + $0xf0] sm:$0xf]
                %601 = vst [vmem:[%s569 + $0x3c] sm:$0xf] %v600
                %v602 = vld [vmem:[%s568 + $0x100] sm:$0xf]
                %603 = vst [vmem:[%s569 + $0x40] sm:$0xf] %v602
                %v604 = vld [vmem:[%s568 + $0x110] sm:$0xf]
                %605 = vst [vmem:[%s569 + $0x44] sm:$0xf] %v604
                %v606 = vld [vmem:[%s568 + $0x120] sm:$0xf]
                %607 = vst [vmem:[%s569 + $0x48] sm:$0xf] %v606
                %v608 = vld [vmem:[%s568 + $0x130] sm:$0xf]
                %609 = vst [vmem:[%s569 + $0x4c] sm:$0xf] %v608
                %v610 = vld [vmem:[%s568 + $0x140] sm:$0xf]
                %611 = vst [vmem:[%s569 + $0x50] sm:$0xf] %v610
                %v612 = vld [vmem:[%s568 + $0x150] sm:$0xf]
                %613 = vst [vmem:[%s569 + $0x54] sm:$0xf] %v612
                %v614 = vld [vmem:[%s568 + $0x160] sm:$0xf]
                %615 = vst [vmem:[%s569 + $0x58] sm:$0xf] %v614
                %v616 = vld [vmem:[%s568 + $0x170] sm:$0xf]
                %617 = vst [vmem:[%s569 + $0x5c] sm:$0xf] %v616
              $region119: #{fcn_decode_forward.5} parent=113 // loop_footer
                %s567 = sadd.s32 1, %s563
              $region120: #{fcn_decode_forward.5} parent=113 // loop_footer_branch
                %562 = sbr.rel target = $region116
              $region121: #{fcn_decode_forward.5} parent=113 // loop_exit
                _
            $region114: #{fcn_decode_forward.5} parent=105 // pred_fallthru
              _
          $region106: #{fcn_decode_forward.5} parent=101 // pred_fallthru
            _
          %685 = vnop
        $region102: #{fcn_decode_forward.5} parent=15 // pred_fallthru
          _
        // Predicated region
        $region140: #{fcn_decode_forward.5} parent=15 // pred_check
          %p686 = pneg %p142
        $region141: #{fcn_decode_forward.5} parent=15 // pred_check_branch
          %688 = sbr.rel (%p686) target = $region143
        $region142: #{fcn_decode_forward.5} parent=15 // pred_region
          %s689 = sand.u32 %s132, 1
          %s690 = sand.u32 %s132, 1
          %s691 = smul.addr %s690, 576
          %s692 = scalar_lea.vmem [#allocation5], %s691
          %s693 = smul.u32 16, %s22
          %s694 = smul.addr %s693, 4
          %s695 = scalar_lea.vmem %s3, %s694
          // Predicated region
          $region144: #{fcn_decode_forward.5} parent=142 // pred_check
            _
          $region145: #{fcn_decode_forward.5} parent=142 // pred_check_branch
            %697 = sbr.rel (0) target = $region147
          $region146: #{fcn_decode_forward.5} parent=142 // pred_region
            // Predicated region
            $region148: #{fcn_decode_forward.5} parent=146 // pred_check
              _
            $region149: #{fcn_decode_forward.5} parent=146 // pred_check_branch
              %699 = sbr.rel target = $region151
            $region150: #{fcn_decode_forward.5} parent=146 // pred_region
              // Predicated region
              $region163: #{fcn_decode_forward.5} parent=150 // pred_check
                _
              $region164: #{fcn_decode_forward.5} parent=150 // pred_check_branch
                %1000 = sbr.rel (0) target = $region166
              $region165: #{fcn_decode_forward.5} parent=150 // pred_region
                loop: start=0, step=1, limit=1
                $region167: #{fcn_decode_forward.5} parent=165 // loop_pre_header
                  _
                $region168: #{fcn_decode_forward.5} parent=165 // loop_header
                  %s1002 = sphi 0, %s1006
                  %p1003 = scmp.ge.s32.totalorder %s1002, 1
                  %s1007 = sphi %s695, %s695
                  %s1008 = sphi %s692, %s692
                $region169: #{fcn_decode_forward.5} parent=165 // loop_header_branch
                  %1005 = sbr.rel (%p1003) target = $region173
                $region170: #{fcn_decode_forward.5} parent=165 // loop_body
                  _
                $region171: #{fcn_decode_forward.5} parent=165 // loop_footer
                  %s1006 = sadd.s32 1, %s1002
                $region172: #{fcn_decode_forward.5} parent=165 // loop_footer_branch
                  %1001 = sbr.rel target = $region168
                $region173: #{fcn_decode_forward.5} parent=165 // loop_exit
                  _
                loop: start=0, step=1, limit=1
                $region174: #{fcn_decode_forward.5} parent=165 // loop_pre_header
                  _
                $region175: #{fcn_decode_forward.5} parent=165 // loop_header
                  %s1011 = sphi 0, %s1015
                  %p1012 = scmp.ge.s32.totalorder %s1011, 1
                  %s1016 = sphi %s695, %s695
                  %s1017 = sphi %s692, %s692
                $region176: #{fcn_decode_forward.5} parent=165 // loop_header_branch
                  %1014 = sbr.rel (%p1012) target = $region180
                $region177: #{fcn_decode_forward.5} parent=165 // loop_body
                  %v1018 = vld [vmem:[%s1016] sm:$0xf]
                  %1019 = vst [vmem:[%s1017] sm:$0xf] %v1018
                  %v1020 = vld [vmem:[%s1016 + $0x4] sm:$0xf]
                  %1021 = vst [vmem:[%s1017 + $0x4] sm:$0xf] %v1020
                  %v1022 = vld [vmem:[%s1016 + $0x8] sm:$0xf]
                  %1023 = vst [vmem:[%s1017 + $0x8] sm:$0xf] %v1022
                  %v1024 = vld [vmem:[%s1016 + $0xc] sm:$0xf]
                  %1025 = vst [vmem:[%s1017 + $0xc] sm:$0xf] %v1024
                  %v1026 = vld [vmem:[%s1016 + $0x10] sm:$0xf]
                  %1027 = vst [vmem:[%s1017 + $0x10] sm:$0xf] %v1026
                  %v1028 = vld [vmem:[%s1016 + $0x14] sm:$0xf]
                  %1029 = vst [vmem:[%s1017 + $0x14] sm:$0xf] %v1028
                  %v1030 = vld [vmem:[%s1016 + $0x18] sm:$0xf]
                  %1031 = vst [vmem:[%s1017 + $0x18] sm:$0xf] %v1030
                  %v1032 = vld [vmem:[%s1016 + $0x1c] sm:$0xf]
                  %1033 = vst [vmem:[%s1017 + $0x1c] sm:$0xf] %v1032
                  %v1034 = vld [vmem:[%s1016 + $0x20] sm:$0xf]
                  %1035 = vst [vmem:[%s1017 + $0x20] sm:$0xf] %v1034
                  %v1036 = vld [vmem:[%s1016 + $0x24] sm:$0xf]
                  %1037 = vst [vmem:[%s1017 + $0x24] sm:$0xf] %v1036
                  %v1038 = vld [vmem:[%s1016 + $0x28] sm:$0xf]
                  %1039 = vst [vmem:[%s1017 + $0x28] sm:$0xf] %v1038
                  %v1040 = vld [vmem:[%s1016 + $0x2c] sm:$0xf]
                  %1041 = vst [vmem:[%s1017 + $0x2c] sm:$0xf] %v1040
                  %v1042 = vld [vmem:[%s1016 + $0x30] sm:$0xf]
                  %1043 = vst [vmem:[%s1017 + $0x30] sm:$0xf] %v1042
                  %v1044 = vld [vmem:[%s1016 + $0x34] sm:$0xf]
                  %1045 = vst [vmem:[%s1017 + $0x34] sm:$0xf] %v1044
                  %v1046 = vld [vmem:[%s1016 + $0x38] sm:$0xf]
                  %1047 = vst [vmem:[%s1017 + $0x38] sm:$0xf] %v1046
                  %v1048 = vld [vmem:[%s1016 + $0x3c] sm:$0xf]
                  %1049 = vst [vmem:[%s1017 + $0x3c] sm:$0xf] %v1048
                  %v1050 = vld [vmem:[%s1016 + $0x100] sm:$0xf]
                  %1051 = vst [vmem:[%s1017 + $0x40] sm:$0xf] %v1050
                  %v1052 = vld [vmem:[%s1016 + $0x104] sm:$0xf]
                  %1053 = vst [vmem:[%s1017 + $0x44] sm:$0xf] %v1052
                  %v1054 = vld [vmem:[%s1016 + $0x108] sm:$0xf]
                  %1055 = vst [vmem:[%s1017 + $0x48] sm:$0xf] %v1054
                  %v1056 = vld [vmem:[%s1016 + $0x10c] sm:$0xf]
                  %1057 = vst [vmem:[%s1017 + $0x4c] sm:$0xf] %v1056
                  %v1058 = vld [vmem:[%s1016 + $0x110] sm:$0xf]
                  %1059 = vst [vmem:[%s1017 + $0x50] sm:$0xf] %v1058
                  %v1060 = vld [vmem:[%s1016 + $0x114] sm:$0xf]
                  %1061 = vst [vmem:[%s1017 + $0x54] sm:$0xf] %v1060
                  %v1062 = vld [vmem:[%s1016 + $0x118] sm:$0xf]
                  %1063 = vst [vmem:[%s1017 + $0x58] sm:$0xf] %v1062
                  %v1064 = vld [vmem:[%s1016 + $0x11c] sm:$0xf]
                  %1065 = vst [vmem:[%s1017 + $0x5c] sm:$0xf] %v1064
                  %v1066 = vld [vmem:[%s1016 + $0x120] sm:$0xf]
                  %1067 = vst [vmem:[%s1017 + $0x60] sm:$0xf] %v1066
                  %v1068 = vld [vmem:[%s1016 + $0x124] sm:$0xf]
                  %1069 = vst [vmem:[%s1017 + $0x64] sm:$0xf] %v1068
                  %v1070 = vld [vmem:[%s1016 + $0x128] sm:$0xf]
                  %1071 = vst [vmem:[%s1017 + $0x68] sm:$0xf] %v1070
                  %v1072 = vld [vmem:[%s1016 + $0x12c] sm:$0xf]
                  %1073 = vst [vmem:[%s1017 + $0x6c] sm:$0xf] %v1072
                  %v1074 = vld [vmem:[%s1016 + $0x130] sm:$0xf]
                  %1075 = vst [vmem:[%s1017 + $0x70] sm:$0xf] %v1074
                  %v1076 = vld [vmem:[%s1016 + $0x134] sm:$0xf]
                  %1077 = vst [vmem:[%s1017 + $0x74] sm:$0xf] %v1076
                  %v1078 = vld [vmem:[%s1016 + $0x138] sm:$0xf]
                  %1079 = vst [vmem:[%s1017 + $0x78] sm:$0xf] %v1078
                  %v1080 = vld [vmem:[%s1016 + $0x13c] sm:$0xf]
                  %1081 = vst [vmem:[%s1017 + $0x7c] sm:$0xf] %v1080
                  %v1082 = vld [vmem:[%s1016 + $0x200] sm:$0xf]
                  %1083 = vst [vmem:[%s1017 + $0x80] sm:$0xf] %v1082
                  %v1084 = vld [vmem:[%s1016 + $0x204] sm:$0xf]
                  %1085 = vst [vmem:[%s1017 + $0x84] sm:$0xf] %v1084
                  %v1086 = vld [vmem:[%s1016 + $0x208] sm:$0xf]
                  %1087 = vst [vmem:[%s1017 + $0x88] sm:$0xf] %v1086
                  %v1088 = vld [vmem:[%s1016 + $0x20c] sm:$0xf]
                  %1089 = vst [vmem:[%s1017 + $0x8c] sm:$0xf] %v1088
                  %v1090 = vld [vmem:[%s1016 + $0x210] sm:$0xf]
                  %1091 = vst [vmem:[%s1017 + $0x90] sm:$0xf] %v1090
                  %v1092 = vld [vmem:[%s1016 + $0x214] sm:$0xf]
                  %1093 = vst [vmem:[%s1017 + $0x94] sm:$0xf] %v1092
                  %v1094 = vld [vmem:[%s1016 + $0x218] sm:$0xf]
                  %1095 = vst [vmem:[%s1017 + $0x98] sm:$0xf] %v1094
                  %v1096 = vld [vmem:[%s1016 + $0x21c] sm:$0xf]
                  %1097 = vst [vmem:[%s1017 + $0x9c] sm:$0xf] %v1096
                  %v1098 = vld [vmem:[%s1016 + $0x220] sm:$0xf]
                  %1099 = vst [vmem:[%s1017 + $0xa0] sm:$0xf] %v1098
                  %v1100 = vld [vmem:[%s1016 + $0x224] sm:$0xf]
                  %1101 = vst [vmem:[%s1017 + $0xa4] sm:$0xf] %v1100
                  %v1102 = vld [vmem:[%s1016 + $0x228] sm:$0xf]
                  %1103 = vst [vmem:[%s1017 + $0xa8] sm:$0xf] %v1102
                  %v1104 = vld [vmem:[%s1016 + $0x22c] sm:$0xf]
                  %1105 = vst [vmem:[%s1017 + $0xac] sm:$0xf] %v1104
                  %v1106 = vld [vmem:[%s1016 + $0x230] sm:$0xf]
                  %1107 = vst [vmem:[%s1017 + $0xb0] sm:$0xf] %v1106
                  %v1108 = vld [vmem:[%s1016 + $0x234] sm:$0xf]
                  %1109 = vst [vmem:[%s1017 + $0xb4] sm:$0xf] %v1108
                  %v1110 = vld [vmem:[%s1016 + $0x238] sm:$0xf]
                  %1111 = vst [vmem:[%s1017 + $0xb8] sm:$0xf] %v1110
                  %v1112 = vld [vmem:[%s1016 + $0x23c] sm:$0xf]
                  %1113 = vst [vmem:[%s1017 + $0xbc] sm:$0xf] %v1112
                  %v1114 = vld [vmem:[%s1016 + $0x300] sm:$0xf]
                  %1115 = vst [vmem:[%s1017 + $0xc0] sm:$0xf] %v1114
                  %v1116 = vld [vmem:[%s1016 + $0x304] sm:$0xf]
                  %1117 = vst [vmem:[%s1017 + $0xc4] sm:$0xf] %v1116
                  %v1118 = vld [vmem:[%s1016 + $0x308] sm:$0xf]
                  %1119 = vst [vmem:[%s1017 + $0xc8] sm:$0xf] %v1118
                  %v1120 = vld [vmem:[%s1016 + $0x30c] sm:$0xf]
                  %1121 = vst [vmem:[%s1017 + $0xcc] sm:$0xf] %v1120
                  %v1122 = vld [vmem:[%s1016 + $0x310] sm:$0xf]
                  %1123 = vst [vmem:[%s1017 + $0xd0] sm:$0xf] %v1122
                  %v1124 = vld [vmem:[%s1016 + $0x314] sm:$0xf]
                  %1125 = vst [vmem:[%s1017 + $0xd4] sm:$0xf] %v1124
                  %v1126 = vld [vmem:[%s1016 + $0x318] sm:$0xf]
                  %1127 = vst [vmem:[%s1017 + $0xd8] sm:$0xf] %v1126
                  %v1128 = vld [vmem:[%s1016 + $0x31c] sm:$0xf]
                  %1129 = vst [vmem:[%s1017 + $0xdc] sm:$0xf] %v1128
                  %v1130 = vld [vmem:[%s1016 + $0x320] sm:$0xf]
                  %1131 = vst [vmem:[%s1017 + $0xe0] sm:$0xf] %v1130
                  %v1132 = vld [vmem:[%s1016 + $0x324] sm:$0xf]
                  %1133 = vst [vmem:[%s1017 + $0xe4] sm:$0xf] %v1132
                  %v1134 = vld [vmem:[%s1016 + $0x328] sm:$0xf]
                  %1135 = vst [vmem:[%s1017 + $0xe8] sm:$0xf] %v1134
                  %v1136 = vld [vmem:[%s1016 + $0x32c] sm:$0xf]
                  %1137 = vst [vmem:[%s1017 + $0xec] sm:$0xf] %v1136
                  %v1138 = vld [vmem:[%s1016 + $0x330] sm:$0xf]
                  %1139 = vst [vmem:[%s1017 + $0xf0] sm:$0xf] %v1138
                  %v1140 = vld [vmem:[%s1016 + $0x334] sm:$0xf]
                  %1141 = vst [vmem:[%s1017 + $0xf4] sm:$0xf] %v1140
                  %v1142 = vld [vmem:[%s1016 + $0x338] sm:$0xf]
                  %1143 = vst [vmem:[%s1017 + $0xf8] sm:$0xf] %v1142
                  %v1144 = vld [vmem:[%s1016 + $0x33c] sm:$0xf]
                  %1145 = vst [vmem:[%s1017 + $0xfc] sm:$0xf] %v1144
                  %v1146 = vld [vmem:[%s1016 + $0x400] sm:$0xf]
                  %1147 = vst [vmem:[%s1017 + $0x100] sm:$0xf] %v1146
                  %v1148 = vld [vmem:[%s1016 + $0x404] sm:$0xf]
                  %1149 = vst [vmem:[%s1017 + $0x104] sm:$0xf] %v1148
                  %v1150 = vld [vmem:[%s1016 + $0x408] sm:$0xf]
                  %1151 = vst [vmem:[%s1017 + $0x108] sm:$0xf] %v1150
                  %v1152 = vld [vmem:[%s1016 + $0x40c] sm:$0xf]
                  %1153 = vst [vmem:[%s1017 + $0x10c] sm:$0xf] %v1152
                  %v1154 = vld [vmem:[%s1016 + $0x410] sm:$0xf]
                  %1155 = vst [vmem:[%s1017 + $0x110] sm:$0xf] %v1154
                  %v1156 = vld [vmem:[%s1016 + $0x414] sm:$0xf]
                  %1157 = vst [vmem:[%s1017 + $0x114] sm:$0xf] %v1156
                  %v1158 = vld [vmem:[%s1016 + $0x418] sm:$0xf]
                  %1159 = vst [vmem:[%s1017 + $0x118] sm:$0xf] %v1158
                  %v1160 = vld [vmem:[%s1016 + $0x41c] sm:$0xf]
                  %1161 = vst [vmem:[%s1017 + $0x11c] sm:$0xf] %v1160
                  %v1162 = vld [vmem:[%s1016 + $0x420] sm:$0xf]
                  %1163 = vst [vmem:[%s1017 + $0x120] sm:$0xf] %v1162
                  %v1164 = vld [vmem:[%s1016 + $0x424] sm:$0xf]
                  %1165 = vst [vmem:[%s1017 + $0x124] sm:$0xf] %v1164
                  %v1166 = vld [vmem:[%s1016 + $0x428] sm:$0xf]
                  %1167 = vst [vmem:[%s1017 + $0x128] sm:$0xf] %v1166
                  %v1168 = vld [vmem:[%s1016 + $0x42c] sm:$0xf]
                  %1169 = vst [vmem:[%s1017 + $0x12c] sm:$0xf] %v1168
                  %v1170 = vld [vmem:[%s1016 + $0x430] sm:$0xf]
                  %1171 = vst [vmem:[%s1017 + $0x130] sm:$0xf] %v1170
                  %v1172 = vld [vmem:[%s1016 + $0x434] sm:$0xf]
                  %1173 = vst [vmem:[%s1017 + $0x134] sm:$0xf] %v1172
                  %v1174 = vld [vmem:[%s1016 + $0x438] sm:$0xf]
                  %1175 = vst [vmem:[%s1017 + $0x138] sm:$0xf] %v1174
                  %v1176 = vld [vmem:[%s1016 + $0x43c] sm:$0xf]
                  %1177 = vst [vmem:[%s1017 + $0x13c] sm:$0xf] %v1176
                  %v1178 = vld [vmem:[%s1016 + $0x500] sm:$0xf]
                  %1179 = vst [vmem:[%s1017 + $0x140] sm:$0xf] %v1178
                  %v1180 = vld [vmem:[%s1016 + $0x504] sm:$0xf]
                  %1181 = vst [vmem:[%s1017 + $0x144] sm:$0xf] %v1180
                  %v1182 = vld [vmem:[%s1016 + $0x508] sm:$0xf]
                  %1183 = vst [vmem:[%s1017 + $0x148] sm:$0xf] %v1182
                  %v1184 = vld [vmem:[%s1016 + $0x50c] sm:$0xf]
                  %1185 = vst [vmem:[%s1017 + $0x14c] sm:$0xf] %v1184
                  %v1186 = vld [vmem:[%s1016 + $0x510] sm:$0xf]
                  %1187 = vst [vmem:[%s1017 + $0x150] sm:$0xf] %v1186
                  %v1188 = vld [vmem:[%s1016 + $0x514] sm:$0xf]
                  %1189 = vst [vmem:[%s1017 + $0x154] sm:$0xf] %v1188
                  %v1190 = vld [vmem:[%s1016 + $0x518] sm:$0xf]
                  %1191 = vst [vmem:[%s1017 + $0x158] sm:$0xf] %v1190
                  %v1192 = vld [vmem:[%s1016 + $0x51c] sm:$0xf]
                  %1193 = vst [vmem:[%s1017 + $0x15c] sm:$0xf] %v1192
                  %v1194 = vld [vmem:[%s1016 + $0x520] sm:$0xf]
                  %1195 = vst [vmem:[%s1017 + $0x160] sm:$0xf] %v1194
                  %v1196 = vld [vmem:[%s1016 + $0x524] sm:$0xf]
                  %1197 = vst [vmem:[%s1017 + $0x164] sm:$0xf] %v1196
                  %v1198 = vld [vmem:[%s1016 + $0x528] sm:$0xf]
                  %1199 = vst [vmem:[%s1017 + $0x168] sm:$0xf] %v1198
                  %v1200 = vld [vmem:[%s1016 + $0x52c] sm:$0xf]
                  %1201 = vst [vmem:[%s1017 + $0x16c] sm:$0xf] %v1200
                  %v1202 = vld [vmem:[%s1016 + $0x530] sm:$0xf]
                  %1203 = vst [vmem:[%s1017 + $0x170] sm:$0xf] %v1202
                  %v1204 = vld [vmem:[%s1016 + $0x534] sm:$0xf]
                  %1205 = vst [vmem:[%s1017 + $0x174] sm:$0xf] %v1204
                  %v1206 = vld [vmem:[%s1016 + $0x538] sm:$0xf]
                  %1207 = vst [vmem:[%s1017 + $0x178] sm:$0xf] %v1206
                  %v1208 = vld [vmem:[%s1016 + $0x53c] sm:$0xf]
                  %1209 = vst [vmem:[%s1017 + $0x17c] sm:$0xf] %v1208
                  %v1210 = vld [vmem:[%s1016 + $0x600] sm:$0xf]
                  %1211 = vst [vmem:[%s1017 + $0x180] sm:$0xf] %v1210
                  %v1212 = vld [vmem:[%s1016 + $0x604] sm:$0xf]
                  %1213 = vst [vmem:[%s1017 + $0x184] sm:$0xf] %v1212
                  %v1214 = vld [vmem:[%s1016 + $0x608] sm:$0xf]
                  %1215 = vst [vmem:[%s1017 + $0x188] sm:$0xf] %v1214
                  %v1216 = vld [vmem:[%s1016 + $0x60c] sm:$0xf]
                  %1217 = vst [vmem:[%s1017 + $0x18c] sm:$0xf] %v1216
                  %v1218 = vld [vmem:[%s1016 + $0x610] sm:$0xf]
                  %1219 = vst [vmem:[%s1017 + $0x190] sm:$0xf] %v1218
                  %v1220 = vld [vmem:[%s1016 + $0x614] sm:$0xf]
                  %1221 = vst [vmem:[%s1017 + $0x194] sm:$0xf] %v1220
                  %v1222 = vld [vmem:[%s1016 + $0x618] sm:$0xf]
                  %1223 = vst [vmem:[%s1017 + $0x198] sm:$0xf] %v1222
                  %v1224 = vld [vmem:[%s1016 + $0x61c] sm:$0xf]
                  %1225 = vst [vmem:[%s1017 + $0x19c] sm:$0xf] %v1224
                  %v1226 = vld [vmem:[%s1016 + $0x620] sm:$0xf]
                  %1227 = vst [vmem:[%s1017 + $0x1a0] sm:$0xf] %v1226
                  %v1228 = vld [vmem:[%s1016 + $0x624] sm:$0xf]
                  %1229 = vst [vmem:[%s1017 + $0x1a4] sm:$0xf] %v1228
                  %v1230 = vld [vmem:[%s1016 + $0x628] sm:$0xf]
                  %1231 = vst [vmem:[%s1017 + $0x1a8] sm:$0xf] %v1230
                  %v1232 = vld [vmem:[%s1016 + $0x62c] sm:$0xf]
                  %1233 = vst [vmem:[%s1017 + $0x1ac] sm:$0xf] %v1232
                  %v1234 = vld [vmem:[%s1016 + $0x630] sm:$0xf]
                  %1235 = vst [vmem:[%s1017 + $0x1b0] sm:$0xf] %v1234
                  %v1236 = vld [vmem:[%s1016 + $0x634] sm:$0xf]
                  %1237 = vst [vmem:[%s1017 + $0x1b4] sm:$0xf] %v1236
                  %v1238 = vld [vmem:[%s1016 + $0x638] sm:$0xf]
                  %1239 = vst [vmem:[%s1017 + $0x1b8] sm:$0xf] %v1238
                  %v1240 = vld [vmem:[%s1016 + $0x63c] sm:$0xf]
                  %1241 = vst [vmem:[%s1017 + $0x1bc] sm:$0xf] %v1240
                  %v1242 = vld [vmem:[%s1016 + $0x700] sm:$0xf]
                  %1243 = vst [vmem:[%s1017 + $0x1c0] sm:$0xf] %v1242
                  %v1244 = vld [vmem:[%s1016 + $0x704] sm:$0xf]
                  %1245 = vst [vmem:[%s1017 + $0x1c4] sm:$0xf] %v1244
                  %v1246 = vld [vmem:[%s1016 + $0x708] sm:$0xf]
                  %1247 = vst [vmem:[%s1017 + $0x1c8] sm:$0xf] %v1246
                  %v1248 = vld [vmem:[%s1016 + $0x70c] sm:$0xf]
                  %1249 = vst [vmem:[%s1017 + $0x1cc] sm:$0xf] %v1248
                  %v1250 = vld [vmem:[%s1016 + $0x710] sm:$0xf]
                  %1251 = vst [vmem:[%s1017 + $0x1d0] sm:$0xf] %v1250
                  %v1252 = vld [vmem:[%s1016 + $0x714] sm:$0xf]
                  %1253 = vst [vmem:[%s1017 + $0x1d4] sm:$0xf] %v1252
                  %v1254 = vld [vmem:[%s1016 + $0x718] sm:$0xf]
                  %1255 = vst [vmem:[%s1017 + $0x1d8] sm:$0xf] %v1254
                  %v1256 = vld [vmem:[%s1016 + $0x71c] sm:$0xf]
                  %1257 = vst [vmem:[%s1017 + $0x1dc] sm:$0xf] %v1256
                  %v1258 = vld [vmem:[%s1016 + $0x720] sm:$0xf]
                  %1259 = vst [vmem:[%s1017 + $0x1e0] sm:$0xf] %v1258
                  %v1260 = vld [vmem:[%s1016 + $0x724] sm:$0xf]
                  %1261 = vst [vmem:[%s1017 + $0x1e4] sm:$0xf] %v1260
                  %v1262 = vld [vmem:[%s1016 + $0x728] sm:$0xf]
                  %1263 = vst [vmem:[%s1017 + $0x1e8] sm:$0xf] %v1262
                  %v1264 = vld [vmem:[%s1016 + $0x72c] sm:$0xf]
                  %1265 = vst [vmem:[%s1017 + $0x1ec] sm:$0xf] %v1264
                  %v1266 = vld [vmem:[%s1016 + $0x730] sm:$0xf]
                  %1267 = vst [vmem:[%s1017 + $0x1f0] sm:$0xf] %v1266
                  %v1268 = vld [vmem:[%s1016 + $0x734] sm:$0xf]
                  %1269 = vst [vmem:[%s1017 + $0x1f4] sm:$0xf] %v1268
                  %v1270 = vld [vmem:[%s1016 + $0x738] sm:$0xf]
                  %1271 = vst [vmem:[%s1017 + $0x1f8] sm:$0xf] %v1270
                  %v1272 = vld [vmem:[%s1016 + $0x73c] sm:$0xf]
                  %1273 = vst [vmem:[%s1017 + $0x1fc] sm:$0xf] %v1272
                  %v1274 = vld [vmem:[%s1016 + $0x800] sm:$0xf]
                  %1275 = vst [vmem:[%s1017 + $0x200] sm:$0xf] %v1274
                  %v1276 = vld [vmem:[%s1016 + $0x804] sm:$0xf]
                  %1277 = vst [vmem:[%s1017 + $0x204] sm:$0xf] %v1276
                  %v1278 = vld [vmem:[%s1016 + $0x808] sm:$0xf]
                  %1279 = vst [vmem:[%s1017 + $0x208] sm:$0xf] %v1278
                  %v1280 = vld [vmem:[%s1016 + $0x80c] sm:$0xf]
                  %1281 = vst [vmem:[%s1017 + $0x20c] sm:$0xf] %v1280
                  %v1282 = vld [vmem:[%s1016 + $0x810] sm:$0xf]
                  %1283 = vst [vmem:[%s1017 + $0x210] sm:$0xf] %v1282
                  %v1284 = vld [vmem:[%s1016 + $0x814] sm:$0xf]
                  %1285 = vst [vmem:[%s1017 + $0x214] sm:$0xf] %v1284
                  %v1286 = vld [vmem:[%s1016 + $0x818] sm:$0xf]
                  %1287 = vst [vmem:[%s1017 + $0x218] sm:$0xf] %v1286
                  %v1288 = vld [vmem:[%s1016 + $0x81c] sm:$0xf]
                  %1289 = vst [vmem:[%s1017 + $0x21c] sm:$0xf] %v1288
                  %v1290 = vld [vmem:[%s1016 + $0x820] sm:$0xf]
                  %1291 = vst [vmem:[%s1017 + $0x220] sm:$0xf] %v1290
                  %v1292 = vld [vmem:[%s1016 + $0x824] sm:$0xf]
                  %1293 = vst [vmem:[%s1017 + $0x224] sm:$0xf] %v1292
                  %v1294 = vld [vmem:[%s1016 + $0x828] sm:$0xf]
                  %1295 = vst [vmem:[%s1017 + $0x228] sm:$0xf] %v1294
                  %v1296 = vld [vmem:[%s1016 + $0x82c] sm:$0xf]
                  %1297 = vst [vmem:[%s1017 + $0x22c] sm:$0xf] %v1296
                  %v1298 = vld [vmem:[%s1016 + $0x830] sm:$0xf]
                  %1299 = vst [vmem:[%s1017 + $0x230] sm:$0xf] %v1298
                  %v1300 = vld [vmem:[%s1016 + $0x834] sm:$0xf]
                  %1301 = vst [vmem:[%s1017 + $0x234] sm:$0xf] %v1300
                  %v1302 = vld [vmem:[%s1016 + $0x838] sm:$0xf]
                  %1303 = vst [vmem:[%s1017 + $0x238] sm:$0xf] %v1302
                  %v1304 = vld [vmem:[%s1016 + $0x83c] sm:$0xf]
                  %1305 = vst [vmem:[%s1017 + $0x23c] sm:$0xf] %v1304
                $region178: #{fcn_decode_forward.5} parent=165 // loop_footer
                  %s1015 = sadd.s32 1, %s1011
                $region179: #{fcn_decode_forward.5} parent=165 // loop_footer_branch
                  %1010 = sbr.rel target = $region175
                $region180: #{fcn_decode_forward.5} parent=165 // loop_exit
                  _
              $region166: #{fcn_decode_forward.5} parent=150 // pred_fallthru
                _
            $region151: #{fcn_decode_forward.5} parent=146 // pred_fallthru
              _
            // Predicated region
            $region152: #{fcn_decode_forward.5} parent=146 // pred_check
              _
            $region153: #{fcn_decode_forward.5} parent=146 // pred_check_branch
              %701 = sbr.rel (0) target = $region155
            $region154: #{fcn_decode_forward.5} parent=146 // pred_region
              loop: start=0, step=1, limit=1
              $region156: #{fcn_decode_forward.5} parent=154 // loop_pre_header
                _
              $region157: #{fcn_decode_forward.5} parent=154 // loop_header
                %s704 = sphi 0, %s708
                %p705 = scmp.ge.s32.totalorder %s704, 1
                %s709 = sphi %s695, %s695
                %s710 = sphi %s692, %s692
              $region158: #{fcn_decode_forward.5} parent=154 // loop_header_branch
                %707 = sbr.rel (%p705) target = $region162
              $region159: #{fcn_decode_forward.5} parent=154 // loop_body
                %v711 = vld [vmem:[%s709] sm:$0xf]
                %712 = vst [vmem:[%s710] sm:$0xf] %v711
                %v713 = vld [vmem:[%s709 + $0x4] sm:$0xf]
                %714 = vst [vmem:[%s710 + $0x4] sm:$0xf] %v713
                %v715 = vld [vmem:[%s709 + $0x8] sm:$0xf]
                %716 = vst [vmem:[%s710 + $0x8] sm:$0xf] %v715
                %v717 = vld [vmem:[%s709 + $0xc] sm:$0xf]
                %718 = vst [vmem:[%s710 + $0xc] sm:$0xf] %v717
                %v719 = vld [vmem:[%s709 + $0x10] sm:$0xf]
                %720 = vst [vmem:[%s710 + $0x10] sm:$0xf] %v719
                %v721 = vld [vmem:[%s709 + $0x14] sm:$0xf]
                %722 = vst [vmem:[%s710 + $0x14] sm:$0xf] %v721
                %v723 = vld [vmem:[%s709 + $0x18] sm:$0xf]
                %724 = vst [vmem:[%s710 + $0x18] sm:$0xf] %v723
                %v725 = vld [vmem:[%s709 + $0x1c] sm:$0xf]
                %726 = vst [vmem:[%s710 + $0x1c] sm:$0xf] %v725
                %v727 = vld [vmem:[%s709 + $0x20] sm:$0xf]
                %728 = vst [vmem:[%s710 + $0x20] sm:$0xf] %v727
                %v729 = vld [vmem:[%s709 + $0x24] sm:$0xf]
                %730 = vst [vmem:[%s710 + $0x24] sm:$0xf] %v729
                %v731 = vld [vmem:[%s709 + $0x28] sm:$0xf]
                %732 = vst [vmem:[%s710 + $0x28] sm:$0xf] %v731
                %v733 = vld [vmem:[%s709 + $0x2c] sm:$0xf]
                %734 = vst [vmem:[%s710 + $0x2c] sm:$0xf] %v733
                %v735 = vld [vmem:[%s709 + $0x30] sm:$0xf]
                %736 = vst [vmem:[%s710 + $0x30] sm:$0xf] %v735
                %v737 = vld [vmem:[%s709 + $0x34] sm:$0xf]
                %738 = vst [vmem:[%s710 + $0x34] sm:$0xf] %v737
                %v739 = vld [vmem:[%s709 + $0x38] sm:$0xf]
                %740 = vst [vmem:[%s710 + $0x38] sm:$0xf] %v739
                %v741 = vld [vmem:[%s709 + $0x3c] sm:$0xf]
                %742 = vst [vmem:[%s710 + $0x3c] sm:$0xf] %v741
                %v743 = vld [vmem:[%s709 + $0x100] sm:$0xf]
                %744 = vst [vmem:[%s710 + $0x40] sm:$0xf] %v743
                %v745 = vld [vmem:[%s709 + $0x104] sm:$0xf]
                %746 = vst [vmem:[%s710 + $0x44] sm:$0xf] %v745
                %v747 = vld [vmem:[%s709 + $0x108] sm:$0xf]
                %748 = vst [vmem:[%s710 + $0x48] sm:$0xf] %v747
                %v749 = vld [vmem:[%s709 + $0x10c] sm:$0xf]
                %750 = vst [vmem:[%s710 + $0x4c] sm:$0xf] %v749
                %v751 = vld [vmem:[%s709 + $0x110] sm:$0xf]
                %752 = vst [vmem:[%s710 + $0x50] sm:$0xf] %v751
                %v753 = vld [vmem:[%s709 + $0x114] sm:$0xf]
                %754 = vst [vmem:[%s710 + $0x54] sm:$0xf] %v753
                %v755 = vld [vmem:[%s709 + $0x118] sm:$0xf]
                %756 = vst [vmem:[%s710 + $0x58] sm:$0xf] %v755
                %v757 = vld [vmem:[%s709 + $0x11c] sm:$0xf]
                %758 = vst [vmem:[%s710 + $0x5c] sm:$0xf] %v757
                %v759 = vld [vmem:[%s709 + $0x120] sm:$0xf]
                %760 = vst [vmem:[%s710 + $0x60] sm:$0xf] %v759
                %v761 = vld [vmem:[%s709 + $0x124] sm:$0xf]
                %762 = vst [vmem:[%s710 + $0x64] sm:$0xf] %v761
                %v763 = vld [vmem:[%s709 + $0x128] sm:$0xf]
                %764 = vst [vmem:[%s710 + $0x68] sm:$0xf] %v763
                %v765 = vld [vmem:[%s709 + $0x12c] sm:$0xf]
                %766 = vst [vmem:[%s710 + $0x6c] sm:$0xf] %v765
                %v767 = vld [vmem:[%s709 + $0x130] sm:$0xf]
                %768 = vst [vmem:[%s710 + $0x70] sm:$0xf] %v767
                %v769 = vld [vmem:[%s709 + $0x134] sm:$0xf]
                %770 = vst [vmem:[%s710 + $0x74] sm:$0xf] %v769
                %v771 = vld [vmem:[%s709 + $0x138] sm:$0xf]
                %772 = vst [vmem:[%s710 + $0x78] sm:$0xf] %v771
                %v773 = vld [vmem:[%s709 + $0x13c] sm:$0xf]
                %774 = vst [vmem:[%s710 + $0x7c] sm:$0xf] %v773
                %v775 = vld [vmem:[%s709 + $0x200] sm:$0xf]
                %776 = vst [vmem:[%s710 + $0x80] sm:$0xf] %v775
                %v777 = vld [vmem:[%s709 + $0x204] sm:$0xf]
                %778 = vst [vmem:[%s710 + $0x84] sm:$0xf] %v777
                %v779 = vld [vmem:[%s709 + $0x208] sm:$0xf]
                %780 = vst [vmem:[%s710 + $0x88] sm:$0xf] %v779
                %v781 = vld [vmem:[%s709 + $0x20c] sm:$0xf]
                %782 = vst [vmem:[%s710 + $0x8c] sm:$0xf] %v781
                %v783 = vld [vmem:[%s709 + $0x210] sm:$0xf]
                %784 = vst [vmem:[%s710 + $0x90] sm:$0xf] %v783
                %v785 = vld [vmem:[%s709 + $0x214] sm:$0xf]
                %786 = vst [vmem:[%s710 + $0x94] sm:$0xf] %v785
                %v787 = vld [vmem:[%s709 + $0x218] sm:$0xf]
                %788 = vst [vmem:[%s710 + $0x98] sm:$0xf] %v787
                %v789 = vld [vmem:[%s709 + $0x21c] sm:$0xf]
                %790 = vst [vmem:[%s710 + $0x9c] sm:$0xf] %v789
                %v791 = vld [vmem:[%s709 + $0x220] sm:$0xf]
                %792 = vst [vmem:[%s710 + $0xa0] sm:$0xf] %v791
                %v793 = vld [vmem:[%s709 + $0x224] sm:$0xf]
                %794 = vst [vmem:[%s710 + $0xa4] sm:$0xf] %v793
                %v795 = vld [vmem:[%s709 + $0x228] sm:$0xf]
                %796 = vst [vmem:[%s710 + $0xa8] sm:$0xf] %v795
                %v797 = vld [vmem:[%s709 + $0x22c] sm:$0xf]
                %798 = vst [vmem:[%s710 + $0xac] sm:$0xf] %v797
                %v799 = vld [vmem:[%s709 + $0x230] sm:$0xf]
                %800 = vst [vmem:[%s710 + $0xb0] sm:$0xf] %v799
                %v801 = vld [vmem:[%s709 + $0x234] sm:$0xf]
                %802 = vst [vmem:[%s710 + $0xb4] sm:$0xf] %v801
                %v803 = vld [vmem:[%s709 + $0x238] sm:$0xf]
                %804 = vst [vmem:[%s710 + $0xb8] sm:$0xf] %v803
                %v805 = vld [vmem:[%s709 + $0x23c] sm:$0xf]
                %806 = vst [vmem:[%s710 + $0xbc] sm:$0xf] %v805
                %v807 = vld [vmem:[%s709 + $0x300] sm:$0xf]
                %808 = vst [vmem:[%s710 + $0xc0] sm:$0xf] %v807
                %v809 = vld [vmem:[%s709 + $0x304] sm:$0xf]
                %810 = vst [vmem:[%s710 + $0xc4] sm:$0xf] %v809
                %v811 = vld [vmem:[%s709 + $0x308] sm:$0xf]
                %812 = vst [vmem:[%s710 + $0xc8] sm:$0xf] %v811
                %v813 = vld [vmem:[%s709 + $0x30c] sm:$0xf]
                %814 = vst [vmem:[%s710 + $0xcc] sm:$0xf] %v813
                %v815 = vld [vmem:[%s709 + $0x310] sm:$0xf]
                %816 = vst [vmem:[%s710 + $0xd0] sm:$0xf] %v815
                %v817 = vld [vmem:[%s709 + $0x314] sm:$0xf]
                %818 = vst [vmem:[%s710 + $0xd4] sm:$0xf] %v817
                %v819 = vld [vmem:[%s709 + $0x318] sm:$0xf]
                %820 = vst [vmem:[%s710 + $0xd8] sm:$0xf] %v819
                %v821 = vld [vmem:[%s709 + $0x31c] sm:$0xf]
                %822 = vst [vmem:[%s710 + $0xdc] sm:$0xf] %v821
                %v823 = vld [vmem:[%s709 + $0x320] sm:$0xf]
                %824 = vst [vmem:[%s710 + $0xe0] sm:$0xf] %v823
                %v825 = vld [vmem:[%s709 + $0x324] sm:$0xf]
                %826 = vst [vmem:[%s710 + $0xe4] sm:$0xf] %v825
                %v827 = vld [vmem:[%s709 + $0x328] sm:$0xf]
                %828 = vst [vmem:[%s710 + $0xe8] sm:$0xf] %v827
                %v829 = vld [vmem:[%s709 + $0x32c] sm:$0xf]
                %830 = vst [vmem:[%s710 + $0xec] sm:$0xf] %v829
                %v831 = vld [vmem:[%s709 + $0x330] sm:$0xf]
                %832 = vst [vmem:[%s710 + $0xf0] sm:$0xf] %v831
                %v833 = vld [vmem:[%s709 + $0x334] sm:$0xf]
                %834 = vst [vmem:[%s710 + $0xf4] sm:$0xf] %v833
                %v835 = vld [vmem:[%s709 + $0x338] sm:$0xf]
                %836 = vst [vmem:[%s710 + $0xf8] sm:$0xf] %v835
                %v837 = vld [vmem:[%s709 + $0x33c] sm:$0xf]
                %838 = vst [vmem:[%s710 + $0xfc] sm:$0xf] %v837
                %v839 = vld [vmem:[%s709 + $0x400] sm:$0xf]
                %840 = vst [vmem:[%s710 + $0x100] sm:$0xf] %v839
                %v841 = vld [vmem:[%s709 + $0x404] sm:$0xf]
                %842 = vst [vmem:[%s710 + $0x104] sm:$0xf] %v841
                %v843 = vld [vmem:[%s709 + $0x408] sm:$0xf]
                %844 = vst [vmem:[%s710 + $0x108] sm:$0xf] %v843
                %v845 = vld [vmem:[%s709 + $0x40c] sm:$0xf]
                %846 = vst [vmem:[%s710 + $0x10c] sm:$0xf] %v845
                %v847 = vld [vmem:[%s709 + $0x410] sm:$0xf]
                %848 = vst [vmem:[%s710 + $0x110] sm:$0xf] %v847
                %v849 = vld [vmem:[%s709 + $0x414] sm:$0xf]
                %850 = vst [vmem:[%s710 + $0x114] sm:$0xf] %v849
                %v851 = vld [vmem:[%s709 + $0x418] sm:$0xf]
                %852 = vst [vmem:[%s710 + $0x118] sm:$0xf] %v851
                %v853 = vld [vmem:[%s709 + $0x41c] sm:$0xf]
                %854 = vst [vmem:[%s710 + $0x11c] sm:$0xf] %v853
                %v855 = vld [vmem:[%s709 + $0x420] sm:$0xf]
                %856 = vst [vmem:[%s710 + $0x120] sm:$0xf] %v855
                %v857 = vld [vmem:[%s709 + $0x424] sm:$0xf]
                %858 = vst [vmem:[%s710 + $0x124] sm:$0xf] %v857
                %v859 = vld [vmem:[%s709 + $0x428] sm:$0xf]
                %860 = vst [vmem:[%s710 + $0x128] sm:$0xf] %v859
                %v861 = vld [vmem:[%s709 + $0x42c] sm:$0xf]
                %862 = vst [vmem:[%s710 + $0x12c] sm:$0xf] %v861
                %v863 = vld [vmem:[%s709 + $0x430] sm:$0xf]
                %864 = vst [vmem:[%s710 + $0x130] sm:$0xf] %v863
                %v865 = vld [vmem:[%s709 + $0x434] sm:$0xf]
                %866 = vst [vmem:[%s710 + $0x134] sm:$0xf] %v865
                %v867 = vld [vmem:[%s709 + $0x438] sm:$0xf]
                %868 = vst [vmem:[%s710 + $0x138] sm:$0xf] %v867
                %v869 = vld [vmem:[%s709 + $0x43c] sm:$0xf]
                %870 = vst [vmem:[%s710 + $0x13c] sm:$0xf] %v869
                %v871 = vld [vmem:[%s709 + $0x500] sm:$0xf]
                %872 = vst [vmem:[%s710 + $0x140] sm:$0xf] %v871
                %v873 = vld [vmem:[%s709 + $0x504] sm:$0xf]
                %874 = vst [vmem:[%s710 + $0x144] sm:$0xf] %v873
                %v875 = vld [vmem:[%s709 + $0x508] sm:$0xf]
                %876 = vst [vmem:[%s710 + $0x148] sm:$0xf] %v875
                %v877 = vld [vmem:[%s709 + $0x50c] sm:$0xf]
                %878 = vst [vmem:[%s710 + $0x14c] sm:$0xf] %v877
                %v879 = vld [vmem:[%s709 + $0x510] sm:$0xf]
                %880 = vst [vmem:[%s710 + $0x150] sm:$0xf] %v879
                %v881 = vld [vmem:[%s709 + $0x514] sm:$0xf]
                %882 = vst [vmem:[%s710 + $0x154] sm:$0xf] %v881
                %v883 = vld [vmem:[%s709 + $0x518] sm:$0xf]
                %884 = vst [vmem:[%s710 + $0x158] sm:$0xf] %v883
                %v885 = vld [vmem:[%s709 + $0x51c] sm:$0xf]
                %886 = vst [vmem:[%s710 + $0x15c] sm:$0xf] %v885
                %v887 = vld [vmem:[%s709 + $0x520] sm:$0xf]
                %888 = vst [vmem:[%s710 + $0x160] sm:$0xf] %v887
                %v889 = vld [vmem:[%s709 + $0x524] sm:$0xf]
                %890 = vst [vmem:[%s710 + $0x164] sm:$0xf] %v889
                %v891 = vld [vmem:[%s709 + $0x528] sm:$0xf]
                %892 = vst [vmem:[%s710 + $0x168] sm:$0xf] %v891
                %v893 = vld [vmem:[%s709 + $0x52c] sm:$0xf]
                %894 = vst [vmem:[%s710 + $0x16c] sm:$0xf] %v893
                %v895 = vld [vmem:[%s709 + $0x530] sm:$0xf]
                %896 = vst [vmem:[%s710 + $0x170] sm:$0xf] %v895
                %v897 = vld [vmem:[%s709 + $0x534] sm:$0xf]
                %898 = vst [vmem:[%s710 + $0x174] sm:$0xf] %v897
                %v899 = vld [vmem:[%s709 + $0x538] sm:$0xf]
                %900 = vst [vmem:[%s710 + $0x178] sm:$0xf] %v899
                %v901 = vld [vmem:[%s709 + $0x53c] sm:$0xf]
                %902 = vst [vmem:[%s710 + $0x17c] sm:$0xf] %v901
                %v903 = vld [vmem:[%s709 + $0x600] sm:$0xf]
                %904 = vst [vmem:[%s710 + $0x180] sm:$0xf] %v903
                %v905 = vld [vmem:[%s709 + $0x604] sm:$0xf]
                %906 = vst [vmem:[%s710 + $0x184] sm:$0xf] %v905
                %v907 = vld [vmem:[%s709 + $0x608] sm:$0xf]
                %908 = vst [vmem:[%s710 + $0x188] sm:$0xf] %v907
                %v909 = vld [vmem:[%s709 + $0x60c] sm:$0xf]
                %910 = vst [vmem:[%s710 + $0x18c] sm:$0xf] %v909
                %v911 = vld [vmem:[%s709 + $0x610] sm:$0xf]
                %912 = vst [vmem:[%s710 + $0x190] sm:$0xf] %v911
                %v913 = vld [vmem:[%s709 + $0x614] sm:$0xf]
                %914 = vst [vmem:[%s710 + $0x194] sm:$0xf] %v913
                %v915 = vld [vmem:[%s709 + $0x618] sm:$0xf]
                %916 = vst [vmem:[%s710 + $0x198] sm:$0xf] %v915
                %v917 = vld [vmem:[%s709 + $0x61c] sm:$0xf]
                %918 = vst [vmem:[%s710 + $0x19c] sm:$0xf] %v917
                %v919 = vld [vmem:[%s709 + $0x620] sm:$0xf]
                %920 = vst [vmem:[%s710 + $0x1a0] sm:$0xf] %v919
                %v921 = vld [vmem:[%s709 + $0x624] sm:$0xf]
                %922 = vst [vmem:[%s710 + $0x1a4] sm:$0xf] %v921
                %v923 = vld [vmem:[%s709 + $0x628] sm:$0xf]
                %924 = vst [vmem:[%s710 + $0x1a8] sm:$0xf] %v923
                %v925 = vld [vmem:[%s709 + $0x62c] sm:$0xf]
                %926 = vst [vmem:[%s710 + $0x1ac] sm:$0xf] %v925
                %v927 = vld [vmem:[%s709 + $0x630] sm:$0xf]
                %928 = vst [vmem:[%s710 + $0x1b0] sm:$0xf] %v927
                %v929 = vld [vmem:[%s709 + $0x634] sm:$0xf]
                %930 = vst [vmem:[%s710 + $0x1b4] sm:$0xf] %v929
                %v931 = vld [vmem:[%s709 + $0x638] sm:$0xf]
                %932 = vst [vmem:[%s710 + $0x1b8] sm:$0xf] %v931
                %v933 = vld [vmem:[%s709 + $0x63c] sm:$0xf]
                %934 = vst [vmem:[%s710 + $0x1bc] sm:$0xf] %v933
                %v935 = vld [vmem:[%s709 + $0x700] sm:$0xf]
                %936 = vst [vmem:[%s710 + $0x1c0] sm:$0xf] %v935
                %v937 = vld [vmem:[%s709 + $0x704] sm:$0xf]
                %938 = vst [vmem:[%s710 + $0x1c4] sm:$0xf] %v937
                %v939 = vld [vmem:[%s709 + $0x708] sm:$0xf]
                %940 = vst [vmem:[%s710 + $0x1c8] sm:$0xf] %v939
                %v941 = vld [vmem:[%s709 + $0x70c] sm:$0xf]
                %942 = vst [vmem:[%s710 + $0x1cc] sm:$0xf] %v941
                %v943 = vld [vmem:[%s709 + $0x710] sm:$0xf]
                %944 = vst [vmem:[%s710 + $0x1d0] sm:$0xf] %v943
                %v945 = vld [vmem:[%s709 + $0x714] sm:$0xf]
                %946 = vst [vmem:[%s710 + $0x1d4] sm:$0xf] %v945
                %v947 = vld [vmem:[%s709 + $0x718] sm:$0xf]
                %948 = vst [vmem:[%s710 + $0x1d8] sm:$0xf] %v947
                %v949 = vld [vmem:[%s709 + $0x71c] sm:$0xf]
                %950 = vst [vmem:[%s710 + $0x1dc] sm:$0xf] %v949
                %v951 = vld [vmem:[%s709 + $0x720] sm:$0xf]
                %952 = vst [vmem:[%s710 + $0x1e0] sm:$0xf] %v951
                %v953 = vld [vmem:[%s709 + $0x724] sm:$0xf]
                %954 = vst [vmem:[%s710 + $0x1e4] sm:$0xf] %v953
                %v955 = vld [vmem:[%s709 + $0x728] sm:$0xf]
                %956 = vst [vmem:[%s710 + $0x1e8] sm:$0xf] %v955
                %v957 = vld [vmem:[%s709 + $0x72c] sm:$0xf]
                %958 = vst [vmem:[%s710 + $0x1ec] sm:$0xf] %v957
                %v959 = vld [vmem:[%s709 + $0x730] sm:$0xf]
                %960 = vst [vmem:[%s710 + $0x1f0] sm:$0xf] %v959
                %v961 = vld [vmem:[%s709 + $0x734] sm:$0xf]
                %962 = vst [vmem:[%s710 + $0x1f4] sm:$0xf] %v961
                %v963 = vld [vmem:[%s709 + $0x738] sm:$0xf]
                %964 = vst [vmem:[%s710 + $0x1f8] sm:$0xf] %v963
                %v965 = vld [vmem:[%s709 + $0x73c] sm:$0xf]
                %966 = vst [vmem:[%s710 + $0x1fc] sm:$0xf] %v965
                %v967 = vld [vmem:[%s709 + $0x800] sm:$0xf]
                %968 = vst [vmem:[%s710 + $0x200] sm:$0xf] %v967
                %v969 = vld [vmem:[%s709 + $0x804] sm:$0xf]
                %970 = vst [vmem:[%s710 + $0x204] sm:$0xf] %v969
                %v971 = vld [vmem:[%s709 + $0x808] sm:$0xf]
                %972 = vst [vmem:[%s710 + $0x208] sm:$0xf] %v971
                %v973 = vld [vmem:[%s709 + $0x80c] sm:$0xf]
                %974 = vst [vmem:[%s710 + $0x20c] sm:$0xf] %v973
                %v975 = vld [vmem:[%s709 + $0x810] sm:$0xf]
                %976 = vst [vmem:[%s710 + $0x210] sm:$0xf] %v975
                %v977 = vld [vmem:[%s709 + $0x814] sm:$0xf]
                %978 = vst [vmem:[%s710 + $0x214] sm:$0xf] %v977
                %v979 = vld [vmem:[%s709 + $0x818] sm:$0xf]
                %980 = vst [vmem:[%s710 + $0x218] sm:$0xf] %v979
                %v981 = vld [vmem:[%s709 + $0x81c] sm:$0xf]
                %982 = vst [vmem:[%s710 + $0x21c] sm:$0xf] %v981
                %v983 = vld [vmem:[%s709 + $0x820] sm:$0xf]
                %984 = vst [vmem:[%s710 + $0x220] sm:$0xf] %v983
                %v985 = vld [vmem:[%s709 + $0x824] sm:$0xf]
                %986 = vst [vmem:[%s710 + $0x224] sm:$0xf] %v985
                %v987 = vld [vmem:[%s709 + $0x828] sm:$0xf]
                %988 = vst [vmem:[%s710 + $0x228] sm:$0xf] %v987
                %v989 = vld [vmem:[%s709 + $0x82c] sm:$0xf]
                %990 = vst [vmem:[%s710 + $0x22c] sm:$0xf] %v989
                %v991 = vld [vmem:[%s709 + $0x830] sm:$0xf]
                %992 = vst [vmem:[%s710 + $0x230] sm:$0xf] %v991
                %v993 = vld [vmem:[%s709 + $0x834] sm:$0xf]
                %994 = vst [vmem:[%s710 + $0x234] sm:$0xf] %v993
                %v995 = vld [vmem:[%s709 + $0x838] sm:$0xf]
                %996 = vst [vmem:[%s710 + $0x238] sm:$0xf] %v995
                %v997 = vld [vmem:[%s709 + $0x83c] sm:$0xf]
                %998 = vst [vmem:[%s710 + $0x23c] sm:$0xf] %v997
              $region160: #{fcn_decode_forward.5} parent=154 // loop_footer
                %s708 = sadd.s32 1, %s704
              $region161: #{fcn_decode_forward.5} parent=154 // loop_footer_branch
                %703 = sbr.rel target = $region157
              $region162: #{fcn_decode_forward.5} parent=154 // loop_exit
                _
            $region155: #{fcn_decode_forward.5} parent=146 // pred_fallthru
              _
          $region147: #{fcn_decode_forward.5} parent=142 // pred_fallthru
            _
          %1306 = vnop
        $region143: #{fcn_decode_forward.5} parent=15 // pred_fallthru
          _
      $region16: #{fcn_decode_forward.5} parent=5 // pred_fallthru
        _
      %p1307 = scmp.le.s32.totalorder 1, %s13
      %p1308 = scmp.lt.s32.totalorder %s13, 17
      %p1309 = pnand %p1307, %p1308
      %p1310 = pneg %p1309
      // Predicated region
      $region181: #{fcn_decode_forward.5} parent=5 // pred_check
        _
      $region182: #{fcn_decode_forward.5} parent=5 // pred_check_branch
        %1312 = sbr.rel (%p1309) target = $region184
      $region183: #{fcn_decode_forward.5} parent=5 // pred_region
        %s1313 = ssub.s32 %s13, 1
        %s1314 = sand.u32 %s49, 1
        %s1315 = sand.u32 %s49, 1
        %s1316 = smul.addr %s1315, 96
        %s1317 = scalar_lea.vmem [#allocation2], %s1316
        // Predicated region
        $region185: #{fcn_decode_forward.5} parent=183 // pred_check
          %p1318 = pneg %p62
        $region186: #{fcn_decode_forward.5} parent=183 // pred_check_branch
          %1320 = sbr.rel (%p1318) target = $region188
        $region187: #{fcn_decode_forward.5} parent=183 // pred_region
          _
        $region188: #{fcn_decode_forward.5} parent=183 // pred_fallthru
          _
        %s1321 = sand.u32 %s79, 1
        %s1322 = sand.u32 %s79, 1
        %s1323 = smul.addr %s1322, 96
        %s1324 = scalar_lea.vmem [#allocation3], %s1323
        // Predicated region
        $region189: #{fcn_decode_forward.5} parent=183 // pred_check
          %p1325 = pneg %p92
        $region190: #{fcn_decode_forward.5} parent=183 // pred_check_branch
          %1327 = sbr.rel (%p1325) target = $region192
        $region191: #{fcn_decode_forward.5} parent=183 // pred_region
          _
        $region192: #{fcn_decode_forward.5} parent=183 // pred_fallthru
          _
        %s1328 = sand.u32 %s109, 1
        %s1329 = sand.u32 %s109, 1
        %s1330 = smul.addr %s1329, 96
        %s1331 = scalar_lea.vmem [#allocation4], %s1330
        // Predicated region
        $region193: #{fcn_decode_forward.5} parent=183 // pred_check
          %p1332 = pneg %p122
        $region194: #{fcn_decode_forward.5} parent=183 // pred_check_branch
          %1334 = sbr.rel (%p1332) target = $region196
        $region195: #{fcn_decode_forward.5} parent=183 // pred_region
          _
        $region196: #{fcn_decode_forward.5} parent=183 // pred_fallthru
          _
        %s1335 = sand.u32 %s135, 1
        %s1336 = sand.u32 %s135, 1
        %s1337 = smul.addr %s1336, 576
        %s1338 = scalar_lea.vmem [#allocation5], %s1337
        // Predicated region
        $region197: #{fcn_decode_forward.5} parent=183 // pred_check
          %p1339 = pneg %p148
        $region198: #{fcn_decode_forward.5} parent=183 // pred_check_branch
          %1341 = sbr.rel (%p1339) target = $region200
        $region199: #{fcn_decode_forward.5} parent=183 // pred_region
          _
        $region200: #{fcn_decode_forward.5} parent=183 // pred_fallthru
          _
        %s1342 = sand.u32 %s49, 1
        %s1343 = sand.u32 %s49, 1
        %s1344 = smul.addr %s1343, 96
        %s1345 = scalar_lea.vmem [#allocation2], %s1344
        %p1346 = pneg %p62
        %p1347 = pneg %p59
        %s1348 = sand.u32 %s79, 1
        %s1349 = sand.u32 %s79, 1
        %s1350 = smul.addr %s1349, 96
        %s1351 = scalar_lea.vmem [#allocation3], %s1350
        %p1352 = pneg %p92
        %p1353 = pneg %p89
        %s1354 = sand.u32 %s109, 1
        %s1355 = sand.u32 %s109, 1
        %s1356 = smul.addr %s1355, 96
        %s1357 = scalar_lea.vmem [#allocation4], %s1356
        %p1358 = pneg %p122
        %p1359 = pneg %p119
        %s1360 = sand.u32 %s135, 1
        %s1361 = sand.u32 %s135, 1
        %s1362 = smul.addr %s1361, 576
        %s1363 = scalar_lea.vmem [#allocation5], %s1362
        %p1364 = pneg %p148
        %p1365 = pneg %p145
        %p1366 = pneg %p176
        %p1367 = pneg %p173
        %s1368 = smul.u32 8, %s24
        %p1369 = scmp.lt.s32.totalorder %s23, 1
        %s1370 = scalar_select %p1369, %s23, 1
        %p1371 = scmp.lt.s32.totalorder %s1368, 15
        %s1372 = scalar_select %p1371, %s1368, 15
        %s1373 = smul.addr %s1372, 2
        %s1374 = smul.addr %s1370, 32
        %s1375 = sadd.s32 %s1373, %s1374
        %s1376 = smul.addr %s1375, 8
        %s1377 = scalar_lea.vmem %s4, %s1376
        %p1378 = pneg %p204
        %p1379 = pneg %p201
        %p1380 = scmp.lt.s32.totalorder %s23, 1
        %s1381 = scalar_select %p1380, %s23, 1
        %p1382 = scmp.lt.s32.totalorder %s24, 1
        %s1383 = scalar_select %p1382, %s24, 1
        %s1384 = smul.addr %s1381, 2
        %s1385 = sadd.s32 %s1383, %s1384
        %s1386 = smul.addr %s1385, 8
        %s1387 = scalar_lea.vmem %s5, %s1386
        %p1388 = pneg %p232
        %p1389 = pneg %p229
        %p1390 = scmp.lt.s32.totalorder %s23, 1
        %s1391 = scalar_select %p1390, %s23, 1
        %p1392 = scmp.lt.s32.totalorder %s24, 1
        %s1393 = scalar_select %p1392, %s24, 1
        %s1394 = smul.addr %s1391, 2
        %s1395 = sadd.s32 %s1393, %s1394
        %s1396 = smul.addr %s1395, 8
        %s1397 = scalar_lea.vmem %s6, %s1396
        %s1398 = smul.u32 8, %s24
        %s1399 = smul.u32 8, %s24
        %s1400 = smul.u32 8, %s24
        %s1401 = smul.u32 16, %s25
        %s1402 = smul.u32 8, %s24
        %p1403 = scmp.lt.s32.totalorder %s23, 1
        %s1404 = scalar_select %p1403, %s23, 1
        %p1405 = scmp.lt.s32.totalorder %s1402, 15
        %s1406 = scalar_select %p1405, %s1402, 15
        %s1407 = smul.addr %s1406, 2
        %s1408 = smul.addr %s1404, 32
        %s1409 = sadd.s32 %s1407, %s1408
        %s1410 = smul.addr %s1409, 8
        %s1411 = scalar_lea.vmem %s4, %s1410
        %s1412 = smul.u32 8, %s24
        %p1413 = scmp.lt.s32.totalorder %s23, 1
        %s1414 = scalar_select %p1413, %s23, 1
        %p1415 = scmp.lt.s32.totalorder %s24, 1
        %s1416 = scalar_select %p1415, %s24, 1
        %s1417 = smul.addr %s1414, 2
        %s1418 = sadd.s32 %s1416, %s1417
        %s1419 = smul.addr %s1418, 8
        %s1420 = scalar_lea.vmem %s5, %s1419
        %p1421 = scmp.lt.s32.totalorder %s23, 1
        %s1422 = scalar_select %p1421, %s23, 1
        %p1423 = scmp.lt.s32.totalorder %s24, 1
        %s1424 = scalar_select %p1423, %s24, 1
        %s1425 = smul.addr %s1422, 2
        %s1426 = sadd.s32 %s1424, %s1425
        %s1427 = smul.addr %s1426, 8
        %s1428 = scalar_lea.vmem %s6, %s1427
        %p1430 = scmp.eq.s32.totalorder %s25, 0
        // Predicated region
        $region201: #{fcn_decode_forward.5} parent=183 // pred_check
          %p1431 = pneg %p1430
        $region202: #{fcn_decode_forward.5} parent=183 // pred_check_branch
          %1433 = sbr.rel (%p1431) target = $region204
        $region203: #{fcn_decode_forward.5} parent=183 // pred_region
          %1434 = vst [vmem:[%s1411] sm:$0xff] 0.0
          %1435 = vst [vmem:[%s1411 + $0x8] sm:$0xff] 0.0
          %1436 = vst [vmem:[%s1411 + $0x10] sm:$0xff] 0.0
          %1437 = vst [vmem:[%s1411 + $0x18] sm:$0xff] 0.0
          %1438 = vst [vmem:[%s1411 + $0x20] sm:$0xff] 0.0
          %1439 = vst [vmem:[%s1411 + $0x28] sm:$0xff] 0.0
          %1440 = vst [vmem:[%s1411 + $0x30] sm:$0xff] 0.0
          %1441 = vst [vmem:[%s1411 + $0x38] sm:$0xff] 0.0
          %1442 = vst [vmem:[%s1411 + $0x40] sm:$0xff] 0.0
          %1443 = vst [vmem:[%s1411 + $0x48] sm:$0xff] 0.0
          %1444 = vst [vmem:[%s1411 + $0x50] sm:$0xff] 0.0
          %1445 = vst [vmem:[%s1411 + $0x58] sm:$0xff] 0.0
          %1446 = vst [vmem:[%s1411 + $0x60] sm:$0xff] 0.0
          %1447 = vst [vmem:[%s1411 + $0x68] sm:$0xff] 0.0
          %1448 = vst [vmem:[%s1411 + $0x70] sm:$0xff] 0.0
          %1449 = vst [vmem:[%s1411 + $0x78] sm:$0xff] 0.0
        $region204: #{fcn_decode_forward.5} parent=183 // pred_fallthru
          _
        %v1450 = vld [vmem:[%s1317] sm:$0xf]
        %v1451 = vld [vmem:[%s1317 + $0x4] sm:$0xf]
        %v1452 = vld [vmem:[%s1317 + $0x8] sm:$0x1]
        %v1453 = vld [vmem:[%s1317 + $0xc] sm:$0xf]
        %v1454 = vld [vmem:[%s1317 + $0x10] sm:$0xf]
        %v1455 = vld [vmem:[%s1317 + $0x14] sm:$0x1]
        %v1456 = vld [vmem:[%s1317 + $0x18] sm:$0xf]
        %v1457 = vld [vmem:[%s1317 + $0x1c] sm:$0xf]
        %v1458 = vld [vmem:[%s1317 + $0x20] sm:$0x1]
        %v1459 = vld [vmem:[%s1317 + $0x24] sm:$0xf]
        %v1460 = vld [vmem:[%s1317 + $0x28] sm:$0xf]
        %v1461 = vld [vmem:[%s1317 + $0x2c] sm:$0x1]
        %v1462 = vld [vmem:[%s1317 + $0x30] sm:$0xf]
        %v1463 = vld [vmem:[%s1317 + $0x34] sm:$0xf]
        %v1464 = vld [vmem:[%s1317 + $0x38] sm:$0x1]
        %v1465 = vld [vmem:[%s1317 + $0x3c] sm:$0xf]
        %v1466 = vld [vmem:[%s1317 + $0x40] sm:$0xf]
        %v1467 = vld [vmem:[%s1317 + $0x44] sm:$0x1]
        %v1468 = vld [vmem:[%s1317 + $0x48] sm:$0xf]
        %v1469 = vld [vmem:[%s1317 + $0x4c] sm:$0xf]
        %v1470 = vld [vmem:[%s1317 + $0x50] sm:$0x1]
        %v1471 = vld [vmem:[%s1317 + $0x54] sm:$0xf]
        %v1472 = vld [vmem:[%s1317 + $0x58] sm:$0xf]
        %v1473 = vld [vmem:[%s1317 + $0x5c] sm:$0x1]
        %v1474 = vld [vmem:[%s1338] sm:$0xf]
        %v1475 = vld [vmem:[%s1338 + $0x4] sm:$0xf]
        %v1476 = vld [vmem:[%s1338 + $0x8] sm:$0xf]
        %v1477 = vld [vmem:[%s1338 + $0xc] sm:$0xf]
        %v1478 = vld [vmem:[%s1338 + $0x10] sm:$0xf]
        %v1479 = vld [vmem:[%s1338 + $0x14] sm:$0xf]
        %v1480 = vld [vmem:[%s1338 + $0x18] sm:$0xf]
        %v1481 = vld [vmem:[%s1338 + $0x1c] sm:$0xf]
        %v1482 = vld [vmem:[%s1338 + $0x20] sm:$0xf]
        %v1483 = vld [vmem:[%s1338 + $0x24] sm:$0xf]
        %v1484 = vld [vmem:[%s1338 + $0x28] sm:$0xf]
        %v1485 = vld [vmem:[%s1338 + $0x2c] sm:$0xf]
        %v1486 = vld [vmem:[%s1338 + $0x30] sm:$0xf]
        %v1487 = vld [vmem:[%s1338 + $0x34] sm:$0xf]
        %v1488 = vld [vmem:[%s1338 + $0x38] sm:$0xf]
        %v1489 = vld [vmem:[%s1338 + $0x3c] sm:$0xf]
        %vm1490 = vsmask.f32 3328
        %vm1491 = vsmask.f32 7440
        %vm1492 = vmor %vm1490, %vm1491
        %v1494 = vshrl.u32 %v1450, 16
        %v1496 = vrot.slane %v1494, 4
        %v1497 = vshll.u32 %v1450, 16
        %v1499 = vrot.slane %v1497, 5
        %v1500 = vor.u32 %v1496, %v1499
        %v1501 = vrot.slane %v1500, 4
        %v1503 = vshll.u32 %v1451, 16
        %v1505 = vrot.slane %v1503, 5
        %v1506 = vsel %vm1492, %v1501, %v1505
        %v1507 = vshrl.u32 %v1451, 16
        %v1509 = vrot.slane %v1507, 4
        %v1510 = vor.u32 %v1509, %v1505
        %v1511 = vrot.slane %v1510, 4
        %v1513 = vshll.u32 %v1452, 16
        %v1515 = vrot.slane %v1513, 5
        %v1516 = vsel %vm1492, %v1511, %v1515
        %v1518 = vshrl.u32 %v1453, 16
        %v1520 = vrot.slane %v1518, 4
        %v1521 = vshll.u32 %v1453, 16
        %v1523 = vrot.slane %v1521, 5
        %v1524 = vor.u32 %v1520, %v1523
        %v1525 = vrot.slane %v1524, 4
        %v1527 = vshll.u32 %v1454, 16
        %v1529 = vrot.slane %v1527, 5
        %v1530 = vsel %vm1492, %v1525, %v1529
        %v1531 = vshrl.u32 %v1454, 16
        %v1533 = vrot.slane %v1531, 4
        %v1534 = vor.u32 %v1533, %v1529
        %v1535 = vrot.slane %v1534, 4
        %v1537 = vshll.u32 %v1455, 16
        %v1539 = vrot.slane %v1537, 5
        %v1540 = vsel %vm1492, %v1535, %v1539
        %v1542 = vshrl.u32 %v1456, 16
        %v1544 = vrot.slane %v1542, 4
        %v1545 = vshll.u32 %v1456, 16
        %v1547 = vrot.slane %v1545, 5
        %v1548 = vor.u32 %v1544, %v1547
        %v1549 = vrot.slane %v1548, 4
        %v1551 = vshll.u32 %v1457, 16
        %v1553 = vrot.slane %v1551, 5
        %v1554 = vsel %vm1492, %v1549, %v1553
        %v1555 = vshrl.u32 %v1457, 16
        %v1557 = vrot.slane %v1555, 4
        %v1558 = vor.u32 %v1557, %v1553
        %v1559 = vrot.slane %v1558, 4
        %v1561 = vshll.u32 %v1458, 16
        %v1563 = vrot.slane %v1561, 5
        %v1564 = vsel %vm1492, %v1559, %v1563
        %v1566 = vshrl.u32 %v1459, 16
        %v1568 = vrot.slane %v1566, 4
        %v1569 = vshll.u32 %v1459, 16
        %v1571 = vrot.slane %v1569, 5
        %v1572 = vor.u32 %v1568, %v1571
        %v1573 = vrot.slane %v1572, 4
        %v1575 = vshll.u32 %v1460, 16
        %v1577 = vrot.slane %v1575, 5
        %v1578 = vsel %vm1492, %v1573, %v1577
        %v1579 = vshrl.u32 %v1460, 16
        %v1581 = vrot.slane %v1579, 4
        %v1582 = vor.u32 %v1581, %v1577
        %v1583 = vrot.slane %v1582, 4
        %v1585 = vshll.u32 %v1461, 16
        %v1587 = vrot.slane %v1585, 5
        %v1588 = vsel %vm1492, %v1583, %v1587
        %v1590 = vshrl.u32 %v1462, 16
        %v1592 = vrot.slane %v1590, 4
        %v1593 = vshll.u32 %v1462, 16
        %v1595 = vrot.slane %v1593, 5
        %v1596 = vor.u32 %v1592, %v1595
        %v1597 = vrot.slane %v1596, 4
        %v1599 = vshll.u32 %v1463, 16
        %v1601 = vrot.slane %v1599, 5
        %v1602 = vsel %vm1492, %v1597, %v1601
        %v1603 = vshrl.u32 %v1463, 16
        %v1605 = vrot.slane %v1603, 4
        %v1606 = vor.u32 %v1605, %v1601
        %v1607 = vrot.slane %v1606, 4
        %v1609 = vshll.u32 %v1464, 16
        %v1611 = vrot.slane %v1609, 5
        %v1612 = vsel %vm1492, %v1607, %v1611
        %v1614 = vshrl.u32 %v1465, 16
        %v1616 = vrot.slane %v1614, 4
        %v1617 = vshll.u32 %v1465, 16
        %v1619 = vrot.slane %v1617, 5
        %v1620 = vor.u32 %v1616, %v1619
        %v1621 = vrot.slane %v1620, 4
        %v1623 = vshll.u32 %v1466, 16
        %v1625 = vrot.slane %v1623, 5
        %v1626 = vsel %vm1492, %v1621, %v1625
        %v1627 = vshrl.u32 %v1466, 16
        %v1629 = vrot.slane %v1627, 4
        %v1630 = vor.u32 %v1629, %v1625
        %v1631 = vrot.slane %v1630, 4
        %v1633 = vshll.u32 %v1467, 16
        %v1635 = vrot.slane %v1633, 5
        %v1636 = vsel %vm1492, %v1631, %v1635
        %v1638 = vshrl.u32 %v1468, 16
        %v1640 = vrot.slane %v1638, 4
        %v1641 = vshll.u32 %v1468, 16
        %v1643 = vrot.slane %v1641, 5
        %v1644 = vor.u32 %v1640, %v1643
        %v1645 = vrot.slane %v1644, 4
        %v1647 = vshll.u32 %v1469, 16
        %v1649 = vrot.slane %v1647, 5
        %v1650 = vsel %vm1492, %v1645, %v1649
        %v1651 = vshrl.u32 %v1469, 16
        %v1653 = vrot.slane %v1651, 4
        %v1654 = vor.u32 %v1653, %v1649
        %v1655 = vrot.slane %v1654, 4
        %v1657 = vshll.u32 %v1470, 16
        %v1659 = vrot.slane %v1657, 5
        %v1660 = vsel %vm1492, %v1655, %v1659
        %v1662 = vshrl.u32 %v1471, 16
        %v1664 = vrot.slane %v1662, 4
        %v1665 = vshll.u32 %v1471, 16
        %v1667 = vrot.slane %v1665, 5
        %v1668 = vor.u32 %v1664, %v1667
        %v1669 = vrot.slane %v1668, 4
        %v1671 = vshll.u32 %v1472, 16
        %v1673 = vrot.slane %v1671, 5
        %v1674 = vsel %vm1492, %v1669, %v1673
        %v1675 = vshrl.u32 %v1472, 16
        %v1677 = vrot.slane %v1675, 4
        %v1678 = vor.u32 %v1677, %v1673
        %v1679 = vrot.slane %v1678, 4
        %v1681 = vshll.u32 %v1473, 16
        %v1683 = vrot.slane %v1681, 5
        %v1684 = vsel %vm1492, %v1679, %v1683
        %s1685 = scalar_lea.vmem %s1338, 64 [#allocation5]
        %v1686 = vld [vmem:[%s1685] sm:$0xf]
        %v1687 = vld [vmem:[%s1685 + $0x4] sm:$0xf]
        %v1688 = vld [vmem:[%s1685 + $0x8] sm:$0xf]
        %v1689 = vld [vmem:[%s1685 + $0xc] sm:$0xf]
        %v1690 = vld [vmem:[%s1685 + $0x10] sm:$0xf]
        %v1691 = vld [vmem:[%s1685 + $0x14] sm:$0xf]
        %v1692 = vld [vmem:[%s1685 + $0x18] sm:$0xf]
        %v1693 = vld [vmem:[%s1685 + $0x1c] sm:$0xf]
        %v1694 = vld [vmem:[%s1685 + $0x20] sm:$0xf]
        %v1695 = vld [vmem:[%s1685 + $0x24] sm:$0xf]
        %v1696 = vld [vmem:[%s1685 + $0x28] sm:$0xf]
        %v1697 = vld [vmem:[%s1685 + $0x2c] sm:$0xf]
        %v1698 = vld [vmem:[%s1685 + $0x30] sm:$0xf]
        %v1699 = vld [vmem:[%s1685 + $0x34] sm:$0xf]
        %v1700 = vld [vmem:[%s1685 + $0x38] sm:$0xf]
        %v1701 = vld [vmem:[%s1685 + $0x3c] sm:$0xf]
        %v1702 = vunpack.c.l.b16 %v1506
        %v1703 = vunpack.c.l.b16 %v1516
        %v1704 = vunpack.c.l.b16 %v1530
        %v1705 = vunpack.c.l.b16 %v1540
        %v1706 = vunpack.c.l.b16 %v1554
        %v1707 = vunpack.c.l.b16 %v1564
        %v1708 = vunpack.c.l.b16 %v1578
        %v1709 = vunpack.c.l.b16 %v1588
        %v1710 = vunpack.c.l.b16 %v1602
        %v1711 = vunpack.c.l.b16 %v1612
        %v1712 = vunpack.c.l.b16 %v1626
        %v1713 = vunpack.c.l.b16 %v1636
        %v1714 = vunpack.c.l.b16 %v1650
        %v1715 = vunpack.c.l.b16 %v1660
        %v1716 = vunpack.c.l.b16 %v1674
        %v1717 = vunpack.c.l.b16 %v1684
        %v1718 = vpack.c.b16 %v1703, %v1702
        %v1719 = vpack.c.b16 %v1705, %v1704
        %v1720 = vpack.c.b16 %v1707, %v1706
        %v1721 = vpack.c.b16 %v1709, %v1708
        %v1722 = vpack.c.b16 %v1711, %v1710
        %v1723 = vpack.c.b16 %v1713, %v1712
        %v1724 = vpack.c.b16 %v1715, %v1714
        %v1725 = vpack.c.b16 %v1717, %v1716
        %v1750 = vunpack.c.l.b16 %v1686
        %v1751 = vunpack.c.l.b16 %v1687
        %v1752 = vunpack.c.l.b16 %v1688
        %v1753 = vunpack.c.l.b16 %v1689
        %v1754 = vunpack.c.l.b16 %v1690
        %v1755 = vunpack.c.l.b16 %v1691
        %v1756 = vunpack.c.l.b16 %v1692
        %v1757 = vunpack.c.l.b16 %v1693
        %v1758 = vunpack.c.l.b16 %v1694
        %v1759 = vunpack.c.l.b16 %v1695
        %v1760 = vunpack.c.l.b16 %v1696
        %v1761 = vunpack.c.l.b16 %v1697
        %v1762 = vunpack.c.l.b16 %v1698
        %v1763 = vunpack.c.l.b16 %v1699
        %v1764 = vunpack.c.l.b16 %v1700
        %v1765 = vunpack.c.l.b16 %v1701
        %v1766 = vpack.c.b16 %v1751, %v1750
        %v1767 = vpack.c.b16 %v1753, %v1752
        %v1768 = vpack.c.b16 %v1755, %v1754
        %v1769 = vpack.c.b16 %v1757, %v1756
        %v1770 = vpack.c.b16 %v1759, %v1758
        %v1771 = vpack.c.b16 %v1761, %v1760
        %v1772 = vpack.c.b16 %v1763, %v1762
        %v1773 = vpack.c.b16 %v1765, %v1764
        %1782 = vmatprep.subr.bf16.mxu0 0
        %1783 = vmatpush1.bf16.msra.mxu0 %v1766
        %1784 = vmatprep.subr.bf16.mxu0 0
        %1785 = vmatpush1.bf16.msra.mxu0 %v1767
        %1786 = vmatprep.subr.bf16.mxu0 0
        %1787 = vmatpush1.bf16.msra.mxu0 %v1768
        %1788 = vmatprep.subr.bf16.mxu0 0
        %1789 = vmatpush1.bf16.msra.mxu0 %v1769
        %1790 = vmatprep.subr.bf16.mxu0 0
        %1791 = vmatpush1.bf16.msra.mxu0 %v1770
        %1792 = vmatprep.subr.bf16.mxu0 0
        %1793 = vmatpush1.bf16.msra.mxu0 %v1771
        %1794 = vmatprep.subr.bf16.mxu0 0
        %1795 = vmatpush1.bf16.msra.mxu0 %v1772
        %1796 = vmatprep.subr.bf16.mxu0 0
        %1797 = vmatpush1.bf16.msra.mxu0 %v1773
        %1798 = vmatprep.subr.bf16.mxu0 0
        %1799 = vmatpush1.bf16.msra.mxu0 0
        %1800 = vmatprep.subr.bf16.mxu0 0
        %1801 = vmatpush1.bf16.msra.mxu0 0
        %1802 = vmatprep.subr.bf16.mxu0 0
        %1803 = vmatpush1.bf16.msra.mxu0 0
        %1804 = vmatprep.subr.bf16.mxu0 0
        %1805 = vmatpush1.bf16.msra.mxu0 0
        %1806 = vmatprep.subr.bf16.mxu0 0
        %1807 = vmatpush1.bf16.msra.mxu0 0
        %1808 = vmatprep.subr.bf16.mxu0 0
        %1809 = vmatpush1.bf16.msra.mxu0 0
        %1810 = vmatprep.subr.bf16.mxu0 0
        %1811 = vmatpush1.bf16.msra.mxu0 0
        %1812 = vmatprep.subr.bf16.mxu0 0
        %1813 = vmatpush1.bf16.msra.mxu0 0
        %1814 = vmatprep.mubr.bf16.mxu0 0
        %1815 = vmatmul.mubr.bf16.gmra.mrb[0].mxu0 %v1718
        %v1816 = vpop.f32.mrb[0].mxu0
        %v1817 = vadd.f32 0.0, %v1816
        %v1818 = vpop.f32.mrb[0].mxu0
        %v1819 = vpop.f32.mrb[0].mxu0
        %v1820 = vadd.f32 0.0, %v1819
        %v1821 = vpop.f32.mrb[0].mxu0
        %1822 = vmatprep.mubr.bf16.mxu0 0
        %1823 = vmatmul.mubr.bf16.gmra.mrb[0].mxu0 %v1719
        %v1824 = vpop.f32.mrb[0].mxu0
        %v1825 = vadd.f32 0.0, %v1824
        %v1826 = vpop.f32.mrb[0].mxu0
        %v1827 = vpop.f32.mrb[0].mxu0
        %v1828 = vadd.f32 0.0, %v1827
        %v1829 = vpop.f32.mrb[0].mxu0
        %1830 = vmatprep.mubr.bf16.mxu0 0
        %1831 = vmatmul.mubr.bf16.gmra.mrb[0].mxu0 %v1720
        %v1832 = vpop.f32.mrb[0].mxu0
        %v1833 = vadd.f32 0.0, %v1832
        %v1834 = vpop.f32.mrb[0].mxu0
        %v1835 = vpop.f32.mrb[0].mxu0
        %v1836 = vadd.f32 0.0, %v1835
        %v1837 = vpop.f32.mrb[0].mxu0
        %1838 = vmatprep.mubr.bf16.mxu0 0
        %1839 = vmatmul.mubr.bf16.gmra.mrb[0].mxu0 %v1721
        %v1840 = vpop.f32.mrb[0].mxu0
        %v1841 = vadd.f32 0.0, %v1840
        %v1842 = vpop.f32.mrb[0].mxu0
        %v1843 = vpop.f32.mrb[0].mxu0
        %v1844 = vadd.f32 0.0, %v1843
        %v1845 = vpop.f32.mrb[0].mxu0
        %1846 = vmatprep.mubr.bf16.mxu0 0
        %1847 = vmatmul.mubr.bf16.gmra.mrb[0].mxu0 %v1722
        %v1848 = vpop.f32.mrb[0].mxu0
        %v1849 = vadd.f32 0.0, %v1848
        %v1850 = vpop.f32.mrb[0].mxu0
        %v1851 = vpop.f32.mrb[0].mxu0
        %v1852 = vadd.f32 0.0, %v1851
        %v1853 = vpop.f32.mrb[0].mxu0
        %1854 = vmatprep.mubr.bf16.mxu0 0
        %1855 = vmatmul.mubr.bf16.gmra.mrb[0].mxu0 %v1723
        %v1856 = vpop.f32.mrb[0].mxu0
        %v1857 = vadd.f32 0.0, %v1856
        %v1858 = vpop.f32.mrb[0].mxu0
        %v1859 = vpop.f32.mrb[0].mxu0
        %v1860 = vadd.f32 0.0, %v1859
        %v1861 = vpop.f32.mrb[0].mxu0
        %1862 = vmatprep.mubr.bf16.mxu0 0
        %1863 = vmatmul.mubr.bf16.gmra.mrb[0].mxu0 %v1724
        %v1864 = vpop.f32.mrb[0].mxu0
        %v1865 = vadd.f32 0.0, %v1864
        %v1866 = vpop.f32.mrb[0].mxu0
        %v1867 = vpop.f32.mrb[0].mxu0
        %v1868 = vadd.f32 0.0, %v1867
        %v1869 = vpop.f32.mrb[0].mxu0
        %1870 = vmatprep.mubr.bf16.mxu0 0
        %1871 = vmatmul.mubr.bf16.gmra.mrb[0].mxu0 %v1725
        %v1872 = vpop.f32.mrb[0].mxu0
        %v1873 = vadd.f32 0.0, %v1872
        %v1874 = vpop.f32.mrb[0].mxu0
        %v1875 = vpop.f32.mrb[0].mxu0
        %v1876 = vadd.f32 0.0, %v1875
        %v1877 = vpop.f32.mrb[0].mxu0
        %1878 = vdwg.mxu0
        %v1895 = vunpack.c.l.b16 %v1450
        %v1896 = vunpack.c.l.b16 %v1451
        %v1897 = vunpack.c.l.b16 %v1453
        %v1898 = vunpack.c.l.b16 %v1454
        %v1899 = vunpack.c.l.b16 %v1456
        %v1900 = vunpack.c.l.b16 %v1457
        %v1901 = vunpack.c.l.b16 %v1459
        %v1902 = vunpack.c.l.b16 %v1460
        %v1903 = vunpack.c.l.b16 %v1462
        %v1904 = vunpack.c.l.b16 %v1463
        %v1905 = vunpack.c.l.b16 %v1465
        %v1906 = vunpack.c.l.b16 %v1466
        %v1907 = vunpack.c.l.b16 %v1468
        %v1908 = vunpack.c.l.b16 %v1469
        %v1909 = vunpack.c.l.b16 %v1471
        %v1910 = vunpack.c.l.b16 %v1472
        %v1911 = vpack.c.b16 %v1896, %v1895
        %v1912 = vpack.c.b16 %v1898, %v1897
        %v1913 = vpack.c.b16 %v1900, %v1899
        %v1914 = vpack.c.b16 %v1902, %v1901
        %v1915 = vpack.c.b16 %v1904, %v1903
        %v1916 = vpack.c.b16 %v1906, %v1905
        %v1917 = vpack.c.b16 %v1908, %v1907
        %v1918 = vpack.c.b16 %v1910, %v1909
        %v1943 = vunpack.c.l.b16 %v1474
        %v1944 = vunpack.c.l.b16 %v1475
        %v1945 = vunpack.c.l.b16 %v1476
        %v1946 = vunpack.c.l.b16 %v1477
        %v1947 = vunpack.c.l.b16 %v1478
        %v1948 = vunpack.c.l.b16 %v1479
        %v1949 = vunpack.c.l.b16 %v1480
        %v1950 = vunpack.c.l.b16 %v1481
        %v1951 = vunpack.c.l.b16 %v1482
        %v1952 = vunpack.c.l.b16 %v1483
        %v1953 = vunpack.c.l.b16 %v1484
        %v1954 = vunpack.c.l.b16 %v1485
        %v1955 = vunpack.c.l.b16 %v1486
        %v1956 = vunpack.c.l.b16 %v1487
        %v1957 = vunpack.c.l.b16 %v1488
        %v1958 = vunpack.c.l.b16 %v1489
        %v1959 = vpack.c.b16 %v1944, %v1943
        %v1960 = vpack.c.b16 %v1946, %v1945
        %v1961 = vpack.c.b16 %v1948, %v1947
        %v1962 = vpack.c.b16 %v1950, %v1949
        %v1963 = vpack.c.b16 %v1952, %v1951
        %v1964 = vpack.c.b16 %v1954, %v1953
        %v1965 = vpack.c.b16 %v1956, %v1955
        %v1966 = vpack.c.b16 %v1958, %v1957
        %1975 = vmatprep.subr.bf16.mxu0 0
        %1976 = vmatpush1.bf16.msra.mxu0 %v1959
        %1977 = vmatprep.subr.bf16.mxu0 0
        %1978 = vmatpush1.bf16.msra.mxu0 %v1960
        %1979 = vmatprep.subr.bf16.mxu0 0
        %1980 = vmatpush1.bf16.msra.mxu0 %v1961
        %1981 = vmatprep.subr.bf16.mxu0 0
        %1982 = vmatpush1.bf16.msra.mxu0 %v1962
        %1983 = vmatprep.subr.bf16.mxu0 0
        %1984 = vmatpush1.bf16.msra.mxu0 %v1963
        %1985 = vmatprep.subr.bf16.mxu0 0
        %1986 = vmatpush1.bf16.msra.mxu0 %v1964
        %1987 = vmatprep.subr.bf16.mxu0 0
        %1988 = vmatpush1.bf16.msra.mxu0 %v1965
        %1989 = vmatprep.subr.bf16.mxu0 0
        %1990 = vmatpush1.bf16.msra.mxu0 %v1966
        %1991 = vmatprep.subr.bf16.mxu0 0
        %1992 = vmatpush1.bf16.msra.mxu0 0
        %1993 = vmatprep.subr.bf16.mxu0 0
        %1994 = vmatpush1.bf16.msra.mxu0 0
        %1995 = vmatprep.subr.bf16.mxu0 0
        %1996 = vmatpush1.bf16.msra.mxu0 0
        %1997 = vmatprep.subr.bf16.mxu0 0
        %1998 = vmatpush1.bf16.msra.mxu0 0
        %1999 = vmatprep.subr.bf16.mxu0 0
        %2000 = vmatpush1.bf16.msra.mxu0 0
        %2001 = vmatprep.subr.bf16.mxu0 0
        %2002 = vmatpush1.bf16.msra.mxu0 0
        %2003 = vmatprep.subr.bf16.mxu0 0
        %2004 = vmatpush1.bf16.msra.mxu0 0
        %2005 = vmatprep.subr.bf16.mxu0 0
        %2006 = vmatpush1.bf16.msra.mxu0 0
        %2007 = vmatprep.mubr.bf16.mxu0 0
        %2008 = vmatmul.mubr.bf16.gmra.mrb[0].mxu0 %v1911
        %v2009 = vpop.f32.mrb[0].mxu0
        %v2010 = vadd.f32 %v1817, %v2009
        %v2011 = vpop.f32.mrb[0].mxu0
        %v2012 = vpop.f32.mrb[0].mxu0
        %v2013 = vadd.f32 %v1820, %v2012
        %v2014 = vpop.f32.mrb[0].mxu0
        %2015 = vmatprep.mubr.bf16.mxu0 0
        %2016 = vmatmul.mubr.bf16.gmra.mrb[0].mxu0 %v1912
        %v2017 = vpop.f32.mrb[0].mxu0
        %v2018 = vadd.f32 %v1825, %v2017
        %v2019 = vpop.f32.mrb[0].mxu0
        %v2020 = vpop.f32.mrb[0].mxu0
        %v2021 = vadd.f32 %v1828, %v2020
        %v2022 = vpop.f32.mrb[0].mxu0
        %2023 = vmatprep.mubr.bf16.mxu0 0
        %2024 = vmatmul.mubr.bf16.gmra.mrb[0].mxu0 %v1913
        %v2025 = vpop.f32.mrb[0].mxu0
        %v2026 = vadd.f32 %v1833, %v2025
        %v2027 = vpop.f32.mrb[0].mxu0
        %v2028 = vpop.f32.mrb[0].mxu0
        %v2029 = vadd.f32 %v1836, %v2028
        %v2030 = vpop.f32.mrb[0].mxu0
        %2031 = vmatprep.mubr.bf16.mxu0 0
        %2032 = vmatmul.mubr.bf16.gmra.mrb[0].mxu0 %v1914
        %v2033 = vpop.f32.mrb[0].mxu0
        %v2034 = vadd.f32 %v1841, %v2033
        %v2035 = vpop.f32.mrb[0].mxu0
        %v2036 = vpop.f32.mrb[0].mxu0
        %v2037 = vadd.f32 %v1844, %v2036
        %v2038 = vpop.f32.mrb[0].mxu0
        %2039 = vmatprep.mubr.bf16.mxu0 0
        %2040 = vmatmul.mubr.bf16.gmra.mrb[0].mxu0 %v1915
        %v2041 = vpop.f32.mrb[0].mxu0
        %v2042 = vadd.f32 %v1849, %v2041
        %v2043 = vpop.f32.mrb[0].mxu0
        %v2044 = vpop.f32.mrb[0].mxu0
        %v2045 = vadd.f32 %v1852, %v2044
        %v2046 = vpop.f32.mrb[0].mxu0
        %2047 = vmatprep.mubr.bf16.mxu0 0
        %2048 = vmatmul.mubr.bf16.gmra.mrb[0].mxu0 %v1916
        %v2049 = vpop.f32.mrb[0].mxu0
        %v2050 = vadd.f32 %v1857, %v2049
        %v2051 = vpop.f32.mrb[0].mxu0
        %v2052 = vpop.f32.mrb[0].mxu0
        %v2053 = vadd.f32 %v1860, %v2052
        %v2054 = vpop.f32.mrb[0].mxu0
        %2055 = vmatprep.mubr.bf16.mxu0 0
        %2056 = vmatmul.mubr.bf16.gmra.mrb[0].mxu0 %v1917
        %v2057 = vpop.f32.mrb[0].mxu0
        %v2058 = vadd.f32 %v1865, %v2057
        %v2059 = vpop.f32.mrb[0].mxu0
        %v2060 = vpop.f32.mrb[0].mxu0
        %v2061 = vadd.f32 %v1868, %v2060
        %v2062 = vpop.f32.mrb[0].mxu0
        %2063 = vmatprep.mubr.bf16.mxu0 0
        %2064 = vmatmul.mubr.bf16.gmra.mrb[0].mxu0 %v1918
        %v2065 = vpop.f32.mrb[0].mxu0
        %v2066 = vadd.f32 %v1873, %v2065
        %v2067 = vpop.f32.mrb[0].mxu0
        %v2068 = vpop.f32.mrb[0].mxu0
        %v2069 = vadd.f32 %v1876, %v2068
        %v2070 = vpop.f32.mrb[0].mxu0
        %2071 = vdwg.mxu0
        %vm2080 = vcmask 1042432
        %vm2081 = vcmask 1046532
        %vm2082 = vmor %vm2080, %vm2081
        %v2083 = vrot.slane %v1450, 5
        %v2084 = vrot.slane %v2083, 4
        %v2085 = vrot.slane %v1451, 5
        %v2086 = vsel %vm2082, %v2084, %v2085
        %v2087 = vrot.slane %v2085, 4
        %v2088 = vrot.slane %v1452, 5
        %v2089 = vsel %vm2082, %v2087, %v2088
        %v2090 = vrot.slane %v1453, 5
        %v2091 = vrot.slane %v2090, 4
        %v2092 = vrot.slane %v1454, 5
        %v2093 = vsel %vm2082, %v2091, %v2092
        %v2094 = vrot.slane %v2092, 4
        %v2095 = vrot.slane %v1455, 5
        %v2096 = vsel %vm2082, %v2094, %v2095
        %v2097 = vrot.slane %v1456, 5
        %v2098 = vrot.slane %v2097, 4
        %v2099 = vrot.slane %v1457, 5
        %v2100 = vsel %vm2082, %v2098, %v2099
        %v2101 = vrot.slane %v2099, 4
        %v2102 = vrot.slane %v1458, 5
        %v2103 = vsel %vm2082, %v2101, %v2102
        %v2104 = vrot.slane %v1459, 5
        %v2105 = vrot.slane %v2104, 4
        %v2106 = vrot.slane %v1460, 5
        %v2107 = vsel %vm2082, %v2105, %v2106
        %v2108 = vrot.slane %v2106, 4
        %v2109 = vrot.slane %v1461, 5
        %v2110 = vsel %vm2082, %v2108, %v2109
        %v2111 = vrot.slane %v1462, 5
        %v2112 = vrot.slane %v2111, 4
        %v2113 = vrot.slane %v1463, 5
        %v2114 = vsel %vm2082, %v2112, %v2113
        %v2115 = vrot.slane %v2113, 4
        %v2116 = vrot.slane %v1464, 5
        %v2117 = vsel %vm2082, %v2115, %v2116
        %v2118 = vrot.slane %v1465, 5
        %v2119 = vrot.slane %v2118, 4
        %v2120 = vrot.slane %v1466, 5
        %v2121 = vsel %vm2082, %v2119, %v2120
        %v2122 = vrot.slane %v2120, 4
        %v2123 = vrot.slane %v1467, 5
        %v2124 = vsel %vm2082, %v2122, %v2123
        %v2125 = vrot.slane %v1468, 5
        %v2126 = vrot.slane %v2125, 4
        %v2127 = vrot.slane %v1469, 5
        %v2128 = vsel %vm2082, %v2126, %v2127
        %v2129 = vrot.slane %v2127, 4
        %v2130 = vrot.slane %v1470, 5
        %v2131 = vsel %vm2082, %v2129, %v2130
        %v2132 = vrot.slane %v1471, 5
        %v2133 = vrot.slane %v2132, 4
        %v2134 = vrot.slane %v1472, 5
        %v2135 = vsel %vm2082, %v2133, %v2134
        %v2136 = vrot.slane %v2134, 4
        %v2137 = vrot.slane %v1473, 5
        %v2138 = vsel %vm2082, %v2136, %v2137
        %s2139 = scalar_lea.vmem %s1338, 128 [#allocation5]
        %v2140 = vld [vmem:[%s2139] sm:$0xf]
        %v2141 = vld [vmem:[%s2139 + $0x4] sm:$0xf]
        %v2142 = vld [vmem:[%s2139 + $0x8] sm:$0xf]
        %v2143 = vld [vmem:[%s2139 + $0xc] sm:$0xf]
        %v2144 = vld [vmem:[%s2139 + $0x10] sm:$0xf]
        %v2145 = vld [vmem:[%s2139 + $0x14] sm:$0xf]
        %v2146 = vld [vmem:[%s2139 + $0x18] sm:$0xf]
        %v2147 = vld [vmem:[%s2139 + $0x1c] sm:$0xf]
        %v2148 = vld [vmem:[%s2139 + $0x20] sm:$0xf]
        %v2149 = vld [vmem:[%s2139 + $0x24] sm:$0xf]
        %v2150 = vld [vmem:[%s2139 + $0x28] sm:$0xf]
        %v2151 = vld [vmem:[%s2139 + $0x2c] sm:$0xf]
        %v2152 = vld [vmem:[%s2139 + $0x30] sm:$0xf]
        %v2153 = vld [vmem:[%s2139 + $0x34] sm:$0xf]
        %v2154 = vld [vmem:[%s2139 + $0x38] sm:$0xf]
        %v2155 = vld [vmem:[%s2139 + $0x3c] sm:$0xf]
        %v2156 = vunpack.c.l.b16 %v2086
        %v2157 = vunpack.c.l.b16 %v2089
        %v2158 = vunpack.c.l.b16 %v2093
        %v2159 = vunpack.c.l.b16 %v2096
        %v2160 = vunpack.c.l.b16 %v2100
        %v2161 = vunpack.c.l.b16 %v2103
        %v2162 = vunpack.c.l.b16 %v2107
        %v2163 = vunpack.c.l.b16 %v2110
        %v2164 = vunpack.c.l.b16 %v2114
        %v2165 = vunpack.c.l.b16 %v2117
        %v2166 = vunpack.c.l.b16 %v2121
        %v2167 = vunpack.c.l.b16 %v2124
        %v2168 = vunpack.c.l.b16 %v2128
        %v2169 = vunpack.c.l.b16 %v2131
        %v2170 = vunpack.c.l.b16 %v2135
        %v2171 = vunpack.c.l.b16 %v2138
        %v2172 = vpack.c.b16 %v2157, %v2156
        %v2173 = vpack.c.b16 %v2159, %v2158
        %v2174 = vpack.c.b16 %v2161, %v2160
        %v2175 = vpack.c.b16 %v2163, %v2162
        %v2176 = vpack.c.b16 %v2165, %v2164
        %v2177 = vpack.c.b16 %v2167, %v2166
        %v2178 = vpack.c.b16 %v2169, %v2168
        %v2179 = vpack.c.b16 %v2171, %v2170
        %v2204 = vunpack.c.l.b16 %v2140
        %v2205 = vunpack.c.l.b16 %v2141
        %v2206 = vunpack.c.l.b16 %v2142
        %v2207 = vunpack.c.l.b16 %v2143
        %v2208 = vunpack.c.l.b16 %v2144
        %v2209 = vunpack.c.l.b16 %v2145
        %v2210 = vunpack.c.l.b16 %v2146
        %v2211 = vunpack.c.l.b16 %v2147
        %v2212 = vunpack.c.l.b16 %v2148
        %v2213 = vunpack.c.l.b16 %v2149
        %v2214 = vunpack.c.l.b16 %v2150
        %v2215 = vunpack.c.l.b16 %v2151
        %v2216 = vunpack.c.l.b16 %v2152
        %v2217 = vunpack.c.l.b16 %v2153
        %v2218 = vunpack.c.l.b16 %v2154
        %v2219 = vunpack.c.l.b16 %v2155
        %v2220 = vpack.c.b16 %v2205, %v2204
        %v2221 = vpack.c.b16 %v2207, %v2206
        %v2222 = vpack.c.b16 %v2209, %v2208
        %v2223 = vpack.c.b16 %v2211, %v2210
        %v2224 = vpack.c.b16 %v2213, %v2212
        %v2225 = vpack.c.b16 %v2215, %v2214
        %v2226 = vpack.c.b16 %v2217, %v2216
        %v2227 = vpack.c.b16 %v2219, %v2218
        %2236 = vmatprep.subr.bf16.mxu0 0
        %2237 = vmatpush1.bf16.msra.mxu0 %v2220
        %2238 = vmatprep.subr.bf16.mxu0 0
        %2239 = vmatpush1.bf16.msra.mxu0 %v2221
        %2240 = vmatprep.subr.bf16.mxu0 0
        %2241 = vmatpush1.bf16.msra.mxu0 %v2222
        %2242 = vmatprep.subr.bf16.mxu0 0
        %2243 = vmatpush1.bf16.msra.mxu0 %v2223
        %2244 = vmatprep.subr.bf16.mxu0 0
        %2245 = vmatpush1.bf16.msra.mxu0 %v2224
        %2246 = vmatprep.subr.bf16.mxu0 0
        %2247 = vmatpush1.bf16.msra.mxu0 %v2225
        %2248 = vmatprep.subr.bf16.mxu0 0
        %2249 = vmatpush1.bf16.msra.mxu0 %v2226
        %2250 = vmatprep.subr.bf16.mxu0 0
        %2251 = vmatpush1.bf16.msra.mxu0 %v2227
        %2252 = vmatprep.subr.bf16.mxu0 0
        %2253 = vmatpush1.bf16.msra.mxu0 0
        %2254 = vmatprep.subr.bf16.mxu0 0
        %2255 = vmatpush1.bf16.msra.mxu0 0
        %2256 = vmatprep.subr.bf16.mxu0 0
        %2257 = vmatpush1.bf16.msra.mxu0 0
        %2258 = vmatprep.subr.bf16.mxu0 0
        %2259 = vmatpush1.bf16.msra.mxu0 0
        %2260 = vmatprep.subr.bf16.mxu0 0
        %2261 = vmatpush1.bf16.msra.mxu0 0
        %2262 = vmatprep.subr.bf16.mxu0 0
        %2263 = vmatpush1.bf16.msra.mxu0 0
        %2264 = vmatprep.subr.bf16.mxu0 0
        %2265 = vmatpush1.bf16.msra.mxu0 0
        %2266 = vmatprep.subr.bf16.mxu0 0
        %2267 = vmatpush1.bf16.msra.mxu0 0
        %2268 = vmatprep.mubr.bf16.mxu0 0
        %2269 = vmatmul.mubr.bf16.gmra.mrb[0].mxu0 %v2172
        %v2270 = vpop.f32.mrb[0].mxu0
        %v2271 = vadd.f32 0.0, %v2270
        %v2272 = vpop.f32.mrb[0].mxu0
        %v2273 = vpop.f32.mrb[0].mxu0
        %v2274 = vadd.f32 0.0, %v2273
        %v2275 = vpop.f32.mrb[0].mxu0
        %2276 = vmatprep.mubr.bf16.mxu0 0
        %2277 = vmatmul.mubr.bf16.gmra.mrb[0].mxu0 %v2173
        %v2278 = vpop.f32.mrb[0].mxu0
        %v2279 = vadd.f32 0.0, %v2278
        %v2280 = vpop.f32.mrb[0].mxu0
        %v2281 = vpop.f32.mrb[0].mxu0
        %v2282 = vadd.f32 0.0, %v2281
        %v2283 = vpop.f32.mrb[0].mxu0
        %2284 = vmatprep.mubr.bf16.mxu0 0
        %2285 = vmatmul.mubr.bf16.gmra.mrb[0].mxu0 %v2174
        %v2286 = vpop.f32.mrb[0].mxu0
        %v2287 = vadd.f32 0.0, %v2286
        %v2288 = vpop.f32.mrb[0].mxu0
        %v2289 = vpop.f32.mrb[0].mxu0
        %v2290 = vadd.f32 0.0, %v2289
        %v2291 = vpop.f32.mrb[0].mxu0
        %2292 = vmatprep.mubr.bf16.mxu0 0
        %2293 = vmatmul.mubr.bf16.gmra.mrb[0].mxu0 %v2175
        %v2294 = vpop.f32.mrb[0].mxu0
        %v2295 = vadd.f32 0.0, %v2294
        %v2296 = vpop.f32.mrb[0].mxu0
        %v2297 = vpop.f32.mrb[0].mxu0
        %v2298 = vadd.f32 0.0, %v2297
        %v2299 = vpop.f32.mrb[0].mxu0
        %2300 = vmatprep.mubr.bf16.mxu0 0
        %2301 = vmatmul.mubr.bf16.gmra.mrb[0].mxu0 %v2176
        %v2302 = vpop.f32.mrb[0].mxu0
        %v2303 = vadd.f32 0.0, %v2302
        %v2304 = vpop.f32.mrb[0].mxu0
        %v2305 = vpop.f32.mrb[0].mxu0
        %v2306 = vadd.f32 0.0, %v2305
        %v2307 = vpop.f32.mrb[0].mxu0
        %2308 = vmatprep.mubr.bf16.mxu0 0
        %2309 = vmatmul.mubr.bf16.gmra.mrb[0].mxu0 %v2177
        %v2310 = vpop.f32.mrb[0].mxu0
        %v2311 = vadd.f32 0.0, %v2310
        %v2312 = vpop.f32.mrb[0].mxu0
        %v2313 = vpop.f32.mrb[0].mxu0
        %v2314 = vadd.f32 0.0, %v2313
        %v2315 = vpop.f32.mrb[0].mxu0
        %2316 = vmatprep.mubr.bf16.mxu0 0
        %2317 = vmatmul.mubr.bf16.gmra.mrb[0].mxu0 %v2178
        %v2318 = vpop.f32.mrb[0].mxu0
        %v2319 = vadd.f32 0.0, %v2318
        %v2320 = vpop.f32.mrb[0].mxu0
        %v2321 = vpop.f32.mrb[0].mxu0
        %v2322 = vadd.f32 0.0, %v2321
        %v2323 = vpop.f32.mrb[0].mxu0
        %2324 = vmatprep.mubr.bf16.mxu0 0
        %2325 = vmatmul.mubr.bf16.gmra.mrb[0].mxu0 %v2179
        %v2326 = vpop.f32.mrb[0].mxu0
        %v2327 = vadd.f32 0.0, %v2326
        %v2328 = vpop.f32.mrb[0].mxu0
        %v2329 = vpop.f32.mrb[0].mxu0
        %v2330 = vadd.f32 0.0, %v2329
        %v2331 = vpop.f32.mrb[0].mxu0
        %2332 = vdwg.mxu0
        %v2333 = vadd.f32 %v2010, %v2271
        %v2334 = vadd.f32 %v2013, %v2274
        %v2335 = vadd.f32 %v2018, %v2279
        %v2336 = vadd.f32 %v2021, %v2282
        %v2337 = vadd.f32 %v2026, %v2287
        %v2338 = vadd.f32 %v2029, %v2290
        %v2339 = vadd.f32 %v2034, %v2295
        %v2340 = vadd.f32 %v2037, %v2298
        %v2341 = vadd.f32 %v2042, %v2303
        %v2342 = vadd.f32 %v2045, %v2306
        %v2343 = vadd.f32 %v2050, %v2311
        %v2344 = vadd.f32 %v2053, %v2314
        %v2345 = vadd.f32 %v2058, %v2319
        %v2346 = vadd.f32 %v2061, %v2322
        %v2347 = vadd.f32 %v2066, %v2327
        %v2348 = vadd.f32 %v2069, %v2330
        %v2349 = vld [vmem:[%s1324] sm:$0xf]
        %v2350 = vld [vmem:[%s1324 + $0x4] sm:$0xf]
        %v2351 = vld [vmem:[%s1324 + $0x8] sm:$0x1]
        %v2352 = vld [vmem:[%s1324 + $0xc] sm:$0xf]
        %v2353 = vld [vmem:[%s1324 + $0x10] sm:$0xf]
        %v2354 = vld [vmem:[%s1324 + $0x14] sm:$0x1]
        %v2355 = vld [vmem:[%s1324 + $0x18] sm:$0xf]
        %v2356 = vld [vmem:[%s1324 + $0x1c] sm:$0xf]
        %v2357 = vld [vmem:[%s1324 + $0x20] sm:$0x1]
        %v2358 = vld [vmem:[%s1324 + $0x24] sm:$0xf]
        %v2359 = vld [vmem:[%s1324 + $0x28] sm:$0xf]
        %v2360 = vld [vmem:[%s1324 + $0x2c] sm:$0x1]
        %v2361 = vld [vmem:[%s1324 + $0x30] sm:$0xf]
        %v2362 = vld [vmem:[%s1324 + $0x34] sm:$0xf]
        %v2363 = vld [vmem:[%s1324 + $0x38] sm:$0x1]
        %v2364 = vld [vmem:[%s1324 + $0x3c] sm:$0xf]
        %v2365 = vld [vmem:[%s1324 + $0x40] sm:$0xf]
        %v2366 = vld [vmem:[%s1324 + $0x44] sm:$0x1]
        %v2367 = vld [vmem:[%s1324 + $0x48] sm:$0xf]
        %v2368 = vld [vmem:[%s1324 + $0x4c] sm:$0xf]
        %v2369 = vld [vmem:[%s1324 + $0x50] sm:$0x1]
        %v2370 = vld [vmem:[%s1324 + $0x54] sm:$0xf]
        %v2371 = vld [vmem:[%s1324 + $0x58] sm:$0xf]
        %v2372 = vld [vmem:[%s1324 + $0x5c] sm:$0x1]
        %s2373 = scalar_lea.vmem %s1338, 192 [#allocation5]
        %v2374 = vld [vmem:[%s2373] sm:$0xf]
        %v2375 = vld [vmem:[%s2373 + $0x4] sm:$0xf]
        %v2376 = vld [vmem:[%s2373 + $0x8] sm:$0xf]
        %v2377 = vld [vmem:[%s2373 + $0xc] sm:$0xf]
        %v2378 = vld [vmem:[%s2373 + $0x10] sm:$0xf]
        %v2379 = vld [vmem:[%s2373 + $0x14] sm:$0xf]
        %v2380 = vld [vmem:[%s2373 + $0x18] sm:$0xf]
        %v2381 = vld [vmem:[%s2373 + $0x1c] sm:$0xf]
        %v2382 = vld [vmem:[%s2373 + $0x20] sm:$0xf]
        %v2383 = vld [vmem:[%s2373 + $0x24] sm:$0xf]
        %v2384 = vld [vmem:[%s2373 + $0x28] sm:$0xf]
        %v2385 = vld [vmem:[%s2373 + $0x2c] sm:$0xf]
        %v2386 = vld [vmem:[%s2373 + $0x30] sm:$0xf]
        %v2387 = vld [vmem:[%s2373 + $0x34] sm:$0xf]
        %v2388 = vld [vmem:[%s2373 + $0x38] sm:$0xf]
        %v2389 = vld [vmem:[%s2373 + $0x3c] sm:$0xf]
        %v2406 = vunpack.c.l.b16 %v2349
        %v2407 = vunpack.c.l.b16 %v2350
        %v2408 = vunpack.c.l.b16 %v2352
        %v2409 = vunpack.c.l.b16 %v2353
        %v2410 = vunpack.c.l.b16 %v2355
        %v2411 = vunpack.c.l.b16 %v2356
        %v2412 = vunpack.c.l.b16 %v2358
        %v2413 = vunpack.c.l.b16 %v2359
        %v2414 = vunpack.c.l.b16 %v2361
        %v2415 = vunpack.c.l.b16 %v2362
        %v2416 = vunpack.c.l.b16 %v2364
        %v2417 = vunpack.c.l.b16 %v2365
        %v2418 = vunpack.c.l.b16 %v2367
        %v2419 = vunpack.c.l.b16 %v2368
        %v2420 = vunpack.c.l.b16 %v2370
        %v2421 = vunpack.c.l.b16 %v2371
        %v2422 = vpack.c.b16 %v2407, %v2406
        %v2423 = vpack.c.b16 %v2409, %v2408
        %v2424 = vpack.c.b16 %v2411, %v2410
        %v2425 = vpack.c.b16 %v2413, %v2412
        %v2426 = vpack.c.b16 %v2415, %v2414
        %v2427 = vpack.c.b16 %v2417, %v2416
        %v2428 = vpack.c.b16 %v2419, %v2418
        %v2429 = vpack.c.b16 %v2421, %v2420
        %v2454 = vunpack.c.l.b16 %v2374
        %v2455 = vunpack.c.l.b16 %v2375
        %v2456 = vunpack.c.l.b16 %v2376
        %v2457 = vunpack.c.l.b16 %v2377
        %v2458 = vunpack.c.l.b16 %v2378
        %v2459 = vunpack.c.l.b16 %v2379
        %v2460 = vunpack.c.l.b16 %v2380
        %v2461 = vunpack.c.l.b16 %v2381
        %v2462 = vunpack.c.l.b16 %v2382
        %v2463 = vunpack.c.l.b16 %v2383
        %v2464 = vunpack.c.l.b16 %v2384
        %v2465 = vunpack.c.l.b16 %v2385
        %v2466 = vunpack.c.l.b16 %v2386
        %v2467 = vunpack.c.l.b16 %v2387
        %v2468 = vunpack.c.l.b16 %v2388
        %v2469 = vunpack.c.l.b16 %v2389
        %v2470 = vpack.c.b16 %v2455, %v2454
        %v2471 = vpack.c.b16 %v2457, %v2456
        %v2472 = vpack.c.b16 %v2459, %v2458
        %v2473 = vpack.c.b16 %v2461, %v2460
        %v2474 = vpack.c.b16 %v2463, %v2462
        %v2475 = vpack.c.b16 %v2465, %v2464
        %v2476 = vpack.c.b16 %v2467, %v2466
        %v2477 = vpack.c.b16 %v2469, %v2468
        %2486 = vmatprep.subr.bf16.mxu0 0
        %2487 = vmatpush1.bf16.msra.mxu0 %v2470
        %2488 = vmatprep.subr.bf16.mxu0 0
        %2489 = vmatpush1.bf16.msra.mxu0 %v2471
        %2490 = vmatprep.subr.bf16.mxu0 0
        %2491 = vmatpush1.bf16.msra.mxu0 %v2472
        %2492 = vmatprep.subr.bf16.mxu0 0
        %2493 = vmatpush1.bf16.msra.mxu0 %v2473
        %2494 = vmatprep.subr.bf16.mxu0 0
        %2495 = vmatpush1.bf16.msra.mxu0 %v2474
        %2496 = vmatprep.subr.bf16.mxu0 0
        %2497 = vmatpush1.bf16.msra.mxu0 %v2475
        %2498 = vmatprep.subr.bf16.mxu0 0
        %2499 = vmatpush1.bf16.msra.mxu0 %v2476
        %2500 = vmatprep.subr.bf16.mxu0 0
        %2501 = vmatpush1.bf16.msra.mxu0 %v2477
        %2502 = vmatprep.subr.bf16.mxu0 0
        %2503 = vmatpush1.bf16.msra.mxu0 0
        %2504 = vmatprep.subr.bf16.mxu0 0
        %2505 = vmatpush1.bf16.msra.mxu0 0
        %2506 = vmatprep.subr.bf16.mxu0 0
        %2507 = vmatpush1.bf16.msra.mxu0 0
        %2508 = vmatprep.subr.bf16.mxu0 0
        %2509 = vmatpush1.bf16.msra.mxu0 0
        %2510 = vmatprep.subr.bf16.mxu0 0
        %2511 = vmatpush1.bf16.msra.mxu0 0
        %2512 = vmatprep.subr.bf16.mxu0 0
        %2513 = vmatpush1.bf16.msra.mxu0 0
        %2514 = vmatprep.subr.bf16.mxu0 0
        %2515 = vmatpush1.bf16.msra.mxu0 0
        %2516 = vmatprep.subr.bf16.mxu0 0
        %2517 = vmatpush1.bf16.msra.mxu0 0
        %2518 = vmatprep.mubr.bf16.mxu0 0
        %2519 = vmatmul.mubr.bf16.gmra.mrb[0].mxu0 %v2422
        %v2520 = vpop.f32.mrb[0].mxu0
        %v2521 = vadd.f32 0.0, %v2520
        %v2522 = vpop.f32.mrb[0].mxu0
        %v2523 = vpop.f32.mrb[0].mxu0
        %v2524 = vadd.f32 0.0, %v2523
        %v2525 = vpop.f32.mrb[0].mxu0
        %2526 = vmatprep.mubr.bf16.mxu0 0
        %2527 = vmatmul.mubr.bf16.gmra.mrb[0].mxu0 %v2423
        %v2528 = vpop.f32.mrb[0].mxu0
        %v2529 = vadd.f32 0.0, %v2528
        %v2530 = vpop.f32.mrb[0].mxu0
        %v2531 = vpop.f32.mrb[0].mxu0
        %v2532 = vadd.f32 0.0, %v2531
        %v2533 = vpop.f32.mrb[0].mxu0
        %2534 = vmatprep.mubr.bf16.mxu0 0
        %2535 = vmatmul.mubr.bf16.gmra.mrb[0].mxu0 %v2424
        %v2536 = vpop.f32.mrb[0].mxu0
        %v2537 = vadd.f32 0.0, %v2536
        %v2538 = vpop.f32.mrb[0].mxu0
        %v2539 = vpop.f32.mrb[0].mxu0
        %v2540 = vadd.f32 0.0, %v2539
        %v2541 = vpop.f32.mrb[0].mxu0
        %2542 = vmatprep.mubr.bf16.mxu0 0
        %2543 = vmatmul.mubr.bf16.gmra.mrb[0].mxu0 %v2425
        %v2544 = vpop.f32.mrb[0].mxu0
        %v2545 = vadd.f32 0.0, %v2544
        %v2546 = vpop.f32.mrb[0].mxu0
        %v2547 = vpop.f32.mrb[0].mxu0
        %v2548 = vadd.f32 0.0, %v2547
        %v2549 = vpop.f32.mrb[0].mxu0
        %2550 = vmatprep.mubr.bf16.mxu0 0
        %2551 = vmatmul.mubr.bf16.gmra.mrb[0].mxu0 %v2426
        %v2552 = vpop.f32.mrb[0].mxu0
        %v2553 = vadd.f32 0.0, %v2552
        %v2554 = vpop.f32.mrb[0].mxu0
        %v2555 = vpop.f32.mrb[0].mxu0
        %v2556 = vadd.f32 0.0, %v2555
        %v2557 = vpop.f32.mrb[0].mxu0
        %2558 = vmatprep.mubr.bf16.mxu0 0
        %2559 = vmatmul.mubr.bf16.gmra.mrb[0].mxu0 %v2427
        %v2560 = vpop.f32.mrb[0].mxu0
        %v2561 = vadd.f32 0.0, %v2560
        %v2562 = vpop.f32.mrb[0].mxu0
        %v2563 = vpop.f32.mrb[0].mxu0
        %v2564 = vadd.f32 0.0, %v2563
        %v2565 = vpop.f32.mrb[0].mxu0
        %2566 = vmatprep.mubr.bf16.mxu0 0
        %2567 = vmatmul.mubr.bf16.gmra.mrb[0].mxu0 %v2428
        %v2568 = vpop.f32.mrb[0].mxu0
        %v2569 = vadd.f32 0.0, %v2568
        %v2570 = vpop.f32.mrb[0].mxu0
        %v2571 = vpop.f32.mrb[0].mxu0
        %v2572 = vadd.f32 0.0, %v2571
        %v2573 = vpop.f32.mrb[0].mxu0
        %2574 = vmatprep.mubr.bf16.mxu0 0
        %2575 = vmatmul.mubr.bf16.gmra.mrb[0].mxu0 %v2429
        %v2576 = vpop.f32.mrb[0].mxu0
        %v2577 = vadd.f32 0.0, %v2576
        %v2578 = vpop.f32.mrb[0].mxu0
        %v2579 = vpop.f32.mrb[0].mxu0
        %v2580 = vadd.f32 0.0, %v2579
        %v2581 = vpop.f32.mrb[0].mxu0
        %2582 = vdwg.mxu0
        %v2583 = vadd.f32 %v2333, %v2521
        %v2584 = vadd.f32 %v2334, %v2524
        %v2585 = vadd.f32 %v2335, %v2529
        %v2586 = vadd.f32 %v2336, %v2532
        %v2587 = vadd.f32 %v2337, %v2537
        %v2588 = vadd.f32 %v2338, %v2540
        %v2589 = vadd.f32 %v2339, %v2545
        %v2590 = vadd.f32 %v2340, %v2548
        %v2591 = vadd.f32 %v2341, %v2553
        %v2592 = vadd.f32 %v2342, %v2556
        %v2593 = vadd.f32 %v2343, %v2561
        %v2594 = vadd.f32 %v2344, %v2564
        %v2595 = vadd.f32 %v2345, %v2569
        %v2596 = vadd.f32 %v2346, %v2572
        %v2597 = vadd.f32 %v2347, %v2577
        %v2598 = vadd.f32 %v2348, %v2580
        %v2600 = vshrl.u32 %v2349, 16
        %v2602 = vrot.slane %v2600, 4
        %v2603 = vshll.u32 %v2349, 16
        %v2605 = vrot.slane %v2603, 5
        %v2606 = vor.u32 %v2602, %v2605
        %v2607 = vrot.slane %v2606, 4
        %v2609 = vshll.u32 %v2350, 16
        %v2611 = vrot.slane %v2609, 5
        %v2612 = vsel %vm1492, %v2607, %v2611
        %v2613 = vshrl.u32 %v2350, 16
        %v2615 = vrot.slane %v2613, 4
        %v2616 = vor.u32 %v2615, %v2611
        %v2617 = vrot.slane %v2616, 4
        %v2619 = vshll.u32 %v2351, 16
        %v2621 = vrot.slane %v2619, 5
        %v2622 = vsel %vm1492, %v2617, %v2621
        %v2624 = vshrl.u32 %v2352, 16
        %v2626 = vrot.slane %v2624, 4
        %v2627 = vshll.u32 %v2352, 16
        %v2629 = vrot.slane %v2627, 5
        %v2630 = vor.u32 %v2626, %v2629
        %v2631 = vrot.slane %v2630, 4
        %v2633 = vshll.u32 %v2353, 16
        %v2635 = vrot.slane %v2633, 5
        %v2636 = vsel %vm1492, %v2631, %v2635
        %v2637 = vshrl.u32 %v2353, 16
        %v2639 = vrot.slane %v2637, 4
        %v2640 = vor.u32 %v2639, %v2635
        %v2641 = vrot.slane %v2640, 4
        %v2643 = vshll.u32 %v2354, 16
        %v2645 = vrot.slane %v2643, 5
        %v2646 = vsel %vm1492, %v2641, %v2645
        %v2648 = vshrl.u32 %v2355, 16
        %v2650 = vrot.slane %v2648, 4
        %v2651 = vshll.u32 %v2355, 16
        %v2653 = vrot.slane %v2651, 5
        %v2654 = vor.u32 %v2650, %v2653
        %v2655 = vrot.slane %v2654, 4
        %v2657 = vshll.u32 %v2356, 16
        %v2659 = vrot.slane %v2657, 5
        %v2660 = vsel %vm1492, %v2655, %v2659
        %v2661 = vshrl.u32 %v2356, 16
        %v2663 = vrot.slane %v2661, 4
        %v2664 = vor.u32 %v2663, %v2659
        %v2665 = vrot.slane %v2664, 4
        %v2667 = vshll.u32 %v2357, 16
        %v2669 = vrot.slane %v2667, 5
        %v2670 = vsel %vm1492, %v2665, %v2669
        %v2672 = vshrl.u32 %v2358, 16
        %v2674 = vrot.slane %v2672, 4
        %v2675 = vshll.u32 %v2358, 16
        %v2677 = vrot.slane %v2675, 5
        %v2678 = vor.u32 %v2674, %v2677
        %v2679 = vrot.slane %v2678, 4
        %v2681 = vshll.u32 %v2359, 16
        %v2683 = vrot.slane %v2681, 5
        %v2684 = vsel %vm1492, %v2679, %v2683
        %v2685 = vshrl.u32 %v2359, 16
        %v2687 = vrot.slane %v2685, 4
        %v2688 = vor.u32 %v2687, %v2683
        %v2689 = vrot.slane %v2688, 4
        %v2691 = vshll.u32 %v2360, 16
        %v2693 = vrot.slane %v2691, 5
        %v2694 = vsel %vm1492, %v2689, %v2693
        %v2696 = vshrl.u32 %v2361, 16
        %v2698 = vrot.slane %v2696, 4
        %v2699 = vshll.u32 %v2361, 16
        %v2701 = vrot.slane %v2699, 5
        %v2702 = vor.u32 %v2698, %v2701
        %v2703 = vrot.slane %v2702, 4
        %v2705 = vshll.u32 %v2362, 16
        %v2707 = vrot.slane %v2705, 5
        %v2708 = vsel %vm1492, %v2703, %v2707
        %v2709 = vshrl.u32 %v2362, 16
        %v2711 = vrot.slane %v2709, 4
        %v2712 = vor.u32 %v2711, %v2707
        %v2713 = vrot.slane %v2712, 4
        %v2715 = vshll.u32 %v2363, 16
        %v2717 = vrot.slane %v2715, 5
        %v2718 = vsel %vm1492, %v2713, %v2717
        %v2720 = vshrl.u32 %v2364, 16
        %v2722 = vrot.slane %v2720, 4
        %v2723 = vshll.u32 %v2364, 16
        %v2725 = vrot.slane %v2723, 5
        %v2726 = vor.u32 %v2722, %v2725
        %v2727 = vrot.slane %v2726, 4
        %v2729 = vshll.u32 %v2365, 16
        %v2731 = vrot.slane %v2729, 5
        %v2732 = vsel %vm1492, %v2727, %v2731
        %v2733 = vshrl.u32 %v2365, 16
        %v2735 = vrot.slane %v2733, 4
        %v2736 = vor.u32 %v2735, %v2731
        %v2737 = vrot.slane %v2736, 4
        %v2739 = vshll.u32 %v2366, 16
        %v2741 = vrot.slane %v2739, 5
        %v2742 = vsel %vm1492, %v2737, %v2741
        %v2744 = vshrl.u32 %v2367, 16
        %v2746 = vrot.slane %v2744, 4
        %v2747 = vshll.u32 %v2367, 16
        %v2749 = vrot.slane %v2747, 5
        %v2750 = vor.u32 %v2746, %v2749
        %v2751 = vrot.slane %v2750, 4
        %v2753 = vshll.u32 %v2368, 16
        %v2755 = vrot.slane %v2753, 5
        %v2756 = vsel %vm1492, %v2751, %v2755
        %v2757 = vshrl.u32 %v2368, 16
        %v2759 = vrot.slane %v2757, 4
        %v2760 = vor.u32 %v2759, %v2755
        %v2761 = vrot.slane %v2760, 4
        %v2763 = vshll.u32 %v2369, 16
        %v2765 = vrot.slane %v2763, 5
        %v2766 = vsel %vm1492, %v2761, %v2765
        %v2768 = vshrl.u32 %v2370, 16
        %v2770 = vrot.slane %v2768, 4
        %v2771 = vshll.u32 %v2370, 16
        %v2773 = vrot.slane %v2771, 5
        %v2774 = vor.u32 %v2770, %v2773
        %v2775 = vrot.slane %v2774, 4
        %v2777 = vshll.u32 %v2371, 16
        %v2779 = vrot.slane %v2777, 5
        %v2780 = vsel %vm1492, %v2775, %v2779
        %v2781 = vshrl.u32 %v2371, 16
        %v2783 = vrot.slane %v2781, 4
        %v2784 = vor.u32 %v2783, %v2779
        %v2785 = vrot.slane %v2784, 4
        %v2787 = vshll.u32 %v2372, 16
        %v2789 = vrot.slane %v2787, 5
        %v2790 = vsel %vm1492, %v2785, %v2789
        %s2791 = scalar_lea.vmem %s1338, 256 [#allocation5]
        %v2792 = vld [vmem:[%s2791] sm:$0xf]
        %v2793 = vld [vmem:[%s2791 + $0x4] sm:$0xf]
        %v2794 = vld [vmem:[%s2791 + $0x8] sm:$0xf]
        %v2795 = vld [vmem:[%s2791 + $0xc] sm:$0xf]
        %v2796 = vld [vmem:[%s2791 + $0x10] sm:$0xf]
        %v2797 = vld [vmem:[%s2791 + $0x14] sm:$0xf]
        %v2798 = vld [vmem:[%s2791 + $0x18] sm:$0xf]
        %v2799 = vld [vmem:[%s2791 + $0x1c] sm:$0xf]
        %v2800 = vld [vmem:[%s2791 + $0x20] sm:$0xf]
        %v2801 = vld [vmem:[%s2791 + $0x24] sm:$0xf]
        %v2802 = vld [vmem:[%s2791 + $0x28] sm:$0xf]
        %v2803 = vld [vmem:[%s2791 + $0x2c] sm:$0xf]
        %v2804 = vld [vmem:[%s2791 + $0x30] sm:$0xf]
        %v2805 = vld [vmem:[%s2791 + $0x34] sm:$0xf]
        %v2806 = vld [vmem:[%s2791 + $0x38] sm:$0xf]
        %v2807 = vld [vmem:[%s2791 + $0x3c] sm:$0xf]
        %v2808 = vunpack.c.l.b16 %v2612
        %v2809 = vunpack.c.l.b16 %v2622
        %v2810 = vunpack.c.l.b16 %v2636
        %v2811 = vunpack.c.l.b16 %v2646
        %v2812 = vunpack.c.l.b16 %v2660
        %v2813 = vunpack.c.l.b16 %v2670
        %v2814 = vunpack.c.l.b16 %v2684
        %v2815 = vunpack.c.l.b16 %v2694
        %v2816 = vunpack.c.l.b16 %v2708
        %v2817 = vunpack.c.l.b16 %v2718
        %v2818 = vunpack.c.l.b16 %v2732
        %v2819 = vunpack.c.l.b16 %v2742
        %v2820 = vunpack.c.l.b16 %v2756
        %v2821 = vunpack.c.l.b16 %v2766
        %v2822 = vunpack.c.l.b16 %v2780
        %v2823 = vunpack.c.l.b16 %v2790
        %v2824 = vpack.c.b16 %v2809, %v2808
        %v2825 = vpack.c.b16 %v2811, %v2810
        %v2826 = vpack.c.b16 %v2813, %v2812
        %v2827 = vpack.c.b16 %v2815, %v2814
        %v2828 = vpack.c.b16 %v2817, %v2816
        %v2829 = vpack.c.b16 %v2819, %v2818
        %v2830 = vpack.c.b16 %v2821, %v2820
        %v2831 = vpack.c.b16 %v2823, %v2822
        %v2856 = vunpack.c.l.b16 %v2792
        %v2857 = vunpack.c.l.b16 %v2793
        %v2858 = vunpack.c.l.b16 %v2794
        %v2859 = vunpack.c.l.b16 %v2795
        %v2860 = vunpack.c.l.b16 %v2796
        %v2861 = vunpack.c.l.b16 %v2797
        %v2862 = vunpack.c.l.b16 %v2798
        %v2863 = vunpack.c.l.b16 %v2799
        %v2864 = vunpack.c.l.b16 %v2800
        %v2865 = vunpack.c.l.b16 %v2801
        %v2866 = vunpack.c.l.b16 %v2802
        %v2867 = vunpack.c.l.b16 %v2803
        %v2868 = vunpack.c.l.b16 %v2804
        %v2869 = vunpack.c.l.b16 %v2805
        %v2870 = vunpack.c.l.b16 %v2806
        %v2871 = vunpack.c.l.b16 %v2807
        %v2872 = vpack.c.b16 %v2857, %v2856
        %v2873 = vpack.c.b16 %v2859, %v2858
        %v2874 = vpack.c.b16 %v2861, %v2860
        %v2875 = vpack.c.b16 %v2863, %v2862
        %v2876 = vpack.c.b16 %v2865, %v2864
        %v2877 = vpack.c.b16 %v2867, %v2866
        %v2878 = vpack.c.b16 %v2869, %v2868
        %v2879 = vpack.c.b16 %v2871, %v2870
        %2888 = vmatprep.subr.bf16.mxu0 0
        %2889 = vmatpush1.bf16.msra.mxu0 %v2872
        %2890 = vmatprep.subr.bf16.mxu0 0
        %2891 = vmatpush1.bf16.msra.mxu0 %v2873
        %2892 = vmatprep.subr.bf16.mxu0 0
        %2893 = vmatpush1.bf16.msra.mxu0 %v2874
        %2894 = vmatprep.subr.bf16.mxu0 0
        %2895 = vmatpush1.bf16.msra.mxu0 %v2875
        %2896 = vmatprep.subr.bf16.mxu0 0
        %2897 = vmatpush1.bf16.msra.mxu0 %v2876
        %2898 = vmatprep.subr.bf16.mxu0 0
        %2899 = vmatpush1.bf16.msra.mxu0 %v2877
        %2900 = vmatprep.subr.bf16.mxu0 0
        %2901 = vmatpush1.bf16.msra.mxu0 %v2878
        %2902 = vmatprep.subr.bf16.mxu0 0
        %2903 = vmatpush1.bf16.msra.mxu0 %v2879
        %2904 = vmatprep.subr.bf16.mxu0 0
        %2905 = vmatpush1.bf16.msra.mxu0 0
        %2906 = vmatprep.subr.bf16.mxu0 0
        %2907 = vmatpush1.bf16.msra.mxu0 0
        %2908 = vmatprep.subr.bf16.mxu0 0
        %2909 = vmatpush1.bf16.msra.mxu0 0
        %2910 = vmatprep.subr.bf16.mxu0 0
        %2911 = vmatpush1.bf16.msra.mxu0 0
        %2912 = vmatprep.subr.bf16.mxu0 0
        %2913 = vmatpush1.bf16.msra.mxu0 0
        %2914 = vmatprep.subr.bf16.mxu0 0
        %2915 = vmatpush1.bf16.msra.mxu0 0
        %2916 = vmatprep.subr.bf16.mxu0 0
        %2917 = vmatpush1.bf16.msra.mxu0 0
        %2918 = vmatprep.subr.bf16.mxu0 0
        %2919 = vmatpush1.bf16.msra.mxu0 0
        %2920 = vmatprep.mubr.bf16.mxu0 0
        %2921 = vmatmul.mubr.bf16.gmra.mrb[0].mxu0 %v2824
        %v2922 = vpop.f32.mrb[0].mxu0
        %v2923 = vadd.f32 0.0, %v2922
        %v2924 = vpop.f32.mrb[0].mxu0
        %v2925 = vpop.f32.mrb[0].mxu0
        %v2926 = vadd.f32 0.0, %v2925
        %v2927 = vpop.f32.mrb[0].mxu0
        %2928 = vmatprep.mubr.bf16.mxu0 0
        %2929 = vmatmul.mubr.bf16.gmra.mrb[0].mxu0 %v2825
        %v2930 = vpop.f32.mrb[0].mxu0
        %v2931 = vadd.f32 0.0, %v2930
        %v2932 = vpop.f32.mrb[0].mxu0
        %v2933 = vpop.f32.mrb[0].mxu0
        %v2934 = vadd.f32 0.0, %v2933
        %v2935 = vpop.f32.mrb[0].mxu0
        %2936 = vmatprep.mubr.bf16.mxu0 0
        %2937 = vmatmul.mubr.bf16.gmra.mrb[0].mxu0 %v2826
        %v2938 = vpop.f32.mrb[0].mxu0
        %v2939 = vadd.f32 0.0, %v2938
        %v2940 = vpop.f32.mrb[0].mxu0
        %v2941 = vpop.f32.mrb[0].mxu0
        %v2942 = vadd.f32 0.0, %v2941
        %v2943 = vpop.f32.mrb[0].mxu0
        %2944 = vmatprep.mubr.bf16.mxu0 0
        %2945 = vmatmul.mubr.bf16.gmra.mrb[0].mxu0 %v2827
        %v2946 = vpop.f32.mrb[0].mxu0
        %v2947 = vadd.f32 0.0, %v2946
        %v2948 = vpop.f32.mrb[0].mxu0
        %v2949 = vpop.f32.mrb[0].mxu0
        %v2950 = vadd.f32 0.0, %v2949
        %v2951 = vpop.f32.mrb[0].mxu0
        %2952 = vmatprep.mubr.bf16.mxu0 0
        %2953 = vmatmul.mubr.bf16.gmra.mrb[0].mxu0 %v2828
        %v2954 = vpop.f32.mrb[0].mxu0
        %v2955 = vadd.f32 0.0, %v2954
        %v2956 = vpop.f32.mrb[0].mxu0
        %v2957 = vpop.f32.mrb[0].mxu0
        %v2958 = vadd.f32 0.0, %v2957
        %v2959 = vpop.f32.mrb[0].mxu0
        %2960 = vmatprep.mubr.bf16.mxu0 0
        %2961 = vmatmul.mubr.bf16.gmra.mrb[0].mxu0 %v2829
        %v2962 = vpop.f32.mrb[0].mxu0
        %v2963 = vadd.f32 0.0, %v2962
        %v2964 = vpop.f32.mrb[0].mxu0
        %v2965 = vpop.f32.mrb[0].mxu0
        %v2966 = vadd.f32 0.0, %v2965
        %v2967 = vpop.f32.mrb[0].mxu0
        %2968 = vmatprep.mubr.bf16.mxu0 0
        %2969 = vmatmul.mubr.bf16.gmra.mrb[0].mxu0 %v2830
        %v2970 = vpop.f32.mrb[0].mxu0
        %v2971 = vadd.f32 0.0, %v2970
        %v2972 = vpop.f32.mrb[0].mxu0
        %v2973 = vpop.f32.mrb[0].mxu0
        %v2974 = vadd.f32 0.0, %v2973
        %v2975 = vpop.f32.mrb[0].mxu0
        %2976 = vmatprep.mubr.bf16.mxu0 0
        %2977 = vmatmul.mubr.bf16.gmra.mrb[0].mxu0 %v2831
        %v2978 = vpop.f32.mrb[0].mxu0
        %v2979 = vadd.f32 0.0, %v2978
        %v2980 = vpop.f32.mrb[0].mxu0
        %v2981 = vpop.f32.mrb[0].mxu0
        %v2982 = vadd.f32 0.0, %v2981
        %v2983 = vpop.f32.mrb[0].mxu0
        %2984 = vdwg.mxu0
        %v2985 = vadd.f32 %v2583, %v2923
        %v2986 = vadd.f32 %v2584, %v2926
        %v2987 = vadd.f32 %v2585, %v2931
        %v2988 = vadd.f32 %v2586, %v2934
        %v2989 = vadd.f32 %v2587, %v2939
        %v2990 = vadd.f32 %v2588, %v2942
        %v2991 = vadd.f32 %v2589, %v2947
        %v2992 = vadd.f32 %v2590, %v2950
        %v2993 = vadd.f32 %v2591, %v2955
        %v2994 = vadd.f32 %v2592, %v2958
        %v2995 = vadd.f32 %v2593, %v2963
        %v2996 = vadd.f32 %v2594, %v2966
        %v2997 = vadd.f32 %v2595, %v2971
        %v2998 = vadd.f32 %v2596, %v2974
        %v2999 = vadd.f32 %v2597, %v2979
        %v3000 = vadd.f32 %v2598, %v2982
        %v3009 = vrot.slane %v2349, 5
        %v3010 = vrot.slane %v3009, 4
        %v3011 = vrot.slane %v2350, 5
        %v3012 = vsel %vm2082, %v3010, %v3011
        %v3013 = vrot.slane %v3011, 4
        %v3014 = vrot.slane %v2351, 5
        %v3015 = vsel %vm2082, %v3013, %v3014
        %v3016 = vrot.slane %v2352, 5
        %v3017 = vrot.slane %v3016, 4
        %v3018 = vrot.slane %v2353, 5
        %v3019 = vsel %vm2082, %v3017, %v3018
        %v3020 = vrot.slane %v3018, 4
        %v3021 = vrot.slane %v2354, 5
        %v3022 = vsel %vm2082, %v3020, %v3021
        %v3023 = vrot.slane %v2355, 5
        %v3024 = vrot.slane %v3023, 4
        %v3025 = vrot.slane %v2356, 5
        %v3026 = vsel %vm2082, %v3024, %v3025
        %v3027 = vrot.slane %v3025, 4
        %v3028 = vrot.slane %v2357, 5
        %v3029 = vsel %vm2082, %v3027, %v3028
        %v3030 = vrot.slane %v2358, 5
        %v3031 = vrot.slane %v3030, 4
        %v3032 = vrot.slane %v2359, 5
        %v3033 = vsel %vm2082, %v3031, %v3032
        %v3034 = vrot.slane %v3032, 4
        %v3035 = vrot.slane %v2360, 5
        %v3036 = vsel %vm2082, %v3034, %v3035
        %v3037 = vrot.slane %v2361, 5
        %v3038 = vrot.slane %v3037, 4
        %v3039 = vrot.slane %v2362, 5
        %v3040 = vsel %vm2082, %v3038, %v3039
        %v3041 = vrot.slane %v3039, 4
        %v3042 = vrot.slane %v2363, 5
        %v3043 = vsel %vm2082, %v3041, %v3042
        %v3044 = vrot.slane %v2364, 5
        %v3045 = vrot.slane %v3044, 4
        %v3046 = vrot.slane %v2365, 5
        %v3047 = vsel %vm2082, %v3045, %v3046
        %v3048 = vrot.slane %v3046, 4
        %v3049 = vrot.slane %v2366, 5
        %v3050 = vsel %vm2082, %v3048, %v3049
        %v3051 = vrot.slane %v2367, 5
        %v3052 = vrot.slane %v3051, 4
        %v3053 = vrot.slane %v2368, 5
        %v3054 = vsel %vm2082, %v3052, %v3053
        %v3055 = vrot.slane %v3053, 4
        %v3056 = vrot.slane %v2369, 5
        %v3057 = vsel %vm2082, %v3055, %v3056
        %v3058 = vrot.slane %v2370, 5
        %v3059 = vrot.slane %v3058, 4
        %v3060 = vrot.slane %v2371, 5
        %v3061 = vsel %vm2082, %v3059, %v3060
        %v3062 = vrot.slane %v3060, 4
        %v3063 = vrot.slane %v2372, 5
        %v3064 = vsel %vm2082, %v3062, %v3063
        %s3065 = scalar_lea.vmem %s1338, 320 [#allocation5]
        %v3066 = vld [vmem:[%s3065] sm:$0xf]
        %v3067 = vld [vmem:[%s3065 + $0x4] sm:$0xf]
        %v3068 = vld [vmem:[%s3065 + $0x8] sm:$0xf]
        %v3069 = vld [vmem:[%s3065 + $0xc] sm:$0xf]
        %v3070 = vld [vmem:[%s3065 + $0x10] sm:$0xf]
        %v3071 = vld [vmem:[%s3065 + $0x14] sm:$0xf]
        %v3072 = vld [vmem:[%s3065 + $0x18] sm:$0xf]
        %v3073 = vld [vmem:[%s3065 + $0x1c] sm:$0xf]
        %v3074 = vld [vmem:[%s3065 + $0x20] sm:$0xf]
        %v3075 = vld [vmem:[%s3065 + $0x24] sm:$0xf]
        %v3076 = vld [vmem:[%s3065 + $0x28] sm:$0xf]
        %v3077 = vld [vmem:[%s3065 + $0x2c] sm:$0xf]
        %v3078 = vld [vmem:[%s3065 + $0x30] sm:$0xf]
        %v3079 = vld [vmem:[%s3065 + $0x34] sm:$0xf]
        %v3080 = vld [vmem:[%s3065 + $0x38] sm:$0xf]
        %v3081 = vld [vmem:[%s3065 + $0x3c] sm:$0xf]
        %v3082 = vunpack.c.l.b16 %v3012
        %v3083 = vunpack.c.l.b16 %v3015
        %v3084 = vunpack.c.l.b16 %v3019
        %v3085 = vunpack.c.l.b16 %v3022
        %v3086 = vunpack.c.l.b16 %v3026
        %v3087 = vunpack.c.l.b16 %v3029
        %v3088 = vunpack.c.l.b16 %v3033
        %v3089 = vunpack.c.l.b16 %v3036
        %v3090 = vunpack.c.l.b16 %v3040
        %v3091 = vunpack.c.l.b16 %v3043
        %v3092 = vunpack.c.l.b16 %v3047
        %v3093 = vunpack.c.l.b16 %v3050
        %v3094 = vunpack.c.l.b16 %v3054
        %v3095 = vunpack.c.l.b16 %v3057
        %v3096 = vunpack.c.l.b16 %v3061
        %v3097 = vunpack.c.l.b16 %v3064
        %v3098 = vpack.c.b16 %v3083, %v3082
        %v3099 = vpack.c.b16 %v3085, %v3084
        %v3100 = vpack.c.b16 %v3087, %v3086
        %v3101 = vpack.c.b16 %v3089, %v3088
        %v3102 = vpack.c.b16 %v3091, %v3090
        %v3103 = vpack.c.b16 %v3093, %v3092
        %v3104 = vpack.c.b16 %v3095, %v3094
        %v3105 = vpack.c.b16 %v3097, %v3096
        %v3130 = vunpack.c.l.b16 %v3066
        %v3131 = vunpack.c.l.b16 %v3067
        %v3132 = vunpack.c.l.b16 %v3068
        %v3133 = vunpack.c.l.b16 %v3069
        %v3134 = vunpack.c.l.b16 %v3070
        %v3135 = vunpack.c.l.b16 %v3071
        %v3136 = vunpack.c.l.b16 %v3072
        %v3137 = vunpack.c.l.b16 %v3073
        %v3138 = vunpack.c.l.b16 %v3074
        %v3139 = vunpack.c.l.b16 %v3075
        %v3140 = vunpack.c.l.b16 %v3076
        %v3141 = vunpack.c.l.b16 %v3077
        %v3142 = vunpack.c.l.b16 %v3078
        %v3143 = vunpack.c.l.b16 %v3079
        %v3144 = vunpack.c.l.b16 %v3080
        %v3145 = vunpack.c.l.b16 %v3081
        %v3146 = vpack.c.b16 %v3131, %v3130
        %v3147 = vpack.c.b16 %v3133, %v3132
        %v3148 = vpack.c.b16 %v3135, %v3134
        %v3149 = vpack.c.b16 %v3137, %v3136
        %v3150 = vpack.c.b16 %v3139, %v3138
        %v3151 = vpack.c.b16 %v3141, %v3140
        %v3152 = vpack.c.b16 %v3143, %v3142
        %v3153 = vpack.c.b16 %v3145, %v3144
        %3162 = vmatprep.subr.bf16.mxu0 0
        %3163 = vmatpush1.bf16.msra.mxu0 %v3146
        %3164 = vmatprep.subr.bf16.mxu0 0
        %3165 = vmatpush1.bf16.msra.mxu0 %v3147
        %3166 = vmatprep.subr.bf16.mxu0 0
        %3167 = vmatpush1.bf16.msra.mxu0 %v3148
        %3168 = vmatprep.subr.bf16.mxu0 0
        %3169 = vmatpush1.bf16.msra.mxu0 %v3149
        %3170 = vmatprep.subr.bf16.mxu0 0
        %3171 = vmatpush1.bf16.msra.mxu0 %v3150
        %3172 = vmatprep.subr.bf16.mxu0 0
        %3173 = vmatpush1.bf16.msra.mxu0 %v3151
        %3174 = vmatprep.subr.bf16.mxu0 0
        %3175 = vmatpush1.bf16.msra.mxu0 %v3152
        %3176 = vmatprep.subr.bf16.mxu0 0
        %3177 = vmatpush1.bf16.msra.mxu0 %v3153
        %3178 = vmatprep.subr.bf16.mxu0 0
        %3179 = vmatpush1.bf16.msra.mxu0 0
        %3180 = vmatprep.subr.bf16.mxu0 0
        %3181 = vmatpush1.bf16.msra.mxu0 0
        %3182 = vmatprep.subr.bf16.mxu0 0
        %3183 = vmatpush1.bf16.msra.mxu0 0
        %3184 = vmatprep.subr.bf16.mxu0 0
        %3185 = vmatpush1.bf16.msra.mxu0 0
        %3186 = vmatprep.subr.bf16.mxu0 0
        %3187 = vmatpush1.bf16.msra.mxu0 0
        %3188 = vmatprep.subr.bf16.mxu0 0
        %3189 = vmatpush1.bf16.msra.mxu0 0
        %3190 = vmatprep.subr.bf16.mxu0 0
        %3191 = vmatpush1.bf16.msra.mxu0 0
        %3192 = vmatprep.subr.bf16.mxu0 0
        %3193 = vmatpush1.bf16.msra.mxu0 0
        %3194 = vmatprep.mubr.bf16.mxu0 0
        %3195 = vmatmul.mubr.bf16.gmra.mrb[0].mxu0 %v3098
        %v3196 = vpop.f32.mrb[0].mxu0
        %v3197 = vadd.f32 0.0, %v3196
        %v3198 = vpop.f32.mrb[0].mxu0
        %v3199 = vpop.f32.mrb[0].mxu0
        %v3200 = vadd.f32 0.0, %v3199
        %v3201 = vpop.f32.mrb[0].mxu0
        %3202 = vmatprep.mubr.bf16.mxu0 0
        %3203 = vmatmul.mubr.bf16.gmra.mrb[0].mxu0 %v3099
        %v3204 = vpop.f32.mrb[0].mxu0
        %v3205 = vadd.f32 0.0, %v3204
        %v3206 = vpop.f32.mrb[0].mxu0
        %v3207 = vpop.f32.mrb[0].mxu0
        %v3208 = vadd.f32 0.0, %v3207
        %v3209 = vpop.f32.mrb[0].mxu0
        %3210 = vmatprep.mubr.bf16.mxu0 0
        %3211 = vmatmul.mubr.bf16.gmra.mrb[0].mxu0 %v3100
        %v3212 = vpop.f32.mrb[0].mxu0
        %v3213 = vadd.f32 0.0, %v3212
        %v3214 = vpop.f32.mrb[0].mxu0
        %v3215 = vpop.f32.mrb[0].mxu0
        %v3216 = vadd.f32 0.0, %v3215
        %v3217 = vpop.f32.mrb[0].mxu0
        %3218 = vmatprep.mubr.bf16.mxu0 0
        %3219 = vmatmul.mubr.bf16.gmra.mrb[0].mxu0 %v3101
        %v3220 = vpop.f32.mrb[0].mxu0
        %v3221 = vadd.f32 0.0, %v3220
        %v3222 = vpop.f32.mrb[0].mxu0
        %v3223 = vpop.f32.mrb[0].mxu0
        %v3224 = vadd.f32 0.0, %v3223
        %v3225 = vpop.f32.mrb[0].mxu0
        %3226 = vmatprep.mubr.bf16.mxu0 0
        %3227 = vmatmul.mubr.bf16.gmra.mrb[0].mxu0 %v3102
        %v3228 = vpop.f32.mrb[0].mxu0
        %v3229 = vadd.f32 0.0, %v3228
        %v3230 = vpop.f32.mrb[0].mxu0
        %v3231 = vpop.f32.mrb[0].mxu0
        %v3232 = vadd.f32 0.0, %v3231
        %v3233 = vpop.f32.mrb[0].mxu0
        %3234 = vmatprep.mubr.bf16.mxu0 0
        %3235 = vmatmul.mubr.bf16.gmra.mrb[0].mxu0 %v3103
        %v3236 = vpop.f32.mrb[0].mxu0
        %v3237 = vadd.f32 0.0, %v3236
        %v3238 = vpop.f32.mrb[0].mxu0
        %v3239 = vpop.f32.mrb[0].mxu0
        %v3240 = vadd.f32 0.0, %v3239
        %v3241 = vpop.f32.mrb[0].mxu0
        %3242 = vmatprep.mubr.bf16.mxu0 0
        %3243 = vmatmul.mubr.bf16.gmra.mrb[0].mxu0 %v3104
        %v3244 = vpop.f32.mrb[0].mxu0
        %v3245 = vadd.f32 0.0, %v3244
        %v3246 = vpop.f32.mrb[0].mxu0
        %v3247 = vpop.f32.mrb[0].mxu0
        %v3248 = vadd.f32 0.0, %v3247
        %v3249 = vpop.f32.mrb[0].mxu0
        %3250 = vmatprep.mubr.bf16.mxu0 0
        %3251 = vmatmul.mubr.bf16.gmra.mrb[0].mxu0 %v3105
        %v3252 = vpop.f32.mrb[0].mxu0
        %v3253 = vadd.f32 0.0, %v3252
        %v3254 = vpop.f32.mrb[0].mxu0
        %v3255 = vpop.f32.mrb[0].mxu0
        %v3256 = vadd.f32 0.0, %v3255
        %v3257 = vpop.f32.mrb[0].mxu0
        %3258 = vdwg.mxu0
        %v3259 = vadd.f32 %v2985, %v3197
        %v3260 = vadd.f32 %v2986, %v3200
        %v3261 = vadd.f32 %v2987, %v3205
        %v3262 = vadd.f32 %v2988, %v3208
        %v3263 = vadd.f32 %v2989, %v3213
        %v3264 = vadd.f32 %v2990, %v3216
        %v3265 = vadd.f32 %v2991, %v3221
        %v3266 = vadd.f32 %v2992, %v3224
        %v3267 = vadd.f32 %v2993, %v3229
        %v3268 = vadd.f32 %v2994, %v3232
        %v3269 = vadd.f32 %v2995, %v3237
        %v3270 = vadd.f32 %v2996, %v3240
        %v3271 = vadd.f32 %v2997, %v3245
        %v3272 = vadd.f32 %v2998, %v3248
        %v3273 = vadd.f32 %v2999, %v3253
        %v3274 = vadd.f32 %v3000, %v3256
        %v3275 = vld [vmem:[%s1331] sm:$0xf]
        %v3276 = vld [vmem:[%s1331 + $0x4] sm:$0xf]
        %v3277 = vld [vmem:[%s1331 + $0x8] sm:$0x1]
        %v3278 = vld [vmem:[%s1331 + $0xc] sm:$0xf]
        %v3279 = vld [vmem:[%s1331 + $0x10] sm:$0xf]
        %v3280 = vld [vmem:[%s1331 + $0x14] sm:$0x1]
        %v3281 = vld [vmem:[%s1331 + $0x18] sm:$0xf]
        %v3282 = vld [vmem:[%s1331 + $0x1c] sm:$0xf]
        %v3283 = vld [vmem:[%s1331 + $0x20] sm:$0x1]
        %v3284 = vld [vmem:[%s1331 + $0x24] sm:$0xf]
        %v3285 = vld [vmem:[%s1331 + $0x28] sm:$0xf]
        %v3286 = vld [vmem:[%s1331 + $0x2c] sm:$0x1]
        %v3287 = vld [vmem:[%s1331 + $0x30] sm:$0xf]
        %v3288 = vld [vmem:[%s1331 + $0x34] sm:$0xf]
        %v3289 = vld [vmem:[%s1331 + $0x38] sm:$0x1]
        %v3290 = vld [vmem:[%s1331 + $0x3c] sm:$0xf]
        %v3291 = vld [vmem:[%s1331 + $0x40] sm:$0xf]
        %v3292 = vld [vmem:[%s1331 + $0x44] sm:$0x1]
        %v3293 = vld [vmem:[%s1331 + $0x48] sm:$0xf]
        %v3294 = vld [vmem:[%s1331 + $0x4c] sm:$0xf]
        %v3295 = vld [vmem:[%s1331 + $0x50] sm:$0x1]
        %v3296 = vld [vmem:[%s1331 + $0x54] sm:$0xf]
        %v3297 = vld [vmem:[%s1331 + $0x58] sm:$0xf]
        %v3298 = vld [vmem:[%s1331 + $0x5c] sm:$0x1]
        %s3299 = scalar_lea.vmem %s1338, 384 [#allocation5]
        %v3300 = vld [vmem:[%s3299] sm:$0xf]
        %v3301 = vld [vmem:[%s3299 + $0x4] sm:$0xf]
        %v3302 = vld [vmem:[%s3299 + $0x8] sm:$0xf]
        %v3303 = vld [vmem:[%s3299 + $0xc] sm:$0xf]
        %v3304 = vld [vmem:[%s3299 + $0x10] sm:$0xf]
        %v3305 = vld [vmem:[%s3299 + $0x14] sm:$0xf]
        %v3306 = vld [vmem:[%s3299 + $0x18] sm:$0xf]
        %v3307 = vld [vmem:[%s3299 + $0x1c] sm:$0xf]
        %v3308 = vld [vmem:[%s3299 + $0x20] sm:$0xf]
        %v3309 = vld [vmem:[%s3299 + $0x24] sm:$0xf]
        %v3310 = vld [vmem:[%s3299 + $0x28] sm:$0xf]
        %v3311 = vld [vmem:[%s3299 + $0x2c] sm:$0xf]
        %v3312 = vld [vmem:[%s3299 + $0x30] sm:$0xf]
        %v3313 = vld [vmem:[%s3299 + $0x34] sm:$0xf]
        %v3314 = vld [vmem:[%s3299 + $0x38] sm:$0xf]
        %v3315 = vld [vmem:[%s3299 + $0x3c] sm:$0xf]
        %v3332 = vunpack.c.l.b16 %v3275
        %v3333 = vunpack.c.l.b16 %v3276
        %v3334 = vunpack.c.l.b16 %v3278
        %v3335 = vunpack.c.l.b16 %v3279
        %v3336 = vunpack.c.l.b16 %v3281
        %v3337 = vunpack.c.l.b16 %v3282
        %v3338 = vunpack.c.l.b16 %v3284
        %v3339 = vunpack.c.l.b16 %v3285
        %v3340 = vunpack.c.l.b16 %v3287
        %v3341 = vunpack.c.l.b16 %v3288
        %v3342 = vunpack.c.l.b16 %v3290
        %v3343 = vunpack.c.l.b16 %v3291
        %v3344 = vunpack.c.l.b16 %v3293
        %v3345 = vunpack.c.l.b16 %v3294
        %v3346 = vunpack.c.l.b16 %v3296
        %v3347 = vunpack.c.l.b16 %v3297
        %v3348 = vpack.c.b16 %v3333, %v3332
        %v3349 = vpack.c.b16 %v3335, %v3334
        %v3350 = vpack.c.b16 %v3337, %v3336
        %v3351 = vpack.c.b16 %v3339, %v3338
        %v3352 = vpack.c.b16 %v3341, %v3340
        %v3353 = vpack.c.b16 %v3343, %v3342
        %v3354 = vpack.c.b16 %v3345, %v3344
        %v3355 = vpack.c.b16 %v3347, %v3346
        %v3380 = vunpack.c.l.b16 %v3300
        %v3381 = vunpack.c.l.b16 %v3301
        %v3382 = vunpack.c.l.b16 %v3302
        %v3383 = vunpack.c.l.b16 %v3303
        %v3384 = vunpack.c.l.b16 %v3304
        %v3385 = vunpack.c.l.b16 %v3305
        %v3386 = vunpack.c.l.b16 %v3306
        %v3387 = vunpack.c.l.b16 %v3307
        %v3388 = vunpack.c.l.b16 %v3308
        %v3389 = vunpack.c.l.b16 %v3309
        %v3390 = vunpack.c.l.b16 %v3310
        %v3391 = vunpack.c.l.b16 %v3311
        %v3392 = vunpack.c.l.b16 %v3312
        %v3393 = vunpack.c.l.b16 %v3313
        %v3394 = vunpack.c.l.b16 %v3314
        %v3395 = vunpack.c.l.b16 %v3315
        %v3396 = vpack.c.b16 %v3381, %v3380
        %v3397 = vpack.c.b16 %v3383, %v3382
        %v3398 = vpack.c.b16 %v3385, %v3384
        %v3399 = vpack.c.b16 %v3387, %v3386
        %v3400 = vpack.c.b16 %v3389, %v3388
        %v3401 = vpack.c.b16 %v3391, %v3390
        %v3402 = vpack.c.b16 %v3393, %v3392
        %v3403 = vpack.c.b16 %v3395, %v3394
        %3412 = vmatprep.subr.bf16.mxu0 0
        %3413 = vmatpush1.bf16.msra.mxu0 %v3396
        %3414 = vmatprep.subr.bf16.mxu0 0
        %3415 = vmatpush1.bf16.msra.mxu0 %v3397
        %3416 = vmatprep.subr.bf16.mxu0 0
        %3417 = vmatpush1.bf16.msra.mxu0 %v3398
        %3418 = vmatprep.subr.bf16.mxu0 0
        %3419 = vmatpush1.bf16.msra.mxu0 %v3399
        %3420 = vmatprep.subr.bf16.mxu0 0
        %3421 = vmatpush1.bf16.msra.mxu0 %v3400
        %3422 = vmatprep.subr.bf16.mxu0 0
        %3423 = vmatpush1.bf16.msra.mxu0 %v3401
        %3424 = vmatprep.subr.bf16.mxu0 0
        %3425 = vmatpush1.bf16.msra.mxu0 %v3402
        %3426 = vmatprep.subr.bf16.mxu0 0
        %3427 = vmatpush1.bf16.msra.mxu0 %v3403
        %3428 = vmatprep.subr.bf16.mxu0 0
        %3429 = vmatpush1.bf16.msra.mxu0 0
        %3430 = vmatprep.subr.bf16.mxu0 0
        %3431 = vmatpush1.bf16.msra.mxu0 0
        %3432 = vmatprep.subr.bf16.mxu0 0
        %3433 = vmatpush1.bf16.msra.mxu0 0
        %3434 = vmatprep.subr.bf16.mxu0 0
        %3435 = vmatpush1.bf16.msra.mxu0 0
        %3436 = vmatprep.subr.bf16.mxu0 0
        %3437 = vmatpush1.bf16.msra.mxu0 0
        %3438 = vmatprep.subr.bf16.mxu0 0
        %3439 = vmatpush1.bf16.msra.mxu0 0
        %3440 = vmatprep.subr.bf16.mxu0 0
        %3441 = vmatpush1.bf16.msra.mxu0 0
        %3442 = vmatprep.subr.bf16.mxu0 0
        %3443 = vmatpush1.bf16.msra.mxu0 0
        %3444 = vmatprep.mubr.bf16.mxu0 0
        %3445 = vmatmul.mubr.bf16.gmra.mrb[0].mxu0 %v3348
        %v3446 = vpop.f32.mrb[0].mxu0
        %v3447 = vadd.f32 0.0, %v3446
        %v3448 = vpop.f32.mrb[0].mxu0
        %v3449 = vpop.f32.mrb[0].mxu0
        %v3450 = vadd.f32 0.0, %v3449
        %v3451 = vpop.f32.mrb[0].mxu0
        %3452 = vmatprep.mubr.bf16.mxu0 0
        %3453 = vmatmul.mubr.bf16.gmra.mrb[0].mxu0 %v3349
        %v3454 = vpop.f32.mrb[0].mxu0
        %v3455 = vadd.f32 0.0, %v3454
        %v3456 = vpop.f32.mrb[0].mxu0
        %v3457 = vpop.f32.mrb[0].mxu0
        %v3458 = vadd.f32 0.0, %v3457
        %v3459 = vpop.f32.mrb[0].mxu0
        %3460 = vmatprep.mubr.bf16.mxu0 0
        %3461 = vmatmul.mubr.bf16.gmra.mrb[0].mxu0 %v3350
        %v3462 = vpop.f32.mrb[0].mxu0
        %v3463 = vadd.f32 0.0, %v3462
        %v3464 = vpop.f32.mrb[0].mxu0
        %v3465 = vpop.f32.mrb[0].mxu0
        %v3466 = vadd.f32 0.0, %v3465
        %v3467 = vpop.f32.mrb[0].mxu0
        %3468 = vmatprep.mubr.bf16.mxu0 0
        %3469 = vmatmul.mubr.bf16.gmra.mrb[0].mxu0 %v3351
        %v3470 = vpop.f32.mrb[0].mxu0
        %v3471 = vadd.f32 0.0, %v3470
        %v3472 = vpop.f32.mrb[0].mxu0
        %v3473 = vpop.f32.mrb[0].mxu0
        %v3474 = vadd.f32 0.0, %v3473
        %v3475 = vpop.f32.mrb[0].mxu0
        %3476 = vmatprep.mubr.bf16.mxu0 0
        %3477 = vmatmul.mubr.bf16.gmra.mrb[0].mxu0 %v3352
        %v3478 = vpop.f32.mrb[0].mxu0
        %v3479 = vadd.f32 0.0, %v3478
        %v3480 = vpop.f32.mrb[0].mxu0
        %v3481 = vpop.f32.mrb[0].mxu0
        %v3482 = vadd.f32 0.0, %v3481
        %v3483 = vpop.f32.mrb[0].mxu0
        %3484 = vmatprep.mubr.bf16.mxu0 0
        %3485 = vmatmul.mubr.bf16.gmra.mrb[0].mxu0 %v3353
        %v3486 = vpop.f32.mrb[0].mxu0
        %v3487 = vadd.f32 0.0, %v3486
        %v3488 = vpop.f32.mrb[0].mxu0
        %v3489 = vpop.f32.mrb[0].mxu0
        %v3490 = vadd.f32 0.0, %v3489
        %v3491 = vpop.f32.mrb[0].mxu0
        %3492 = vmatprep.mubr.bf16.mxu0 0
        %3493 = vmatmul.mubr.bf16.gmra.mrb[0].mxu0 %v3354
        %v3494 = vpop.f32.mrb[0].mxu0
        %v3495 = vadd.f32 0.0, %v3494
        %v3496 = vpop.f32.mrb[0].mxu0
        %v3497 = vpop.f32.mrb[0].mxu0
        %v3498 = vadd.f32 0.0, %v3497
        %v3499 = vpop.f32.mrb[0].mxu0
        %3500 = vmatprep.mubr.bf16.mxu0 0
        %3501 = vmatmul.mubr.bf16.gmra.mrb[0].mxu0 %v3355
        %v3502 = vpop.f32.mrb[0].mxu0
        %v3503 = vadd.f32 0.0, %v3502
        %v3504 = vpop.f32.mrb[0].mxu0
        %v3505 = vpop.f32.mrb[0].mxu0
        %v3506 = vadd.f32 0.0, %v3505
        %v3507 = vpop.f32.mrb[0].mxu0
        %3508 = vdwg.mxu0
        %v3509 = vadd.f32 %v3259, %v3447
        %v3510 = vadd.f32 %v3260, %v3450
        %v3511 = vadd.f32 %v3261, %v3455
        %v3512 = vadd.f32 %v3262, %v3458
        %v3513 = vadd.f32 %v3263, %v3463
        %v3514 = vadd.f32 %v3264, %v3466
        %v3515 = vadd.f32 %v3265, %v3471
        %v3516 = vadd.f32 %v3266, %v3474
        %v3517 = vadd.f32 %v3267, %v3479
        %v3518 = vadd.f32 %v3268, %v3482
        %v3519 = vadd.f32 %v3269, %v3487
        %v3520 = vadd.f32 %v3270, %v3490
        %v3521 = vadd.f32 %v3271, %v3495
        %v3522 = vadd.f32 %v3272, %v3498
        %v3523 = vadd.f32 %v3273, %v3503
        %v3524 = vadd.f32 %v3274, %v3506
        %v3526 = vshrl.u32 %v3275, 16
        %v3528 = vrot.slane %v3526, 4
        %v3529 = vshll.u32 %v3275, 16
        %v3531 = vrot.slane %v3529, 5
        %v3532 = vor.u32 %v3528, %v3531
        %v3533 = vrot.slane %v3532, 4
        %v3535 = vshll.u32 %v3276, 16
        %v3537 = vrot.slane %v3535, 5
        %v3538 = vsel %vm1492, %v3533, %v3537
        %v3539 = vshrl.u32 %v3276, 16
        %v3541 = vrot.slane %v3539, 4
        %v3542 = vor.u32 %v3541, %v3537
        %v3543 = vrot.slane %v3542, 4
        %v3545 = vshll.u32 %v3277, 16
        %v3547 = vrot.slane %v3545, 5
        %v3548 = vsel %vm1492, %v3543, %v3547
        %v3550 = vshrl.u32 %v3278, 16
        %v3552 = vrot.slane %v3550, 4
        %v3553 = vshll.u32 %v3278, 16
        %v3555 = vrot.slane %v3553, 5
        %v3556 = vor.u32 %v3552, %v3555
        %v3557 = vrot.slane %v3556, 4
        %v3559 = vshll.u32 %v3279, 16
        %v3561 = vrot.slane %v3559, 5
        %v3562 = vsel %vm1492, %v3557, %v3561
        %v3563 = vshrl.u32 %v3279, 16
        %v3565 = vrot.slane %v3563, 4
        %v3566 = vor.u32 %v3565, %v3561
        %v3567 = vrot.slane %v3566, 4
        %v3569 = vshll.u32 %v3280, 16
        %v3571 = vrot.slane %v3569, 5
        %v3572 = vsel %vm1492, %v3567, %v3571
        %v3574 = vshrl.u32 %v3281, 16
        %v3576 = vrot.slane %v3574, 4
        %v3577 = vshll.u32 %v3281, 16
        %v3579 = vrot.slane %v3577, 5
        %v3580 = vor.u32 %v3576, %v3579
        %v3581 = vrot.slane %v3580, 4
        %v3583 = vshll.u32 %v3282, 16
        %v3585 = vrot.slane %v3583, 5
        %v3586 = vsel %vm1492, %v3581, %v3585
        %v3587 = vshrl.u32 %v3282, 16
        %v3589 = vrot.slane %v3587, 4
        %v3590 = vor.u32 %v3589, %v3585
        %v3591 = vrot.slane %v3590, 4
        %v3593 = vshll.u32 %v3283, 16
        %v3595 = vrot.slane %v3593, 5
        %v3596 = vsel %vm1492, %v3591, %v3595
        %v3598 = vshrl.u32 %v3284, 16
        %v3600 = vrot.slane %v3598, 4
        %v3601 = vshll.u32 %v3284, 16
        %v3603 = vrot.slane %v3601, 5
        %v3604 = vor.u32 %v3600, %v3603
        %v3605 = vrot.slane %v3604, 4
        %v3607 = vshll.u32 %v3285, 16
        %v3609 = vrot.slane %v3607, 5
        %v3610 = vsel %vm1492, %v3605, %v3609
        %v3611 = vshrl.u32 %v3285, 16
        %v3613 = vrot.slane %v3611, 4
        %v3614 = vor.u32 %v3613, %v3609
        %v3615 = vrot.slane %v3614, 4
        %v3617 = vshll.u32 %v3286, 16
        %v3619 = vrot.slane %v3617, 5
        %v3620 = vsel %vm1492, %v3615, %v3619
        %v3622 = vshrl.u32 %v3287, 16
        %v3624 = vrot.slane %v3622, 4
        %v3625 = vshll.u32 %v3287, 16
        %v3627 = vrot.slane %v3625, 5
        %v3628 = vor.u32 %v3624, %v3627
        %v3629 = vrot.slane %v3628, 4
        %v3631 = vshll.u32 %v3288, 16
        %v3633 = vrot.slane %v3631, 5
        %v3634 = vsel %vm1492, %v3629, %v3633
        %v3635 = vshrl.u32 %v3288, 16
        %v3637 = vrot.slane %v3635, 4
        %v3638 = vor.u32 %v3637, %v3633
        %v3639 = vrot.slane %v3638, 4
        %v3641 = vshll.u32 %v3289, 16
        %v3643 = vrot.slane %v3641, 5
        %v3644 = vsel %vm1492, %v3639, %v3643
        %v3646 = vshrl.u32 %v3290, 16
        %v3648 = vrot.slane %v3646, 4
        %v3649 = vshll.u32 %v3290, 16
        %v3651 = vrot.slane %v3649, 5
        %v3652 = vor.u32 %v3648, %v3651
        %v3653 = vrot.slane %v3652, 4
        %v3655 = vshll.u32 %v3291, 16
        %v3657 = vrot.slane %v3655, 5
        %v3658 = vsel %vm1492, %v3653, %v3657
        %v3659 = vshrl.u32 %v3291, 16
        %v3661 = vrot.slane %v3659, 4
        %v3662 = vor.u32 %v3661, %v3657
        %v3663 = vrot.slane %v3662, 4
        %v3665 = vshll.u32 %v3292, 16
        %v3667 = vrot.slane %v3665, 5
        %v3668 = vsel %vm1492, %v3663, %v3667
        %v3670 = vshrl.u32 %v3293, 16
        %v3672 = vrot.slane %v3670, 4
        %v3673 = vshll.u32 %v3293, 16
        %v3675 = vrot.slane %v3673, 5
        %v3676 = vor.u32 %v3672, %v3675
        %v3677 = vrot.slane %v3676, 4
        %v3679 = vshll.u32 %v3294, 16
        %v3681 = vrot.slane %v3679, 5
        %v3682 = vsel %vm1492, %v3677, %v3681
        %v3683 = vshrl.u32 %v3294, 16
        %v3685 = vrot.slane %v3683, 4
        %v3686 = vor.u32 %v3685, %v3681
        %v3687 = vrot.slane %v3686, 4
        %v3689 = vshll.u32 %v3295, 16
        %v3691 = vrot.slane %v3689, 5
        %v3692 = vsel %vm1492, %v3687, %v3691
        %v3694 = vshrl.u32 %v3296, 16
        %v3696 = vrot.slane %v3694, 4
        %v3697 = vshll.u32 %v3296, 16
        %v3699 = vrot.slane %v3697, 5
        %v3700 = vor.u32 %v3696, %v3699
        %v3701 = vrot.slane %v3700, 4
        %v3703 = vshll.u32 %v3297, 16
        %v3705 = vrot.slane %v3703, 5
        %v3706 = vsel %vm1492, %v3701, %v3705
        %v3707 = vshrl.u32 %v3297, 16
        %v3709 = vrot.slane %v3707, 4
        %v3710 = vor.u32 %v3709, %v3705
        %v3711 = vrot.slane %v3710, 4
        %v3713 = vshll.u32 %v3298, 16
        %v3715 = vrot.slane %v3713, 5
        %v3716 = vsel %vm1492, %v3711, %v3715
        %s3717 = scalar_lea.vmem %s1338, 448 [#allocation5]
        %v3718 = vld [vmem:[%s3717] sm:$0xf]
        %v3719 = vld [vmem:[%s3717 + $0x4] sm:$0xf]
        %v3720 = vld [vmem:[%s3717 + $0x8] sm:$0xf]
        %v3721 = vld [vmem:[%s3717 + $0xc] sm:$0xf]
        %v3722 = vld [vmem:[%s3717 + $0x10] sm:$0xf]
        %v3723 = vld [vmem:[%s3717 + $0x14] sm:$0xf]
        %v3724 = vld [vmem:[%s3717 + $0x18] sm:$0xf]
        %v3725 = vld [vmem:[%s3717 + $0x1c] sm:$0xf]
        %v3726 = vld [vmem:[%s3717 + $0x20] sm:$0xf]
        %v3727 = vld [vmem:[%s3717 + $0x24] sm:$0xf]
        %v3728 = vld [vmem:[%s3717 + $0x28] sm:$0xf]
        %v3729 = vld [vmem:[%s3717 + $0x2c] sm:$0xf]
        %v3730 = vld [vmem:[%s3717 + $0x30] sm:$0xf]
        %v3731 = vld [vmem:[%s3717 + $0x34] sm:$0xf]
        %v3732 = vld [vmem:[%s3717 + $0x38] sm:$0xf]
        %v3733 = vld [vmem:[%s3717 + $0x3c] sm:$0xf]
        %v3734 = vunpack.c.l.b16 %v3538
        %v3735 = vunpack.c.l.b16 %v3548
        %v3736 = vunpack.c.l.b16 %v3562
        %v3737 = vunpack.c.l.b16 %v3572
        %v3738 = vunpack.c.l.b16 %v3586
        %v3739 = vunpack.c.l.b16 %v3596
        %v3740 = vunpack.c.l.b16 %v3610
        %v3741 = vunpack.c.l.b16 %v3620
        %v3742 = vunpack.c.l.b16 %v3634
        %v3743 = vunpack.c.l.b16 %v3644
        %v3744 = vunpack.c.l.b16 %v3658
        %v3745 = vunpack.c.l.b16 %v3668
        %v3746 = vunpack.c.l.b16 %v3682
        %v3747 = vunpack.c.l.b16 %v3692
        %v3748 = vunpack.c.l.b16 %v3706
        %v3749 = vunpack.c.l.b16 %v3716
        %v3750 = vpack.c.b16 %v3735, %v3734
        %v3751 = vpack.c.b16 %v3737, %v3736
        %v3752 = vpack.c.b16 %v3739, %v3738
        %v3753 = vpack.c.b16 %v3741, %v3740
        %v3754 = vpack.c.b16 %v3743, %v3742
        %v3755 = vpack.c.b16 %v3745, %v3744
        %v3756 = vpack.c.b16 %v3747, %v3746
        %v3757 = vpack.c.b16 %v3749, %v3748
        %v3782 = vunpack.c.l.b16 %v3718
        %v3783 = vunpack.c.l.b16 %v3719
        %v3784 = vunpack.c.l.b16 %v3720
        %v3785 = vunpack.c.l.b16 %v3721
        %v3786 = vunpack.c.l.b16 %v3722
        %v3787 = vunpack.c.l.b16 %v3723
        %v3788 = vunpack.c.l.b16 %v3724
        %v3789 = vunpack.c.l.b16 %v3725
        %v3790 = vunpack.c.l.b16 %v3726
        %v3791 = vunpack.c.l.b16 %v3727
        %v3792 = vunpack.c.l.b16 %v3728
        %v3793 = vunpack.c.l.b16 %v3729
        %v3794 = vunpack.c.l.b16 %v3730
        %v3795 = vunpack.c.l.b16 %v3731
        %v3796 = vunpack.c.l.b16 %v3732
        %v3797 = vunpack.c.l.b16 %v3733
        %v3798 = vpack.c.b16 %v3783, %v3782
        %v3799 = vpack.c.b16 %v3785, %v3784
        %v3800 = vpack.c.b16 %v3787, %v3786
        %v3801 = vpack.c.b16 %v3789, %v3788
        %v3802 = vpack.c.b16 %v3791, %v3790
        %v3803 = vpack.c.b16 %v3793, %v3792
        %v3804 = vpack.c.b16 %v3795, %v3794
        %v3805 = vpack.c.b16 %v3797, %v3796
        %3814 = vmatprep.subr.bf16.mxu0 0
        %3815 = vmatpush1.bf16.msra.mxu0 %v3798
        %3816 = vmatprep.subr.bf16.mxu0 0
        %3817 = vmatpush1.bf16.msra.mxu0 %v3799
        %3818 = vmatprep.subr.bf16.mxu0 0
        %3819 = vmatpush1.bf16.msra.mxu0 %v3800
        %3820 = vmatprep.subr.bf16.mxu0 0
        %3821 = vmatpush1.bf16.msra.mxu0 %v3801
        %3822 = vmatprep.subr.bf16.mxu0 0
        %3823 = vmatpush1.bf16.msra.mxu0 %v3802
        %3824 = vmatprep.subr.bf16.mxu0 0
        %3825 = vmatpush1.bf16.msra.mxu0 %v3803
        %3826 = vmatprep.subr.bf16.mxu0 0
        %3827 = vmatpush1.bf16.msra.mxu0 %v3804
        %3828 = vmatprep.subr.bf16.mxu0 0
        %3829 = vmatpush1.bf16.msra.mxu0 %v3805
        %3830 = vmatprep.subr.bf16.mxu0 0
        %3831 = vmatpush1.bf16.msra.mxu0 0
        %3832 = vmatprep.subr.bf16.mxu0 0
        %3833 = vmatpush1.bf16.msra.mxu0 0
        %3834 = vmatprep.subr.bf16.mxu0 0
        %3835 = vmatpush1.bf16.msra.mxu0 0
        %3836 = vmatprep.subr.bf16.mxu0 0
        %3837 = vmatpush1.bf16.msra.mxu0 0
        %3838 = vmatprep.subr.bf16.mxu0 0
        %3839 = vmatpush1.bf16.msra.mxu0 0
        %3840 = vmatprep.subr.bf16.mxu0 0
        %3841 = vmatpush1.bf16.msra.mxu0 0
        %3842 = vmatprep.subr.bf16.mxu0 0
        %3843 = vmatpush1.bf16.msra.mxu0 0
        %3844 = vmatprep.subr.bf16.mxu0 0
        %3845 = vmatpush1.bf16.msra.mxu0 0
        %3846 = vmatprep.mubr.bf16.mxu0 0
        %3847 = vmatmul.mubr.bf16.gmra.mrb[0].mxu0 %v3750
        %v3848 = vpop.f32.mrb[0].mxu0
        %v3849 = vadd.f32 0.0, %v3848
        %v3850 = vpop.f32.mrb[0].mxu0
        %v3851 = vpop.f32.mrb[0].mxu0
        %v3852 = vadd.f32 0.0, %v3851
        %v3853 = vpop.f32.mrb[0].mxu0
        %3854 = vmatprep.mubr.bf16.mxu0 0
        %3855 = vmatmul.mubr.bf16.gmra.mrb[0].mxu0 %v3751
        %v3856 = vpop.f32.mrb[0].mxu0
        %v3857 = vadd.f32 0.0, %v3856
        %v3858 = vpop.f32.mrb[0].mxu0
        %v3859 = vpop.f32.mrb[0].mxu0
        %v3860 = vadd.f32 0.0, %v3859
        %v3861 = vpop.f32.mrb[0].mxu0
        %3862 = vmatprep.mubr.bf16.mxu0 0
        %3863 = vmatmul.mubr.bf16.gmra.mrb[0].mxu0 %v3752
        %v3864 = vpop.f32.mrb[0].mxu0
        %v3865 = vadd.f32 0.0, %v3864
        %v3866 = vpop.f32.mrb[0].mxu0
        %v3867 = vpop.f32.mrb[0].mxu0
        %v3868 = vadd.f32 0.0, %v3867
        %v3869 = vpop.f32.mrb[0].mxu0
        %3870 = vmatprep.mubr.bf16.mxu0 0
        %3871 = vmatmul.mubr.bf16.gmra.mrb[0].mxu0 %v3753
        %v3872 = vpop.f32.mrb[0].mxu0
        %v3873 = vadd.f32 0.0, %v3872
        %v3874 = vpop.f32.mrb[0].mxu0
        %v3875 = vpop.f32.mrb[0].mxu0
        %v3876 = vadd.f32 0.0, %v3875
        %v3877 = vpop.f32.mrb[0].mxu0
        %3878 = vmatprep.mubr.bf16.mxu0 0
        %3879 = vmatmul.mubr.bf16.gmra.mrb[0].mxu0 %v3754
        %v3880 = vpop.f32.mrb[0].mxu0
        %v3881 = vadd.f32 0.0, %v3880
        %v3882 = vpop.f32.mrb[0].mxu0
        %v3883 = vpop.f32.mrb[0].mxu0
        %v3884 = vadd.f32 0.0, %v3883
        %v3885 = vpop.f32.mrb[0].mxu0
        %3886 = vmatprep.mubr.bf16.mxu0 0
        %3887 = vmatmul.mubr.bf16.gmra.mrb[0].mxu0 %v3755
        %v3888 = vpop.f32.mrb[0].mxu0
        %v3889 = vadd.f32 0.0, %v3888
        %v3890 = vpop.f32.mrb[0].mxu0
        %v3891 = vpop.f32.mrb[0].mxu0
        %v3892 = vadd.f32 0.0, %v3891
        %v3893 = vpop.f32.mrb[0].mxu0
        %3894 = vmatprep.mubr.bf16.mxu0 0
        %3895 = vmatmul.mubr.bf16.gmra.mrb[0].mxu0 %v3756
        %v3896 = vpop.f32.mrb[0].mxu0
        %v3897 = vadd.f32 0.0, %v3896
        %v3898 = vpop.f32.mrb[0].mxu0
        %v3899 = vpop.f32.mrb[0].mxu0
        %v3900 = vadd.f32 0.0, %v3899
        %v3901 = vpop.f32.mrb[0].mxu0
        %3902 = vmatprep.mubr.bf16.mxu0 0
        %3903 = vmatmul.mubr.bf16.gmra.mrb[0].mxu0 %v3757
        %v3904 = vpop.f32.mrb[0].mxu0
        %v3905 = vadd.f32 0.0, %v3904
        %v3906 = vpop.f32.mrb[0].mxu0
        %v3907 = vpop.f32.mrb[0].mxu0
        %v3908 = vadd.f32 0.0, %v3907
        %v3909 = vpop.f32.mrb[0].mxu0
        %3910 = vdwg.mxu0
        %v3911 = vadd.f32 %v3509, %v3849
        %v3912 = vadd.f32 %v3510, %v3852
        %v3913 = vadd.f32 %v3511, %v3857
        %v3914 = vadd.f32 %v3512, %v3860
        %v3915 = vadd.f32 %v3513, %v3865
        %v3916 = vadd.f32 %v3514, %v3868
        %v3917 = vadd.f32 %v3515, %v3873
        %v3918 = vadd.f32 %v3516, %v3876
        %v3919 = vadd.f32 %v3517, %v3881
        %v3920 = vadd.f32 %v3518, %v3884
        %v3921 = vadd.f32 %v3519, %v3889
        %v3922 = vadd.f32 %v3520, %v3892
        %v3923 = vadd.f32 %v3521, %v3897
        %v3924 = vadd.f32 %v3522, %v3900
        %v3925 = vadd.f32 %v3523, %v3905
        %v3926 = vadd.f32 %v3524, %v3908
        %v3935 = vrot.slane %v3275, 5
        %v3936 = vrot.slane %v3935, 4
        %v3937 = vrot.slane %v3276, 5
        %v3938 = vsel %vm2082, %v3936, %v3937
        %v3939 = vrot.slane %v3937, 4
        %v3940 = vrot.slane %v3277, 5
        %v3941 = vsel %vm2082, %v3939, %v3940
        %v3942 = vrot.slane %v3278, 5
        %v3943 = vrot.slane %v3942, 4
        %v3944 = vrot.slane %v3279, 5
        %v3945 = vsel %vm2082, %v3943, %v3944
        %v3946 = vrot.slane %v3944, 4
        %v3947 = vrot.slane %v3280, 5
        %v3948 = vsel %vm2082, %v3946, %v3947
        %v3949 = vrot.slane %v3281, 5
        %v3950 = vrot.slane %v3949, 4
        %v3951 = vrot.slane %v3282, 5
        %v3952 = vsel %vm2082, %v3950, %v3951
        %v3953 = vrot.slane %v3951, 4
        %v3954 = vrot.slane %v3283, 5
        %v3955 = vsel %vm2082, %v3953, %v3954
        %v3956 = vrot.slane %v3284, 5
        %v3957 = vrot.slane %v3956, 4
        %v3958 = vrot.slane %v3285, 5
        %v3959 = vsel %vm2082, %v3957, %v3958
        %v3960 = vrot.slane %v3958, 4
        %v3961 = vrot.slane %v3286, 5
        %v3962 = vsel %vm2082, %v3960, %v3961
        %v3963 = vrot.slane %v3287, 5
        %v3964 = vrot.slane %v3963, 4
        %v3965 = vrot.slane %v3288, 5
        %v3966 = vsel %vm2082, %v3964, %v3965
        %v3967 = vrot.slane %v3965, 4
        %v3968 = vrot.slane %v3289, 5
        %v3969 = vsel %vm2082, %v3967, %v3968
        %v3970 = vrot.slane %v3290, 5
        %v3971 = vrot.slane %v3970, 4
        %v3972 = vrot.slane %v3291, 5
        %v3973 = vsel %vm2082, %v3971, %v3972
        %v3974 = vrot.slane %v3972, 4
        %v3975 = vrot.slane %v3292, 5
        %v3976 = vsel %vm2082, %v3974, %v3975
        %v3977 = vrot.slane %v3293, 5
        %v3978 = vrot.slane %v3977, 4
        %v3979 = vrot.slane %v3294, 5
        %v3980 = vsel %vm2082, %v3978, %v3979
        %v3981 = vrot.slane %v3979, 4
        %v3982 = vrot.slane %v3295, 5
        %v3983 = vsel %vm2082, %v3981, %v3982
        %v3984 = vrot.slane %v3296, 5
        %v3985 = vrot.slane %v3984, 4
        %v3986 = vrot.slane %v3297, 5
        %v3987 = vsel %vm2082, %v3985, %v3986
        %v3988 = vrot.slane %v3986, 4
        %v3989 = vrot.slane %v3298, 5
        %v3990 = vsel %vm2082, %v3988, %v3989
        %s3991 = scalar_lea.vmem %s1338, 512 [#allocation5]
        %v3992 = vld [vmem:[%s3991] sm:$0xf]
        %v3993 = vld [vmem:[%s3991 + $0x4] sm:$0xf]
        %v3994 = vld [vmem:[%s3991 + $0x8] sm:$0xf]
        %v3995 = vld [vmem:[%s3991 + $0xc] sm:$0xf]
        %v3996 = vld [vmem:[%s3991 + $0x10] sm:$0xf]
        %v3997 = vld [vmem:[%s3991 + $0x14] sm:$0xf]
        %v3998 = vld [vmem:[%s3991 + $0x18] sm:$0xf]
        %v3999 = vld [vmem:[%s3991 + $0x1c] sm:$0xf]
        %v4000 = vld [vmem:[%s3991 + $0x20] sm:$0xf]
        %v4001 = vld [vmem:[%s3991 + $0x24] sm:$0xf]
        %v4002 = vld [vmem:[%s3991 + $0x28] sm:$0xf]
        %v4003 = vld [vmem:[%s3991 + $0x2c] sm:$0xf]
        %v4004 = vld [vmem:[%s3991 + $0x30] sm:$0xf]
        %v4005 = vld [vmem:[%s3991 + $0x34] sm:$0xf]
        %v4006 = vld [vmem:[%s3991 + $0x38] sm:$0xf]
        %v4007 = vld [vmem:[%s3991 + $0x3c] sm:$0xf]
        %v4008 = vunpack.c.l.b16 %v3938
        %v4009 = vunpack.c.l.b16 %v3941
        %v4010 = vunpack.c.l.b16 %v3945
        %v4011 = vunpack.c.l.b16 %v3948
        %v4012 = vunpack.c.l.b16 %v3952
        %v4013 = vunpack.c.l.b16 %v3955
        %v4014 = vunpack.c.l.b16 %v3959
        %v4015 = vunpack.c.l.b16 %v3962
        %v4016 = vunpack.c.l.b16 %v3966
        %v4017 = vunpack.c.l.b16 %v3969
        %v4018 = vunpack.c.l.b16 %v3973
        %v4019 = vunpack.c.l.b16 %v3976
        %v4020 = vunpack.c.l.b16 %v3980
        %v4021 = vunpack.c.l.b16 %v3983
        %v4022 = vunpack.c.l.b16 %v3987
        %v4023 = vunpack.c.l.b16 %v3990
        %v4024 = vpack.c.b16 %v4009, %v4008
        %v4025 = vpack.c.b16 %v4011, %v4010
        %v4026 = vpack.c.b16 %v4013, %v4012
        %v4027 = vpack.c.b16 %v4015, %v4014
        %v4028 = vpack.c.b16 %v4017, %v4016
        %v4029 = vpack.c.b16 %v4019, %v4018
        %v4030 = vpack.c.b16 %v4021, %v4020
        %v4031 = vpack.c.b16 %v4023, %v4022
        %v4056 = vunpack.c.l.b16 %v3992
        %v4057 = vunpack.c.l.b16 %v3993
        %v4058 = vunpack.c.l.b16 %v3994
        %v4059 = vunpack.c.l.b16 %v3995
        %v4060 = vunpack.c.l.b16 %v3996
        %v4061 = vunpack.c.l.b16 %v3997
        %v4062 = vunpack.c.l.b16 %v3998
        %v4063 = vunpack.c.l.b16 %v3999
        %v4064 = vunpack.c.l.b16 %v4000
        %v4065 = vunpack.c.l.b16 %v4001
        %v4066 = vunpack.c.l.b16 %v4002
        %v4067 = vunpack.c.l.b16 %v4003
        %v4068 = vunpack.c.l.b16 %v4004
        %v4069 = vunpack.c.l.b16 %v4005
        %v4070 = vunpack.c.l.b16 %v4006
        %v4071 = vunpack.c.l.b16 %v4007
        %v4072 = vpack.c.b16 %v4057, %v4056
        %v4073 = vpack.c.b16 %v4059, %v4058
        %v4074 = vpack.c.b16 %v4061, %v4060
        %v4075 = vpack.c.b16 %v4063, %v4062
        %v4076 = vpack.c.b16 %v4065, %v4064
        %v4077 = vpack.c.b16 %v4067, %v4066
        %v4078 = vpack.c.b16 %v4069, %v4068
        %v4079 = vpack.c.b16 %v4071, %v4070
        %4088 = vmatprep.subr.bf16.mxu0 0
        %4089 = vmatpush1.bf16.msra.mxu0 %v4072
        %4090 = vmatprep.subr.bf16.mxu0 0
        %4091 = vmatpush1.bf16.msra.mxu0 %v4073
        %4092 = vmatprep.subr.bf16.mxu0 0
        %4093 = vmatpush1.bf16.msra.mxu0 %v4074
        %4094 = vmatprep.subr.bf16.mxu0 0
        %4095 = vmatpush1.bf16.msra.mxu0 %v4075
        %4096 = vmatprep.subr.bf16.mxu0 0
        %4097 = vmatpush1.bf16.msra.mxu0 %v4076
        %4098 = vmatprep.subr.bf16.mxu0 0
        %4099 = vmatpush1.bf16.msra.mxu0 %v4077
        %4100 = vmatprep.subr.bf16.mxu0 0
        %4101 = vmatpush1.bf16.msra.mxu0 %v4078
        %4102 = vmatprep.subr.bf16.mxu0 0
        %4103 = vmatpush1.bf16.msra.mxu0 %v4079
        %4104 = vmatprep.subr.bf16.mxu0 0
        %4105 = vmatpush1.bf16.msra.mxu0 0
        %4106 = vmatprep.subr.bf16.mxu0 0
        %4107 = vmatpush1.bf16.msra.mxu0 0
        %4108 = vmatprep.subr.bf16.mxu0 0
        %4109 = vmatpush1.bf16.msra.mxu0 0
        %4110 = vmatprep.subr.bf16.mxu0 0
        %4111 = vmatpush1.bf16.msra.mxu0 0
        %4112 = vmatprep.subr.bf16.mxu0 0
        %4113 = vmatpush1.bf16.msra.mxu0 0
        %4114 = vmatprep.subr.bf16.mxu0 0
        %4115 = vmatpush1.bf16.msra.mxu0 0
        %4116 = vmatprep.subr.bf16.mxu0 0
        %4117 = vmatpush1.bf16.msra.mxu0 0
        %4118 = vmatprep.subr.bf16.mxu0 0
        %4119 = vmatpush1.bf16.msra.mxu0 0
        %4120 = vmatprep.mubr.bf16.mxu0 0
        %4121 = vmatmul.mubr.bf16.gmra.mrb[0].mxu0 %v4024
        %v4122 = vpop.f32.mrb[0].mxu0
        %v4123 = vadd.f32 0.0, %v4122
        %v4124 = vpop.f32.mrb[0].mxu0
        %v4125 = vpop.f32.mrb[0].mxu0
        %v4126 = vadd.f32 0.0, %v4125
        %v4127 = vpop.f32.mrb[0].mxu0
        %4128 = vmatprep.mubr.bf16.mxu0 0
        %4129 = vmatmul.mubr.bf16.gmra.mrb[0].mxu0 %v4025
        %v4130 = vpop.f32.mrb[0].mxu0
        %v4131 = vadd.f32 0.0, %v4130
        %v4132 = vpop.f32.mrb[0].mxu0
        %v4133 = vpop.f32.mrb[0].mxu0
        %v4134 = vadd.f32 0.0, %v4133
        %v4135 = vpop.f32.mrb[0].mxu0
        %4136 = vmatprep.mubr.bf16.mxu0 0
        %4137 = vmatmul.mubr.bf16.gmra.mrb[0].mxu0 %v4026
        %v4138 = vpop.f32.mrb[0].mxu0
        %v4139 = vadd.f32 0.0, %v4138
        %v4140 = vpop.f32.mrb[0].mxu0
        %v4141 = vpop.f32.mrb[0].mxu0
        %v4142 = vadd.f32 0.0, %v4141
        %v4143 = vpop.f32.mrb[0].mxu0
        %4144 = vmatprep.mubr.bf16.mxu0 0
        %4145 = vmatmul.mubr.bf16.gmra.mrb[0].mxu0 %v4027
        %v4146 = vpop.f32.mrb[0].mxu0
        %v4147 = vadd.f32 0.0, %v4146
        %v4148 = vpop.f32.mrb[0].mxu0
        %v4149 = vpop.f32.mrb[0].mxu0
        %v4150 = vadd.f32 0.0, %v4149
        %v4151 = vpop.f32.mrb[0].mxu0
        %4152 = vmatprep.mubr.bf16.mxu0 0
        %4153 = vmatmul.mubr.bf16.gmra.mrb[0].mxu0 %v4028
        %v4154 = vpop.f32.mrb[0].mxu0
        %v4155 = vadd.f32 0.0, %v4154
        %v4156 = vpop.f32.mrb[0].mxu0
        %v4157 = vpop.f32.mrb[0].mxu0
        %v4158 = vadd.f32 0.0, %v4157
        %v4159 = vpop.f32.mrb[0].mxu0
        %4160 = vmatprep.mubr.bf16.mxu0 0
        %4161 = vmatmul.mubr.bf16.gmra.mrb[0].mxu0 %v4029
        %v4162 = vpop.f32.mrb[0].mxu0
        %v4163 = vadd.f32 0.0, %v4162
        %v4164 = vpop.f32.mrb[0].mxu0
        %v4165 = vpop.f32.mrb[0].mxu0
        %v4166 = vadd.f32 0.0, %v4165
        %v4167 = vpop.f32.mrb[0].mxu0
        %4168 = vmatprep.mubr.bf16.mxu0 0
        %4169 = vmatmul.mubr.bf16.gmra.mrb[0].mxu0 %v4030
        %v4170 = vpop.f32.mrb[0].mxu0
        %v4171 = vadd.f32 0.0, %v4170
        %v4172 = vpop.f32.mrb[0].mxu0
        %v4173 = vpop.f32.mrb[0].mxu0
        %v4174 = vadd.f32 0.0, %v4173
        %v4175 = vpop.f32.mrb[0].mxu0
        %4176 = vmatprep.mubr.bf16.mxu0 0
        %4177 = vmatmul.mubr.bf16.gmra.mrb[0].mxu0 %v4031
        %v4178 = vpop.f32.mrb[0].mxu0
        %v4179 = vadd.f32 0.0, %v4178
        %v4180 = vpop.f32.mrb[0].mxu0
        %v4181 = vpop.f32.mrb[0].mxu0
        %v4182 = vadd.f32 0.0, %v4181
        %v4183 = vpop.f32.mrb[0].mxu0
        %4184 = vdwg.mxu0
        %v4185 = vadd.f32 %v3911, %v4123
        %v4186 = vadd.f32 %v3912, %v4126
        %v4187 = vadd.f32 %v3913, %v4131
        %v4188 = vadd.f32 %v3914, %v4134
        %v4189 = vadd.f32 %v3915, %v4139
        %v4190 = vadd.f32 %v3916, %v4142
        %v4191 = vadd.f32 %v3917, %v4147
        %v4192 = vadd.f32 %v3918, %v4150
        %v4193 = vadd.f32 %v3919, %v4155
        %v4194 = vadd.f32 %v3920, %v4158
        %v4195 = vadd.f32 %v3921, %v4163
        %v4196 = vadd.f32 %v3922, %v4166
        %v4197 = vadd.f32 %v3923, %v4171
        %v4198 = vadd.f32 %v3924, %v4174
        %v4199 = vadd.f32 %v3925, %v4179
        %v4200 = vadd.f32 %v3926, %v4182
        %v4201 = vld [vmem:[%s1411] sm:$0xff]
        %v4202 = vld [vmem:[%s1411 + $0x8] sm:$0xff]
        %v4203 = vld [vmem:[%s1411 + $0x10] sm:$0xff]
        %v4204 = vld [vmem:[%s1411 + $0x18] sm:$0xff]
        %v4205 = vld [vmem:[%s1411 + $0x20] sm:$0xff]
        %v4206 = vld [vmem:[%s1411 + $0x28] sm:$0xff]
        %v4207 = vld [vmem:[%s1411 + $0x30] sm:$0xff]
        %v4208 = vld [vmem:[%s1411 + $0x38] sm:$0xff]
        %v4209 = vld [vmem:[%s1411 + $0x40] sm:$0xff]
        %v4210 = vld [vmem:[%s1411 + $0x48] sm:$0xff]
        %v4211 = vld [vmem:[%s1411 + $0x50] sm:$0xff]
        %v4212 = vld [vmem:[%s1411 + $0x58] sm:$0xff]
        %v4213 = vld [vmem:[%s1411 + $0x60] sm:$0xff]
        %v4214 = vld [vmem:[%s1411 + $0x68] sm:$0xff]
        %v4215 = vld [vmem:[%s1411 + $0x70] sm:$0xff]
        %v4216 = vld [vmem:[%s1411 + $0x78] sm:$0xff]
        %v4217 = vadd.f32 %v4201, %v4185
        %v4218 = vadd.f32 %v4202, %v4186
        %v4219 = vadd.f32 %v4203, %v4187
        %v4220 = vadd.f32 %v4204, %v4188
        %v4221 = vadd.f32 %v4205, %v4189
        %v4222 = vadd.f32 %v4206, %v4190
        %v4223 = vadd.f32 %v4207, %v4191
        %v4224 = vadd.f32 %v4208, %v4192
        %v4225 = vadd.f32 %v4209, %v4193
        %v4226 = vadd.f32 %v4210, %v4194
        %v4227 = vadd.f32 %v4211, %v4195
        %v4228 = vadd.f32 %v4212, %v4196
        %v4229 = vadd.f32 %v4213, %v4197
        %v4230 = vadd.f32 %v4214, %v4198
        %v4231 = vadd.f32 %v4215, %v4199
        %v4232 = vadd.f32 %v4216, %v4200
        %4233 = vst [vmem:[%s1411] sm:$0xff] %v4217
        %4234 = vst [vmem:[%s1411 + $0x8] sm:$0xff] %v4218
        %4235 = vst [vmem:[%s1411 + $0x10] sm:$0xff] %v4219
        %4236 = vst [vmem:[%s1411 + $0x18] sm:$0xff] %v4220
        %4237 = vst [vmem:[%s1411 + $0x20] sm:$0xff] %v4221
        %4238 = vst [vmem:[%s1411 + $0x28] sm:$0xff] %v4222
        %4239 = vst [vmem:[%s1411 + $0x30] sm:$0xff] %v4223
        %4240 = vst [vmem:[%s1411 + $0x38] sm:$0xff] %v4224
        %4241 = vst [vmem:[%s1411 + $0x40] sm:$0xff] %v4225
        %4242 = vst [vmem:[%s1411 + $0x48] sm:$0xff] %v4226
        %4243 = vst [vmem:[%s1411 + $0x50] sm:$0xff] %v4227
        %4244 = vst [vmem:[%s1411 + $0x58] sm:$0xff] %v4228
        %4245 = vst [vmem:[%s1411 + $0x60] sm:$0xff] %v4229
        %4246 = vst [vmem:[%s1411 + $0x68] sm:$0xff] %v4230
        %4247 = vst [vmem:[%s1411 + $0x70] sm:$0xff] %v4231
        %4248 = vst [vmem:[%s1411 + $0x78] sm:$0xff] %v4232
        %p4249 = scmp.eq.s32.totalorder %s25, 3
        // Predicated region
        $region205: #{fcn_decode_forward.5} parent=183 // pred_check
          %p4250 = pneg %p4249
        $region206: #{fcn_decode_forward.5} parent=183 // pred_check_branch
          %4252 = sbr.rel (%p4250) target = $region208
        $region207: #{fcn_decode_forward.5} parent=183 // pred_region
          %v4253 = vld [vmem:[%s1411] sm:$0xff]
          %v4254 = vld [vmem:[%s1411 + $0x8] sm:$0xff]
          %v4255 = vld [vmem:[%s1411 + $0x10] sm:$0xff]
          %v4256 = vld [vmem:[%s1411 + $0x18] sm:$0xff]
          %v4257 = vld [vmem:[%s1411 + $0x20] sm:$0xff]
          %v4258 = vld [vmem:[%s1411 + $0x28] sm:$0xff]
          %v4259 = vld [vmem:[%s1411 + $0x30] sm:$0xff]
          %v4260 = vld [vmem:[%s1411 + $0x38] sm:$0xff]
          %v4261 = vld [vmem:[%s1411 + $0x40] sm:$0xff]
          %v4262 = vld [vmem:[%s1411 + $0x48] sm:$0xff]
          %v4263 = vld [vmem:[%s1411 + $0x50] sm:$0xff]
          %v4264 = vld [vmem:[%s1411 + $0x58] sm:$0xff]
          %v4265 = vld [vmem:[%s1411 + $0x60] sm:$0xff]
          %v4266 = vld [vmem:[%s1411 + $0x68] sm:$0xff]
          %v4267 = vld [vmem:[%s1411 + $0x70] sm:$0xff]
          %v4268 = vld [vmem:[%s1411 + $0x78] sm:$0xff]
          %v4269 = vadd.f32 %v4253, %v4254
          %v4270 = vadd.f32 %v4269, %v4255
          %v4271 = vadd.f32 %v4270, %v4256
          %v4272 = vadd.f32 %v4271, %v4257
          %v4273 = vadd.f32 %v4272, %v4258
          %v4274 = vadd.f32 %v4273, %v4259
          %v4275 = vadd.f32 %v4274, %v4260
          %v4276 = vadd.f32 %v4275, %v4261
          %v4277 = vadd.f32 %v4276, %v4262
          %v4278 = vadd.f32 %v4277, %v4263
          %v4279 = vadd.f32 %v4278, %v4264
          %v4280 = vadd.f32 %v4279, %v4265
          %v4281 = vadd.f32 %v4280, %v4266
          %v4282 = vadd.f32 %v4281, %v4267
          %v4283 = vadd.f32 %v4282, %v4268
          %v4284 = vrot.slane %v4283, 4
          %v4285 = vadd.f32 %v4283, %v4284
          %v4286 = vrot.slane %v4285, 2
          %v4287 = vadd.f32 %v4285, %v4286
          %v4288 = vrot.slane %v4287, 1
          %v4289 = vadd.f32 %v4287, %v4288
          %v4290 = vmul.f32 %v4253, %v4253
          %v4291 = vmul.f32 %v4254, %v4254
          %v4292 = vmul.f32 %v4255, %v4255
          %v4293 = vmul.f32 %v4256, %v4256
          %v4294 = vmul.f32 %v4257, %v4257
          %v4295 = vmul.f32 %v4258, %v4258
          %v4296 = vmul.f32 %v4259, %v4259
          %v4297 = vmul.f32 %v4260, %v4260
          %v4298 = vmul.f32 %v4261, %v4261
          %v4299 = vmul.f32 %v4262, %v4262
          %v4300 = vmul.f32 %v4263, %v4263
          %v4301 = vmul.f32 %v4264, %v4264
          %v4302 = vmul.f32 %v4265, %v4265
          %v4303 = vmul.f32 %v4266, %v4266
          %v4304 = vmul.f32 %v4267, %v4267
          %v4305 = vmul.f32 %v4268, %v4268
          %v4306 = vadd.f32 %v4290, %v4291
          %v4307 = vadd.f32 %v4306, %v4292
          %v4308 = vadd.f32 %v4307, %v4293
          %v4309 = vadd.f32 %v4308, %v4294
          %v4310 = vadd.f32 %v4309, %v4295
          %v4311 = vadd.f32 %v4310, %v4296
          %v4312 = vadd.f32 %v4311, %v4297
          %v4313 = vadd.f32 %v4312, %v4298
          %v4314 = vadd.f32 %v4313, %v4299
          %v4315 = vadd.f32 %v4314, %v4300
          %v4316 = vadd.f32 %v4315, %v4301
          %v4317 = vadd.f32 %v4316, %v4302
          %v4318 = vadd.f32 %v4317, %v4303
          %v4319 = vadd.f32 %v4318, %v4304
          %v4320 = vadd.f32 %v4319, %v4305
          %v4321 = vrot.slane %v4320, 4
          %v4322 = vadd.f32 %v4320, %v4321
          %v4323 = vrot.slane %v4322, 2
          %v4324 = vadd.f32 %v4322, %v4323
          %v4325 = vrot.slane %v4324, 1
          %v4326 = vadd.f32 %v4324, %v4325
          %4327 = vst [vmem:[%s1420] sm:$0xff] %v4289
          %4328 = vst [vmem:[%s1428] sm:$0xff] %v4326
        $region208: #{fcn_decode_forward.5} parent=183 // pred_fallthru
          _
        %s4329 = smul.u32 8, %s24
        %p4330 = scmp.lt.s32.totalorder %s23, 1
        %s4331 = scalar_select %p4330, %s23, 1
        %p4332 = scmp.lt.s32.totalorder %s4329, 15
        %s4333 = scalar_select %p4332, %s4329, 15
        %s4334 = smul.addr %s4333, 2
        %s4335 = smul.addr %s4331, 32
        %s4336 = sadd.s32 %s4334, %s4335
        %s4337 = smul.addr %s4336, 8
        %s4338 = scalar_lea.vmem %s4, %s4337
        %p4339 = scmp.lt.s32.totalorder %s23, 1
        %s4340 = scalar_select %p4339, %s23, 1
        %p4341 = scmp.lt.s32.totalorder %s24, 1
        %s4342 = scalar_select %p4341, %s24, 1
        %s4343 = smul.addr %s4340, 2
        %s4344 = sadd.s32 %s4342, %s4343
        %s4345 = smul.addr %s4344, 8
        %s4346 = scalar_lea.vmem %s5, %s4345
        %p4347 = scmp.lt.s32.totalorder %s23, 1
        %s4348 = scalar_select %p4347, %s23, 1
        %p4349 = scmp.lt.s32.totalorder %s24, 1
        %s4350 = scalar_select %p4349, %s24, 1
        %s4351 = smul.addr %s4348, 2
        %s4352 = sadd.s32 %s4350, %s4351
        %s4353 = smul.addr %s4352, 8
        %s4354 = scalar_lea.vmem %s6, %s4353
        // Predicated region
        $region209: #{fcn_decode_forward.5} parent=183 // pred_check
          %p4355 = pneg %p173
        $region210: #{fcn_decode_forward.5} parent=183 // pred_check_branch
          %4357 = sbr.rel (%p4355) target = $region212
        $region211: #{fcn_decode_forward.5} parent=183 // pred_region
          %s4358 = smul.u32 8, %s24
        $region212: #{fcn_decode_forward.5} parent=183 // pred_fallthru
          _
        // Predicated region
        $region213: #{fcn_decode_forward.5} parent=183 // pred_check
          %p4359 = pneg %p201
        $region214: #{fcn_decode_forward.5} parent=183 // pred_check_branch
          %4361 = sbr.rel (%p4359) target = $region216
        $region215: #{fcn_decode_forward.5} parent=183 // pred_region
          _
        $region216: #{fcn_decode_forward.5} parent=183 // pred_fallthru
          _
        // Predicated region
        $region217: #{fcn_decode_forward.5} parent=183 // pred_check
          %p4362 = pneg %p229
        $region218: #{fcn_decode_forward.5} parent=183 // pred_check_branch
          %4364 = sbr.rel (%p4362) target = $region220
        $region219: #{fcn_decode_forward.5} parent=183 // pred_region
          _
        $region220: #{fcn_decode_forward.5} parent=183 // pred_fallthru
          _
      $region184: #{fcn_decode_forward.5} parent=5 // pred_fallthru
        _
      %p4365 = scmp.le.s32.totalorder 2, %s13
      // Predicated region
      $region221: #{fcn_decode_forward.5} parent=5 // pred_check
        %p4366 = pneg %p4365
      $region222: #{fcn_decode_forward.5} parent=5 // pred_check_branch
        %4368 = sbr.rel (%p4366) target = $region224
      $region223: #{fcn_decode_forward.5} parent=5 // pred_region
        %s4369 = ssub.s32 %s13, 2
        // Predicated region
        $region225: #{fcn_decode_forward.5} parent=223 // pred_check
          %p4370 = pneg %p179
        $region226: #{fcn_decode_forward.5} parent=223 // pred_check_branch
          %4372 = sbr.rel (%p4370) target = $region228
        $region227: #{fcn_decode_forward.5} parent=223 // pred_region
          %s4373 = smul.u32 8, %s27
          %p4374 = scmp.lt.s32.totalorder %s26, 1
          %s4375 = scalar_select %p4374, %s26, 1
          %p4376 = scmp.lt.s32.totalorder %s4373, 15
          %s4377 = scalar_select %p4376, %s4373, 15
          %s4378 = smul.addr %s4377, 2
          %s4379 = smul.addr %s4375, 32
          %s4380 = sadd.s32 %s4378, %s4379
          %s4381 = smul.addr %s4380, 8
          %s4382 = scalar_lea.vmem %s4, %s4381
        $region228: #{fcn_decode_forward.5} parent=223 // pred_fallthru
          _
        // Predicated region
        $region229: #{fcn_decode_forward.5} parent=223 // pred_check
          %p4383 = pneg %p207
        $region230: #{fcn_decode_forward.5} parent=223 // pred_check_branch
          %4385 = sbr.rel (%p4383) target = $region232
        $region231: #{fcn_decode_forward.5} parent=223 // pred_region
          %p4386 = scmp.lt.s32.totalorder %s26, 1
          %s4387 = scalar_select %p4386, %s26, 1
          %p4388 = scmp.lt.s32.totalorder %s27, 1
          %s4389 = scalar_select %p4388, %s27, 1
          %s4390 = smul.addr %s4387, 2
          %s4391 = sadd.s32 %s4389, %s4390
          %s4392 = smul.addr %s4391, 8
          %s4393 = scalar_lea.vmem %s5, %s4392
        $region232: #{fcn_decode_forward.5} parent=223 // pred_fallthru
          _
        // Predicated region
        $region233: #{fcn_decode_forward.5} parent=223 // pred_check
          %p4394 = pneg %p235
        $region234: #{fcn_decode_forward.5} parent=223 // pred_check_branch
          %4396 = sbr.rel (%p4394) target = $region236
        $region235: #{fcn_decode_forward.5} parent=223 // pred_region
          %p4397 = scmp.lt.s32.totalorder %s26, 1
          %s4398 = scalar_select %p4397, %s26, 1
          %p4399 = scmp.lt.s32.totalorder %s27, 1
          %s4400 = scalar_select %p4399, %s27, 1
          %s4401 = smul.addr %s4398, 2
          %s4402 = sadd.s32 %s4400, %s4401
          %s4403 = smul.addr %s4402, 8
          %s4404 = scalar_lea.vmem %s6, %s4403
        $region236: #{fcn_decode_forward.5} parent=223 // pred_fallthru
          _
      $region224: #{fcn_decode_forward.5} parent=5 // pred_fallthru
        _
    $region6: #{fcn_decode_forward.5} parent=1 // loop_footer
      %s17 = sadd.s32 1, %s13
    $region7: #{fcn_decode_forward.5} parent=1 // loop_footer_branch
      %12 = sbr.rel target = $region3
    $region8: #{fcn_decode_forward.5} parent=1 // loop_exit
      _

// kernel: fcn_decode_forward.9
$region0: #{fcn_decode_forward.9}
  #allocation0 [shape = 'u32[]', space=smem, size = 0x4, offset = 0x4, fixed_abs, tag = 'smem constant byte address 0x4 - core index']
  #allocation1 [shape = 'u32[144,128]{1,0:T(1,128)}', space=vmem, size = 0x12000, scoped, tag = 'internal scratch']
  %s0 = inlined_call_operand.vmem [shape: f32[2,16,16,128], index: 0, kind: input, shape index: {}]
  %s1 = inlined_call_operand.vmem [shape: bf16[2,128,256], index: 1, kind: input, shape index: {}]
  %s2 = inlined_call_operand.vmem [shape: f32[1,256], index: 2, kind: input, shape index: {}]
  %s3 = inlined_call_operand.vmem [shape: f32[32,2,16,256], index: 3, kind: output, shape index: {}]
  %s4 = sld [smem:[#allocation0]]
  $region64: #{fcn_decode_forward.9} parent=0
    _
  %s6 = ssub.s32 1, %s4
  %s7 = scalar_select 0, %s6, %s4
  $region1: #{fcn_decode_forward.9} parent=0
    #allocation2 [shape = 'u8[262144]{0}', space=vmem, size = 0x40000, scoped, tag = 'output window, operand 0']
    loop: start=0, step=1, limit=10
    $region2: #{fcn_decode_forward.9} parent=1 // loop_pre_header
      _
    $region3: #{fcn_decode_forward.9} parent=1 // loop_header
      %s9 = sphi 0, %s13
      %p10 = scmp.ge.s32.totalorder %s9, 10
      %s16 = sphi 0, %s35
      %s17 = sphi 0, %s31
      %s18 = sphi 0, %s27
      %s19 = sphi 0, %s16
      %s20 = sphi 0, %s17
      %s21 = sphi 0, %s18
      %s22 = sphi 0, %s19
      %s23 = sphi 0, %s20
      %s24 = sphi 0, %s21
      %s40 = sphi 0, %s42
      %s43 = sphi 0, %s40
      %s44 = sphi 0, %s43
      %s60 = sphi 0, %s44
      %s66 = sphi 0, %s68
      %s69 = sphi 0, %s66
      %s70 = sphi 0, %s69
      %s86 = sphi 0, %s70
      %s90 = sphi 0, %s90
      %s92 = sphi 0, %s90
      %s93 = sphi 0, %s92
      %s107 = sphi 0, %s93
      %s119 = sphi 0, %s121
      %s122 = sphi 0, %s119
      %s123 = sphi 0, %s122
      %s139 = sphi 0, %s123
    $region4: #{fcn_decode_forward.9} parent=1 // loop_header_branch
      %12 = sbr.rel (%p10) target = $region8
    $region5: #{fcn_decode_forward.9} parent=1 // loop_body
      %s14 = ssub.s32 %s9, 1
      %s15 = ssub.s32 %s9, 2
      %s25 = sadd.s32 1, %s18
      %p26 = scmp.ge.s32.totalorder %s25, 2
      %s27 = scalar_select %p26, 0, %s25
      %s28 = sadd.s32 1, %s17
      %s29 = scalar_select %p26, %s28, %s17
      %p30 = scmp.ge.s32.totalorder %s29, 2
      %s31 = scalar_select %p30, 0, %s29
      %s32 = sadd.s32 1, %s16
      %s33 = scalar_select %p30, %s32, %s16
      %p34 = scmp.ge.s32.totalorder %s33, 2
      %s35 = scalar_select %p34, 0, %s33
      %s36 = ssub.s32 %s16, %s35
      %s37 = ssub.s32 %s17, %s31
      %s38 = sor.u32 %s36, %s37
      %p39 = scmp.eq.s32.totalorder %s38, 0
      %s41 = sadd.s32 %s40, 1
      %s42 = scalar_select %p39, %s40, %s41
      %p45 = pneg %p39
      %p46 = scmp.eq.s32.totalorder %s9, 7
      %p47 = por %p45, %p46
      %p48 = scmp.ne.s32.totalorder %s40, %s43
      %p49 = scmp.eq.s32.totalorder %s9, 0
      %p50 = por %p48, %p49
      %p51 = scmp.ne.s32.totalorder %s40, %s43
      %p52 = scmp.eq.s32.totalorder %s14, 7
      %p53 = por %p51, %p52
      %p54 = scmp.ne.s32.totalorder %s43, %s44
      %p55 = scmp.eq.s32.totalorder %s14, 0
      %p56 = por %p54, %p55
      %p57 = scmp.ne.s32.totalorder %s43, %s44
      %p58 = scmp.eq.s32.totalorder %s15, 7
      %p59 = por %p57, %p58
      %p61 = scmp.ne.s32.totalorder %s44, %s60
      %p62 = scmp.eq.s32.totalorder %s15, 0
      %p63 = por %p61, %p62
      %s64 = ssub.s32 %s18, %s27
      %p65 = scmp.eq.s32.totalorder %s64, 0
      %s67 = sadd.s32 %s66, 1
      %s68 = scalar_select %p65, %s66, %s67
      %p71 = pneg %p65
      %p72 = scmp.eq.s32.totalorder %s9, 7
      %p73 = por %p71, %p72
      %p74 = scmp.ne.s32.totalorder %s66, %s69
      %p75 = scmp.eq.s32.totalorder %s9, 0
      %p76 = por %p74, %p75
      %p77 = scmp.ne.s32.totalorder %s66, %s69
      %p78 = scmp.eq.s32.totalorder %s14, 7
      %p79 = por %p77, %p78
      %p80 = scmp.ne.s32.totalorder %s69, %s70
      %p81 = scmp.eq.s32.totalorder %s14, 0
      %p82 = por %p80, %p81
      %p83 = scmp.ne.s32.totalorder %s69, %s70
      %p84 = scmp.eq.s32.totalorder %s15, 7
      %p85 = por %p83, %p84
      %p87 = scmp.ne.s32.totalorder %s70, %s86
      %p88 = scmp.eq.s32.totalorder %s15, 0
      %p89 = por %p87, %p88
      %s91 = sadd.s32 %s90, 1
      %p94 = scmp.eq.s32.totalorder %s9, 7
      %p95 = scmp.ne.s32.totalorder %s90, %s92
      %p96 = scmp.eq.s32.totalorder %s9, 0
      %p97 = por %p95, %p96
      %p98 = scmp.ne.s32.totalorder %s90, %s92
      %p99 = scmp.eq.s32.totalorder %s14, 7
      %p100 = por %p98, %p99
      %p101 = scmp.ne.s32.totalorder %s92, %s93
      %p102 = scmp.eq.s32.totalorder %s14, 0
      %p103 = por %p101, %p102
      %p104 = scmp.ne.s32.totalorder %s92, %s93
      %p105 = scmp.eq.s32.totalorder %s15, 7
      %p106 = por %p104, %p105
      %p108 = scmp.ne.s32.totalorder %s93, %s107
      %p109 = scmp.eq.s32.totalorder %s15, 0
      %p110 = por %p108, %p109
      %s111 = smul.u32 %s16, 2
      %s112 = sadd.s32 %s111, %s17
      %s113 = smul.u32 %s35, 2
      %s114 = sadd.s32 %s113, %s31
      %s115 = ssub.s32 %s112, %s114
      %s116 = ssub.s32 %s18, %s27
      %s117 = sor.u32 %s115, %s116
      %p118 = scmp.eq.s32.totalorder %s117, 0
      %s120 = sadd.s32 %s119, 1
      %s121 = scalar_select %p118, %s119, %s120
      %p124 = pneg %p118
      %p125 = scmp.eq.s32.totalorder %s9, 7
      %p126 = por %p124, %p125
      %p127 = scmp.ne.s32.totalorder %s119, %s122
      %p128 = scmp.eq.s32.totalorder %s9, 0
      %p129 = por %p127, %p128
      %p130 = scmp.ne.s32.totalorder %s119, %s122
      %p131 = scmp.eq.s32.totalorder %s14, 7
      %p132 = por %p130, %p131
      %p133 = scmp.ne.s32.totalorder %s122, %s123
      %p134 = scmp.eq.s32.totalorder %s14, 0
      %p135 = por %p133, %p134
      %p136 = scmp.ne.s32.totalorder %s122, %s123
      %p137 = scmp.eq.s32.totalorder %s15, 7
      %p138 = por %p136, %p137
      %p140 = scmp.ne.s32.totalorder %s123, %s139
      %p141 = scmp.eq.s32.totalorder %s15, 0
      %p142 = por %p140, %p141
      %p143 = scmp.le.s32.totalorder 1, %s9
      %p144 = scmp.lt.s32.totalorder %s9, 9
      %p145 = pnand %p143, %p144
      %p146 = pneg %p145
      // Predicated region
      $region9: #{fcn_decode_forward.9} parent=5 // pred_check
        _
      $region10: #{fcn_decode_forward.9} parent=5 // pred_check_branch
        %148 = sbr.rel (%p145) target = $region12
      $region11: #{fcn_decode_forward.9} parent=5 // pred_region
        %s149 = ssub.s32 %s9, 1
        // Predicated region
        $region13: #{fcn_decode_forward.9} parent=11 // pred_check
          %p150 = pneg %p103
        $region14: #{fcn_decode_forward.9} parent=11 // pred_check_branch
          %152 = sbr.rel (%p150) target = $region16
        $region15: #{fcn_decode_forward.9} parent=11 // pred_region
          _
        $region16: #{fcn_decode_forward.9} parent=11 // pred_fallthru
          _
      $region12: #{fcn_decode_forward.9} parent=5 // pred_fallthru
        _
      %p153 = scmp.lt.s32.totalorder %s9, 8
      // Predicated region
      $region17: #{fcn_decode_forward.9} parent=5 // pred_check
        %p154 = pneg %p153
      $region18: #{fcn_decode_forward.9} parent=5 // pred_check_branch
        %156 = sbr.rel (%p154) target = $region20
      $region19: #{fcn_decode_forward.9} parent=5 // pred_region
        // Predicated region
        $region21: #{fcn_decode_forward.9} parent=19 // pred_check
          %p157 = pneg %p50
        $region22: #{fcn_decode_forward.9} parent=19 // pred_check_branch
          %159 = sbr.rel (%p157) target = $region24
        $region23: #{fcn_decode_forward.9} parent=19 // pred_region
          %s160 = smul.u32 8, %s17
          %p161 = scmp.lt.s32.totalorder %s16, 1
          %s162 = scalar_select %p161, %s16, 1
          %p163 = scmp.lt.s32.totalorder %s160, 15
          %s164 = scalar_select %p163, %s160, 15
          %s165 = smul.addr %s164, 2
          %s166 = smul.addr %s162, 32
          %s167 = sadd.s32 %s165, %s166
          %s168 = smul.addr %s167, 8
          %s169 = scalar_lea.vmem %s0, %s168
          %s170 = smul.u32 8, %s17
        $region24: #{fcn_decode_forward.9} parent=19 // pred_fallthru
          _
        // Predicated region
        $region25: #{fcn_decode_forward.9} parent=19 // pred_check
          %p171 = pneg %p76
        $region26: #{fcn_decode_forward.9} parent=19 // pred_check_branch
          %173 = sbr.rel (%p171) target = $region28
        $region27: #{fcn_decode_forward.9} parent=19 // pred_region
          %p174 = scmp.lt.s32.totalorder %s18, 1
          %s175 = scalar_select %p174, %s18, 1
          %s176 = smul.addr %s175, 32
          %s177 = smul.addr %s176, 4
          %s178 = scalar_lea.vmem %s1, %s177
        $region28: #{fcn_decode_forward.9} parent=19 // pred_fallthru
          _
      $region20: #{fcn_decode_forward.9} parent=5 // pred_fallthru
        _
      %p179 = scmp.le.s32.totalorder 1, %s9
      %p180 = scmp.lt.s32.totalorder %s9, 9
      %p181 = pnand %p179, %p180
      %p182 = pneg %p181
      // Predicated region
      $region29: #{fcn_decode_forward.9} parent=5 // pred_check
        _
      $region30: #{fcn_decode_forward.9} parent=5 // pred_check_branch
        %184 = sbr.rel (%p181) target = $region32
      $region31: #{fcn_decode_forward.9} parent=5 // pred_region
        %s185 = ssub.s32 %s9, 1
        %s186 = smul.u32 8, %s20
        %p187 = scmp.lt.s32.totalorder %s19, 1
        %s188 = scalar_select %p187, %s19, 1
        %p189 = scmp.lt.s32.totalorder %s186, 15
        %s190 = scalar_select %p189, %s186, 15
        %s191 = smul.addr %s190, 2
        %s192 = smul.addr %s188, 32
        %s193 = sadd.s32 %s191, %s192
        %s194 = smul.addr %s193, 8
        %s195 = scalar_lea.vmem %s0, %s194
        %p196 = pneg %p56
        %p197 = pneg %p53
        %p198 = scmp.lt.s32.totalorder %s21, 1
        %s199 = scalar_select %p198, %s21, 1
        %s200 = smul.addr %s199, 32
        %s201 = smul.addr %s200, 4
        %s202 = scalar_lea.vmem %s1, %s201
        %p203 = pneg %p82
        %p204 = pneg %p79
        %p205 = pneg %p103
        %p206 = pneg %p100
        %p207 = pneg %p135
        %p208 = pneg %p132
        %s209 = sand.u32 %s122, 1
        %s210 = sand.u32 %s122, 1
        %s211 = smul.addr %s210, 256
        %s212 = scalar_lea.vmem [#allocation2], %s211
        %s213 = smul.u32 8, %s20
        %p214 = scmp.lt.s32.totalorder %s19, 1
        %s215 = scalar_select %p214, %s19, 1
        %p216 = scmp.lt.s32.totalorder %s213, 15
        %s217 = scalar_select %p216, %s213, 15
        %s218 = smul.addr %s217, 2
        %s219 = smul.addr %s215, 32
        %s220 = sadd.s32 %s218, %s219
        %s221 = smul.addr %s220, 8
        %s222 = scalar_lea.vmem %s0, %s221
        %s223 = smul.u32 8, %s20
        %p224 = scmp.lt.s32.totalorder %s21, 1
        %s225 = scalar_select %p224, %s21, 1
        %s226 = smul.addr %s225, 32
        %s227 = smul.addr %s226, 4
        %s228 = scalar_lea.vmem %s1, %s227
        %s229 = smul.u32 %s19, 2
        %s230 = sadd.s32 %s229, %s20
        %s231 = smul.u32 8, %s230
        %v233 = vld [vmem:[%s222] sm:$0xff]
        %v234 = vld [vmem:[%s222 + $0x8] sm:$0xff]
        %v235 = vld [vmem:[%s222 + $0x10] sm:$0xff]
        %v236 = vld [vmem:[%s222 + $0x18] sm:$0xff]
        %v237 = vld [vmem:[%s222 + $0x20] sm:$0xff]
        %v238 = vld [vmem:[%s222 + $0x28] sm:$0xff]
        %v239 = vld [vmem:[%s222 + $0x30] sm:$0xff]
        %v240 = vld [vmem:[%s222 + $0x38] sm:$0xff]
        %v241 = vld [vmem:[%s222 + $0x40] sm:$0xff]
        %v242 = vld [vmem:[%s222 + $0x48] sm:$0xff]
        %v243 = vld [vmem:[%s222 + $0x50] sm:$0xff]
        %v244 = vld [vmem:[%s222 + $0x58] sm:$0xff]
        %v245 = vld [vmem:[%s222 + $0x60] sm:$0xff]
        %v246 = vld [vmem:[%s222 + $0x68] sm:$0xff]
        %v247 = vld [vmem:[%s222 + $0x70] sm:$0xff]
        %v248 = vld [vmem:[%s222 + $0x78] sm:$0xff]
        %v249 = vpack.c.bf16 %v234, %v233
        %v250 = vpack.c.bf16 %v236, %v235
        %v251 = vpack.c.bf16 %v238, %v237
        %v252 = vpack.c.bf16 %v240, %v239
        %v253 = vpack.c.bf16 %v242, %v241
        %v254 = vpack.c.bf16 %v244, %v243
        %v255 = vpack.c.bf16 %v246, %v245
        %v256 = vpack.c.bf16 %v248, %v247
        %v257 = vld [vmem:[%s228] sm:$0xff]
        %v258 = vld [vmem:[%s228 + $0x8] sm:$0xff]
        %v259 = vld [vmem:[%s228 + $0x10] sm:$0xff]
        %v260 = vld [vmem:[%s228 + $0x18] sm:$0xff]
        %v261 = vld [vmem:[%s228 + $0x20] sm:$0xff]
        %v262 = vld [vmem:[%s228 + $0x28] sm:$0xff]
        %v263 = vld [vmem:[%s228 + $0x30] sm:$0xff]
        %v264 = vld [vmem:[%s228 + $0x38] sm:$0xff]
        %v265 = vld [vmem:[%s228 + $0x40] sm:$0xff]
        %v266 = vld [vmem:[%s228 + $0x48] sm:$0xff]
        %v267 = vld [vmem:[%s228 + $0x50] sm:$0xff]
        %v268 = vld [vmem:[%s228 + $0x58] sm:$0xff]
        %v269 = vld [vmem:[%s228 + $0x60] sm:$0xff]
        %v270 = vld [vmem:[%s228 + $0x68] sm:$0xff]
        %v271 = vld [vmem:[%s228 + $0x70] sm:$0xff]
        %v272 = vld [vmem:[%s228 + $0x78] sm:$0xff]
        %v273 = vld [vmem:[%s2] sm:$0x3]
        %v275 = vlaneseq
        %v276 = vshrl.u32 %v275, 7
        %v277 = vsub.s32 0, %v276
        %v278 = vrot.slane %v273, %v277
        %v279 = vlaneseq
        %v280 = vshrl.u32 %v279, 7
        %v281 = vsub.s32 1, %v280
        %v282 = vrot.slane %v273, %v281
        %v301 = vunpack.c.l.b16 %v257
        %v302 = vunpack.c.h.b16 %v257
        %v303 = vunpack.c.l.b16 %v258
        %v304 = vunpack.c.h.b16 %v258
        %v305 = vunpack.c.l.b16 %v259
        %v306 = vunpack.c.h.b16 %v259
        %v307 = vunpack.c.l.b16 %v260
        %v308 = vunpack.c.h.b16 %v260
        %v309 = vunpack.c.l.b16 %v261
        %v310 = vunpack.c.h.b16 %v261
        %v311 = vunpack.c.l.b16 %v262
        %v312 = vunpack.c.h.b16 %v262
        %v313 = vunpack.c.l.b16 %v263
        %v314 = vunpack.c.h.b16 %v263
        %v315 = vunpack.c.l.b16 %v264
        %v316 = vunpack.c.h.b16 %v264
        %v317 = vunpack.c.l.b16 %v265
        %v318 = vunpack.c.h.b16 %v265
        %v319 = vunpack.c.l.b16 %v266
        %v320 = vunpack.c.h.b16 %v266
        %v321 = vunpack.c.l.b16 %v267
        %v322 = vunpack.c.h.b16 %v267
        %v323 = vunpack.c.l.b16 %v268
        %v324 = vunpack.c.h.b16 %v268
        %v325 = vunpack.c.l.b16 %v269
        %v326 = vunpack.c.h.b16 %v269
        %v327 = vunpack.c.l.b16 %v270
        %v328 = vunpack.c.h.b16 %v270
        %v329 = vunpack.c.l.b16 %v271
        %v330 = vunpack.c.h.b16 %v271
        %v331 = vunpack.c.l.b16 %v272
        %v332 = vunpack.c.h.b16 %v272
        %v333 = vpack.c.b16 %v303, %v301
        %v334 = vpack.c.b16 %v304, %v302
        %v335 = vpack.c.b16 %v307, %v305
        %v336 = vpack.c.b16 %v308, %v306
        %v337 = vpack.c.b16 %v311, %v309
        %v338 = vpack.c.b16 %v312, %v310
        %v339 = vpack.c.b16 %v315, %v313
        %v340 = vpack.c.b16 %v316, %v314
        %v341 = vpack.c.b16 %v319, %v317
        %v342 = vpack.c.b16 %v320, %v318
        %v343 = vpack.c.b16 %v323, %v321
        %v344 = vpack.c.b16 %v324, %v322
        %v345 = vpack.c.b16 %v327, %v325
        %v346 = vpack.c.b16 %v328, %v326
        %v347 = vpack.c.b16 %v331, %v329
        %v348 = vpack.c.b16 %v332, %v330
        %365 = vmatprep.subr.bf16.mxu0 %v334
        %366 = vmatpush1.bf16.msra.mxu0 %v333
        %367 = vmatprep.subr.bf16.mxu0 %v336
        %368 = vmatpush1.bf16.msra.mxu0 %v335
        %369 = vmatprep.subr.bf16.mxu0 %v338
        %370 = vmatpush1.bf16.msra.mxu0 %v337
        %371 = vmatprep.subr.bf16.mxu0 %v340
        %372 = vmatpush1.bf16.msra.mxu0 %v339
        %373 = vmatprep.subr.bf16.mxu0 %v342
        %374 = vmatpush1.bf16.msra.mxu0 %v341
        %375 = vmatprep.subr.bf16.mxu0 %v344
        %376 = vmatpush1.bf16.msra.mxu0 %v343
        %377 = vmatprep.subr.bf16.mxu0 %v346
        %378 = vmatpush1.bf16.msra.mxu0 %v345
        %379 = vmatprep.subr.bf16.mxu0 %v348
        %380 = vmatpush1.bf16.msra.mxu0 %v347
        %381 = vmatprep.subr.bf16.mxu0 0
        %382 = vmatpush1.bf16.msra.mxu0 0
        %383 = vmatprep.subr.bf16.mxu0 0
        %384 = vmatpush1.bf16.msra.mxu0 0
        %385 = vmatprep.subr.bf16.mxu0 0
        %386 = vmatpush1.bf16.msra.mxu0 0
        %387 = vmatprep.subr.bf16.mxu0 0
        %388 = vmatpush1.bf16.msra.mxu0 0
        %389 = vmatprep.subr.bf16.mxu0 0
        %390 = vmatpush1.bf16.msra.mxu0 0
        %391 = vmatprep.subr.bf16.mxu0 0
        %392 = vmatpush1.bf16.msra.mxu0 0
        %393 = vmatprep.subr.bf16.mxu0 0
        %394 = vmatpush1.bf16.msra.mxu0 0
        %395 = vmatprep.subr.bf16.mxu0 0
        %396 = vmatpush1.bf16.msra.mxu0 0
        %397 = vmatprep.mubr.bf16.mxu0 0
        %398 = vmatmul.mubr.bf16.gmra.mrb[0].mxu0 %v249
        %v399 = vpop.f32.mrb[0].mxu0
        %v400 = vadd.f32 %v278, %v399
        %v401 = vpop.f32.mrb[0].mxu0
        %v402 = vadd.f32 %v282, %v401
        %v403 = vpop.f32.mrb[0].mxu0
        %v404 = vadd.f32 %v278, %v403
        %v405 = vpop.f32.mrb[0].mxu0
        %v406 = vadd.f32 %v282, %v405
        %407 = vmatprep.mubr.bf16.mxu0 0
        %408 = vmatmul.mubr.bf16.gmra.mrb[0].mxu0 %v250
        %v409 = vpop.f32.mrb[0].mxu0
        %v410 = vadd.f32 %v278, %v409
        %v411 = vpop.f32.mrb[0].mxu0
        %v412 = vadd.f32 %v282, %v411
        %v413 = vpop.f32.mrb[0].mxu0
        %v414 = vadd.f32 %v278, %v413
        %v415 = vpop.f32.mrb[0].mxu0
        %v416 = vadd.f32 %v282, %v415
        %417 = vmatprep.mubr.bf16.mxu0 0
        %418 = vmatmul.mubr.bf16.gmra.mrb[0].mxu0 %v251
        %v419 = vpop.f32.mrb[0].mxu0
        %v420 = vadd.f32 %v278, %v419
        %v421 = vpop.f32.mrb[0].mxu0
        %v422 = vadd.f32 %v282, %v421
        %v423 = vpop.f32.mrb[0].mxu0
        %v424 = vadd.f32 %v278, %v423
        %v425 = vpop.f32.mrb[0].mxu0
        %v426 = vadd.f32 %v282, %v425
        %427 = vmatprep.mubr.bf16.mxu0 0
        %428 = vmatmul.mubr.bf16.gmra.mrb[0].mxu0 %v252
        %v429 = vpop.f32.mrb[0].mxu0
        %v430 = vadd.f32 %v278, %v429
        %v431 = vpop.f32.mrb[0].mxu0
        %v432 = vadd.f32 %v282, %v431
        %v433 = vpop.f32.mrb[0].mxu0
        %v434 = vadd.f32 %v278, %v433
        %v435 = vpop.f32.mrb[0].mxu0
        %v436 = vadd.f32 %v282, %v435
        %437 = vmatprep.mubr.bf16.mxu0 0
        %438 = vmatmul.mubr.bf16.gmra.mrb[0].mxu0 %v253
        %v439 = vpop.f32.mrb[0].mxu0
        %v440 = vadd.f32 %v278, %v439
        %v441 = vpop.f32.mrb[0].mxu0
        %v442 = vadd.f32 %v282, %v441
        %v443 = vpop.f32.mrb[0].mxu0
        %v444 = vadd.f32 %v278, %v443
        %v445 = vpop.f32.mrb[0].mxu0
        %v446 = vadd.f32 %v282, %v445
        %447 = vmatprep.mubr.bf16.mxu0 0
        %448 = vmatmul.mubr.bf16.gmra.mrb[0].mxu0 %v254
        %v449 = vpop.f32.mrb[0].mxu0
        %v450 = vadd.f32 %v278, %v449
        %v451 = vpop.f32.mrb[0].mxu0
        %v452 = vadd.f32 %v282, %v451
        %v453 = vpop.f32.mrb[0].mxu0
        %v454 = vadd.f32 %v278, %v453
        %v455 = vpop.f32.mrb[0].mxu0
        %v456 = vadd.f32 %v282, %v455
        %457 = vmatprep.mubr.bf16.mxu0 0
        %458 = vmatmul.mubr.bf16.gmra.mrb[0].mxu0 %v255
        %v459 = vpop.f32.mrb[0].mxu0
        %v460 = vadd.f32 %v278, %v459
        %v461 = vpop.f32.mrb[0].mxu0
        %v462 = vadd.f32 %v282, %v461
        %v463 = vpop.f32.mrb[0].mxu0
        %v464 = vadd.f32 %v278, %v463
        %v465 = vpop.f32.mrb[0].mxu0
        %v466 = vadd.f32 %v282, %v465
        %467 = vmatprep.mubr.bf16.mxu0 0
        %468 = vmatmul.mubr.bf16.gmra.mrb[0].mxu0 %v256
        %v469 = vpop.f32.mrb[0].mxu0
        %v470 = vadd.f32 %v278, %v469
        %v471 = vpop.f32.mrb[0].mxu0
        %v472 = vadd.f32 %v282, %v471
        %v473 = vpop.f32.mrb[0].mxu0
        %v474 = vadd.f32 %v278, %v473
        %v475 = vpop.f32.mrb[0].mxu0
        %v476 = vadd.f32 %v282, %v475
        %477 = vdwg.mxu0
        %478 = vst [vmem:[%s212] sm:$0xff] %v400
        %479 = vst [vmem:[%s212 + $0x8] sm:$0xff] %v402
        %480 = vst [vmem:[%s212 + $0x10] sm:$0xff] %v404
        %481 = vst [vmem:[%s212 + $0x18] sm:$0xff] %v406
        %482 = vst [vmem:[%s212 + $0x20] sm:$0xff] %v410
        %483 = vst [vmem:[%s212 + $0x28] sm:$0xff] %v412
        %484 = vst [vmem:[%s212 + $0x30] sm:$0xff] %v414
        %485 = vst [vmem:[%s212 + $0x38] sm:$0xff] %v416
        %486 = vst [vmem:[%s212 + $0x40] sm:$0xff] %v420
        %487 = vst [vmem:[%s212 + $0x48] sm:$0xff] %v422
        %488 = vst [vmem:[%s212 + $0x50] sm:$0xff] %v424
        %489 = vst [vmem:[%s212 + $0x58] sm:$0xff] %v426
        %490 = vst [vmem:[%s212 + $0x60] sm:$0xff] %v430
        %491 = vst [vmem:[%s212 + $0x68] sm:$0xff] %v432
        %492 = vst [vmem:[%s212 + $0x70] sm:$0xff] %v434
        %493 = vst [vmem:[%s212 + $0x78] sm:$0xff] %v436
        %494 = vst [vmem:[%s212 + $0x80] sm:$0xff] %v440
        %495 = vst [vmem:[%s212 + $0x88] sm:$0xff] %v442
        %496 = vst [vmem:[%s212 + $0x90] sm:$0xff] %v444
        %497 = vst [vmem:[%s212 + $0x98] sm:$0xff] %v446
        %498 = vst [vmem:[%s212 + $0xa0] sm:$0xff] %v450
        %499 = vst [vmem:[%s212 + $0xa8] sm:$0xff] %v452
        %500 = vst [vmem:[%s212 + $0xb0] sm:$0xff] %v454
        %501 = vst [vmem:[%s212 + $0xb8] sm:$0xff] %v456
        %502 = vst [vmem:[%s212 + $0xc0] sm:$0xff] %v460
        %503 = vst [vmem:[%s212 + $0xc8] sm:$0xff] %v462
        %504 = vst [vmem:[%s212 + $0xd0] sm:$0xff] %v464
        %505 = vst [vmem:[%s212 + $0xd8] sm:$0xff] %v466
        %506 = vst [vmem:[%s212 + $0xe0] sm:$0xff] %v470
        %507 = vst [vmem:[%s212 + $0xe8] sm:$0xff] %v472
        %508 = vst [vmem:[%s212 + $0xf0] sm:$0xff] %v474
        %509 = vst [vmem:[%s212 + $0xf8] sm:$0xff] %v476
        %s510 = sand.u32 %s122, 1
        %s511 = sand.u32 %s122, 1
        %s512 = smul.addr %s511, 256
        %s513 = scalar_lea.vmem [#allocation2], %s512
        // Predicated region
        $region33: #{fcn_decode_forward.9} parent=31 // pred_check
          %p514 = pneg %p132
        $region34: #{fcn_decode_forward.9} parent=31 // pred_check_branch
          %516 = sbr.rel (%p514) target = $region36
        $region35: #{fcn_decode_forward.9} parent=31 // pred_region
          %s517 = smul.u32 %s19, 2
          %s518 = sadd.s32 %s517, %s20
          %s519 = smul.u32 8, %s518
          %s520 = smul.addr %s21, 4
          %s521 = smul.addr %s519, 8
          %s522 = sadd.s32 %s520, %s521
          %s523 = smul.addr %s522, 8
          %s524 = scalar_lea.vmem %s3, %s523
          // Predicated region
          $region37: #{fcn_decode_forward.9} parent=35 // pred_check
            _
          $region38: #{fcn_decode_forward.9} parent=35 // pred_check_branch
            %526 = sbr.rel (0) target = $region40
          $region39: #{fcn_decode_forward.9} parent=35 // pred_region
            // Predicated region
            $region41: #{fcn_decode_forward.9} parent=39 // pred_check
              _
            $region42: #{fcn_decode_forward.9} parent=39 // pred_check_branch
              %528 = sbr.rel (0) target = $region44
            $region43: #{fcn_decode_forward.9} parent=39 // pred_region
              loop: start=0, step=1, limit=1
              $region45: #{fcn_decode_forward.9} parent=43 // loop_pre_header
                _
              $region46: #{fcn_decode_forward.9} parent=43 // loop_header
                %s530 = sphi 0, %s534
                %p531 = scmp.ge.s32.totalorder %s530, 1
                %s535 = sphi %s513, %s513
                %s536 = sphi %s524, %s524
              $region47: #{fcn_decode_forward.9} parent=43 // loop_header_branch
                %533 = sbr.rel (%p531) target = $region51
              $region48: #{fcn_decode_forward.9} parent=43 // loop_body
                %v537 = vld [vmem:[%s535] sm:$0xff]
                %538 = vst [vmem:[%s536] sm:$0xff] %v537
                %v539 = vld [vmem:[%s535 + $0x8] sm:$0xff]
                %540 = vst [vmem:[%s536 + $0x8] sm:$0xff] %v539
                %v541 = vld [vmem:[%s535 + $0x10] sm:$0xff]
                %542 = vst [vmem:[%s536 + $0x10] sm:$0xff] %v541
                %v543 = vld [vmem:[%s535 + $0x18] sm:$0xff]
                %544 = vst [vmem:[%s536 + $0x18] sm:$0xff] %v543
                %v545 = vld [vmem:[%s535 + $0x20] sm:$0xff]
                %546 = vst [vmem:[%s536 + $0x40] sm:$0xff] %v545
                %v547 = vld [vmem:[%s535 + $0x28] sm:$0xff]
                %548 = vst [vmem:[%s536 + $0x48] sm:$0xff] %v547
                %v549 = vld [vmem:[%s535 + $0x30] sm:$0xff]
                %550 = vst [vmem:[%s536 + $0x50] sm:$0xff] %v549
                %v551 = vld [vmem:[%s535 + $0x38] sm:$0xff]
                %552 = vst [vmem:[%s536 + $0x58] sm:$0xff] %v551
                %v553 = vld [vmem:[%s535 + $0x40] sm:$0xff]
                %554 = vst [vmem:[%s536 + $0x80] sm:$0xff] %v553
                %v555 = vld [vmem:[%s535 + $0x48] sm:$0xff]
                %556 = vst [vmem:[%s536 + $0x88] sm:$0xff] %v555
                %v557 = vld [vmem:[%s535 + $0x50] sm:$0xff]
                %558 = vst [vmem:[%s536 + $0x90] sm:$0xff] %v557
                %v559 = vld [vmem:[%s535 + $0x58] sm:$0xff]
                %560 = vst [vmem:[%s536 + $0x98] sm:$0xff] %v559
                %v561 = vld [vmem:[%s535 + $0x60] sm:$0xff]
                %562 = vst [vmem:[%s536 + $0xc0] sm:$0xff] %v561
                %v563 = vld [vmem:[%s535 + $0x68] sm:$0xff]
                %564 = vst [vmem:[%s536 + $0xc8] sm:$0xff] %v563
                %v565 = vld [vmem:[%s535 + $0x70] sm:$0xff]
                %566 = vst [vmem:[%s536 + $0xd0] sm:$0xff] %v565
                %v567 = vld [vmem:[%s535 + $0x78] sm:$0xff]
                %568 = vst [vmem:[%s536 + $0xd8] sm:$0xff] %v567
                %v569 = vld [vmem:[%s535 + $0x80] sm:$0xff]
                %570 = vst [vmem:[%s536 + $0x100] sm:$0xff] %v569
                %v571 = vld [vmem:[%s535 + $0x88] sm:$0xff]
                %572 = vst [vmem:[%s536 + $0x108] sm:$0xff] %v571
                %v573 = vld [vmem:[%s535 + $0x90] sm:$0xff]
                %574 = vst [vmem:[%s536 + $0x110] sm:$0xff] %v573
                %v575 = vld [vmem:[%s535 + $0x98] sm:$0xff]
                %576 = vst [vmem:[%s536 + $0x118] sm:$0xff] %v575
                %v577 = vld [vmem:[%s535 + $0xa0] sm:$0xff]
                %578 = vst [vmem:[%s536 + $0x140] sm:$0xff] %v577
                %v579 = vld [vmem:[%s535 + $0xa8] sm:$0xff]
                %580 = vst [vmem:[%s536 + $0x148] sm:$0xff] %v579
                %v581 = vld [vmem:[%s535 + $0xb0] sm:$0xff]
                %582 = vst [vmem:[%s536 + $0x150] sm:$0xff] %v581
                %v583 = vld [vmem:[%s535 + $0xb8] sm:$0xff]
                %584 = vst [vmem:[%s536 + $0x158] sm:$0xff] %v583
                %v585 = vld [vmem:[%s535 + $0xc0] sm:$0xff]
                %586 = vst [vmem:[%s536 + $0x180] sm:$0xff] %v585
                %v587 = vld [vmem:[%s535 + $0xc8] sm:$0xff]
                %588 = vst [vmem:[%s536 + $0x188] sm:$0xff] %v587
                %v589 = vld [vmem:[%s535 + $0xd0] sm:$0xff]
                %590 = vst [vmem:[%s536 + $0x190] sm:$0xff] %v589
                %v591 = vld [vmem:[%s535 + $0xd8] sm:$0xff]
                %592 = vst [vmem:[%s536 + $0x198] sm:$0xff] %v591
                %v593 = vld [vmem:[%s535 + $0xe0] sm:$0xff]
                %594 = vst [vmem:[%s536 + $0x1c0] sm:$0xff] %v593
                %v595 = vld [vmem:[%s535 + $0xe8] sm:$0xff]
                %596 = vst [vmem:[%s536 + $0x1c8] sm:$0xff] %v595
                %v597 = vld [vmem:[%s535 + $0xf0] sm:$0xff]
                %598 = vst [vmem:[%s536 + $0x1d0] sm:$0xff] %v597
                %v599 = vld [vmem:[%s535 + $0xf8] sm:$0xff]
                %600 = vst [vmem:[%s536 + $0x1d8] sm:$0xff] %v599
              $region49: #{fcn_decode_forward.9} parent=43 // loop_footer
                %s534 = sadd.s32 1, %s530
              $region50: #{fcn_decode_forward.9} parent=43 // loop_footer_branch
                %529 = sbr.rel target = $region46
              $region51: #{fcn_decode_forward.9} parent=43 // loop_exit
                _
            $region44: #{fcn_decode_forward.9} parent=39 // pred_fallthru
              _
            // Predicated region
            $region52: #{fcn_decode_forward.9} parent=39 // pred_check
              _
            $region53: #{fcn_decode_forward.9} parent=39 // pred_check_branch
              %602 = sbr.rel target = $region55
            $region54: #{fcn_decode_forward.9} parent=39 // pred_region
              _
            $region55: #{fcn_decode_forward.9} parent=39 // pred_fallthru
              _
          $region40: #{fcn_decode_forward.9} parent=35 // pred_fallthru
            _
          %603 = vnop
        $region36: #{fcn_decode_forward.9} parent=31 // pred_fallthru
          _
      $region32: #{fcn_decode_forward.9} parent=5 // pred_fallthru
        _
      %p604 = scmp.le.s32.totalorder 2, %s9
      // Predicated region
      $region56: #{fcn_decode_forward.9} parent=5 // pred_check
        %p605 = pneg %p604
      $region57: #{fcn_decode_forward.9} parent=5 // pred_check_branch
        %607 = sbr.rel (%p605) target = $region59
      $region58: #{fcn_decode_forward.9} parent=5 // pred_region
        %s608 = ssub.s32 %s9, 2
        // Predicated region
        $region60: #{fcn_decode_forward.9} parent=58 // pred_check
          %p609 = pneg %p138
        $region61: #{fcn_decode_forward.9} parent=58 // pred_check_branch
          %611 = sbr.rel (%p609) target = $region63
        $region62: #{fcn_decode_forward.9} parent=58 // pred_region
          %s612 = sand.u32 %s123, 1
          %s613 = sand.u32 %s123, 1
          %s614 = smul.addr %s613, 256
          %s615 = scalar_lea.vmem [#allocation2], %s614
        $region63: #{fcn_decode_forward.9} parent=58 // pred_fallthru
          _
      $region59: #{fcn_decode_forward.9} parent=5 // pred_fallthru
        _
    $region6: #{fcn_decode_forward.9} parent=1 // loop_footer
      %s13 = sadd.s32 1, %s9
    $region7: #{fcn_decode_forward.9} parent=1 // loop_footer_branch
      %8 = sbr.rel target = $region3
    $region8: #{fcn_decode_forward.9} parent=1 // loop_exit
      _

// kernel: fcn_decode_forward.7
$region0: #{fcn_decode_forward.7}
  #allocation0 [shape = 'u32[]', space=smem, size = 0x4, offset = 0x4, fixed_abs, tag = 'smem constant byte address 0x4 - core index']
  #allocation1 [shape = 'u32[144,128]{1,0:T(1,128)}', space=vmem, size = 0x12000, scoped, tag = 'internal scratch']
  %s0 = inlined_call_operand.vmem [shape: bf16[2,16,18,128], index: 0, kind: input, shape index: {}]
  %s1 = inlined_call_operand.vmem [shape: bf16[2,16,18,128], index: 1, kind: input, shape index: {}]
  %s2 = inlined_call_operand.vmem [shape: bf16[2,16,18,128], index: 2, kind: input, shape index: {}]
  %s3 = inlined_call_operand.vmem [shape: bf16[3,3,128,128], index: 3, kind: input, shape index: {}]
  %s4 = inlined_call_operand.vmem [shape: f32[2,16,16,128], index: 4, kind: output, shape index: {0}]
  %s5 = inlined_call_operand.vmem [shape: f32[2,2,8,128], index: 5, kind: output, shape index: {1}]
  %s6 = inlined_call_operand.vmem [shape: f32[2,2,8,128], index: 6, kind: output, shape index: {2}]
  %7 = xla_tuple %s4, %s5, %s6
  %s8 = sld [smem:[#allocation0]]
  $region73: #{fcn_decode_forward.7} parent=0
    _
  %s10 = ssub.s32 1, %s8
  %s11 = scalar_select 0, %s10, %s8
  loop: start=0, step=1, limit=6
  $region2: #{fcn_decode_forward.7} parent=0 // loop_pre_header
    _
  $region3: #{fcn_decode_forward.7} parent=0 // loop_header
    %s13 = sphi 0, %s17
    %p14 = scmp.ge.s32.totalorder %s13, 6
    %s20 = sphi 0, %s39
    %s21 = sphi 0, %s35
    %s22 = sphi 0, %s31
    %s23 = sphi 0, %s20
    %s24 = sphi 0, %s21
    %s25 = sphi 0, %s22
    %s26 = sphi 0, %s23
    %s27 = sphi 0, %s24
    %s28 = sphi 0, %s25
    %s46 = sphi 0, %s48
    %s49 = sphi 0, %s46
    %s50 = sphi 0, %s49
    %s66 = sphi 0, %s50
    %s76 = sphi 0, %s78
    %s79 = sphi 0, %s76
    %s80 = sphi 0, %s79
    %s96 = sphi 0, %s80
    %s106 = sphi 0, %s108
    %s109 = sphi 0, %s106
    %s110 = sphi 0, %s109
    %s126 = sphi 0, %s110
    %s132 = sphi 0, %s134
    %s135 = sphi 0, %s132
    %s136 = sphi 0, %s135
    %s152 = sphi 0, %s136
    %s160 = sphi 0, %s162
    %s163 = sphi 0, %s160
    %s164 = sphi 0, %s163
    %s180 = sphi 0, %s164
    %s188 = sphi 0, %s190
    %s191 = sphi 0, %s188
    %s192 = sphi 0, %s191
    %s208 = sphi 0, %s192
    %s216 = sphi 0, %s218
    %s219 = sphi 0, %s216
    %s220 = sphi 0, %s219
    %s236 = sphi 0, %s220
  $region4: #{fcn_decode_forward.7} parent=0 // loop_header_branch
    %16 = sbr.rel (%p14) target = $region8
  $region5: #{fcn_decode_forward.7} parent=0 // loop_body
    %s18 = ssub.s32 %s13, 1
    %s19 = ssub.s32 %s13, 2
    %s29 = sadd.s32 1, %s22
    %p30 = scmp.ge.s32.totalorder %s29, 1
    %s31 = scalar_select %p30, 0, %s29
    %s32 = sadd.s32 1, %s21
    %s33 = scalar_select %p30, %s32, %s21
    %p34 = scmp.ge.s32.totalorder %s33, 2
    %s35 = scalar_select %p34, 0, %s33
    %s36 = sadd.s32 1, %s20
    %s37 = scalar_select %p34, %s36, %s20
    %p38 = scmp.ge.s32.totalorder %s37, 2
    %s39 = scalar_select %p38, 0, %s37
    %s40 = ssub.s32 %s20, %s39
    %s41 = ssub.s32 %s21, %s35
    %s42 = sor.u32 %s40, %s41
    %s43 = ssub.s32 %s22, %s31
    %s44 = sor.u32 %s42, %s43
    %p45 = scmp.eq.s32.totalorder %s44, 0
    %s47 = sadd.s32 %s46, 1
    %s48 = scalar_select %p45, %s46, %s47
    %p51 = pneg %p45
    %p52 = scmp.eq.s32.totalorder %s13, 3
    %p53 = por %p51, %p52
    %p54 = scmp.ne.s32.totalorder %s46, %s49
    %p55 = scmp.eq.s32.totalorder %s13, 0
    %p56 = por %p54, %p55
    %p57 = scmp.ne.s32.totalorder %s46, %s49
    %p58 = scmp.eq.s32.totalorder %s18, 3
    %p59 = por %p57, %p58
    %p60 = scmp.ne.s32.totalorder %s49, %s50
    %p61 = scmp.eq.s32.totalorder %s18, 0
    %p62 = por %p60, %p61
    %p63 = scmp.ne.s32.totalorder %s49, %s50
    %p64 = scmp.eq.s32.totalorder %s19, 3
    %p65 = por %p63, %p64
    %p67 = scmp.ne.s32.totalorder %s50, %s66
    %p68 = scmp.eq.s32.totalorder %s19, 0
    %p69 = por %p67, %p68
    %s70 = ssub.s32 %s20, %s39
    %s71 = ssub.s32 %s21, %s35
    %s72 = sor.u32 %s70, %s71
    %s73 = ssub.s32 %s22, %s31
    %s74 = sor.u32 %s72, %s73
    %p75 = scmp.eq.s32.totalorder %s74, 0
    %s77 = sadd.s32 %s76, 1
    %s78 = scalar_select %p75, %s76, %s77
    %p81 = pneg %p75
    %p82 = scmp.eq.s32.totalorder %s13, 3
    %p83 = por %p81, %p82
    %p84 = scmp.ne.s32.totalorder %s76, %s79
    %p85 = scmp.eq.s32.totalorder %s13, 0
    %p86 = por %p84, %p85
    %p87 = scmp.ne.s32.totalorder %s76, %s79
    %p88 = scmp.eq.s32.totalorder %s18, 3
    %p89 = por %p87, %p88
    %p90 = scmp.ne.s32.totalorder %s79, %s80
    %p91 = scmp.eq.s32.totalorder %s18, 0
    %p92 = por %p90, %p91
    %p93 = scmp.ne.s32.totalorder %s79, %s80
    %p94 = scmp.eq.s32.totalorder %s19, 3
    %p95 = por %p93, %p94
    %p97 = scmp.ne.s32.totalorder %s80, %s96
    %p98 = scmp.eq.s32.totalorder %s19, 0
    %p99 = por %p97, %p98
    %s100 = ssub.s32 %s20, %s39
    %s101 = ssub.s32 %s21, %s35
    %s102 = sor.u32 %s100, %s101
    %s103 = ssub.s32 %s22, %s31
    %s104 = sor.u32 %s102, %s103
    %p105 = scmp.eq.s32.totalorder %s104, 0
    %s107 = sadd.s32 %s106, 1
    %s108 = scalar_select %p105, %s106, %s107
    %p111 = pneg %p105
    %p112 = scmp.eq.s32.totalorder %s13, 3
    %p113 = por %p111, %p112
    %p114 = scmp.ne.s32.totalorder %s106, %s109
    %p115 = scmp.eq.s32.totalorder %s13, 0
    %p116 = por %p114, %p115
    %p117 = scmp.ne.s32.totalorder %s106, %s109
    %p118 = scmp.eq.s32.totalorder %s18, 3
    %p119 = por %p117, %p118
    %p120 = scmp.ne.s32.totalorder %s109, %s110
    %p121 = scmp.eq.s32.totalorder %s18, 0
    %p122 = por %p120, %p121
    %p123 = scmp.ne.s32.totalorder %s109, %s110
    %p124 = scmp.eq.s32.totalorder %s19, 3
    %p125 = por %p123, %p124
    %p127 = scmp.ne.s32.totalorder %s110, %s126
    %p128 = scmp.eq.s32.totalorder %s19, 0
    %p129 = por %p127, %p128
    %s130 = ssub.s32 %s22, %s31
    %p131 = scmp.eq.s32.totalorder %s130, 0
    %s133 = sadd.s32 %s132, 1
    %s134 = scalar_select %p131, %s132, %s133
    %p137 = pneg %p131
    %p138 = scmp.eq.s32.totalorder %s13, 3
    %p139 = por %p137, %p138
    %p140 = scmp.ne.s32.totalorder %s132, %s135
    %p141 = scmp.eq.s32.totalorder %s13, 0
    %p142 = por %p140, %p141
    %p143 = scmp.ne.s32.totalorder %s132, %s135
    %p144 = scmp.eq.s32.totalorder %s18, 3
    %p145 = por %p143, %p144
    %p146 = scmp.ne.s32.totalorder %s135, %s136
    %p147 = scmp.eq.s32.totalorder %s18, 0
    %p148 = por %p146, %p147
    %p149 = scmp.ne.s32.totalorder %s135, %s136
    %p150 = scmp.eq.s32.totalorder %s19, 3
    %p151 = por %p149, %p150
    %p153 = scmp.ne.s32.totalorder %s136, %s152
    %p154 = scmp.eq.s32.totalorder %s19, 0
    %p155 = por %p153, %p154
    %s156 = ssub.s32 %s20, %s39
    %s157 = ssub.s32 %s21, %s35
    %s158 = sor.u32 %s156, %s157
    %p159 = scmp.eq.s32.totalorder %s158, 0
    %s161 = sadd.s32 %s160, 1
    %s162 = scalar_select %p159, %s160, %s161
    %p165 = pneg %p159
    %p166 = scmp.eq.s32.totalorder %s13, 3
    %p167 = por %p165, %p166
    %p168 = scmp.ne.s32.totalorder %s160, %s163
    %p169 = scmp.eq.s32.totalorder %s13, 0
    %p170 = por %p168, %p169
    %p171 = scmp.ne.s32.totalorder %s160, %s163
    %p172 = scmp.eq.s32.totalorder %s18, 3
    %p173 = por %p171, %p172
    %p174 = scmp.ne.s32.totalorder %s163, %s164
    %p175 = scmp.eq.s32.totalorder %s18, 0
    %p176 = por %p174, %p175
    %p177 = scmp.ne.s32.totalorder %s163, %s164
    %p178 = scmp.eq.s32.totalorder %s19, 3
    %p179 = por %p177, %p178
    %p181 = scmp.ne.s32.totalorder %s164, %s180
    %p182 = scmp.eq.s32.totalorder %s19, 0
    %p183 = por %p181, %p182
    %s184 = ssub.s32 %s20, %s39
    %s185 = ssub.s32 %s21, %s35
    %s186 = sor.u32 %s184, %s185
    %p187 = scmp.eq.s32.totalorder %s186, 0
    %s189 = sadd.s32 %s188, 1
    %s190 = scalar_select %p187, %s188, %s189
    %p193 = pneg %p187
    %p194 = scmp.eq.s32.totalorder %s13, 3
    %p195 = por %p193, %p194
    %p196 = scmp.ne.s32.totalorder %s188, %s191
    %p197 = scmp.eq.s32.totalorder %s13, 0
    %p198 = por %p196, %p197
    %p199 = scmp.ne.s32.totalorder %s188, %s191
    %p200 = scmp.eq.s32.totalorder %s18, 3
    %p201 = por %p199, %p200
    %p202 = scmp.ne.s32.totalorder %s191, %s192
    %p203 = scmp.eq.s32.totalorder %s18, 0
    %p204 = por %p202, %p203
    %p205 = scmp.ne.s32.totalorder %s191, %s192
    %p206 = scmp.eq.s32.totalorder %s19, 3
    %p207 = por %p205, %p206
    %p209 = scmp.ne.s32.totalorder %s192, %s208
    %p210 = scmp.eq.s32.totalorder %s19, 0
    %p211 = por %p209, %p210
    %s212 = ssub.s32 %s20, %s39
    %s213 = ssub.s32 %s21, %s35
    %s214 = sor.u32 %s212, %s213
    %p215 = scmp.eq.s32.totalorder %s214, 0
    %s217 = sadd.s32 %s216, 1
    %s218 = scalar_select %p215, %s216, %s217
    %p221 = pneg %p215
    %p222 = scmp.eq.s32.totalorder %s13, 3
    %p223 = por %p221, %p222
    %p224 = scmp.ne.s32.totalorder %s216, %s219
    %p225 = scmp.eq.s32.totalorder %s13, 0
    %p226 = por %p224, %p225
    %p227 = scmp.ne.s32.totalorder %s216, %s219
    %p228 = scmp.eq.s32.totalorder %s18, 3
    %p229 = por %p227, %p228
    %p230 = scmp.ne.s32.totalorder %s219, %s220
    %p231 = scmp.eq.s32.totalorder %s18, 0
    %p232 = por %p230, %p231
    %p233 = scmp.ne.s32.totalorder %s219, %s220
    %p234 = scmp.eq.s32.totalorder %s19, 3
    %p235 = por %p233, %p234
    %p237 = scmp.ne.s32.totalorder %s220, %s236
    %p238 = scmp.eq.s32.totalorder %s19, 0
    %p239 = por %p237, %p238
    %p240 = scmp.le.s32.totalorder 1, %s13
    %p241 = scmp.lt.s32.totalorder %s13, 5
    %p242 = pnand %p240, %p241
    %p243 = pneg %p242
    // Predicated region
    $region9: #{fcn_decode_forward.7} parent=5 // pred_check
      _
    $region10: #{fcn_decode_forward.7} parent=5 // pred_check_branch
      %245 = sbr.rel (%p242) target = $region12
    $region11: #{fcn_decode_forward.7} parent=5 // pred_region
      %s246 = ssub.s32 %s13, 1
      // Predicated region
      $region13: #{fcn_decode_forward.7} parent=11 // pred_check
        %p247 = pneg %p148
      $region14: #{fcn_decode_forward.7} parent=11 // pred_check_branch
        %249 = sbr.rel (%p247) target = $region16
      $region15: #{fcn_decode_forward.7} parent=11 // pred_region
        %s250 = smul.u32 16, %s25
        %p251 = scmp.lt.s32.totalorder %s250, 15
        %s252 = scalar_select %p251, %s250, 15
        %s253 = smul.addr %s252, 4
        %s254 = scalar_lea.vmem %s3, %s253
        %s255 = smul.u32 16, %s25
      $region16: #{fcn_decode_forward.7} parent=11 // pred_fallthru
        _
    $region12: #{fcn_decode_forward.7} parent=5 // pred_fallthru
      _
    %p256 = scmp.lt.s32.totalorder %s13, 4
    // Predicated region
    $region17: #{fcn_decode_forward.7} parent=5 // pred_check
      %p257 = pneg %p256
    $region18: #{fcn_decode_forward.7} parent=5 // pred_check_branch
      %259 = sbr.rel (%p257) target = $region20
    $region19: #{fcn_decode_forward.7} parent=5 // pred_region
      // Predicated region
      $region21: #{fcn_decode_forward.7} parent=19 // pred_check
        %p260 = pneg %p56
      $region22: #{fcn_decode_forward.7} parent=19 // pred_check_branch
        %262 = sbr.rel (%p260) target = $region24
      $region23: #{fcn_decode_forward.7} parent=19 // pred_region
        %s263 = smul.u32 8, %s21
        %p264 = scmp.lt.s32.totalorder %s20, 1
        %s265 = scalar_select %p264, %s20, 1
        %p266 = scmp.lt.s32.totalorder %s263, 15
        %s267 = scalar_select %p266, %s263, 15
        %p268 = scmp.lt.s32.totalorder %s22, 0
        %s269 = scalar_select %p268, %s22, 0
        %s270 = smul.addr %s267, 3
        %s271 = sadd.s32 %s269, %s270
        %s272 = smul.addr %s265, 48
        %s273 = sadd.s32 %s271, %s272
        %s274 = smul.addr %s273, 4
        %s275 = scalar_lea.vmem %s0, %s274
        %s276 = smul.u32 8, %s21
      $region24: #{fcn_decode_forward.7} parent=19 // pred_fallthru
        _
      // Predicated region
      $region25: #{fcn_decode_forward.7} parent=19 // pred_check
        %p277 = pneg %p86
      $region26: #{fcn_decode_forward.7} parent=19 // pred_check_branch
        %279 = sbr.rel (%p277) target = $region28
      $region27: #{fcn_decode_forward.7} parent=19 // pred_region
        %s280 = smul.u32 8, %s21
        %p281 = scmp.lt.s32.totalorder %s20, 1
        %s282 = scalar_select %p281, %s20, 1
        %p283 = scmp.lt.s32.totalorder %s280, 15
        %s284 = scalar_select %p283, %s280, 15
        %p285 = scmp.lt.s32.totalorder %s22, 0
        %s286 = scalar_select %p285, %s22, 0
        %s287 = smul.addr %s284, 3
        %s288 = sadd.s32 %s286, %s287
        %s289 = smul.addr %s282, 48
        %s290 = sadd.s32 %s288, %s289
        %s291 = smul.addr %s290, 4
        %s292 = scalar_lea.vmem %s1, %s291
        %s293 = smul.u32 8, %s21
      $region28: #{fcn_decode_forward.7} parent=19 // pred_fallthru
        _
      // Predicated region
      $region29: #{fcn_decode_forward.7} parent=19 // pred_check
        %p294 = pneg %p116
      $region30: #{fcn_decode_forward.7} parent=19 // pred_check_branch
        %296 = sbr.rel (%p294) target = $region32
      $region31: #{fcn_decode_forward.7} parent=19 // pred_region
        %s297 = smul.u32 8, %s21
        %p298 = scmp.lt.s32.totalorder %s20, 1
        %s299 = scalar_select %p298, %s20, 1
        %p300 = scmp.lt.s32.totalorder %s297, 15
        %s301 = scalar_select %p300, %s297, 15
        %p302 = scmp.lt.s32.totalorder %s22, 0
        %s303 = scalar_select %p302, %s22, 0
        %s304 = smul.addr %s301, 3
        %s305 = sadd.s32 %s303, %s304
        %s306 = smul.addr %s299, 48
        %s307 = sadd.s32 %s305, %s306
        %s308 = smul.addr %s307, 4
        %s309 = scalar_lea.vmem %s2, %s308
        %s310 = smul.u32 8, %s21
      $region32: #{fcn_decode_forward.7} parent=19 // pred_fallthru
        _
    $region20: #{fcn_decode_forward.7} parent=5 // pred_fallthru
      _
    %p311 = scmp.le.s32.totalorder 1, %s13
    %p312 = scmp.lt.s32.totalorder %s13, 5
    %p313 = pnand %p311, %p312
    %p314 = pneg %p313
    // Predicated region
    $region33: #{fcn_decode_forward.7} parent=5 // pred_check
      _
    $region34: #{fcn_decode_forward.7} parent=5 // pred_check_branch
      %316 = sbr.rel (%p313) target = $region36
    $region35: #{fcn_decode_forward.7} parent=5 // pred_region
      %s317 = ssub.s32 %s13, 1
      %s318 = smul.u32 8, %s24
      %p319 = scmp.lt.s32.totalorder %s23, 1
      %s320 = scalar_select %p319, %s23, 1
      %p321 = scmp.lt.s32.totalorder %s318, 15
      %s322 = scalar_select %p321, %s318, 15
      %p323 = scmp.lt.s32.totalorder %s25, 0
      %s324 = scalar_select %p323, %s25, 0
      %s325 = smul.addr %s322, 3
      %s326 = sadd.s32 %s324, %s325
      %s327 = smul.addr %s320, 48
      %s328 = sadd.s32 %s326, %s327
      %s329 = smul.addr %s328, 4
      %s330 = scalar_lea.vmem %s0, %s329
      %p331 = pneg %p62
      %p332 = pneg %p59
      %s333 = smul.u32 8, %s24
      %p334 = scmp.lt.s32.totalorder %s23, 1
      %s335 = scalar_select %p334, %s23, 1
      %p336 = scmp.lt.s32.totalorder %s333, 15
      %s337 = scalar_select %p336, %s333, 15
      %p338 = scmp.lt.s32.totalorder %s25, 0
      %s339 = scalar_select %p338, %s25, 0
      %s340 = smul.addr %s337, 3
      %s341 = sadd.s32 %s339, %s340
      %s342 = smul.addr %s335, 48
      %s343 = sadd.s32 %s341, %s342
      %s344 = smul.addr %s343, 4
      %s345 = scalar_lea.vmem %s1, %s344
      %p346 = pneg %p92
      %p347 = pneg %p89
      %s348 = smul.u32 8, %s24
      %p349 = scmp.lt.s32.totalorder %s23, 1
      %s350 = scalar_select %p349, %s23, 1
      %p351 = scmp.lt.s32.totalorder %s348, 15
      %s352 = scalar_select %p351, %s348, 15
      %p353 = scmp.lt.s32.totalorder %s25, 0
      %s354 = scalar_select %p353, %s25, 0
      %s355 = smul.addr %s352, 3
      %s356 = sadd.s32 %s354, %s355
      %s357 = smul.addr %s350, 48
      %s358 = sadd.s32 %s356, %s357
      %s359 = smul.addr %s358, 4
      %s360 = scalar_lea.vmem %s2, %s359
      %p361 = pneg %p122
      %p362 = pneg %p119
      %s363 = smul.u32 16, %s25
      %p364 = scmp.lt.s32.totalorder %s363, 15
      %s365 = scalar_select %p364, %s363, 15
      %s366 = smul.addr %s365, 4
      %s367 = scalar_lea.vmem %s3, %s366
      %p368 = pneg %p148
      %p369 = pneg %p145
      %p370 = pneg %p176
      %p371 = pneg %p173
      %s372 = smul.u32 8, %s24
      %p373 = scmp.lt.s32.totalorder %s23, 1
      %s374 = scalar_select %p373, %s23, 1
      %p375 = scmp.lt.s32.totalorder %s372, 15
      %s376 = scalar_select %p375, %s372, 15
      %s377 = smul.addr %s376, 2
      %s378 = smul.addr %s374, 32
      %s379 = sadd.s32 %s377, %s378
      %s380 = smul.addr %s379, 8
      %s381 = scalar_lea.vmem %s4, %s380
      %p382 = pneg %p204
      %p383 = pneg %p201
      %p384 = scmp.lt.s32.totalorder %s23, 1
      %s385 = scalar_select %p384, %s23, 1
      %p386 = scmp.lt.s32.totalorder %s24, 1
      %s387 = scalar_select %p386, %s24, 1
      %s388 = smul.addr %s385, 2
      %s389 = sadd.s32 %s387, %s388
      %s390 = smul.addr %s389, 8
      %s391 = scalar_lea.vmem %s5, %s390
      %p392 = pneg %p232
      %p393 = pneg %p229
      %p394 = scmp.lt.s32.totalorder %s23, 1
      %s395 = scalar_select %p394, %s23, 1
      %p396 = scmp.lt.s32.totalorder %s24, 1
      %s397 = scalar_select %p396, %s24, 1
      %s398 = smul.addr %s395, 2
      %s399 = sadd.s32 %s397, %s398
      %s400 = smul.addr %s399, 8
      %s401 = scalar_lea.vmem %s6, %s400
      %s402 = smul.u32 8, %s24
      %p403 = scmp.lt.s32.totalorder %s23, 1
      %s404 = scalar_select %p403, %s23, 1
      %p405 = scmp.lt.s32.totalorder %s402, 15
      %s406 = scalar_select %p405, %s402, 15
      %p407 = scmp.lt.s32.totalorder %s25, 0
      %s408 = scalar_select %p407, %s25, 0
      %s409 = smul.addr %s406, 3
      %s410 = sadd.s32 %s408, %s409
      %s411 = smul.addr %s404, 48
      %s412 = sadd.s32 %s410, %s411
      %s413 = smul.addr %s412, 4
      %s414 = scalar_lea.vmem %s0, %s413
      %s415 = smul.u32 8, %s24
      %s416 = smul.u32 8, %s24
      %p417 = scmp.lt.s32.totalorder %s23, 1
      %s418 = scalar_select %p417, %s23, 1
      %p419 = scmp.lt.s32.totalorder %s416, 15
      %s420 = scalar_select %p419, %s416, 15
      %p421 = scmp.lt.s32.totalorder %s25, 0
      %s422 = scalar_select %p421, %s25, 0
      %s423 = smul.addr %s420, 3
      %s424 = sadd.s32 %s422, %s423
      %s425 = smul.addr %s418, 48
      %s426 = sadd.s32 %s424, %s425
      %s427 = smul.addr %s426, 4
      %s428 = scalar_lea.vmem %s1, %s427
      %s429 = smul.u32 8, %s24
      %s430 = smul.u32 8, %s24
      %p431 = scmp.lt.s32.totalorder %s23, 1
      %s432 = scalar_select %p431, %s23, 1
      %p433 = scmp.lt.s32.totalorder %s430, 15
      %s434 = scalar_select %p433, %s430, 15
      %p435 = scmp.lt.s32.totalorder %s25, 0
      %s436 = scalar_select %p435, %s25, 0
      %s437 = smul.addr %s434, 3
      %s438 = sadd.s32 %s436, %s437
      %s439 = smul.addr %s432, 48
      %s440 = sadd.s32 %s438, %s439
      %s441 = smul.addr %s440, 4
      %s442 = scalar_lea.vmem %s2, %s441
      %s443 = smul.u32 8, %s24
      %s444 = smul.u32 16, %s25
      %p445 = scmp.lt.s32.totalorder %s444, 15
      %s446 = scalar_select %p445, %s444, 15
      %s447 = smul.addr %s446, 4
      %s448 = scalar_lea.vmem %s3, %s447
      %s449 = smul.u32 16, %s25
      %s450 = smul.u32 8, %s24
      %p451 = scmp.lt.s32.totalorder %s23, 1
      %s452 = scalar_select %p451, %s23, 1
      %p453 = scmp.lt.s32.totalorder %s450, 15
      %s454 = scalar_select %p453, %s450, 15
      %s455 = smul.addr %s454, 2
      %s456 = smul.addr %s452, 32
      %s457 = sadd.s32 %s455, %s456
      %s458 = smul.addr %s457, 8
      %s459 = scalar_lea.vmem %s4, %s458
      %s460 = smul.u32 8, %s24
      %p461 = scmp.lt.s32.totalorder %s23, 1
      %s462 = scalar_select %p461, %s23, 1
      %p463 = scmp.lt.s32.totalorder %s24, 1
      %s464 = scalar_select %p463, %s24, 1
      %s465 = smul.addr %s462, 2
      %s466 = sadd.s32 %s464, %s465
      %s467 = smul.addr %s466, 8
      %s468 = scalar_lea.vmem %s5, %s467
      %p469 = scmp.lt.s32.totalorder %s23, 1
      %s470 = scalar_select %p469, %s23, 1
      %p471 = scmp.lt.s32.totalorder %s24, 1
      %s472 = scalar_select %p471, %s24, 1
      %s473 = smul.addr %s470, 2
      %s474 = sadd.s32 %s472, %s473
      %s475 = smul.addr %s474, 8
      %s476 = scalar_lea.vmem %s6, %s475
      %p478 = scmp.eq.s32.totalorder %s25, 0
      // Predicated region
      $region37: #{fcn_decode_forward.7} parent=35 // pred_check
        %p479 = pneg %p478
      $region38: #{fcn_decode_forward.7} parent=35 // pred_check_branch
        %481 = sbr.rel (%p479) target = $region40
      $region39: #{fcn_decode_forward.7} parent=35 // pred_region
        %482 = vst [vmem:[%s459] sm:$0xff] 0.0
        %483 = vst [vmem:[%s459 + $0x8] sm:$0xff] 0.0
        %484 = vst [vmem:[%s459 + $0x10] sm:$0xff] 0.0
        %485 = vst [vmem:[%s459 + $0x18] sm:$0xff] 0.0
        %486 = vst [vmem:[%s459 + $0x20] sm:$0xff] 0.0
        %487 = vst [vmem:[%s459 + $0x28] sm:$0xff] 0.0
        %488 = vst [vmem:[%s459 + $0x30] sm:$0xff] 0.0
        %489 = vst [vmem:[%s459 + $0x38] sm:$0xff] 0.0
        %490 = vst [vmem:[%s459 + $0x40] sm:$0xff] 0.0
        %491 = vst [vmem:[%s459 + $0x48] sm:$0xff] 0.0
        %492 = vst [vmem:[%s459 + $0x50] sm:$0xff] 0.0
        %493 = vst [vmem:[%s459 + $0x58] sm:$0xff] 0.0
        %494 = vst [vmem:[%s459 + $0x60] sm:$0xff] 0.0
        %495 = vst [vmem:[%s459 + $0x68] sm:$0xff] 0.0
        %496 = vst [vmem:[%s459 + $0x70] sm:$0xff] 0.0
        %497 = vst [vmem:[%s459 + $0x78] sm:$0xff] 0.0
      $region40: #{fcn_decode_forward.7} parent=35 // pred_fallthru
        _
      %v498 = vld [vmem:[%s414] sm:$0xf]
      %v499 = vld [vmem:[%s414 + $0x4] sm:$0xf]
      %v500 = vld [vmem:[%s414 + $0x8] sm:$0x1]
      %v501 = vld [vmem:[%s414 + $0xc] sm:$0xf]
      %v502 = vld [vmem:[%s414 + $0x10] sm:$0xf]
      %v503 = vld [vmem:[%s414 + $0x14] sm:$0x1]
      %v504 = vld [vmem:[%s414 + $0x18] sm:$0xf]
      %v505 = vld [vmem:[%s414 + $0x1c] sm:$0xf]
      %v506 = vld [vmem:[%s414 + $0x20] sm:$0x1]
      %v507 = vld [vmem:[%s414 + $0x24] sm:$0xf]
      %v508 = vld [vmem:[%s414 + $0x28] sm:$0xf]
      %v509 = vld [vmem:[%s414 + $0x2c] sm:$0x1]
      %v510 = vld [vmem:[%s414 + $0x30] sm:$0xf]
      %v511 = vld [vmem:[%s414 + $0x34] sm:$0xf]
      %v512 = vld [vmem:[%s414 + $0x38] sm:$0x1]
      %v513 = vld [vmem:[%s414 + $0x3c] sm:$0xf]
      %v514 = vld [vmem:[%s414 + $0x40] sm:$0xf]
      %v515 = vld [vmem:[%s414 + $0x44] sm:$0x1]
      %v516 = vld [vmem:[%s414 + $0x48] sm:$0xf]
      %v517 = vld [vmem:[%s414 + $0x4c] sm:$0xf]
      %v518 = vld [vmem:[%s414 + $0x50] sm:$0x1]
      %v519 = vld [vmem:[%s414 + $0x54] sm:$0xf]
      %v520 = vld [vmem:[%s414 + $0x58] sm:$0xf]
      %v521 = vld [vmem:[%s414 + $0x5c] sm:$0x1]
      %v522 = vld [vmem:[%s448] sm:$0xf]
      %v523 = vld [vmem:[%s448 + $0x4] sm:$0xf]
      %v524 = vld [vmem:[%s448 + $0x8] sm:$0xf]
      %v525 = vld [vmem:[%s448 + $0xc] sm:$0xf]
      %v526 = vld [vmem:[%s448 + $0x10] sm:$0xf]
      %v527 = vld [vmem:[%s448 + $0x14] sm:$0xf]
      %v528 = vld [vmem:[%s448 + $0x18] sm:$0xf]
      %v529 = vld [vmem:[%s448 + $0x1c] sm:$0xf]
      %v530 = vld [vmem:[%s448 + $0x20] sm:$0xf]
      %v531 = vld [vmem:[%s448 + $0x24] sm:$0xf]
      %v532 = vld [vmem:[%s448 + $0x28] sm:$0xf]
      %v533 = vld [vmem:[%s448 + $0x2c] sm:$0xf]
      %v534 = vld [vmem:[%s448 + $0x30] sm:$0xf]
      %v535 = vld [vmem:[%s448 + $0x34] sm:$0xf]
      %v536 = vld [vmem:[%s448 + $0x38] sm:$0xf]
      %v537 = vld [vmem:[%s448 + $0x3c] sm:$0xf]
      %vm538 = vsmask.f32 3328
      %vm539 = vsmask.f32 7440
      %vm540 = vmor %vm538, %vm539
      %v542 = vshrl.u32 %v498, 16
      %v544 = vrot.slane %v542, 4
      %v545 = vshll.u32 %v498, 16
      %v547 = vrot.slane %v545, 5
      %v548 = vor.u32 %v544, %v547
      %v549 = vrot.slane %v548, 4
      %v551 = vshll.u32 %v499, 16
      %v553 = vrot.slane %v551, 5
      %v554 = vsel %vm540, %v549, %v553
      %v555 = vshrl.u32 %v499, 16
      %v557 = vrot.slane %v555, 4
      %v558 = vor.u32 %v557, %v553
      %v559 = vrot.slane %v558, 4
      %v561 = vshll.u32 %v500, 16
      %v563 = vrot.slane %v561, 5
      %v564 = vsel %vm540, %v559, %v563
      %v566 = vshrl.u32 %v501, 16
      %v568 = vrot.slane %v566, 4
      %v569 = vshll.u32 %v501, 16
      %v571 = vrot.slane %v569, 5
      %v572 = vor.u32 %v568, %v571
      %v573 = vrot.slane %v572, 4
      %v575 = vshll.u32 %v502, 16
      %v577 = vrot.slane %v575, 5
      %v578 = vsel %vm540, %v573, %v577
      %v579 = vshrl.u32 %v502, 16
      %v581 = vrot.slane %v579, 4
      %v582 = vor.u32 %v581, %v577
      %v583 = vrot.slane %v582, 4
      %v585 = vshll.u32 %v503, 16
      %v587 = vrot.slane %v585, 5
      %v588 = vsel %vm540, %v583, %v587
      %v590 = vshrl.u32 %v504, 16
      %v592 = vrot.slane %v590, 4
      %v593 = vshll.u32 %v504, 16
      %v595 = vrot.slane %v593, 5
      %v596 = vor.u32 %v592, %v595
      %v597 = vrot.slane %v596, 4
      %v599 = vshll.u32 %v505, 16
      %v601 = vrot.slane %v599, 5
      %v602 = vsel %vm540, %v597, %v601
      %v603 = vshrl.u32 %v505, 16
      %v605 = vrot.slane %v603, 4
      %v606 = vor.u32 %v605, %v601
      %v607 = vrot.slane %v606, 4
      %v609 = vshll.u32 %v506, 16
      %v611 = vrot.slane %v609, 5
      %v612 = vsel %vm540, %v607, %v611
      %v614 = vshrl.u32 %v507, 16
      %v616 = vrot.slane %v614, 4
      %v617 = vshll.u32 %v507, 16
      %v619 = vrot.slane %v617, 5
      %v620 = vor.u32 %v616, %v619
      %v621 = vrot.slane %v620, 4
      %v623 = vshll.u32 %v508, 16
      %v625 = vrot.slane %v623, 5
      %v626 = vsel %vm540, %v621, %v625
      %v627 = vshrl.u32 %v508, 16
      %v629 = vrot.slane %v627, 4
      %v630 = vor.u32 %v629, %v625
      %v631 = vrot.slane %v630, 4
      %v633 = vshll.u32 %v509, 16
      %v635 = vrot.slane %v633, 5
      %v636 = vsel %vm540, %v631, %v635
      %v638 = vshrl.u32 %v510, 16
      %v640 = vrot.slane %v638, 4
      %v641 = vshll.u32 %v510, 16
      %v643 = vrot.slane %v641, 5
      %v644 = vor.u32 %v640, %v643
      %v645 = vrot.slane %v644, 4
      %v647 = vshll.u32 %v511, 16
      %v649 = vrot.slane %v647, 5
      %v650 = vsel %vm540, %v645, %v649
      %v651 = vshrl.u32 %v511, 16
      %v653 = vrot.slane %v651, 4
      %v654 = vor.u32 %v653, %v649
      %v655 = vrot.slane %v654, 4
      %v657 = vshll.u32 %v512, 16
      %v659 = vrot.slane %v657, 5
      %v660 = vsel %vm540, %v655, %v659
      %v662 = vshrl.u32 %v513, 16
      %v664 = vrot.slane %v662, 4
      %v665 = vshll.u32 %v513, 16
      %v667 = vrot.slane %v665, 5
      %v668 = vor.u32 %v664, %v667
      %v669 = vrot.slane %v668, 4
      %v671 = vshll.u32 %v514, 16
      %v673 = vrot.slane %v671, 5
      %v674 = vsel %vm540, %v669, %v673
      %v675 = vshrl.u32 %v514, 16
      %v677 = vrot.slane %v675, 4
      %v678 = vor.u32 %v677, %v673
      %v679 = vrot.slane %v678, 4
      %v681 = vshll.u32 %v515, 16
      %v683 = vrot.slane %v681, 5
      %v684 = vsel %vm540, %v679, %v683
      %v686 = vshrl.u32 %v516, 16
      %v688 = vrot.slane %v686, 4
      %v689 = vshll.u32 %v516, 16
      %v691 = vrot.slane %v689, 5
      %v692 = vor.u32 %v688, %v691
      %v693 = vrot.slane %v692, 4
      %v695 = vshll.u32 %v517, 16
      %v697 = vrot.slane %v695, 5
      %v698 = vsel %vm540, %v693, %v697
      %v699 = vshrl.u32 %v517, 16
      %v701 = vrot.slane %v699, 4
      %v702 = vor.u32 %v701, %v697
      %v703 = vrot.slane %v702, 4
      %v705 = vshll.u32 %v518, 16
      %v707 = vrot.slane %v705, 5
      %v708 = vsel %vm540, %v703, %v707
      %v710 = vshrl.u32 %v519, 16
      %v712 = vrot.slane %v710, 4
      %v713 = vshll.u32 %v519, 16
      %v715 = vrot.slane %v713, 5
      %v716 = vor.u32 %v712, %v715
      %v717 = vrot.slane %v716, 4
      %v719 = vshll.u32 %v520, 16
      %v721 = vrot.slane %v719, 5
      %v722 = vsel %vm540, %v717, %v721
      %v723 = vshrl.u32 %v520, 16
      %v725 = vrot.slane %v723, 4
      %v726 = vor.u32 %v725, %v721
      %v727 = vrot.slane %v726, 4
      %v729 = vshll.u32 %v521, 16
      %v731 = vrot.slane %v729, 5
      %v732 = vsel %vm540, %v727, %v731
      %s733 = scalar_lea.vmem %s448, 64
      %v734 = vld [vmem:[%s733] sm:$0xf]
      %v735 = vld [vmem:[%s733 + $0x4] sm:$0xf]
      %v736 = vld [vmem:[%s733 + $0x8] sm:$0xf]
      %v737 = vld [vmem:[%s733 + $0xc] sm:$0xf]
      %v738 = vld [vmem:[%s733 + $0x10] sm:$0xf]
      %v739 = vld [vmem:[%s733 + $0x14] sm:$0xf]
      %v740 = vld [vmem:[%s733 + $0x18] sm:$0xf]
      %v741 = vld [vmem:[%s733 + $0x1c] sm:$0xf]
      %v742 = vld [vmem:[%s733 + $0x20] sm:$0xf]
      %v743 = vld [vmem:[%s733 + $0x24] sm:$0xf]
      %v744 = vld [vmem:[%s733 + $0x28] sm:$0xf]
      %v745 = vld [vmem:[%s733 + $0x2c] sm:$0xf]
      %v746 = vld [vmem:[%s733 + $0x30] sm:$0xf]
      %v747 = vld [vmem:[%s733 + $0x34] sm:$0xf]
      %v748 = vld [vmem:[%s733 + $0x38] sm:$0xf]
      %v749 = vld [vmem:[%s733 + $0x3c] sm:$0xf]
      %v750 = vunpack.c.l.b16 %v554
      %v751 = vunpack.c.l.b16 %v564
      %v752 = vunpack.c.l.b16 %v578
      %v753 = vunpack.c.l.b16 %v588
      %v754 = vunpack.c.l.b16 %v602
      %v755 = vunpack.c.l.b16 %v612
      %v756 = vunpack.c.l.b16 %v626
      %v757 = vunpack.c.l.b16 %v636
      %v758 = vunpack.c.l.b16 %v650
      %v759 = vunpack.c.l.b16 %v660
      %v760 = vunpack.c.l.b16 %v674
      %v761 = vunpack.c.l.b16 %v684
      %v762 = vunpack.c.l.b16 %v698
      %v763 = vunpack.c.l.b16 %v708
      %v764 = vunpack.c.l.b16 %v722
      %v765 = vunpack.c.l.b16 %v732
      %v766 = vpack.c.b16 %v751, %v750
      %v767 = vpack.c.b16 %v753, %v752
      %v768 = vpack.c.b16 %v755, %v754
      %v769 = vpack.c.b16 %v757, %v756
      %v770 = vpack.c.b16 %v759, %v758
      %v771 = vpack.c.b16 %v761, %v760
      %v772 = vpack.c.b16 %v763, %v762
      %v773 = vpack.c.b16 %v765, %v764
      %v798 = vunpack.c.l.b16 %v734
      %v799 = vunpack.c.l.b16 %v735
      %v800 = vunpack.c.l.b16 %v736
      %v801 = vunpack.c.l.b16 %v737
      %v802 = vunpack.c.l.b16 %v738
      %v803 = vunpack.c.l.b16 %v739
      %v804 = vunpack.c.l.b16 %v740
      %v805 = vunpack.c.l.b16 %v741
      %v806 = vunpack.c.l.b16 %v742
      %v807 = vunpack.c.l.b16 %v743
      %v808 = vunpack.c.l.b16 %v744
      %v809 = vunpack.c.l.b16 %v745
      %v810 = vunpack.c.l.b16 %v746
      %v811 = vunpack.c.l.b16 %v747
      %v812 = vunpack.c.l.b16 %v748
      %v813 = vunpack.c.l.b16 %v749
      %v814 = vpack.c.b16 %v799, %v798
      %v815 = vpack.c.b16 %v801, %v800
      %v816 = vpack.c.b16 %v803, %v802
      %v817 = vpack.c.b16 %v805, %v804
      %v818 = vpack.c.b16 %v807, %v806
      %v819 = vpack.c.b16 %v809, %v808
      %v820 = vpack.c.b16 %v811, %v810
      %v821 = vpack.c.b16 %v813, %v812
      %830 = vmatprep.subr.bf16.mxu0 0
      %831 = vmatpush1.bf16.msra.mxu0 %v814
      %832 = vmatprep.subr.bf16.mxu0 0
      %833 = vmatpush1.bf16.msra.mxu0 %v815
      %834 = vmatprep.subr.bf16.mxu0 0
      %835 = vmatpush1.bf16.msra.mxu0 %v816
      %836 = vmatprep.subr.bf16.mxu0 0
      %837 = vmatpush1.bf16.msra.mxu0 %v817
      %838 = vmatprep.subr.bf16.mxu0 0
      %839 = vmatpush1.bf16.msra.mxu0 %v818
      %840 = vmatprep.subr.bf16.mxu0 0
      %841 = vmatpush1.bf16.msra.mxu0 %v819
      %842 = vmatprep.subr.bf16.mxu0 0
      %843 = vmatpush1.bf16.msra.mxu0 %v820
      %844 = vmatprep.subr.bf16.mxu0 0
      %845 = vmatpush1.bf16.msra.mxu0 %v821
      %846 = vmatprep.subr.bf16.mxu0 0
      %847 = vmatpush1.bf16.msra.mxu0 0
      %848 = vmatprep.subr.bf16.mxu0 0
      %849 = vmatpush1.bf16.msra.mxu0 0
      %850 = vmatprep.subr.bf16.mxu0 0
      %851 = vmatpush1.bf16.msra.mxu0 0
      %852 = vmatprep.subr.bf16.mxu0 0
      %853 = vmatpush1.bf16.msra.mxu0 0
      %854 = vmatprep.subr.bf16.mxu0 0
      %855 = vmatpush1.bf16.msra.mxu0 0
      %856 = vmatprep.subr.bf16.mxu0 0
      %857 = vmatpush1.bf16.msra.mxu0 0
      %858 = vmatprep.subr.bf16.mxu0 0
      %859 = vmatpush1.bf16.msra.mxu0 0
      %860 = vmatprep.subr.bf16.mxu0 0
      %861 = vmatpush1.bf16.msra.mxu0 0
      %862 = vmatprep.mubr.bf16.mxu0 0
      %863 = vmatmul.mubr.bf16.gmra.mrb[0].mxu0 %v766
      %v864 = vpop.f32.mrb[0].mxu0
      %v865 = vadd.f32 0.0, %v864
      %v866 = vpop.f32.mrb[0].mxu0
      %v867 = vpop.f32.mrb[0].mxu0
      %v868 = vadd.f32 0.0, %v867
      %v869 = vpop.f32.mrb[0].mxu0
      %870 = vmatprep.mubr.bf16.mxu0 0
      %871 = vmatmul.mubr.bf16.gmra.mrb[0].mxu0 %v767
      %v872 = vpop.f32.mrb[0].mxu0
      %v873 = vadd.f32 0.0, %v872
      %v874 = vpop.f32.mrb[0].mxu0
      %v875 = vpop.f32.mrb[0].mxu0
      %v876 = vadd.f32 0.0, %v875
      %v877 = vpop.f32.mrb[0].mxu0
      %878 = vmatprep.mubr.bf16.mxu0 0
      %879 = vmatmul.mubr.bf16.gmra.mrb[0].mxu0 %v768
      %v880 = vpop.f32.mrb[0].mxu0
      %v881 = vadd.f32 0.0, %v880
      %v882 = vpop.f32.mrb[0].mxu0
      %v883 = vpop.f32.mrb[0].mxu0
      %v884 = vadd.f32 0.0, %v883
      %v885 = vpop.f32.mrb[0].mxu0
      %886 = vmatprep.mubr.bf16.mxu0 0
      %887 = vmatmul.mubr.bf16.gmra.mrb[0].mxu0 %v769
      %v888 = vpop.f32.mrb[0].mxu0
      %v889 = vadd.f32 0.0, %v888
      %v890 = vpop.f32.mrb[0].mxu0
      %v891 = vpop.f32.mrb[0].mxu0
      %v892 = vadd.f32 0.0, %v891
      %v893 = vpop.f32.mrb[0].mxu0
      %894 = vmatprep.mubr.bf16.mxu0 0
      %895 = vmatmul.mubr.bf16.gmra.mrb[0].mxu0 %v770
      %v896 = vpop.f32.mrb[0].mxu0
      %v897 = vadd.f32 0.0, %v896
      %v898 = vpop.f32.mrb[0].mxu0
      %v899 = vpop.f32.mrb[0].mxu0
      %v900 = vadd.f32 0.0, %v899
      %v901 = vpop.f32.mrb[0].mxu0
      %902 = vmatprep.mubr.bf16.mxu0 0
      %903 = vmatmul.mubr.bf16.gmra.mrb[0].mxu0 %v771
      %v904 = vpop.f32.mrb[0].mxu0
      %v905 = vadd.f32 0.0, %v904
      %v906 = vpop.f32.mrb[0].mxu0
      %v907 = vpop.f32.mrb[0].mxu0
      %v908 = vadd.f32 0.0, %v907
      %v909 = vpop.f32.mrb[0].mxu0
      %910 = vmatprep.mubr.bf16.mxu0 0
      %911 = vmatmul.mubr.bf16.gmra.mrb[0].mxu0 %v772
      %v912 = vpop.f32.mrb[0].mxu0
      %v913 = vadd.f32 0.0, %v912
      %v914 = vpop.f32.mrb[0].mxu0
      %v915 = vpop.f32.mrb[0].mxu0
      %v916 = vadd.f32 0.0, %v915
      %v917 = vpop.f32.mrb[0].mxu0
      %918 = vmatprep.mubr.bf16.mxu0 0
      %919 = vmatmul.mubr.bf16.gmra.mrb[0].mxu0 %v773
      %v920 = vpop.f32.mrb[0].mxu0
      %v921 = vadd.f32 0.0, %v920
      %v922 = vpop.f32.mrb[0].mxu0
      %v923 = vpop.f32.mrb[0].mxu0
      %v924 = vadd.f32 0.0, %v923
      %v925 = vpop.f32.mrb[0].mxu0
      %926 = vdwg.mxu0
      %v943 = vunpack.c.l.b16 %v498
      %v944 = vunpack.c.l.b16 %v499
      %v945 = vunpack.c.l.b16 %v501
      %v946 = vunpack.c.l.b16 %v502
      %v947 = vunpack.c.l.b16 %v504
      %v948 = vunpack.c.l.b16 %v505
      %v949 = vunpack.c.l.b16 %v507
      %v950 = vunpack.c.l.b16 %v508
      %v951 = vunpack.c.l.b16 %v510
      %v952 = vunpack.c.l.b16 %v511
      %v953 = vunpack.c.l.b16 %v513
      %v954 = vunpack.c.l.b16 %v514
      %v955 = vunpack.c.l.b16 %v516
      %v956 = vunpack.c.l.b16 %v517
      %v957 = vunpack.c.l.b16 %v519
      %v958 = vunpack.c.l.b16 %v520
      %v959 = vpack.c.b16 %v944, %v943
      %v960 = vpack.c.b16 %v946, %v945
      %v961 = vpack.c.b16 %v948, %v947
      %v962 = vpack.c.b16 %v950, %v949
      %v963 = vpack.c.b16 %v952, %v951
      %v964 = vpack.c.b16 %v954, %v953
      %v965 = vpack.c.b16 %v956, %v955
      %v966 = vpack.c.b16 %v958, %v957
      %v991 = vunpack.c.l.b16 %v522
      %v992 = vunpack.c.l.b16 %v523
      %v993 = vunpack.c.l.b16 %v524
      %v994 = vunpack.c.l.b16 %v525
      %v995 = vunpack.c.l.b16 %v526
      %v996 = vunpack.c.l.b16 %v527
      %v997 = vunpack.c.l.b16 %v528
      %v998 = vunpack.c.l.b16 %v529
      %v999 = vunpack.c.l.b16 %v530
      %v1000 = vunpack.c.l.b16 %v531
      %v1001 = vunpack.c.l.b16 %v532
      %v1002 = vunpack.c.l.b16 %v533
      %v1003 = vunpack.c.l.b16 %v534
      %v1004 = vunpack.c.l.b16 %v535
      %v1005 = vunpack.c.l.b16 %v536
      %v1006 = vunpack.c.l.b16 %v537
      %v1007 = vpack.c.b16 %v992, %v991
      %v1008 = vpack.c.b16 %v994, %v993
      %v1009 = vpack.c.b16 %v996, %v995
      %v1010 = vpack.c.b16 %v998, %v997
      %v1011 = vpack.c.b16 %v1000, %v999
      %v1012 = vpack.c.b16 %v1002, %v1001
      %v1013 = vpack.c.b16 %v1004, %v1003
      %v1014 = vpack.c.b16 %v1006, %v1005
      %1023 = vmatprep.subr.bf16.mxu0 0
      %1024 = vmatpush1.bf16.msra.mxu0 %v1007
      %1025 = vmatprep.subr.bf16.mxu0 0
      %1026 = vmatpush1.bf16.msra.mxu0 %v1008
      %1027 = vmatprep.subr.bf16.mxu0 0
      %1028 = vmatpush1.bf16.msra.mxu0 %v1009
      %1029 = vmatprep.subr.bf16.mxu0 0
      %1030 = vmatpush1.bf16.msra.mxu0 %v1010
      %1031 = vmatprep.subr.bf16.mxu0 0
      %1032 = vmatpush1.bf16.msra.mxu0 %v1011
      %1033 = vmatprep.subr.bf16.mxu0 0
      %1034 = vmatpush1.bf16.msra.mxu0 %v1012
      %1035 = vmatprep.subr.bf16.mxu0 0
      %1036 = vmatpush1.bf16.msra.mxu0 %v1013
      %1037 = vmatprep.subr.bf16.mxu0 0
      %1038 = vmatpush1.bf16.msra.mxu0 %v1014
      %1039 = vmatprep.subr.bf16.mxu0 0
      %1040 = vmatpush1.bf16.msra.mxu0 0
      %1041 = vmatprep.subr.bf16.mxu0 0
      %1042 = vmatpush1.bf16.msra.mxu0 0
      %1043 = vmatprep.subr.bf16.mxu0 0
      %1044 = vmatpush1.bf16.msra.mxu0 0
      %1045 = vmatprep.subr.bf16.mxu0 0
      %1046 = vmatpush1.bf16.msra.mxu0 0
      %1047 = vmatprep.subr.bf16.mxu0 0
      %1048 = vmatpush1.bf16.msra.mxu0 0
      %1049 = vmatprep.subr.bf16.mxu0 0
      %1050 = vmatpush1.bf16.msra.mxu0 0
      %1051 = vmatprep.subr.bf16.mxu0 0
      %1052 = vmatpush1.bf16.msra.mxu0 0
      %1053 = vmatprep.subr.bf16.mxu0 0
      %1054 = vmatpush1.bf16.msra.mxu0 0
      %1055 = vmatprep.mubr.bf16.mxu0 0
      %1056 = vmatmul.mubr.bf16.gmra.mrb[0].mxu0 %v959
      %v1057 = vpop.f32.mrb[0].mxu0
      %v1058 = vadd.f32 %v865, %v1057
      %v1059 = vpop.f32.mrb[0].mxu0
      %v1060 = vpop.f32.mrb[0].mxu0
      %v1061 = vadd.f32 %v868, %v1060
      %v1062 = vpop.f32.mrb[0].mxu0
      %1063 = vmatprep.mubr.bf16.mxu0 0
      %1064 = vmatmul.mubr.bf16.gmra.mrb[0].mxu0 %v960
      %v1065 = vpop.f32.mrb[0].mxu0
      %v1066 = vadd.f32 %v873, %v1065
      %v1067 = vpop.f32.mrb[0].mxu0
      %v1068 = vpop.f32.mrb[0].mxu0
      %v1069 = vadd.f32 %v876, %v1068
      %v1070 = vpop.f32.mrb[0].mxu0
      %1071 = vmatprep.mubr.bf16.mxu0 0
      %1072 = vmatmul.mubr.bf16.gmra.mrb[0].mxu0 %v961
      %v1073 = vpop.f32.mrb[0].mxu0
      %v1074 = vadd.f32 %v881, %v1073
      %v1075 = vpop.f32.mrb[0].mxu0
      %v1076 = vpop.f32.mrb[0].mxu0
      %v1077 = vadd.f32 %v884, %v1076
      %v1078 = vpop.f32.mrb[0].mxu0
      %1079 = vmatprep.mubr.bf16.mxu0 0
      %1080 = vmatmul.mubr.bf16.gmra.mrb[0].mxu0 %v962
      %v1081 = vpop.f32.mrb[0].mxu0
      %v1082 = vadd.f32 %v889, %v1081
      %v1083 = vpop.f32.mrb[0].mxu0
      %v1084 = vpop.f32.mrb[0].mxu0
      %v1085 = vadd.f32 %v892, %v1084
      %v1086 = vpop.f32.mrb[0].mxu0
      %1087 = vmatprep.mubr.bf16.mxu0 0
      %1088 = vmatmul.mubr.bf16.gmra.mrb[0].mxu0 %v963
      %v1089 = vpop.f32.mrb[0].mxu0
      %v1090 = vadd.f32 %v897, %v1089
      %v1091 = vpop.f32.mrb[0].mxu0
      %v1092 = vpop.f32.mrb[0].mxu0
      %v1093 = vadd.f32 %v900, %v1092
      %v1094 = vpop.f32.mrb[0].mxu0
      %1095 = vmatprep.mubr.bf16.mxu0 0
      %1096 = vmatmul.mubr.bf16.gmra.mrb[0].mxu0 %v964
      %v1097 = vpop.f32.mrb[0].mxu0
      %v1098 = vadd.f32 %v905, %v1097
      %v1099 = vpop.f32.mrb[0].mxu0
      %v1100 = vpop.f32.mrb[0].mxu0
      %v1101 = vadd.f32 %v908, %v1100
      %v1102 = vpop.f32.mrb[0].mxu0
      %1103 = vmatprep.mubr.bf16.mxu0 0
      %1104 = vmatmul.mubr.bf16.gmra.mrb[0].mxu0 %v965
      %v1105 = vpop.f32.mrb[0].mxu0
      %v1106 = vadd.f32 %v913, %v1105
      %v1107 = vpop.f32.mrb[0].mxu0
      %v1108 = vpop.f32.mrb[0].mxu0
      %v1109 = vadd.f32 %v916, %v1108
      %v1110 = vpop.f32.mrb[0].mxu0
      %1111 = vmatprep.mubr.bf16.mxu0 0
      %1112 = vmatmul.mubr.bf16.gmra.mrb[0].mxu0 %v966
      %v1113 = vpop.f32.mrb[0].mxu0
      %v1114 = vadd.f32 %v921, %v1113
      %v1115 = vpop.f32.mrb[0].mxu0
      %v1116 = vpop.f32.mrb[0].mxu0
      %v1117 = vadd.f32 %v924, %v1116
      %v1118 = vpop.f32.mrb[0].mxu0
      %1119 = vdwg.mxu0
      %vm1128 = vcmask 1042432
      %vm1129 = vcmask 1046532
      %vm1130 = vmor %vm1128, %vm1129
      %v1131 = vrot.slane %v498, 5
      %v1132 = vrot.slane %v1131, 4
      %v1133 = vrot.slane %v499, 5
      %v1134 = vsel %vm1130, %v1132, %v1133
      %v1135 = vrot.slane %v1133, 4
      %v1136 = vrot.slane %v500, 5
      %v1137 = vsel %vm1130, %v1135, %v1136
      %v1138 = vrot.slane %v501, 5
      %v1139 = vrot.slane %v1138, 4
      %v1140 = vrot.slane %v502, 5
      %v1141 = vsel %vm1130, %v1139, %v1140
      %v1142 = vrot.slane %v1140, 4
      %v1143 = vrot.slane %v503, 5
      %v1144 = vsel %vm1130, %v1142, %v1143
      %v1145 = vrot.slane %v504, 5
      %v1146 = vrot.slane %v1145, 4
      %v1147 = vrot.slane %v505, 5
      %v1148 = vsel %vm1130, %v1146, %v1147
      %v1149 = vrot.slane %v1147, 4
      %v1150 = vrot.slane %v506, 5
      %v1151 = vsel %vm1130, %v1149, %v1150
      %v1152 = vrot.slane %v507, 5
      %v1153 = vrot.slane %v1152, 4
      %v1154 = vrot.slane %v508, 5
      %v1155 = vsel %vm1130, %v1153, %v1154
      %v1156 = vrot.slane %v1154, 4
      %v1157 = vrot.slane %v509, 5
      %v1158 = vsel %vm1130, %v1156, %v1157
      %v1159 = vrot.slane %v510, 5
      %v1160 = vrot.slane %v1159, 4
      %v1161 = vrot.slane %v511, 5
      %v1162 = vsel %vm1130, %v1160, %v1161
      %v1163 = vrot.slane %v1161, 4
      %v1164 = vrot.slane %v512, 5
      %v1165 = vsel %vm1130, %v1163, %v1164
      %v1166 = vrot.slane %v513, 5
      %v1167 = vrot.slane %v1166, 4
      %v1168 = vrot.slane %v514, 5
      %v1169 = vsel %vm1130, %v1167, %v1168
      %v1170 = vrot.slane %v1168, 4
      %v1171 = vrot.slane %v515, 5
      %v1172 = vsel %vm1130, %v1170, %v1171
      %v1173 = vrot.slane %v516, 5
      %v1174 = vrot.slane %v1173, 4
      %v1175 = vrot.slane %v517, 5
      %v1176 = vsel %vm1130, %v1174, %v1175
      %v1177 = vrot.slane %v1175, 4
      %v1178 = vrot.slane %v518, 5
      %v1179 = vsel %vm1130, %v1177, %v1178
      %v1180 = vrot.slane %v519, 5
      %v1181 = vrot.slane %v1180, 4
      %v1182 = vrot.slane %v520, 5
      %v1183 = vsel %vm1130, %v1181, %v1182
      %v1184 = vrot.slane %v1182, 4
      %v1185 = vrot.slane %v521, 5
      %v1186 = vsel %vm1130, %v1184, %v1185
      %s1187 = scalar_lea.vmem %s448, 128
      %v1188 = vld [vmem:[%s1187] sm:$0xf]
      %v1189 = vld [vmem:[%s1187 + $0x4] sm:$0xf]
      %v1190 = vld [vmem:[%s1187 + $0x8] sm:$0xf]
      %v1191 = vld [vmem:[%s1187 + $0xc] sm:$0xf]
      %v1192 = vld [vmem:[%s1187 + $0x10] sm:$0xf]
      %v1193 = vld [vmem:[%s1187 + $0x14] sm:$0xf]
      %v1194 = vld [vmem:[%s1187 + $0x18] sm:$0xf]
      %v1195 = vld [vmem:[%s1187 + $0x1c] sm:$0xf]
      %v1196 = vld [vmem:[%s1187 + $0x20] sm:$0xf]
      %v1197 = vld [vmem:[%s1187 + $0x24] sm:$0xf]
      %v1198 = vld [vmem:[%s1187 + $0x28] sm:$0xf]
      %v1199 = vld [vmem:[%s1187 + $0x2c] sm:$0xf]
      %v1200 = vld [vmem:[%s1187 + $0x30] sm:$0xf]
      %v1201 = vld [vmem:[%s1187 + $0x34] sm:$0xf]
      %v1202 = vld [vmem:[%s1187 + $0x38] sm:$0xf]
      %v1203 = vld [vmem:[%s1187 + $0x3c] sm:$0xf]
      %v1204 = vunpack.c.l.b16 %v1134
      %v1205 = vunpack.c.l.b16 %v1137
      %v1206 = vunpack.c.l.b16 %v1141
      %v1207 = vunpack.c.l.b16 %v1144
      %v1208 = vunpack.c.l.b16 %v1148
      %v1209 = vunpack.c.l.b16 %v1151
      %v1210 = vunpack.c.l.b16 %v1155
      %v1211 = vunpack.c.l.b16 %v1158
      %v1212 = vunpack.c.l.b16 %v1162
      %v1213 = vunpack.c.l.b16 %v1165
      %v1214 = vunpack.c.l.b16 %v1169
      %v1215 = vunpack.c.l.b16 %v1172
      %v1216 = vunpack.c.l.b16 %v1176
      %v1217 = vunpack.c.l.b16 %v1179
      %v1218 = vunpack.c.l.b16 %v1183
      %v1219 = vunpack.c.l.b16 %v1186
      %v1220 = vpack.c.b16 %v1205, %v1204
      %v1221 = vpack.c.b16 %v1207, %v1206
      %v1222 = vpack.c.b16 %v1209, %v1208
      %v1223 = vpack.c.b16 %v1211, %v1210
      %v1224 = vpack.c.b16 %v1213, %v1212
      %v1225 = vpack.c.b16 %v1215, %v1214
      %v1226 = vpack.c.b16 %v1217, %v1216
      %v1227 = vpack.c.b16 %v1219, %v1218
      %v1252 = vunpack.c.l.b16 %v1188
      %v1253 = vunpack.c.l.b16 %v1189
      %v1254 = vunpack.c.l.b16 %v1190
      %v1255 = vunpack.c.l.b16 %v1191
      %v1256 = vunpack.c.l.b16 %v1192
      %v1257 = vunpack.c.l.b16 %v1193
      %v1258 = vunpack.c.l.b16 %v1194
      %v1259 = vunpack.c.l.b16 %v1195
      %v1260 = vunpack.c.l.b16 %v1196
      %v1261 = vunpack.c.l.b16 %v1197
      %v1262 = vunpack.c.l.b16 %v1198
      %v1263 = vunpack.c.l.b16 %v1199
      %v1264 = vunpack.c.l.b16 %v1200
      %v1265 = vunpack.c.l.b16 %v1201
      %v1266 = vunpack.c.l.b16 %v1202
      %v1267 = vunpack.c.l.b16 %v1203
      %v1268 = vpack.c.b16 %v1253, %v1252
      %v1269 = vpack.c.b16 %v1255, %v1254
      %v1270 = vpack.c.b16 %v1257, %v1256
      %v1271 = vpack.c.b16 %v1259, %v1258
      %v1272 = vpack.c.b16 %v1261, %v1260
      %v1273 = vpack.c.b16 %v1263, %v1262
      %v1274 = vpack.c.b16 %v1265, %v1264
      %v1275 = vpack.c.b16 %v1267, %v1266
      %1284 = vmatprep.subr.bf16.mxu0 0
      %1285 = vmatpush1.bf16.msra.mxu0 %v1268
      %1286 = vmatprep.subr.bf16.mxu0 0
      %1287 = vmatpush1.bf16.msra.mxu0 %v1269
      %1288 = vmatprep.subr.bf16.mxu0 0
      %1289 = vmatpush1.bf16.msra.mxu0 %v1270
      %1290 = vmatprep.subr.bf16.mxu0 0
      %1291 = vmatpush1.bf16.msra.mxu0 %v1271
      %1292 = vmatprep.subr.bf16.mxu0 0
      %1293 = vmatpush1.bf16.msra.mxu0 %v1272
      %1294 = vmatprep.subr.bf16.mxu0 0
      %1295 = vmatpush1.bf16.msra.mxu0 %v1273
      %1296 = vmatprep.subr.bf16.mxu0 0
      %1297 = vmatpush1.bf16.msra.mxu0 %v1274
      %1298 = vmatprep.subr.bf16.mxu0 0
      %1299 = vmatpush1.bf16.msra.mxu0 %v1275
      %1300 = vmatprep.subr.bf16.mxu0 0
      %1301 = vmatpush1.bf16.msra.mxu0 0
      %1302 = vmatprep.subr.bf16.mxu0 0
      %1303 = vmatpush1.bf16.msra.mxu0 0
      %1304 = vmatprep.subr.bf16.mxu0 0
      %1305 = vmatpush1.bf16.msra.mxu0 0
      %1306 = vmatprep.subr.bf16.mxu0 0
      %1307 = vmatpush1.bf16.msra.mxu0 0
      %1308 = vmatprep.subr.bf16.mxu0 0
      %1309 = vmatpush1.bf16.msra.mxu0 0
      %1310 = vmatprep.subr.bf16.mxu0 0
      %1311 = vmatpush1.bf16.msra.mxu0 0
      %1312 = vmatprep.subr.bf16.mxu0 0
      %1313 = vmatpush1.bf16.msra.mxu0 0
      %1314 = vmatprep.subr.bf16.mxu0 0
      %1315 = vmatpush1.bf16.msra.mxu0 0
      %1316 = vmatprep.mubr.bf16.mxu0 0
      %1317 = vmatmul.mubr.bf16.gmra.mrb[0].mxu0 %v1220
      %v1318 = vpop.f32.mrb[0].mxu0
      %v1319 = vadd.f32 0.0, %v1318
      %v1320 = vpop.f32.mrb[0].mxu0
      %v1321 = vpop.f32.mrb[0].mxu0
      %v1322 = vadd.f32 0.0, %v1321
      %v1323 = vpop.f32.mrb[0].mxu0
      %1324 = vmatprep.mubr.bf16.mxu0 0
      %1325 = vmatmul.mubr.bf16.gmra.mrb[0].mxu0 %v1221
      %v1326 = vpop.f32.mrb[0].mxu0
      %v1327 = vadd.f32 0.0, %v1326
      %v1328 = vpop.f32.mrb[0].mxu0
      %v1329 = vpop.f32.mrb[0].mxu0
      %v1330 = vadd.f32 0.0, %v1329
      %v1331 = vpop.f32.mrb[0].mxu0
      %1332 = vmatprep.mubr.bf16.mxu0 0
      %1333 = vmatmul.mubr.bf16.gmra.mrb[0].mxu0 %v1222
      %v1334 = vpop.f32.mrb[0].mxu0
      %v1335 = vadd.f32 0.0, %v1334
      %v1336 = vpop.f32.mrb[0].mxu0
      %v1337 = vpop.f32.mrb[0].mxu0
      %v1338 = vadd.f32 0.0, %v1337
      %v1339 = vpop.f32.mrb[0].mxu0
      %1340 = vmatprep.mubr.bf16.mxu0 0
      %1341 = vmatmul.mubr.bf16.gmra.mrb[0].mxu0 %v1223
      %v1342 = vpop.f32.mrb[0].mxu0
      %v1343 = vadd.f32 0.0, %v1342
      %v1344 = vpop.f32.mrb[0].mxu0
      %v1345 = vpop.f32.mrb[0].mxu0
      %v1346 = vadd.f32 0.0, %v1345
      %v1347 = vpop.f32.mrb[0].mxu0
      %1348 = vmatprep.mubr.bf16.mxu0 0
      %1349 = vmatmul.mubr.bf16.gmra.mrb[0].mxu0 %v1224
      %v1350 = vpop.f32.mrb[0].mxu0
      %v1351 = vadd.f32 0.0, %v1350
      %v1352 = vpop.f32.mrb[0].mxu0
      %v1353 = vpop.f32.mrb[0].mxu0
      %v1354 = vadd.f32 0.0, %v1353
      %v1355 = vpop.f32.mrb[0].mxu0
      %1356 = vmatprep.mubr.bf16.mxu0 0
      %1357 = vmatmul.mubr.bf16.gmra.mrb[0].mxu0 %v1225
      %v1358 = vpop.f32.mrb[0].mxu0
      %v1359 = vadd.f32 0.0, %v1358
      %v1360 = vpop.f32.mrb[0].mxu0
      %v1361 = vpop.f32.mrb[0].mxu0
      %v1362 = vadd.f32 0.0, %v1361
      %v1363 = vpop.f32.mrb[0].mxu0
      %1364 = vmatprep.mubr.bf16.mxu0 0
      %1365 = vmatmul.mubr.bf16.gmra.mrb[0].mxu0 %v1226
      %v1366 = vpop.f32.mrb[0].mxu0
      %v1367 = vadd.f32 0.0, %v1366
      %v1368 = vpop.f32.mrb[0].mxu0
      %v1369 = vpop.f32.mrb[0].mxu0
      %v1370 = vadd.f32 0.0, %v1369
      %v1371 = vpop.f32.mrb[0].mxu0
      %1372 = vmatprep.mubr.bf16.mxu0 0
      %1373 = vmatmul.mubr.bf16.gmra.mrb[0].mxu0 %v1227
      %v1374 = vpop.f32.mrb[0].mxu0
      %v1375 = vadd.f32 0.0, %v1374
      %v1376 = vpop.f32.mrb[0].mxu0
      %v1377 = vpop.f32.mrb[0].mxu0
      %v1378 = vadd.f32 0.0, %v1377
      %v1379 = vpop.f32.mrb[0].mxu0
      %1380 = vdwg.mxu0
      %v1381 = vadd.f32 %v1058, %v1319
      %v1382 = vadd.f32 %v1061, %v1322
      %v1383 = vadd.f32 %v1066, %v1327
      %v1384 = vadd.f32 %v1069, %v1330
      %v1385 = vadd.f32 %v1074, %v1335
      %v1386 = vadd.f32 %v1077, %v1338
      %v1387 = vadd.f32 %v1082, %v1343
      %v1388 = vadd.f32 %v1085, %v1346
      %v1389 = vadd.f32 %v1090, %v1351
      %v1390 = vadd.f32 %v1093, %v1354
      %v1391 = vadd.f32 %v1098, %v1359
      %v1392 = vadd.f32 %v1101, %v1362
      %v1393 = vadd.f32 %v1106, %v1367
      %v1394 = vadd.f32 %v1109, %v1370
      %v1395 = vadd.f32 %v1114, %v1375
      %v1396 = vadd.f32 %v1117, %v1378
      %v1397 = vld [vmem:[%s428] sm:$0xf]
      %v1398 = vld [vmem:[%s428 + $0x4] sm:$0xf]
      %v1399 = vld [vmem:[%s428 + $0x8] sm:$0x1]
      %v1400 = vld [vmem:[%s428 + $0xc] sm:$0xf]
      %v1401 = vld [vmem:[%s428 + $0x10] sm:$0xf]
      %v1402 = vld [vmem:[%s428 + $0x14] sm:$0x1]
      %v1403 = vld [vmem:[%s428 + $0x18] sm:$0xf]
      %v1404 = vld [vmem:[%s428 + $0x1c] sm:$0xf]
      %v1405 = vld [vmem:[%s428 + $0x20] sm:$0x1]
      %v1406 = vld [vmem:[%s428 + $0x24] sm:$0xf]
      %v1407 = vld [vmem:[%s428 + $0x28] sm:$0xf]
      %v1408 = vld [vmem:[%s428 + $0x2c] sm:$0x1]
      %v1409 = vld [vmem:[%s428 + $0x30] sm:$0xf]
      %v1410 = vld [vmem:[%s428 + $0x34] sm:$0xf]
      %v1411 = vld [vmem:[%s428 + $0x38] sm:$0x1]
      %v1412 = vld [vmem:[%s428 + $0x3c] sm:$0xf]
      %v1413 = vld [vmem:[%s428 + $0x40] sm:$0xf]
      %v1414 = vld [vmem:[%s428 + $0x44] sm:$0x1]
      %v1415 = vld [vmem:[%s428 + $0x48] sm:$0xf]
      %v1416 = vld [vmem:[%s428 + $0x4c] sm:$0xf]
      %v1417 = vld [vmem:[%s428 + $0x50] sm:$0x1]
      %v1418 = vld [vmem:[%s428 + $0x54] sm:$0xf]
      %v1419 = vld [vmem:[%s428 + $0x58] sm:$0xf]
      %v1420 = vld [vmem:[%s428 + $0x5c] sm:$0x1]
      %s1421 = scalar_lea.vmem %s448, 192
      %v1422 = vld [vmem:[%s1421] sm:$0xf]
      %v1423 = vld [vmem:[%s1421 + $0x4] sm:$0xf]
      %v1424 = vld [vmem:[%s1421 + $0x8] sm:$0xf]
      %v1425 = vld [vmem:[%s1421 + $0xc] sm:$0xf]
      %v1426 = vld [vmem:[%s1421 + $0x10] sm:$0xf]
      %v1427 = vld [vmem:[%s1421 + $0x14] sm:$0xf]
      %v1428 = vld [vmem:[%s1421 + $0x18] sm:$0xf]
      %v1429 = vld [vmem:[%s1421 + $0x1c] sm:$0xf]
      %v1430 = vld [vmem:[%s1421 + $0x20] sm:$0xf]
      %v1431 = vld [vmem:[%s1421 + $0x24] sm:$0xf]
      %v1432 = vld [vmem:[%s1421 + $0x28] sm:$0xf]
      %v1433 = vld [vmem:[%s1421 + $0x2c] sm:$0xf]
      %v1434 = vld [vmem:[%s1421 + $0x30] sm:$0xf]
      %v1435 = vld [vmem:[%s1421 + $0x34] sm:$0xf]
      %v1436 = vld [vmem:[%s1421 + $0x38] sm:$0xf]
      %v1437 = vld [vmem:[%s1421 + $0x3c] sm:$0xf]
      %v1454 = vunpack.c.l.b16 %v1397
      %v1455 = vunpack.c.l.b16 %v1398
      %v1456 = vunpack.c.l.b16 %v1400
      %v1457 = vunpack.c.l.b16 %v1401
      %v1458 = vunpack.c.l.b16 %v1403
      %v1459 = vunpack.c.l.b16 %v1404
      %v1460 = vunpack.c.l.b16 %v1406
      %v1461 = vunpack.c.l.b16 %v1407
      %v1462 = vunpack.c.l.b16 %v1409
      %v1463 = vunpack.c.l.b16 %v1410
      %v1464 = vunpack.c.l.b16 %v1412
      %v1465 = vunpack.c.l.b16 %v1413
      %v1466 = vunpack.c.l.b16 %v1415
      %v1467 = vunpack.c.l.b16 %v1416
      %v1468 = vunpack.c.l.b16 %v1418
      %v1469 = vunpack.c.l.b16 %v1419
      %v1470 = vpack.c.b16 %v1455, %v1454
      %v1471 = vpack.c.b16 %v1457, %v1456
      %v1472 = vpack.c.b16 %v1459, %v1458
      %v1473 = vpack.c.b16 %v1461, %v1460
      %v1474 = vpack.c.b16 %v1463, %v1462
      %v1475 = vpack.c.b16 %v1465, %v1464
      %v1476 = vpack.c.b16 %v1467, %v1466
      %v1477 = vpack.c.b16 %v1469, %v1468
      %v1502 = vunpack.c.l.b16 %v1422
      %v1503 = vunpack.c.l.b16 %v1423
      %v1504 = vunpack.c.l.b16 %v1424
      %v1505 = vunpack.c.l.b16 %v1425
      %v1506 = vunpack.c.l.b16 %v1426
      %v1507 = vunpack.c.l.b16 %v1427
      %v1508 = vunpack.c.l.b16 %v1428
      %v1509 = vunpack.c.l.b16 %v1429
      %v1510 = vunpack.c.l.b16 %v1430
      %v1511 = vunpack.c.l.b16 %v1431
      %v1512 = vunpack.c.l.b16 %v1432
      %v1513 = vunpack.c.l.b16 %v1433
      %v1514 = vunpack.c.l.b16 %v1434
      %v1515 = vunpack.c.l.b16 %v1435
      %v1516 = vunpack.c.l.b16 %v1436
      %v1517 = vunpack.c.l.b16 %v1437
      %v1518 = vpack.c.b16 %v1503, %v1502
      %v1519 = vpack.c.b16 %v1505, %v1504
      %v1520 = vpack.c.b16 %v1507, %v1506
      %v1521 = vpack.c.b16 %v1509, %v1508
      %v1522 = vpack.c.b16 %v1511, %v1510
      %v1523 = vpack.c.b16 %v1513, %v1512
      %v1524 = vpack.c.b16 %v1515, %v1514
      %v1525 = vpack.c.b16 %v1517, %v1516
      %1534 = vmatprep.subr.bf16.mxu0 0
      %1535 = vmatpush1.bf16.msra.mxu0 %v1518
      %1536 = vmatprep.subr.bf16.mxu0 0
      %1537 = vmatpush1.bf16.msra.mxu0 %v1519
      %1538 = vmatprep.subr.bf16.mxu0 0
      %1539 = vmatpush1.bf16.msra.mxu0 %v1520
      %1540 = vmatprep.subr.bf16.mxu0 0
      %1541 = vmatpush1.bf16.msra.mxu0 %v1521
      %1542 = vmatprep.subr.bf16.mxu0 0
      %1543 = vmatpush1.bf16.msra.mxu0 %v1522
      %1544 = vmatprep.subr.bf16.mxu0 0
      %1545 = vmatpush1.bf16.msra.mxu0 %v1523
      %1546 = vmatprep.subr.bf16.mxu0 0
      %1547 = vmatpush1.bf16.msra.mxu0 %v1524
      %1548 = vmatprep.subr.bf16.mxu0 0
      %1549 = vmatpush1.bf16.msra.mxu0 %v1525
      %1550 = vmatprep.subr.bf16.mxu0 0
      %1551 = vmatpush1.bf16.msra.mxu0 0
      %1552 = vmatprep.subr.bf16.mxu0 0
      %1553 = vmatpush1.bf16.msra.mxu0 0
      %1554 = vmatprep.subr.bf16.mxu0 0
      %1555 = vmatpush1.bf16.msra.mxu0 0
      %1556 = vmatprep.subr.bf16.mxu0 0
      %1557 = vmatpush1.bf16.msra.mxu0 0
      %1558 = vmatprep.subr.bf16.mxu0 0
      %1559 = vmatpush1.bf16.msra.mxu0 0
      %1560 = vmatprep.subr.bf16.mxu0 0
      %1561 = vmatpush1.bf16.msra.mxu0 0
      %1562 = vmatprep.subr.bf16.mxu0 0
      %1563 = vmatpush1.bf16.msra.mxu0 0
      %1564 = vmatprep.subr.bf16.mxu0 0
      %1565 = vmatpush1.bf16.msra.mxu0 0
      %1566 = vmatprep.mubr.bf16.mxu0 0
      %1567 = vmatmul.mubr.bf16.gmra.mrb[0].mxu0 %v1470
      %v1568 = vpop.f32.mrb[0].mxu0
      %v1569 = vadd.f32 0.0, %v1568
      %v1570 = vpop.f32.mrb[0].mxu0
      %v1571 = vpop.f32.mrb[0].mxu0
      %v1572 = vadd.f32 0.0, %v1571
      %v1573 = vpop.f32.mrb[0].mxu0
      %1574 = vmatprep.mubr.bf16.mxu0 0
      %1575 = vmatmul.mubr.bf16.gmra.mrb[0].mxu0 %v1471
      %v1576 = vpop.f32.mrb[0].mxu0
      %v1577 = vadd.f32 0.0, %v1576
      %v1578 = vpop.f32.mrb[0].mxu0
      %v1579 = vpop.f32.mrb[0].mxu0
      %v1580 = vadd.f32 0.0, %v1579
      %v1581 = vpop.f32.mrb[0].mxu0
      %1582 = vmatprep.mubr.bf16.mxu0 0
      %1583 = vmatmul.mubr.bf16.gmra.mrb[0].mxu0 %v1472
      %v1584 = vpop.f32.mrb[0].mxu0
      %v1585 = vadd.f32 0.0, %v1584
      %v1586 = vpop.f32.mrb[0].mxu0
      %v1587 = vpop.f32.mrb[0].mxu0
      %v1588 = vadd.f32 0.0, %v1587
      %v1589 = vpop.f32.mrb[0].mxu0
      %1590 = vmatprep.mubr.bf16.mxu0 0
      %1591 = vmatmul.mubr.bf16.gmra.mrb[0].mxu0 %v1473
      %v1592 = vpop.f32.mrb[0].mxu0
      %v1593 = vadd.f32 0.0, %v1592
      %v1594 = vpop.f32.mrb[0].mxu0
      %v1595 = vpop.f32.mrb[0].mxu0
      %v1596 = vadd.f32 0.0, %v1595
      %v1597 = vpop.f32.mrb[0].mxu0
      %1598 = vmatprep.mubr.bf16.mxu0 0
      %1599 = vmatmul.mubr.bf16.gmra.mrb[0].mxu0 %v1474
      %v1600 = vpop.f32.mrb[0].mxu0
      %v1601 = vadd.f32 0.0, %v1600
      %v1602 = vpop.f32.mrb[0].mxu0
      %v1603 = vpop.f32.mrb[0].mxu0
      %v1604 = vadd.f32 0.0, %v1603
      %v1605 = vpop.f32.mrb[0].mxu0
      %1606 = vmatprep.mubr.bf16.mxu0 0
      %1607 = vmatmul.mubr.bf16.gmra.mrb[0].mxu0 %v1475
      %v1608 = vpop.f32.mrb[0].mxu0
      %v1609 = vadd.f32 0.0, %v1608
      %v1610 = vpop.f32.mrb[0].mxu0
      %v1611 = vpop.f32.mrb[0].mxu0
      %v1612 = vadd.f32 0.0, %v1611
      %v1613 = vpop.f32.mrb[0].mxu0
      %1614 = vmatprep.mubr.bf16.mxu0 0
      %1615 = vmatmul.mubr.bf16.gmra.mrb[0].mxu0 %v1476
      %v1616 = vpop.f32.mrb[0].mxu0
      %v1617 = vadd.f32 0.0, %v1616
      %v1618 = vpop.f32.mrb[0].mxu0
      %v1619 = vpop.f32.mrb[0].mxu0
      %v1620 = vadd.f32 0.0, %v1619
      %v1621 = vpop.f32.mrb[0].mxu0
      %1622 = vmatprep.mubr.bf16.mxu0 0
      %1623 = vmatmul.mubr.bf16.gmra.mrb[0].mxu0 %v1477
      %v1624 = vpop.f32.mrb[0].mxu0
      %v1625 = vadd.f32 0.0, %v1624
      %v1626 = vpop.f32.mrb[0].mxu0
      %v1627 = vpop.f32.mrb[0].mxu0
      %v1628 = vadd.f32 0.0, %v1627
      %v1629 = vpop.f32.mrb[0].mxu0
      %1630 = vdwg.mxu0
      %v1631 = vadd.f32 %v1381, %v1569
      %v1632 = vadd.f32 %v1382, %v1572
      %v1633 = vadd.f32 %v1383, %v1577
      %v1634 = vadd.f32 %v1384, %v1580
      %v1635 = vadd.f32 %v1385, %v1585
      %v1636 = vadd.f32 %v1386, %v1588
      %v1637 = vadd.f32 %v1387, %v1593
      %v1638 = vadd.f32 %v1388, %v1596
      %v1639 = vadd.f32 %v1389, %v1601
      %v1640 = vadd.f32 %v1390, %v1604
      %v1641 = vadd.f32 %v1391, %v1609
      %v1642 = vadd.f32 %v1392, %v1612
      %v1643 = vadd.f32 %v1393, %v1617
      %v1644 = vadd.f32 %v1394, %v1620
      %v1645 = vadd.f32 %v1395, %v1625
      %v1646 = vadd.f32 %v1396, %v1628
      %v1648 = vshrl.u32 %v1397, 16
      %v1650 = vrot.slane %v1648, 4
      %v1651 = vshll.u32 %v1397, 16
      %v1653 = vrot.slane %v1651, 5
      %v1654 = vor.u32 %v1650, %v1653
      %v1655 = vrot.slane %v1654, 4
      %v1657 = vshll.u32 %v1398, 16
      %v1659 = vrot.slane %v1657, 5
      %v1660 = vsel %vm540, %v1655, %v1659
      %v1661 = vshrl.u32 %v1398, 16
      %v1663 = vrot.slane %v1661, 4
      %v1664 = vor.u32 %v1663, %v1659
      %v1665 = vrot.slane %v1664, 4
      %v1667 = vshll.u32 %v1399, 16
      %v1669 = vrot.slane %v1667, 5
      %v1670 = vsel %vm540, %v1665, %v1669
      %v1672 = vshrl.u32 %v1400, 16
      %v1674 = vrot.slane %v1672, 4
      %v1675 = vshll.u32 %v1400, 16
      %v1677 = vrot.slane %v1675, 5
      %v1678 = vor.u32 %v1674, %v1677
      %v1679 = vrot.slane %v1678, 4
      %v1681 = vshll.u32 %v1401, 16
      %v1683 = vrot.slane %v1681, 5
      %v1684 = vsel %vm540, %v1679, %v1683
      %v1685 = vshrl.u32 %v1401, 16
      %v1687 = vrot.slane %v1685, 4
      %v1688 = vor.u32 %v1687, %v1683
      %v1689 = vrot.slane %v1688, 4
      %v1691 = vshll.u32 %v1402, 16
      %v1693 = vrot.slane %v1691, 5
      %v1694 = vsel %vm540, %v1689, %v1693
      %v1696 = vshrl.u32 %v1403, 16
      %v1698 = vrot.slane %v1696, 4
      %v1699 = vshll.u32 %v1403, 16
      %v1701 = vrot.slane %v1699, 5
      %v1702 = vor.u32 %v1698, %v1701
      %v1703 = vrot.slane %v1702, 4
      %v1705 = vshll.u32 %v1404, 16
      %v1707 = vrot.slane %v1705, 5
      %v1708 = vsel %vm540, %v1703, %v1707
      %v1709 = vshrl.u32 %v1404, 16
      %v1711 = vrot.slane %v1709, 4
      %v1712 = vor.u32 %v1711, %v1707
      %v1713 = vrot.slane %v1712, 4
      %v1715 = vshll.u32 %v1405, 16
      %v1717 = vrot.slane %v1715, 5
      %v1718 = vsel %vm540, %v1713, %v1717
      %v1720 = vshrl.u32 %v1406, 16
      %v1722 = vrot.slane %v1720, 4
      %v1723 = vshll.u32 %v1406, 16
      %v1725 = vrot.slane %v1723, 5
      %v1726 = vor.u32 %v1722, %v1725
      %v1727 = vrot.slane %v1726, 4
      %v1729 = vshll.u32 %v1407, 16
      %v1731 = vrot.slane %v1729, 5
      %v1732 = vsel %vm540, %v1727, %v1731
      %v1733 = vshrl.u32 %v1407, 16
      %v1735 = vrot.slane %v1733, 4
      %v1736 = vor.u32 %v1735, %v1731
      %v1737 = vrot.slane %v1736, 4
      %v1739 = vshll.u32 %v1408, 16
      %v1741 = vrot.slane %v1739, 5
      %v1742 = vsel %vm540, %v1737, %v1741
      %v1744 = vshrl.u32 %v1409, 16
      %v1746 = vrot.slane %v1744, 4
      %v1747 = vshll.u32 %v1409, 16
      %v1749 = vrot.slane %v1747, 5
      %v1750 = vor.u32 %v1746, %v1749
      %v1751 = vrot.slane %v1750, 4
      %v1753 = vshll.u32 %v1410, 16
      %v1755 = vrot.slane %v1753, 5
      %v1756 = vsel %vm540, %v1751, %v1755
      %v1757 = vshrl.u32 %v1410, 16
      %v1759 = vrot.slane %v1757, 4
      %v1760 = vor.u32 %v1759, %v1755
      %v1761 = vrot.slane %v1760, 4
      %v1763 = vshll.u32 %v1411, 16
      %v1765 = vrot.slane %v1763, 5
      %v1766 = vsel %vm540, %v1761, %v1765
      %v1768 = vshrl.u32 %v1412, 16
      %v1770 = vrot.slane %v1768, 4
      %v1771 = vshll.u32 %v1412, 16
      %v1773 = vrot.slane %v1771, 5
      %v1774 = vor.u32 %v1770, %v1773
      %v1775 = vrot.slane %v1774, 4
      %v1777 = vshll.u32 %v1413, 16
      %v1779 = vrot.slane %v1777, 5
      %v1780 = vsel %vm540, %v1775, %v1779
      %v1781 = vshrl.u32 %v1413, 16
      %v1783 = vrot.slane %v1781, 4
      %v1784 = vor.u32 %v1783, %v1779
      %v1785 = vrot.slane %v1784, 4
      %v1787 = vshll.u32 %v1414, 16
      %v1789 = vrot.slane %v1787, 5
      %v1790 = vsel %vm540, %v1785, %v1789
      %v1792 = vshrl.u32 %v1415, 16
      %v1794 = vrot.slane %v1792, 4
      %v1795 = vshll.u32 %v1415, 16
      %v1797 = vrot.slane %v1795, 5
      %v1798 = vor.u32 %v1794, %v1797
      %v1799 = vrot.slane %v1798, 4
      %v1801 = vshll.u32 %v1416, 16
      %v1803 = vrot.slane %v1801, 5
      %v1804 = vsel %vm540, %v1799, %v1803
      %v1805 = vshrl.u32 %v1416, 16
      %v1807 = vrot.slane %v1805, 4
      %v1808 = vor.u32 %v1807, %v1803
      %v1809 = vrot.slane %v1808, 4
      %v1811 = vshll.u32 %v1417, 16
      %v1813 = vrot.slane %v1811, 5
      %v1814 = vsel %vm540, %v1809, %v1813
      %v1816 = vshrl.u32 %v1418, 16
      %v1818 = vrot.slane %v1816, 4
      %v1819 = vshll.u32 %v1418, 16
      %v1821 = vrot.slane %v1819, 5
      %v1822 = vor.u32 %v1818, %v1821
      %v1823 = vrot.slane %v1822, 4
      %v1825 = vshll.u32 %v1419, 16
      %v1827 = vrot.slane %v1825, 5
      %v1828 = vsel %vm540, %v1823, %v1827
      %v1829 = vshrl.u32 %v1419, 16
      %v1831 = vrot.slane %v1829, 4
      %v1832 = vor.u32 %v1831, %v1827
      %v1833 = vrot.slane %v1832, 4
      %v1835 = vshll.u32 %v1420, 16
      %v1837 = vrot.slane %v1835, 5
      %v1838 = vsel %vm540, %v1833, %v1837
      %s1839 = scalar_lea.vmem %s448, 256
      %v1840 = vld [vmem:[%s1839] sm:$0xf]
      %v1841 = vld [vmem:[%s1839 + $0x4] sm:$0xf]
      %v1842 = vld [vmem:[%s1839 + $0x8] sm:$0xf]
      %v1843 = vld [vmem:[%s1839 + $0xc] sm:$0xf]
      %v1844 = vld [vmem:[%s1839 + $0x10] sm:$0xf]
      %v1845 = vld [vmem:[%s1839 + $0x14] sm:$0xf]
      %v1846 = vld [vmem:[%s1839 + $0x18] sm:$0xf]
      %v1847 = vld [vmem:[%s1839 + $0x1c] sm:$0xf]
      %v1848 = vld [vmem:[%s1839 + $0x20] sm:$0xf]
      %v1849 = vld [vmem:[%s1839 + $0x24] sm:$0xf]
      %v1850 = vld [vmem:[%s1839 + $0x28] sm:$0xf]
      %v1851 = vld [vmem:[%s1839 + $0x2c] sm:$0xf]
      %v1852 = vld [vmem:[%s1839 + $0x30] sm:$0xf]
      %v1853 = vld [vmem:[%s1839 + $0x34] sm:$0xf]
      %v1854 = vld [vmem:[%s1839 + $0x38] sm:$0xf]
      %v1855 = vld [vmem:[%s1839 + $0x3c] sm:$0xf]
      %v1856 = vunpack.c.l.b16 %v1660
      %v1857 = vunpack.c.l.b16 %v1670
      %v1858 = vunpack.c.l.b16 %v1684
      %v1859 = vunpack.c.l.b16 %v1694
      %v1860 = vunpack.c.l.b16 %v1708
      %v1861 = vunpack.c.l.b16 %v1718
      %v1862 = vunpack.c.l.b16 %v1732
      %v1863 = vunpack.c.l.b16 %v1742
      %v1864 = vunpack.c.l.b16 %v1756
      %v1865 = vunpack.c.l.b16 %v1766
      %v1866 = vunpack.c.l.b16 %v1780
      %v1867 = vunpack.c.l.b16 %v1790
      %v1868 = vunpack.c.l.b16 %v1804
      %v1869 = vunpack.c.l.b16 %v1814
      %v1870 = vunpack.c.l.b16 %v1828
      %v1871 = vunpack.c.l.b16 %v1838
      %v1872 = vpack.c.b16 %v1857, %v1856
      %v1873 = vpack.c.b16 %v1859, %v1858
      %v1874 = vpack.c.b16 %v1861, %v1860
      %v1875 = vpack.c.b16 %v1863, %v1862
      %v1876 = vpack.c.b16 %v1865, %v1864
      %v1877 = vpack.c.b16 %v1867, %v1866
      %v1878 = vpack.c.b16 %v1869, %v1868
      %v1879 = vpack.c.b16 %v1871, %v1870
      %v1904 = vunpack.c.l.b16 %v1840
      %v1905 = vunpack.c.l.b16 %v1841
      %v1906 = vunpack.c.l.b16 %v1842
      %v1907 = vunpack.c.l.b16 %v1843
      %v1908 = vunpack.c.l.b16 %v1844
      %v1909 = vunpack.c.l.b16 %v1845
      %v1910 = vunpack.c.l.b16 %v1846
      %v1911 = vunpack.c.l.b16 %v1847
      %v1912 = vunpack.c.l.b16 %v1848
      %v1913 = vunpack.c.l.b16 %v1849
      %v1914 = vunpack.c.l.b16 %v1850
      %v1915 = vunpack.c.l.b16 %v1851
      %v1916 = vunpack.c.l.b16 %v1852
      %v1917 = vunpack.c.l.b16 %v1853
      %v1918 = vunpack.c.l.b16 %v1854
      %v1919 = vunpack.c.l.b16 %v1855
      %v1920 = vpack.c.b16 %v1905, %v1904
      %v1921 = vpack.c.b16 %v1907, %v1906
      %v1922 = vpack.c.b16 %v1909, %v1908
      %v1923 = vpack.c.b16 %v1911, %v1910
      %v1924 = vpack.c.b16 %v1913, %v1912
      %v1925 = vpack.c.b16 %v1915, %v1914
      %v1926 = vpack.c.b16 %v1917, %v1916
      %v1927 = vpack.c.b16 %v1919, %v1918
      %1936 = vmatprep.subr.bf16.mxu0 0
      %1937 = vmatpush1.bf16.msra.mxu0 %v1920
      %1938 = vmatprep.subr.bf16.mxu0 0
      %1939 = vmatpush1.bf16.msra.mxu0 %v1921
      %1940 = vmatprep.subr.bf16.mxu0 0
      %1941 = vmatpush1.bf16.msra.mxu0 %v1922
      %1942 = vmatprep.subr.bf16.mxu0 0
      %1943 = vmatpush1.bf16.msra.mxu0 %v1923
      %1944 = vmatprep.subr.bf16.mxu0 0
      %1945 = vmatpush1.bf16.msra.mxu0 %v1924
      %1946 = vmatprep.subr.bf16.mxu0 0
      %1947 = vmatpush1.bf16.msra.mxu0 %v1925
      %1948 = vmatprep.subr.bf16.mxu0 0
      %1949 = vmatpush1.bf16.msra.mxu0 %v1926
      %1950 = vmatprep.subr.bf16.mxu0 0
      %1951 = vmatpush1.bf16.msra.mxu0 %v1927
      %1952 = vmatprep.subr.bf16.mxu0 0
      %1953 = vmatpush1.bf16.msra.mxu0 0
      %1954 = vmatprep.subr.bf16.mxu0 0
      %1955 = vmatpush1.bf16.msra.mxu0 0
      %1956 = vmatprep.subr.bf16.mxu0 0
      %1957 = vmatpush1.bf16.msra.mxu0 0
      %1958 = vmatprep.subr.bf16.mxu0 0
      %1959 = vmatpush1.bf16.msra.mxu0 0
      %1960 = vmatprep.subr.bf16.mxu0 0
      %1961 = vmatpush1.bf16.msra.mxu0 0
      %1962 = vmatprep.subr.bf16.mxu0 0
      %1963 = vmatpush1.bf16.msra.mxu0 0
      %1964 = vmatprep.subr.bf16.mxu0 0
      %1965 = vmatpush1.bf16.msra.mxu0 0
      %1966 = vmatprep.subr.bf16.mxu0 0
      %1967 = vmatpush1.bf16.msra.mxu0 0
      %1968 = vmatprep.mubr.bf16.mxu0 0
      %1969 = vmatmul.mubr.bf16.gmra.mrb[0].mxu0 %v1872
      %v1970 = vpop.f32.mrb[0].mxu0
      %v1971 = vadd.f32 0.0, %v1970
      %v1972 = vpop.f32.mrb[0].mxu0
      %v1973 = vpop.f32.mrb[0].mxu0
      %v1974 = vadd.f32 0.0, %v1973
      %v1975 = vpop.f32.mrb[0].mxu0
      %1976 = vmatprep.mubr.bf16.mxu0 0
      %1977 = vmatmul.mubr.bf16.gmra.mrb[0].mxu0 %v1873
      %v1978 = vpop.f32.mrb[0].mxu0
      %v1979 = vadd.f32 0.0, %v1978
      %v1980 = vpop.f32.mrb[0].mxu0
      %v1981 = vpop.f32.mrb[0].mxu0
      %v1982 = vadd.f32 0.0, %v1981
      %v1983 = vpop.f32.mrb[0].mxu0
      %1984 = vmatprep.mubr.bf16.mxu0 0
      %1985 = vmatmul.mubr.bf16.gmra.mrb[0].mxu0 %v1874
      %v1986 = vpop.f32.mrb[0].mxu0
      %v1987 = vadd.f32 0.0, %v1986
      %v1988 = vpop.f32.mrb[0].mxu0
      %v1989 = vpop.f32.mrb[0].mxu0
      %v1990 = vadd.f32 0.0, %v1989
      %v1991 = vpop.f32.mrb[0].mxu0
      %1992 = vmatprep.mubr.bf16.mxu0 0
      %1993 = vmatmul.mubr.bf16.gmra.mrb[0].mxu0 %v1875
      %v1994 = vpop.f32.mrb[0].mxu0
      %v1995 = vadd.f32 0.0, %v1994
      %v1996 = vpop.f32.mrb[0].mxu0
      %v1997 = vpop.f32.mrb[0].mxu0
      %v1998 = vadd.f32 0.0, %v1997
      %v1999 = vpop.f32.mrb[0].mxu0
      %2000 = vmatprep.mubr.bf16.mxu0 0
      %2001 = vmatmul.mubr.bf16.gmra.mrb[0].mxu0 %v1876
      %v2002 = vpop.f32.mrb[0].mxu0
      %v2003 = vadd.f32 0.0, %v2002
      %v2004 = vpop.f32.mrb[0].mxu0
      %v2005 = vpop.f32.mrb[0].mxu0
      %v2006 = vadd.f32 0.0, %v2005
      %v2007 = vpop.f32.mrb[0].mxu0
      %2008 = vmatprep.mubr.bf16.mxu0 0
      %2009 = vmatmul.mubr.bf16.gmra.mrb[0].mxu0 %v1877
      %v2010 = vpop.f32.mrb[0].mxu0
      %v2011 = vadd.f32 0.0, %v2010
      %v2012 = vpop.f32.mrb[0].mxu0
      %v2013 = vpop.f32.mrb[0].mxu0
      %v2014 = vadd.f32 0.0, %v2013
      %v2015 = vpop.f32.mrb[0].mxu0
      %2016 = vmatprep.mubr.bf16.mxu0 0
      %2017 = vmatmul.mubr.bf16.gmra.mrb[0].mxu0 %v1878
      %v2018 = vpop.f32.mrb[0].mxu0
      %v2019 = vadd.f32 0.0, %v2018
      %v2020 = vpop.f32.mrb[0].mxu0
      %v2021 = vpop.f32.mrb[0].mxu0
      %v2022 = vadd.f32 0.0, %v2021
      %v2023 = vpop.f32.mrb[0].mxu0
      %2024 = vmatprep.mubr.bf16.mxu0 0
      %2025 = vmatmul.mubr.bf16.gmra.mrb[0].mxu0 %v1879
      %v2026 = vpop.f32.mrb[0].mxu0
      %v2027 = vadd.f32 0.0, %v2026
      %v2028 = vpop.f32.mrb[0].mxu0
      %v2029 = vpop.f32.mrb[0].mxu0
      %v2030 = vadd.f32 0.0, %v2029
      %v2031 = vpop.f32.mrb[0].mxu0
      %2032 = vdwg.mxu0
      %v2033 = vadd.f32 %v1631, %v1971
      %v2034 = vadd.f32 %v1632, %v1974
      %v2035 = vadd.f32 %v1633, %v1979
      %v2036 = vadd.f32 %v1634, %v1982
      %v2037 = vadd.f32 %v1635, %v1987
      %v2038 = vadd.f32 %v1636, %v1990
      %v2039 = vadd.f32 %v1637, %v1995
      %v2040 = vadd.f32 %v1638, %v1998
      %v2041 = vadd.f32 %v1639, %v2003
      %v2042 = vadd.f32 %v1640, %v2006
      %v2043 = vadd.f32 %v1641, %v2011
      %v2044 = vadd.f32 %v1642, %v2014
      %v2045 = vadd.f32 %v1643, %v2019
      %v2046 = vadd.f32 %v1644, %v2022
      %v2047 = vadd.f32 %v1645, %v2027
      %v2048 = vadd.f32 %v1646, %v2030
      %v2057 = vrot.slane %v1397, 5
      %v2058 = vrot.slane %v2057, 4
      %v2059 = vrot.slane %v1398, 5
      %v2060 = vsel %vm1130, %v2058, %v2059
      %v2061 = vrot.slane %v2059, 4
      %v2062 = vrot.slane %v1399, 5
      %v2063 = vsel %vm1130, %v2061, %v2062
      %v2064 = vrot.slane %v1400, 5
      %v2065 = vrot.slane %v2064, 4
      %v2066 = vrot.slane %v1401, 5
      %v2067 = vsel %vm1130, %v2065, %v2066
      %v2068 = vrot.slane %v2066, 4
      %v2069 = vrot.slane %v1402, 5
      %v2070 = vsel %vm1130, %v2068, %v2069
      %v2071 = vrot.slane %v1403, 5
      %v2072 = vrot.slane %v2071, 4
      %v2073 = vrot.slane %v1404, 5
      %v2074 = vsel %vm1130, %v2072, %v2073
      %v2075 = vrot.slane %v2073, 4
      %v2076 = vrot.slane %v1405, 5
      %v2077 = vsel %vm1130, %v2075, %v2076
      %v2078 = vrot.slane %v1406, 5
      %v2079 = vrot.slane %v2078, 4
      %v2080 = vrot.slane %v1407, 5
      %v2081 = vsel %vm1130, %v2079, %v2080
      %v2082 = vrot.slane %v2080, 4
      %v2083 = vrot.slane %v1408, 5
      %v2084 = vsel %vm1130, %v2082, %v2083
      %v2085 = vrot.slane %v1409, 5
      %v2086 = vrot.slane %v2085, 4
      %v2087 = vrot.slane %v1410, 5
      %v2088 = vsel %vm1130, %v2086, %v2087
      %v2089 = vrot.slane %v2087, 4
      %v2090 = vrot.slane %v1411, 5
      %v2091 = vsel %vm1130, %v2089, %v2090
      %v2092 = vrot.slane %v1412, 5
      %v2093 = vrot.slane %v2092, 4
      %v2094 = vrot.slane %v1413, 5
      %v2095 = vsel %vm1130, %v2093, %v2094
      %v2096 = vrot.slane %v2094, 4
      %v2097 = vrot.slane %v1414, 5
      %v2098 = vsel %vm1130, %v2096, %v2097
      %v2099 = vrot.slane %v1415, 5
      %v2100 = vrot.slane %v2099, 4
      %v2101 = vrot.slane %v1416, 5
      %v2102 = vsel %vm1130, %v2100, %v2101
      %v2103 = vrot.slane %v2101, 4
      %v2104 = vrot.slane %v1417, 5
      %v2105 = vsel %vm1130, %v2103, %v2104
      %v2106 = vrot.slane %v1418, 5
      %v2107 = vrot.slane %v2106, 4
      %v2108 = vrot.slane %v1419, 5
      %v2109 = vsel %vm1130, %v2107, %v2108
      %v2110 = vrot.slane %v2108, 4
      %v2111 = vrot.slane %v1420, 5
      %v2112 = vsel %vm1130, %v2110, %v2111
      %s2113 = scalar_lea.vmem %s448, 320
      %v2114 = vld [vmem:[%s2113] sm:$0xf]
      %v2115 = vld [vmem:[%s2113 + $0x4] sm:$0xf]
      %v2116 = vld [vmem:[%s2113 + $0x8] sm:$0xf]
      %v2117 = vld [vmem:[%s2113 + $0xc] sm:$0xf]
      %v2118 = vld [vmem:[%s2113 + $0x10] sm:$0xf]
      %v2119 = vld [vmem:[%s2113 + $0x14] sm:$0xf]
      %v2120 = vld [vmem:[%s2113 + $0x18] sm:$0xf]
      %v2121 = vld [vmem:[%s2113 + $0x1c] sm:$0xf]
      %v2122 = vld [vmem:[%s2113 + $0x20] sm:$0xf]
      %v2123 = vld [vmem:[%s2113 + $0x24] sm:$0xf]
      %v2124 = vld [vmem:[%s2113 + $0x28] sm:$0xf]
      %v2125 = vld [vmem:[%s2113 + $0x2c] sm:$0xf]
      %v2126 = vld [vmem:[%s2113 + $0x30] sm:$0xf]
      %v2127 = vld [vmem:[%s2113 + $0x34] sm:$0xf]
      %v2128 = vld [vmem:[%s2113 + $0x38] sm:$0xf]
      %v2129 = vld [vmem:[%s2113 + $0x3c] sm:$0xf]
      %v2130 = vunpack.c.l.b16 %v2060
      %v2131 = vunpack.c.l.b16 %v2063
      %v2132 = vunpack.c.l.b16 %v2067
      %v2133 = vunpack.c.l.b16 %v2070
      %v2134 = vunpack.c.l.b16 %v2074
      %v2135 = vunpack.c.l.b16 %v2077
      %v2136 = vunpack.c.l.b16 %v2081
      %v2137 = vunpack.c.l.b16 %v2084
      %v2138 = vunpack.c.l.b16 %v2088
      %v2139 = vunpack.c.l.b16 %v2091
      %v2140 = vunpack.c.l.b16 %v2095
      %v2141 = vunpack.c.l.b16 %v2098
      %v2142 = vunpack.c.l.b16 %v2102
      %v2143 = vunpack.c.l.b16 %v2105
      %v2144 = vunpack.c.l.b16 %v2109
      %v2145 = vunpack.c.l.b16 %v2112
      %v2146 = vpack.c.b16 %v2131, %v2130
      %v2147 = vpack.c.b16 %v2133, %v2132
      %v2148 = vpack.c.b16 %v2135, %v2134
      %v2149 = vpack.c.b16 %v2137, %v2136
      %v2150 = vpack.c.b16 %v2139, %v2138
      %v2151 = vpack.c.b16 %v2141, %v2140
      %v2152 = vpack.c.b16 %v2143, %v2142
      %v2153 = vpack.c.b16 %v2145, %v2144
      %v2178 = vunpack.c.l.b16 %v2114
      %v2179 = vunpack.c.l.b16 %v2115
      %v2180 = vunpack.c.l.b16 %v2116
      %v2181 = vunpack.c.l.b16 %v2117
      %v2182 = vunpack.c.l.b16 %v2118
      %v2183 = vunpack.c.l.b16 %v2119
      %v2184 = vunpack.c.l.b16 %v2120
      %v2185 = vunpack.c.l.b16 %v2121
      %v2186 = vunpack.c.l.b16 %v2122
      %v2187 = vunpack.c.l.b16 %v2123
      %v2188 = vunpack.c.l.b16 %v2124
      %v2189 = vunpack.c.l.b16 %v2125
      %v2190 = vunpack.c.l.b16 %v2126
      %v2191 = vunpack.c.l.b16 %v2127
      %v2192 = vunpack.c.l.b16 %v2128
      %v2193 = vunpack.c.l.b16 %v2129
      %v2194 = vpack.c.b16 %v2179, %v2178
      %v2195 = vpack.c.b16 %v2181, %v2180
      %v2196 = vpack.c.b16 %v2183, %v2182
      %v2197 = vpack.c.b16 %v2185, %v2184
      %v2198 = vpack.c.b16 %v2187, %v2186
      %v2199 = vpack.c.b16 %v2189, %v2188
      %v2200 = vpack.c.b16 %v2191, %v2190
      %v2201 = vpack.c.b16 %v2193, %v2192
      %2210 = vmatprep.subr.bf16.mxu0 0
      %2211 = vmatpush1.bf16.msra.mxu0 %v2194
      %2212 = vmatprep.subr.bf16.mxu0 0
      %2213 = vmatpush1.bf16.msra.mxu0 %v2195
      %2214 = vmatprep.subr.bf16.mxu0 0
      %2215 = vmatpush1.bf16.msra.mxu0 %v2196
      %2216 = vmatprep.subr.bf16.mxu0 0
      %2217 = vmatpush1.bf16.msra.mxu0 %v2197
      %2218 = vmatprep.subr.bf16.mxu0 0
      %2219 = vmatpush1.bf16.msra.mxu0 %v2198
      %2220 = vmatprep.subr.bf16.mxu0 0
      %2221 = vmatpush1.bf16.msra.mxu0 %v2199
      %2222 = vmatprep.subr.bf16.mxu0 0
      %2223 = vmatpush1.bf16.msra.mxu0 %v2200
      %2224 = vmatprep.subr.bf16.mxu0 0
      %2225 = vmatpush1.bf16.msra.mxu0 %v2201
      %2226 = vmatprep.subr.bf16.mxu0 0
      %2227 = vmatpush1.bf16.msra.mxu0 0
      %2228 = vmatprep.subr.bf16.mxu0 0
      %2229 = vmatpush1.bf16.msra.mxu0 0
      %2230 = vmatprep.subr.bf16.mxu0 0
      %2231 = vmatpush1.bf16.msra.mxu0 0
      %2232 = vmatprep.subr.bf16.mxu0 0
      %2233 = vmatpush1.bf16.msra.mxu0 0
      %2234 = vmatprep.subr.bf16.mxu0 0
      %2235 = vmatpush1.bf16.msra.mxu0 0
      %2236 = vmatprep.subr.bf16.mxu0 0
      %2237 = vmatpush1.bf16.msra.mxu0 0
      %2238 = vmatprep.subr.bf16.mxu0 0
      %2239 = vmatpush1.bf16.msra.mxu0 0
      %2240 = vmatprep.subr.bf16.mxu0 0
      %2241 = vmatpush1.bf16.msra.mxu0 0
      %2242 = vmatprep.mubr.bf16.mxu0 0
      %2243 = vmatmul.mubr.bf16.gmra.mrb[0].mxu0 %v2146
      %v2244 = vpop.f32.mrb[0].mxu0
      %v2245 = vadd.f32 0.0, %v2244
      %v2246 = vpop.f32.mrb[0].mxu0
      %v2247 = vpop.f32.mrb[0].mxu0
      %v2248 = vadd.f32 0.0, %v2247
      %v2249 = vpop.f32.mrb[0].mxu0
      %2250 = vmatprep.mubr.bf16.mxu0 0
      %2251 = vmatmul.mubr.bf16.gmra.mrb[0].mxu0 %v2147
      %v2252 = vpop.f32.mrb[0].mxu0
      %v2253 = vadd.f32 0.0, %v2252
      %v2254 = vpop.f32.mrb[0].mxu0
      %v2255 = vpop.f32.mrb[0].mxu0
      %v2256 = vadd.f32 0.0, %v2255
      %v2257 = vpop.f32.mrb[0].mxu0
      %2258 = vmatprep.mubr.bf16.mxu0 0
      %2259 = vmatmul.mubr.bf16.gmra.mrb[0].mxu0 %v2148
      %v2260 = vpop.f32.mrb[0].mxu0
      %v2261 = vadd.f32 0.0, %v2260
      %v2262 = vpop.f32.mrb[0].mxu0
      %v2263 = vpop.f32.mrb[0].mxu0
      %v2264 = vadd.f32 0.0, %v2263
      %v2265 = vpop.f32.mrb[0].mxu0
      %2266 = vmatprep.mubr.bf16.mxu0 0
      %2267 = vmatmul.mubr.bf16.gmra.mrb[0].mxu0 %v2149
      %v2268 = vpop.f32.mrb[0].mxu0
      %v2269 = vadd.f32 0.0, %v2268
      %v2270 = vpop.f32.mrb[0].mxu0
      %v2271 = vpop.f32.mrb[0].mxu0
      %v2272 = vadd.f32 0.0, %v2271
      %v2273 = vpop.f32.mrb[0].mxu0
      %2274 = vmatprep.mubr.bf16.mxu0 0
      %2275 = vmatmul.mubr.bf16.gmra.mrb[0].mxu0 %v2150
      %v2276 = vpop.f32.mrb[0].mxu0
      %v2277 = vadd.f32 0.0, %v2276
      %v2278 = vpop.f32.mrb[0].mxu0
      %v2279 = vpop.f32.mrb[0].mxu0
      %v2280 = vadd.f32 0.0, %v2279
      %v2281 = vpop.f32.mrb[0].mxu0
      %2282 = vmatprep.mubr.bf16.mxu0 0
      %2283 = vmatmul.mubr.bf16.gmra.mrb[0].mxu0 %v2151
      %v2284 = vpop.f32.mrb[0].mxu0
      %v2285 = vadd.f32 0.0, %v2284
      %v2286 = vpop.f32.mrb[0].mxu0
      %v2287 = vpop.f32.mrb[0].mxu0
      %v2288 = vadd.f32 0.0, %v2287
      %v2289 = vpop.f32.mrb[0].mxu0
      %2290 = vmatprep.mubr.bf16.mxu0 0
      %2291 = vmatmul.mubr.bf16.gmra.mrb[0].mxu0 %v2152
      %v2292 = vpop.f32.mrb[0].mxu0
      %v2293 = vadd.f32 0.0, %v2292
      %v2294 = vpop.f32.mrb[0].mxu0
      %v2295 = vpop.f32.mrb[0].mxu0
      %v2296 = vadd.f32 0.0, %v2295
      %v2297 = vpop.f32.mrb[0].mxu0
      %2298 = vmatprep.mubr.bf16.mxu0 0
      %2299 = vmatmul.mubr.bf16.gmra.mrb[0].mxu0 %v2153
      %v2300 = vpop.f32.mrb[0].mxu0
      %v2301 = vadd.f32 0.0, %v2300
      %v2302 = vpop.f32.mrb[0].mxu0
      %v2303 = vpop.f32.mrb[0].mxu0
      %v2304 = vadd.f32 0.0, %v2303
      %v2305 = vpop.f32.mrb[0].mxu0
      %2306 = vdwg.mxu0
      %v2307 = vadd.f32 %v2033, %v2245
      %v2308 = vadd.f32 %v2034, %v2248
      %v2309 = vadd.f32 %v2035, %v2253
      %v2310 = vadd.f32 %v2036, %v2256
      %v2311 = vadd.f32 %v2037, %v2261
      %v2312 = vadd.f32 %v2038, %v2264
      %v2313 = vadd.f32 %v2039, %v2269
      %v2314 = vadd.f32 %v2040, %v2272
      %v2315 = vadd.f32 %v2041, %v2277
      %v2316 = vadd.f32 %v2042, %v2280
      %v2317 = vadd.f32 %v2043, %v2285
      %v2318 = vadd.f32 %v2044, %v2288
      %v2319 = vadd.f32 %v2045, %v2293
      %v2320 = vadd.f32 %v2046, %v2296
      %v2321 = vadd.f32 %v2047, %v2301
      %v2322 = vadd.f32 %v2048, %v2304
      %v2323 = vld [vmem:[%s442] sm:$0xf]
      %v2324 = vld [vmem:[%s442 + $0x4] sm:$0xf]
      %v2325 = vld [vmem:[%s442 + $0x8] sm:$0x1]
      %v2326 = vld [vmem:[%s442 + $0xc] sm:$0xf]
      %v2327 = vld [vmem:[%s442 + $0x10] sm:$0xf]
      %v2328 = vld [vmem:[%s442 + $0x14] sm:$0x1]
      %v2329 = vld [vmem:[%s442 + $0x18] sm:$0xf]
      %v2330 = vld [vmem:[%s442 + $0x1c] sm:$0xf]
      %v2331 = vld [vmem:[%s442 + $0x20] sm:$0x1]
      %v2332 = vld [vmem:[%s442 + $0x24] sm:$0xf]
      %v2333 = vld [vmem:[%s442 + $0x28] sm:$0xf]
      %v2334 = vld [vmem:[%s442 + $0x2c] sm:$0x1]
      %v2335 = vld [vmem:[%s442 + $0x30] sm:$0xf]
      %v2336 = vld [vmem:[%s442 + $0x34] sm:$0xf]
      %v2337 = vld [vmem:[%s442 + $0x38] sm:$0x1]
      %v2338 = vld [vmem:[%s442 + $0x3c] sm:$0xf]
      %v2339 = vld [vmem:[%s442 + $0x40] sm:$0xf]
      %v2340 = vld [vmem:[%s442 + $0x44] sm:$0x1]
      %v2341 = vld [vmem:[%s442 + $0x48] sm:$0xf]
      %v2342 = vld [vmem:[%s442 + $0x4c] sm:$0xf]
      %v2343 = vld [vmem:[%s442 + $0x50] sm:$0x1]
      %v2344 = vld [vmem:[%s442 + $0x54] sm:$0xf]
      %v2345 = vld [vmem:[%s442 + $0x58] sm:$0xf]
      %v2346 = vld [vmem:[%s442 + $0x5c] sm:$0x1]
      %s2347 = scalar_lea.vmem %s448, 384
      %v2348 = vld [vmem:[%s2347] sm:$0xf]
      %v2349 = vld [vmem:[%s2347 + $0x4] sm:$0xf]
      %v2350 = vld [vmem:[%s2347 + $0x8] sm:$0xf]
      %v2351 = vld [vmem:[%s2347 + $0xc] sm:$0xf]
      %v2352 = vld [vmem:[%s2347 + $0x10] sm:$0xf]
      %v2353 = vld [vmem:[%s2347 + $0x14] sm:$0xf]
      %v2354 = vld [vmem:[%s2347 + $0x18] sm:$0xf]
      %v2355 = vld [vmem:[%s2347 + $0x1c] sm:$0xf]
      %v2356 = vld [vmem:[%s2347 + $0x20] sm:$0xf]
      %v2357 = vld [vmem:[%s2347 + $0x24] sm:$0xf]
      %v2358 = vld [vmem:[%s2347 + $0x28] sm:$0xf]
      %v2359 = vld [vmem:[%s2347 + $0x2c] sm:$0xf]
      %v2360 = vld [vmem:[%s2347 + $0x30] sm:$0xf]
      %v2361 = vld [vmem:[%s2347 + $0x34] sm:$0xf]
      %v2362 = vld [vmem:[%s2347 + $0x38] sm:$0xf]
      %v2363 = vld [vmem:[%s2347 + $0x3c] sm:$0xf]
      %v2380 = vunpack.c.l.b16 %v2323
      %v2381 = vunpack.c.l.b16 %v2324
      %v2382 = vunpack.c.l.b16 %v2326
      %v2383 = vunpack.c.l.b16 %v2327
      %v2384 = vunpack.c.l.b16 %v2329
      %v2385 = vunpack.c.l.b16 %v2330
      %v2386 = vunpack.c.l.b16 %v2332
      %v2387 = vunpack.c.l.b16 %v2333
      %v2388 = vunpack.c.l.b16 %v2335
      %v2389 = vunpack.c.l.b16 %v2336
      %v2390 = vunpack.c.l.b16 %v2338
      %v2391 = vunpack.c.l.b16 %v2339
      %v2392 = vunpack.c.l.b16 %v2341
      %v2393 = vunpack.c.l.b16 %v2342
      %v2394 = vunpack.c.l.b16 %v2344
      %v2395 = vunpack.c.l.b16 %v2345
      %v2396 = vpack.c.b16 %v2381, %v2380
      %v2397 = vpack.c.b16 %v2383, %v2382
      %v2398 = vpack.c.b16 %v2385, %v2384
      %v2399 = vpack.c.b16 %v2387, %v2386
      %v2400 = vpack.c.b16 %v2389, %v2388
      %v2401 = vpack.c.b16 %v2391, %v2390
      %v2402 = vpack.c.b16 %v2393, %v2392
      %v2403 = vpack.c.b16 %v2395, %v2394
      %v2428 = vunpack.c.l.b16 %v2348
      %v2429 = vunpack.c.l.b16 %v2349
      %v2430 = vunpack.c.l.b16 %v2350
      %v2431 = vunpack.c.l.b16 %v2351
      %v2432 = vunpack.c.l.b16 %v2352
      %v2433 = vunpack.c.l.b16 %v2353
      %v2434 = vunpack.c.l.b16 %v2354
      %v2435 = vunpack.c.l.b16 %v2355
      %v2436 = vunpack.c.l.b16 %v2356
      %v2437 = vunpack.c.l.b16 %v2357
      %v2438 = vunpack.c.l.b16 %v2358
      %v2439 = vunpack.c.l.b16 %v2359
      %v2440 = vunpack.c.l.b16 %v2360
      %v2441 = vunpack.c.l.b16 %v2361
      %v2442 = vunpack.c.l.b16 %v2362
      %v2443 = vunpack.c.l.b16 %v2363
      %v2444 = vpack.c.b16 %v2429, %v2428
      %v2445 = vpack.c.b16 %v2431, %v2430
      %v2446 = vpack.c.b16 %v2433, %v2432
      %v2447 = vpack.c.b16 %v2435, %v2434
      %v2448 = vpack.c.b16 %v2437, %v2436
      %v2449 = vpack.c.b16 %v2439, %v2438
      %v2450 = vpack.c.b16 %v2441, %v2440
      %v2451 = vpack.c.b16 %v2443, %v2442
      %2460 = vmatprep.subr.bf16.mxu0 0
      %2461 = vmatpush1.bf16.msra.mxu0 %v2444
      %2462 = vmatprep.subr.bf16.mxu0 0
      %2463 = vmatpush1.bf16.msra.mxu0 %v2445
      %2464 = vmatprep.subr.bf16.mxu0 0
      %2465 = vmatpush1.bf16.msra.mxu0 %v2446
      %2466 = vmatprep.subr.bf16.mxu0 0
      %2467 = vmatpush1.bf16.msra.mxu0 %v2447
      %2468 = vmatprep.subr.bf16.mxu0 0
      %2469 = vmatpush1.bf16.msra.mxu0 %v2448
      %2470 = vmatprep.subr.bf16.mxu0 0
      %2471 = vmatpush1.bf16.msra.mxu0 %v2449
      %2472 = vmatprep.subr.bf16.mxu0 0
      %2473 = vmatpush1.bf16.msra.mxu0 %v2450
      %2474 = vmatprep.subr.bf16.mxu0 0
      %2475 = vmatpush1.bf16.msra.mxu0 %v2451
      %2476 = vmatprep.subr.bf16.mxu0 0
      %2477 = vmatpush1.bf16.msra.mxu0 0
      %2478 = vmatprep.subr.bf16.mxu0 0
      %2479 = vmatpush1.bf16.msra.mxu0 0
      %2480 = vmatprep.subr.bf16.mxu0 0
      %2481 = vmatpush1.bf16.msra.mxu0 0
      %2482 = vmatprep.subr.bf16.mxu0 0
      %2483 = vmatpush1.bf16.msra.mxu0 0
      %2484 = vmatprep.subr.bf16.mxu0 0
      %2485 = vmatpush1.bf16.msra.mxu0 0
      %2486 = vmatprep.subr.bf16.mxu0 0
      %2487 = vmatpush1.bf16.msra.mxu0 0
      %2488 = vmatprep.subr.bf16.mxu0 0
      %2489 = vmatpush1.bf16.msra.mxu0 0
      %2490 = vmatprep.subr.bf16.mxu0 0
      %2491 = vmatpush1.bf16.msra.mxu0 0
      %2492 = vmatprep.mubr.bf16.mxu0 0
      %2493 = vmatmul.mubr.bf16.gmra.mrb[0].mxu0 %v2396
      %v2494 = vpop.f32.mrb[0].mxu0
      %v2495 = vadd.f32 0.0, %v2494
      %v2496 = vpop.f32.mrb[0].mxu0
      %v2497 = vpop.f32.mrb[0].mxu0
      %v2498 = vadd.f32 0.0, %v2497
      %v2499 = vpop.f32.mrb[0].mxu0
      %2500 = vmatprep.mubr.bf16.mxu0 0
      %2501 = vmatmul.mubr.bf16.gmra.mrb[0].mxu0 %v2397
      %v2502 = vpop.f32.mrb[0].mxu0
      %v2503 = vadd.f32 0.0, %v2502
      %v2504 = vpop.f32.mrb[0].mxu0
      %v2505 = vpop.f32.mrb[0].mxu0
      %v2506 = vadd.f32 0.0, %v2505
      %v2507 = vpop.f32.mrb[0].mxu0
      %2508 = vmatprep.mubr.bf16.mxu0 0
      %2509 = vmatmul.mubr.bf16.gmra.mrb[0].mxu0 %v2398
      %v2510 = vpop.f32.mrb[0].mxu0
      %v2511 = vadd.f32 0.0, %v2510
      %v2512 = vpop.f32.mrb[0].mxu0
      %v2513 = vpop.f32.mrb[0].mxu0
      %v2514 = vadd.f32 0.0, %v2513
      %v2515 = vpop.f32.mrb[0].mxu0
      %2516 = vmatprep.mubr.bf16.mxu0 0
      %2517 = vmatmul.mubr.bf16.gmra.mrb[0].mxu0 %v2399
      %v2518 = vpop.f32.mrb[0].mxu0
      %v2519 = vadd.f32 0.0, %v2518
      %v2520 = vpop.f32.mrb[0].mxu0
      %v2521 = vpop.f32.mrb[0].mxu0
      %v2522 = vadd.f32 0.0, %v2521
      %v2523 = vpop.f32.mrb[0].mxu0
      %2524 = vmatprep.mubr.bf16.mxu0 0
      %2525 = vmatmul.mubr.bf16.gmra.mrb[0].mxu0 %v2400
      %v2526 = vpop.f32.mrb[0].mxu0
      %v2527 = vadd.f32 0.0, %v2526
      %v2528 = vpop.f32.mrb[0].mxu0
      %v2529 = vpop.f32.mrb[0].mxu0
      %v2530 = vadd.f32 0.0, %v2529
      %v2531 = vpop.f32.mrb[0].mxu0
      %2532 = vmatprep.mubr.bf16.mxu0 0
      %2533 = vmatmul.mubr.bf16.gmra.mrb[0].mxu0 %v2401
      %v2534 = vpop.f32.mrb[0].mxu0
      %v2535 = vadd.f32 0.0, %v2534
      %v2536 = vpop.f32.mrb[0].mxu0
      %v2537 = vpop.f32.mrb[0].mxu0
      %v2538 = vadd.f32 0.0, %v2537
      %v2539 = vpop.f32.mrb[0].mxu0
      %2540 = vmatprep.mubr.bf16.mxu0 0
      %2541 = vmatmul.mubr.bf16.gmra.mrb[0].mxu0 %v2402
      %v2542 = vpop.f32.mrb[0].mxu0
      %v2543 = vadd.f32 0.0, %v2542
      %v2544 = vpop.f32.mrb[0].mxu0
      %v2545 = vpop.f32.mrb[0].mxu0
      %v2546 = vadd.f32 0.0, %v2545
      %v2547 = vpop.f32.mrb[0].mxu0
      %2548 = vmatprep.mubr.bf16.mxu0 0
      %2549 = vmatmul.mubr.bf16.gmra.mrb[0].mxu0 %v2403
      %v2550 = vpop.f32.mrb[0].mxu0
      %v2551 = vadd.f32 0.0, %v2550
      %v2552 = vpop.f32.mrb[0].mxu0
      %v2553 = vpop.f32.mrb[0].mxu0
      %v2554 = vadd.f32 0.0, %v2553
      %v2555 = vpop.f32.mrb[0].mxu0
      %2556 = vdwg.mxu0
      %v2557 = vadd.f32 %v2307, %v2495
      %v2558 = vadd.f32 %v2308, %v2498
      %v2559 = vadd.f32 %v2309, %v2503
      %v2560 = vadd.f32 %v2310, %v2506
      %v2561 = vadd.f32 %v2311, %v2511
      %v2562 = vadd.f32 %v2312, %v2514
      %v2563 = vadd.f32 %v2313, %v2519
      %v2564 = vadd.f32 %v2314, %v2522
      %v2565 = vadd.f32 %v2315, %v2527
      %v2566 = vadd.f32 %v2316, %v2530
      %v2567 = vadd.f32 %v2317, %v2535
      %v2568 = vadd.f32 %v2318, %v2538
      %v2569 = vadd.f32 %v2319, %v2543
      %v2570 = vadd.f32 %v2320, %v2546
      %v2571 = vadd.f32 %v2321, %v2551
      %v2572 = vadd.f32 %v2322, %v2554
      %v2574 = vshrl.u32 %v2323, 16
      %v2576 = vrot.slane %v2574, 4
      %v2577 = vshll.u32 %v2323, 16
      %v2579 = vrot.slane %v2577, 5
      %v2580 = vor.u32 %v2576, %v2579
      %v2581 = vrot.slane %v2580, 4
      %v2583 = vshll.u32 %v2324, 16
      %v2585 = vrot.slane %v2583, 5
      %v2586 = vsel %vm540, %v2581, %v2585
      %v2587 = vshrl.u32 %v2324, 16
      %v2589 = vrot.slane %v2587, 4
      %v2590 = vor.u32 %v2589, %v2585
      %v2591 = vrot.slane %v2590, 4
      %v2593 = vshll.u32 %v2325, 16
      %v2595 = vrot.slane %v2593, 5
      %v2596 = vsel %vm540, %v2591, %v2595
      %v2598 = vshrl.u32 %v2326, 16
      %v2600 = vrot.slane %v2598, 4
      %v2601 = vshll.u32 %v2326, 16
      %v2603 = vrot.slane %v2601, 5
      %v2604 = vor.u32 %v2600, %v2603
      %v2605 = vrot.slane %v2604, 4
      %v2607 = vshll.u32 %v2327, 16
      %v2609 = vrot.slane %v2607, 5
      %v2610 = vsel %vm540, %v2605, %v2609
      %v2611 = vshrl.u32 %v2327, 16
      %v2613 = vrot.slane %v2611, 4
      %v2614 = vor.u32 %v2613, %v2609
      %v2615 = vrot.slane %v2614, 4
      %v2617 = vshll.u32 %v2328, 16
      %v2619 = vrot.slane %v2617, 5
      %v2620 = vsel %vm540, %v2615, %v2619
      %v2622 = vshrl.u32 %v2329, 16
      %v2624 = vrot.slane %v2622, 4
      %v2625 = vshll.u32 %v2329, 16
      %v2627 = vrot.slane %v2625, 5
      %v2628 = vor.u32 %v2624, %v2627
      %v2629 = vrot.slane %v2628, 4
      %v2631 = vshll.u32 %v2330, 16
      %v2633 = vrot.slane %v2631, 5
      %v2634 = vsel %vm540, %v2629, %v2633
      %v2635 = vshrl.u32 %v2330, 16
      %v2637 = vrot.slane %v2635, 4
      %v2638 = vor.u32 %v2637, %v2633
      %v2639 = vrot.slane %v2638, 4
      %v2641 = vshll.u32 %v2331, 16
      %v2643 = vrot.slane %v2641, 5
      %v2644 = vsel %vm540, %v2639, %v2643
      %v2646 = vshrl.u32 %v2332, 16
      %v2648 = vrot.slane %v2646, 4
      %v2649 = vshll.u32 %v2332, 16
      %v2651 = vrot.slane %v2649, 5
      %v2652 = vor.u32 %v2648, %v2651
      %v2653 = vrot.slane %v2652, 4
      %v2655 = vshll.u32 %v2333, 16
      %v2657 = vrot.slane %v2655, 5
      %v2658 = vsel %vm540, %v2653, %v2657
      %v2659 = vshrl.u32 %v2333, 16
      %v2661 = vrot.slane %v2659, 4
      %v2662 = vor.u32 %v2661, %v2657
      %v2663 = vrot.slane %v2662, 4
      %v2665 = vshll.u32 %v2334, 16
      %v2667 = vrot.slane %v2665, 5
      %v2668 = vsel %vm540, %v2663, %v2667
      %v2670 = vshrl.u32 %v2335, 16
      %v2672 = vrot.slane %v2670, 4
      %v2673 = vshll.u32 %v2335, 16
      %v2675 = vrot.slane %v2673, 5
      %v2676 = vor.u32 %v2672, %v2675
      %v2677 = vrot.slane %v2676, 4
      %v2679 = vshll.u32 %v2336, 16
      %v2681 = vrot.slane %v2679, 5
      %v2682 = vsel %vm540, %v2677, %v2681
      %v2683 = vshrl.u32 %v2336, 16
      %v2685 = vrot.slane %v2683, 4
      %v2686 = vor.u32 %v2685, %v2681
      %v2687 = vrot.slane %v2686, 4
      %v2689 = vshll.u32 %v2337, 16
      %v2691 = vrot.slane %v2689, 5
      %v2692 = vsel %vm540, %v2687, %v2691
      %v2694 = vshrl.u32 %v2338, 16
      %v2696 = vrot.slane %v2694, 4
      %v2697 = vshll.u32 %v2338, 16
      %v2699 = vrot.slane %v2697, 5
      %v2700 = vor.u32 %v2696, %v2699
      %v2701 = vrot.slane %v2700, 4
      %v2703 = vshll.u32 %v2339, 16
      %v2705 = vrot.slane %v2703, 5
      %v2706 = vsel %vm540, %v2701, %v2705
      %v2707 = vshrl.u32 %v2339, 16
      %v2709 = vrot.slane %v2707, 4
      %v2710 = vor.u32 %v2709, %v2705
      %v2711 = vrot.slane %v2710, 4
      %v2713 = vshll.u32 %v2340, 16
      %v2715 = vrot.slane %v2713, 5
      %v2716 = vsel %vm540, %v2711, %v2715
      %v2718 = vshrl.u32 %v2341, 16
      %v2720 = vrot.slane %v2718, 4
      %v2721 = vshll.u32 %v2341, 16
      %v2723 = vrot.slane %v2721, 5
      %v2724 = vor.u32 %v2720, %v2723
      %v2725 = vrot.slane %v2724, 4
      %v2727 = vshll.u32 %v2342, 16
      %v2729 = vrot.slane %v2727, 5
      %v2730 = vsel %vm540, %v2725, %v2729
      %v2731 = vshrl.u32 %v2342, 16
      %v2733 = vrot.slane %v2731, 4
      %v2734 = vor.u32 %v2733, %v2729
      %v2735 = vrot.slane %v2734, 4
      %v2737 = vshll.u32 %v2343, 16
      %v2739 = vrot.slane %v2737, 5
      %v2740 = vsel %vm540, %v2735, %v2739
      %v2742 = vshrl.u32 %v2344, 16
      %v2744 = vrot.slane %v2742, 4
      %v2745 = vshll.u32 %v2344, 16
      %v2747 = vrot.slane %v2745, 5
      %v2748 = vor.u32 %v2744, %v2747
      %v2749 = vrot.slane %v2748, 4
      %v2751 = vshll.u32 %v2345, 16
      %v2753 = vrot.slane %v2751, 5
      %v2754 = vsel %vm540, %v2749, %v2753
      %v2755 = vshrl.u32 %v2345, 16
      %v2757 = vrot.slane %v2755, 4
      %v2758 = vor.u32 %v2757, %v2753
      %v2759 = vrot.slane %v2758, 4
      %v2761 = vshll.u32 %v2346, 16
      %v2763 = vrot.slane %v2761, 5
      %v2764 = vsel %vm540, %v2759, %v2763
      %s2765 = scalar_lea.vmem %s448, 448
      %v2766 = vld [vmem:[%s2765] sm:$0xf]
      %v2767 = vld [vmem:[%s2765 + $0x4] sm:$0xf]
      %v2768 = vld [vmem:[%s2765 + $0x8] sm:$0xf]
      %v2769 = vld [vmem:[%s2765 + $0xc] sm:$0xf]
      %v2770 = vld [vmem:[%s2765 + $0x10] sm:$0xf]
      %v2771 = vld [vmem:[%s2765 + $0x14] sm:$0xf]
      %v2772 = vld [vmem:[%s2765 + $0x18] sm:$0xf]
      %v2773 = vld [vmem:[%s2765 + $0x1c] sm:$0xf]
      %v2774 = vld [vmem:[%s2765 + $0x20] sm:$0xf]
      %v2775 = vld [vmem:[%s2765 + $0x24] sm:$0xf]
      %v2776 = vld [vmem:[%s2765 + $0x28] sm:$0xf]
      %v2777 = vld [vmem:[%s2765 + $0x2c] sm:$0xf]
      %v2778 = vld [vmem:[%s2765 + $0x30] sm:$0xf]
      %v2779 = vld [vmem:[%s2765 + $0x34] sm:$0xf]
      %v2780 = vld [vmem:[%s2765 + $0x38] sm:$0xf]
      %v2781 = vld [vmem:[%s2765 + $0x3c] sm:$0xf]
      %v2782 = vunpack.c.l.b16 %v2586
      %v2783 = vunpack.c.l.b16 %v2596
      %v2784 = vunpack.c.l.b16 %v2610
      %v2785 = vunpack.c.l.b16 %v2620
      %v2786 = vunpack.c.l.b16 %v2634
      %v2787 = vunpack.c.l.b16 %v2644
      %v2788 = vunpack.c.l.b16 %v2658
      %v2789 = vunpack.c.l.b16 %v2668
      %v2790 = vunpack.c.l.b16 %v2682
      %v2791 = vunpack.c.l.b16 %v2692
      %v2792 = vunpack.c.l.b16 %v2706
      %v2793 = vunpack.c.l.b16 %v2716
      %v2794 = vunpack.c.l.b16 %v2730
      %v2795 = vunpack.c.l.b16 %v2740
      %v2796 = vunpack.c.l.b16 %v2754
      %v2797 = vunpack.c.l.b16 %v2764
      %v2798 = vpack.c.b16 %v2783, %v2782
      %v2799 = vpack.c.b16 %v2785, %v2784
      %v2800 = vpack.c.b16 %v2787, %v2786
      %v2801 = vpack.c.b16 %v2789, %v2788
      %v2802 = vpack.c.b16 %v2791, %v2790
      %v2803 = vpack.c.b16 %v2793, %v2792
      %v2804 = vpack.c.b16 %v2795, %v2794
      %v2805 = vpack.c.b16 %v2797, %v2796
      %v2830 = vunpack.c.l.b16 %v2766
      %v2831 = vunpack.c.l.b16 %v2767
      %v2832 = vunpack.c.l.b16 %v2768
      %v2833 = vunpack.c.l.b16 %v2769
      %v2834 = vunpack.c.l.b16 %v2770
      %v2835 = vunpack.c.l.b16 %v2771
      %v2836 = vunpack.c.l.b16 %v2772
      %v2837 = vunpack.c.l.b16 %v2773
      %v2838 = vunpack.c.l.b16 %v2774
      %v2839 = vunpack.c.l.b16 %v2775
      %v2840 = vunpack.c.l.b16 %v2776
      %v2841 = vunpack.c.l.b16 %v2777
      %v2842 = vunpack.c.l.b16 %v2778
      %v2843 = vunpack.c.l.b16 %v2779
      %v2844 = vunpack.c.l.b16 %v2780
      %v2845 = vunpack.c.l.b16 %v2781
      %v2846 = vpack.c.b16 %v2831, %v2830
      %v2847 = vpack.c.b16 %v2833, %v2832
      %v2848 = vpack.c.b16 %v2835, %v2834
      %v2849 = vpack.c.b16 %v2837, %v2836
      %v2850 = vpack.c.b16 %v2839, %v2838
      %v2851 = vpack.c.b16 %v2841, %v2840
      %v2852 = vpack.c.b16 %v2843, %v2842
      %v2853 = vpack.c.b16 %v2845, %v2844
      %2862 = vmatprep.subr.bf16.mxu0 0
      %2863 = vmatpush1.bf16.msra.mxu0 %v2846
      %2864 = vmatprep.subr.bf16.mxu0 0
      %2865 = vmatpush1.bf16.msra.mxu0 %v2847
      %2866 = vmatprep.subr.bf16.mxu0 0
      %2867 = vmatpush1.bf16.msra.mxu0 %v2848
      %2868 = vmatprep.subr.bf16.mxu0 0
      %2869 = vmatpush1.bf16.msra.mxu0 %v2849
      %2870 = vmatprep.subr.bf16.mxu0 0
      %2871 = vmatpush1.bf16.msra.mxu0 %v2850
      %2872 = vmatprep.subr.bf16.mxu0 0
      %2873 = vmatpush1.bf16.msra.mxu0 %v2851
      %2874 = vmatprep.subr.bf16.mxu0 0
      %2875 = vmatpush1.bf16.msra.mxu0 %v2852
      %2876 = vmatprep.subr.bf16.mxu0 0
      %2877 = vmatpush1.bf16.msra.mxu0 %v2853
      %2878 = vmatprep.subr.bf16.mxu0 0
      %2879 = vmatpush1.bf16.msra.mxu0 0
      %2880 = vmatprep.subr.bf16.mxu0 0
      %2881 = vmatpush1.bf16.msra.mxu0 0
      %2882 = vmatprep.subr.bf16.mxu0 0
      %2883 = vmatpush1.bf16.msra.mxu0 0
      %2884 = vmatprep.subr.bf16.mxu0 0
      %2885 = vmatpush1.bf16.msra.mxu0 0
      %2886 = vmatprep.subr.bf16.mxu0 0
      %2887 = vmatpush1.bf16.msra.mxu0 0
      %2888 = vmatprep.subr.bf16.mxu0 0
      %2889 = vmatpush1.bf16.msra.mxu0 0
      %2890 = vmatprep.subr.bf16.mxu0 0
      %2891 = vmatpush1.bf16.msra.mxu0 0
      %2892 = vmatprep.subr.bf16.mxu0 0
      %2893 = vmatpush1.bf16.msra.mxu0 0
      %2894 = vmatprep.mubr.bf16.mxu0 0
      %2895 = vmatmul.mubr.bf16.gmra.mrb[0].mxu0 %v2798
      %v2896 = vpop.f32.mrb[0].mxu0
      %v2897 = vadd.f32 0.0, %v2896
      %v2898 = vpop.f32.mrb[0].mxu0
      %v2899 = vpop.f32.mrb[0].mxu0
      %v2900 = vadd.f32 0.0, %v2899
      %v2901 = vpop.f32.mrb[0].mxu0
      %2902 = vmatprep.mubr.bf16.mxu0 0
      %2903 = vmatmul.mubr.bf16.gmra.mrb[0].mxu0 %v2799
      %v2904 = vpop.f32.mrb[0].mxu0
      %v2905 = vadd.f32 0.0, %v2904
      %v2906 = vpop.f32.mrb[0].mxu0
      %v2907 = vpop.f32.mrb[0].mxu0
      %v2908 = vadd.f32 0.0, %v2907
      %v2909 = vpop.f32.mrb[0].mxu0
      %2910 = vmatprep.mubr.bf16.mxu0 0
      %2911 = vmatmul.mubr.bf16.gmra.mrb[0].mxu0 %v2800
      %v2912 = vpop.f32.mrb[0].mxu0
      %v2913 = vadd.f32 0.0, %v2912
      %v2914 = vpop.f32.mrb[0].mxu0
      %v2915 = vpop.f32.mrb[0].mxu0
      %v2916 = vadd.f32 0.0, %v2915
      %v2917 = vpop.f32.mrb[0].mxu0
      %2918 = vmatprep.mubr.bf16.mxu0 0
      %2919 = vmatmul.mubr.bf16.gmra.mrb[0].mxu0 %v2801
      %v2920 = vpop.f32.mrb[0].mxu0
      %v2921 = vadd.f32 0.0, %v2920
      %v2922 = vpop.f32.mrb[0].mxu0
      %v2923 = vpop.f32.mrb[0].mxu0
      %v2924 = vadd.f32 0.0, %v2923
      %v2925 = vpop.f32.mrb[0].mxu0
      %2926 = vmatprep.mubr.bf16.mxu0 0
      %2927 = vmatmul.mubr.bf16.gmra.mrb[0].mxu0 %v2802
      %v2928 = vpop.f32.mrb[0].mxu0
      %v2929 = vadd.f32 0.0, %v2928
      %v2930 = vpop.f32.mrb[0].mxu0
      %v2931 = vpop.f32.mrb[0].mxu0
      %v2932 = vadd.f32 0.0, %v2931
      %v2933 = vpop.f32.mrb[0].mxu0
      %2934 = vmatprep.mubr.bf16.mxu0 0
      %2935 = vmatmul.mubr.bf16.gmra.mrb[0].mxu0 %v2803
      %v2936 = vpop.f32.mrb[0].mxu0
      %v2937 = vadd.f32 0.0, %v2936
      %v2938 = vpop.f32.mrb[0].mxu0
      %v2939 = vpop.f32.mrb[0].mxu0
      %v2940 = vadd.f32 0.0, %v2939
      %v2941 = vpop.f32.mrb[0].mxu0
      %2942 = vmatprep.mubr.bf16.mxu0 0
      %2943 = vmatmul.mubr.bf16.gmra.mrb[0].mxu0 %v2804
      %v2944 = vpop.f32.mrb[0].mxu0
      %v2945 = vadd.f32 0.0, %v2944
      %v2946 = vpop.f32.mrb[0].mxu0
      %v2947 = vpop.f32.mrb[0].mxu0
      %v2948 = vadd.f32 0.0, %v2947
      %v2949 = vpop.f32.mrb[0].mxu0
      %2950 = vmatprep.mubr.bf16.mxu0 0
      %2951 = vmatmul.mubr.bf16.gmra.mrb[0].mxu0 %v2805
      %v2952 = vpop.f32.mrb[0].mxu0
      %v2953 = vadd.f32 0.0, %v2952
      %v2954 = vpop.f32.mrb[0].mxu0
      %v2955 = vpop.f32.mrb[0].mxu0
      %v2956 = vadd.f32 0.0, %v2955
      %v2957 = vpop.f32.mrb[0].mxu0
      %2958 = vdwg.mxu0
      %v2959 = vadd.f32 %v2557, %v2897
      %v2960 = vadd.f32 %v2558, %v2900
      %v2961 = vadd.f32 %v2559, %v2905
      %v2962 = vadd.f32 %v2560, %v2908
      %v2963 = vadd.f32 %v2561, %v2913
      %v2964 = vadd.f32 %v2562, %v2916
      %v2965 = vadd.f32 %v2563, %v2921
      %v2966 = vadd.f32 %v2564, %v2924
      %v2967 = vadd.f32 %v2565, %v2929
      %v2968 = vadd.f32 %v2566, %v2932
      %v2969 = vadd.f32 %v2567, %v2937
      %v2970 = vadd.f32 %v2568, %v2940
      %v2971 = vadd.f32 %v2569, %v2945
      %v2972 = vadd.f32 %v2570, %v2948
      %v2973 = vadd.f32 %v2571, %v2953
      %v2974 = vadd.f32 %v2572, %v2956
      %v2983 = vrot.slane %v2323, 5
      %v2984 = vrot.slane %v2983, 4
      %v2985 = vrot.slane %v2324, 5
      %v2986 = vsel %vm1130, %v2984, %v2985
      %v2987 = vrot.slane %v2985, 4
      %v2988 = vrot.slane %v2325, 5
      %v2989 = vsel %vm1130, %v2987, %v2988
      %v2990 = vrot.slane %v2326, 5
      %v2991 = vrot.slane %v2990, 4
      %v2992 = vrot.slane %v2327, 5
      %v2993 = vsel %vm1130, %v2991, %v2992
      %v2994 = vrot.slane %v2992, 4
      %v2995 = vrot.slane %v2328, 5
      %v2996 = vsel %vm1130, %v2994, %v2995
      %v2997 = vrot.slane %v2329, 5
      %v2998 = vrot.slane %v2997, 4
      %v2999 = vrot.slane %v2330, 5
      %v3000 = vsel %vm1130, %v2998, %v2999
      %v3001 = vrot.slane %v2999, 4
      %v3002 = vrot.slane %v2331, 5
      %v3003 = vsel %vm1130, %v3001, %v3002
      %v3004 = vrot.slane %v2332, 5
      %v3005 = vrot.slane %v3004, 4
      %v3006 = vrot.slane %v2333, 5
      %v3007 = vsel %vm1130, %v3005, %v3006
      %v3008 = vrot.slane %v3006, 4
      %v3009 = vrot.slane %v2334, 5
      %v3010 = vsel %vm1130, %v3008, %v3009
      %v3011 = vrot.slane %v2335, 5
      %v3012 = vrot.slane %v3011, 4
      %v3013 = vrot.slane %v2336, 5
      %v3014 = vsel %vm1130, %v3012, %v3013
      %v3015 = vrot.slane %v3013, 4
      %v3016 = vrot.slane %v2337, 5
      %v3017 = vsel %vm1130, %v3015, %v3016
      %v3018 = vrot.slane %v2338, 5
      %v3019 = vrot.slane %v3018, 4
      %v3020 = vrot.slane %v2339, 5
      %v3021 = vsel %vm1130, %v3019, %v3020
      %v3022 = vrot.slane %v3020, 4
      %v3023 = vrot.slane %v2340, 5
      %v3024 = vsel %vm1130, %v3022, %v3023
      %v3025 = vrot.slane %v2341, 5
      %v3026 = vrot.slane %v3025, 4
      %v3027 = vrot.slane %v2342, 5
      %v3028 = vsel %vm1130, %v3026, %v3027
      %v3029 = vrot.slane %v3027, 4
      %v3030 = vrot.slane %v2343, 5
      %v3031 = vsel %vm1130, %v3029, %v3030
      %v3032 = vrot.slane %v2344, 5
      %v3033 = vrot.slane %v3032, 4
      %v3034 = vrot.slane %v2345, 5
      %v3035 = vsel %vm1130, %v3033, %v3034
      %v3036 = vrot.slane %v3034, 4
      %v3037 = vrot.slane %v2346, 5
      %v3038 = vsel %vm1130, %v3036, %v3037
      %s3039 = scalar_lea.vmem %s448, 512
      %v3040 = vld [vmem:[%s3039] sm:$0xf]
      %v3041 = vld [vmem:[%s3039 + $0x4] sm:$0xf]
      %v3042 = vld [vmem:[%s3039 + $0x8] sm:$0xf]
      %v3043 = vld [vmem:[%s3039 + $0xc] sm:$0xf]
      %v3044 = vld [vmem:[%s3039 + $0x10] sm:$0xf]
      %v3045 = vld [vmem:[%s3039 + $0x14] sm:$0xf]
      %v3046 = vld [vmem:[%s3039 + $0x18] sm:$0xf]
      %v3047 = vld [vmem:[%s3039 + $0x1c] sm:$0xf]
      %v3048 = vld [vmem:[%s3039 + $0x20] sm:$0xf]
      %v3049 = vld [vmem:[%s3039 + $0x24] sm:$0xf]
      %v3050 = vld [vmem:[%s3039 + $0x28] sm:$0xf]
      %v3051 = vld [vmem:[%s3039 + $0x2c] sm:$0xf]
      %v3052 = vld [vmem:[%s3039 + $0x30] sm:$0xf]
      %v3053 = vld [vmem:[%s3039 + $0x34] sm:$0xf]
      %v3054 = vld [vmem:[%s3039 + $0x38] sm:$0xf]
      %v3055 = vld [vmem:[%s3039 + $0x3c] sm:$0xf]
      %v3056 = vunpack.c.l.b16 %v2986
      %v3057 = vunpack.c.l.b16 %v2989
      %v3058 = vunpack.c.l.b16 %v2993
      %v3059 = vunpack.c.l.b16 %v2996
      %v3060 = vunpack.c.l.b16 %v3000
      %v3061 = vunpack.c.l.b16 %v3003
      %v3062 = vunpack.c.l.b16 %v3007
      %v3063 = vunpack.c.l.b16 %v3010
      %v3064 = vunpack.c.l.b16 %v3014
      %v3065 = vunpack.c.l.b16 %v3017
      %v3066 = vunpack.c.l.b16 %v3021
      %v3067 = vunpack.c.l.b16 %v3024
      %v3068 = vunpack.c.l.b16 %v3028
      %v3069 = vunpack.c.l.b16 %v3031
      %v3070 = vunpack.c.l.b16 %v3035
      %v3071 = vunpack.c.l.b16 %v3038
      %v3072 = vpack.c.b16 %v3057, %v3056
      %v3073 = vpack.c.b16 %v3059, %v3058
      %v3074 = vpack.c.b16 %v3061, %v3060
      %v3075 = vpack.c.b16 %v3063, %v3062
      %v3076 = vpack.c.b16 %v3065, %v3064
      %v3077 = vpack.c.b16 %v3067, %v3066
      %v3078 = vpack.c.b16 %v3069, %v3068
      %v3079 = vpack.c.b16 %v3071, %v3070
      %v3104 = vunpack.c.l.b16 %v3040
      %v3105 = vunpack.c.l.b16 %v3041
      %v3106 = vunpack.c.l.b16 %v3042
      %v3107 = vunpack.c.l.b16 %v3043
      %v3108 = vunpack.c.l.b16 %v3044
      %v3109 = vunpack.c.l.b16 %v3045
      %v3110 = vunpack.c.l.b16 %v3046
      %v3111 = vunpack.c.l.b16 %v3047
      %v3112 = vunpack.c.l.b16 %v3048
      %v3113 = vunpack.c.l.b16 %v3049
      %v3114 = vunpack.c.l.b16 %v3050
      %v3115 = vunpack.c.l.b16 %v3051
      %v3116 = vunpack.c.l.b16 %v3052
      %v3117 = vunpack.c.l.b16 %v3053
      %v3118 = vunpack.c.l.b16 %v3054
      %v3119 = vunpack.c.l.b16 %v3055
      %v3120 = vpack.c.b16 %v3105, %v3104
      %v3121 = vpack.c.b16 %v3107, %v3106
      %v3122 = vpack.c.b16 %v3109, %v3108
      %v3123 = vpack.c.b16 %v3111, %v3110
      %v3124 = vpack.c.b16 %v3113, %v3112
      %v3125 = vpack.c.b16 %v3115, %v3114
      %v3126 = vpack.c.b16 %v3117, %v3116
      %v3127 = vpack.c.b16 %v3119, %v3118
      %3136 = vmatprep.subr.bf16.mxu0 0
      %3137 = vmatpush1.bf16.msra.mxu0 %v3120
      %3138 = vmatprep.subr.bf16.mxu0 0
      %3139 = vmatpush1.bf16.msra.mxu0 %v3121
      %3140 = vmatprep.subr.bf16.mxu0 0
      %3141 = vmatpush1.bf16.msra.mxu0 %v3122
      %3142 = vmatprep.subr.bf16.mxu0 0
      %3143 = vmatpush1.bf16.msra.mxu0 %v3123
      %3144 = vmatprep.subr.bf16.mxu0 0
      %3145 = vmatpush1.bf16.msra.mxu0 %v3124
      %3146 = vmatprep.subr.bf16.mxu0 0
      %3147 = vmatpush1.bf16.msra.mxu0 %v3125
      %3148 = vmatprep.subr.bf16.mxu0 0
      %3149 = vmatpush1.bf16.msra.mxu0 %v3126
      %3150 = vmatprep.subr.bf16.mxu0 0
      %3151 = vmatpush1.bf16.msra.mxu0 %v3127
      %3152 = vmatprep.subr.bf16.mxu0 0
      %3153 = vmatpush1.bf16.msra.mxu0 0
      %3154 = vmatprep.subr.bf16.mxu0 0
      %3155 = vmatpush1.bf16.msra.mxu0 0
      %3156 = vmatprep.subr.bf16.mxu0 0
      %3157 = vmatpush1.bf16.msra.mxu0 0
      %3158 = vmatprep.subr.bf16.mxu0 0
      %3159 = vmatpush1.bf16.msra.mxu0 0
      %3160 = vmatprep.subr.bf16.mxu0 0
      %3161 = vmatpush1.bf16.msra.mxu0 0
      %3162 = vmatprep.subr.bf16.mxu0 0
      %3163 = vmatpush1.bf16.msra.mxu0 0
      %3164 = vmatprep.subr.bf16.mxu0 0
      %3165 = vmatpush1.bf16.msra.mxu0 0
      %3166 = vmatprep.subr.bf16.mxu0 0
      %3167 = vmatpush1.bf16.msra.mxu0 0
      %3168 = vmatprep.mubr.bf16.mxu0 0
      %3169 = vmatmul.mubr.bf16.gmra.mrb[0].mxu0 %v3072
      %v3170 = vpop.f32.mrb[0].mxu0
      %v3171 = vadd.f32 0.0, %v3170
      %v3172 = vpop.f32.mrb[0].mxu0
      %v3173 = vpop.f32.mrb[0].mxu0
      %v3174 = vadd.f32 0.0, %v3173
      %v3175 = vpop.f32.mrb[0].mxu0
      %3176 = vmatprep.mubr.bf16.mxu0 0
      %3177 = vmatmul.mubr.bf16.gmra.mrb[0].mxu0 %v3073
      %v3178 = vpop.f32.mrb[0].mxu0
      %v3179 = vadd.f32 0.0, %v3178
      %v3180 = vpop.f32.mrb[0].mxu0
      %v3181 = vpop.f32.mrb[0].mxu0
      %v3182 = vadd.f32 0.0, %v3181
      %v3183 = vpop.f32.mrb[0].mxu0
      %3184 = vmatprep.mubr.bf16.mxu0 0
      %3185 = vmatmul.mubr.bf16.gmra.mrb[0].mxu0 %v3074
      %v3186 = vpop.f32.mrb[0].mxu0
      %v3187 = vadd.f32 0.0, %v3186
      %v3188 = vpop.f32.mrb[0].mxu0
      %v3189 = vpop.f32.mrb[0].mxu0
      %v3190 = vadd.f32 0.0, %v3189
      %v3191 = vpop.f32.mrb[0].mxu0
      %3192 = vmatprep.mubr.bf16.mxu0 0
      %3193 = vmatmul.mubr.bf16.gmra.mrb[0].mxu0 %v3075
      %v3194 = vpop.f32.mrb[0].mxu0
      %v3195 = vadd.f32 0.0, %v3194
      %v3196 = vpop.f32.mrb[0].mxu0
      %v3197 = vpop.f32.mrb[0].mxu0
      %v3198 = vadd.f32 0.0, %v3197
      %v3199 = vpop.f32.mrb[0].mxu0
      %3200 = vmatprep.mubr.bf16.mxu0 0
      %3201 = vmatmul.mubr.bf16.gmra.mrb[0].mxu0 %v3076
      %v3202 = vpop.f32.mrb[0].mxu0
      %v3203 = vadd.f32 0.0, %v3202
      %v3204 = vpop.f32.mrb[0].mxu0
      %v3205 = vpop.f32.mrb[0].mxu0
      %v3206 = vadd.f32 0.0, %v3205
      %v3207 = vpop.f32.mrb[0].mxu0
      %3208 = vmatprep.mubr.bf16.mxu0 0
      %3209 = vmatmul.mubr.bf16.gmra.mrb[0].mxu0 %v3077
      %v3210 = vpop.f32.mrb[0].mxu0
      %v3211 = vadd.f32 0.0, %v3210
      %v3212 = vpop.f32.mrb[0].mxu0
      %v3213 = vpop.f32.mrb[0].mxu0
      %v3214 = vadd.f32 0.0, %v3213
      %v3215 = vpop.f32.mrb[0].mxu0
      %3216 = vmatprep.mubr.bf16.mxu0 0
      %3217 = vmatmul.mubr.bf16.gmra.mrb[0].mxu0 %v3078
      %v3218 = vpop.f32.mrb[0].mxu0
      %v3219 = vadd.f32 0.0, %v3218
      %v3220 = vpop.f32.mrb[0].mxu0
      %v3221 = vpop.f32.mrb[0].mxu0
      %v3222 = vadd.f32 0.0, %v3221
      %v3223 = vpop.f32.mrb[0].mxu0
      %3224 = vmatprep.mubr.bf16.mxu0 0
      %3225 = vmatmul.mubr.bf16.gmra.mrb[0].mxu0 %v3079
      %v3226 = vpop.f32.mrb[0].mxu0
      %v3227 = vadd.f32 0.0, %v3226
      %v3228 = vpop.f32.mrb[0].mxu0
      %v3229 = vpop.f32.mrb[0].mxu0
      %v3230 = vadd.f32 0.0, %v3229
      %v3231 = vpop.f32.mrb[0].mxu0
      %3232 = vdwg.mxu0
      %v3233 = vadd.f32 %v2959, %v3171
      %v3234 = vadd.f32 %v2960, %v3174
      %v3235 = vadd.f32 %v2961, %v3179
      %v3236 = vadd.f32 %v2962, %v3182
      %v3237 = vadd.f32 %v2963, %v3187
      %v3238 = vadd.f32 %v2964, %v3190
      %v3239 = vadd.f32 %v2965, %v3195
      %v3240 = vadd.f32 %v2966, %v3198
      %v3241 = vadd.f32 %v2967, %v3203
      %v3242 = vadd.f32 %v2968, %v3206
      %v3243 = vadd.f32 %v2969, %v3211
      %v3244 = vadd.f32 %v2970, %v3214
      %v3245 = vadd.f32 %v2971, %v3219
      %v3246 = vadd.f32 %v2972, %v3222
      %v3247 = vadd.f32 %v2973, %v3227
      %v3248 = vadd.f32 %v2974, %v3230
      %v3249 = vld [vmem:[%s459] sm:$0xff]
      %v3250 = vld [vmem:[%s459 + $0x8] sm:$0xff]
      %v3251 = vld [vmem:[%s459 + $0x10] sm:$0xff]
      %v3252 = vld [vmem:[%s459 + $0x18] sm:$0xff]
      %v3253 = vld [vmem:[%s459 + $0x20] sm:$0xff]
      %v3254 = vld [vmem:[%s459 + $0x28] sm:$0xff]
      %v3255 = vld [vmem:[%s459 + $0x30] sm:$0xff]
      %v3256 = vld [vmem:[%s459 + $0x38] sm:$0xff]
      %v3257 = vld [vmem:[%s459 + $0x40] sm:$0xff]
      %v3258 = vld [vmem:[%s459 + $0x48] sm:$0xff]
      %v3259 = vld [vmem:[%s459 + $0x50] sm:$0xff]
      %v3260 = vld [vmem:[%s459 + $0x58] sm:$0xff]
      %v3261 = vld [vmem:[%s459 + $0x60] sm:$0xff]
      %v3262 = vld [vmem:[%s459 + $0x68] sm:$0xff]
      %v3263 = vld [vmem:[%s459 + $0x70] sm:$0xff]
      %v3264 = vld [vmem:[%s459 + $0x78] sm:$0xff]
      %v3265 = vadd.f32 %v3249, %v3233
      %v3266 = vadd.f32 %v3250, %v3234
      %v3267 = vadd.f32 %v3251, %v3235
      %v3268 = vadd.f32 %v3252, %v3236
      %v3269 = vadd.f32 %v3253, %v3237
      %v3270 = vadd.f32 %v3254, %v3238
      %v3271 = vadd.f32 %v3255, %v3239
      %v3272 = vadd.f32 %v3256, %v3240
      %v3273 = vadd.f32 %v3257, %v3241
      %v3274 = vadd.f32 %v3258, %v3242
      %v3275 = vadd.f32 %v3259, %v3243
      %v3276 = vadd.f32 %v3260, %v3244
      %v3277 = vadd.f32 %v3261, %v3245
      %v3278 = vadd.f32 %v3262, %v3246
      %v3279 = vadd.f32 %v3263, %v3247
      %v3280 = vadd.f32 %v3264, %v3248
      %3281 = vst [vmem:[%s459] sm:$0xff] %v3265
      %3282 = vst [vmem:[%s459 + $0x8] sm:$0xff] %v3266
      %3283 = vst [vmem:[%s459 + $0x10] sm:$0xff] %v3267
      %3284 = vst [vmem:[%s459 + $0x18] sm:$0xff] %v3268
      %3285 = vst [vmem:[%s459 + $0x20] sm:$0xff] %v3269
      %3286 = vst [vmem:[%s459 + $0x28] sm:$0xff] %v3270
      %3287 = vst [vmem:[%s459 + $0x30] sm:$0xff] %v3271
      %3288 = vst [vmem:[%s459 + $0x38] sm:$0xff] %v3272
      %3289 = vst [vmem:[%s459 + $0x40] sm:$0xff] %v3273
      %3290 = vst [vmem:[%s459 + $0x48] sm:$0xff] %v3274
      %3291 = vst [vmem:[%s459 + $0x50] sm:$0xff] %v3275
      %3292 = vst [vmem:[%s459 + $0x58] sm:$0xff] %v3276
      %3293 = vst [vmem:[%s459 + $0x60] sm:$0xff] %v3277
      %3294 = vst [vmem:[%s459 + $0x68] sm:$0xff] %v3278
      %3295 = vst [vmem:[%s459 + $0x70] sm:$0xff] %v3279
      %3296 = vst [vmem:[%s459 + $0x78] sm:$0xff] %v3280
      // Predicated region
      $region41: #{fcn_decode_forward.7} parent=35 // pred_check
        %p3297 = pneg %p478
      $region42: #{fcn_decode_forward.7} parent=35 // pred_check_branch
        %3299 = sbr.rel (%p3297) target = $region44
      $region43: #{fcn_decode_forward.7} parent=35 // pred_region
        %v3300 = vld [vmem:[%s459] sm:$0xff]
        %v3301 = vld [vmem:[%s459 + $0x8] sm:$0xff]
        %v3302 = vld [vmem:[%s459 + $0x10] sm:$0xff]
        %v3303 = vld [vmem:[%s459 + $0x18] sm:$0xff]
        %v3304 = vld [vmem:[%s459 + $0x20] sm:$0xff]
        %v3305 = vld [vmem:[%s459 + $0x28] sm:$0xff]
        %v3306 = vld [vmem:[%s459 + $0x30] sm:$0xff]
        %v3307 = vld [vmem:[%s459 + $0x38] sm:$0xff]
        %v3308 = vld [vmem:[%s459 + $0x40] sm:$0xff]
        %v3309 = vld [vmem:[%s459 + $0x48] sm:$0xff]
        %v3310 = vld [vmem:[%s459 + $0x50] sm:$0xff]
        %v3311 = vld [vmem:[%s459 + $0x58] sm:$0xff]
        %v3312 = vld [vmem:[%s459 + $0x60] sm:$0xff]
        %v3313 = vld [vmem:[%s459 + $0x68] sm:$0xff]
        %v3314 = vld [vmem:[%s459 + $0x70] sm:$0xff]
        %v3315 = vld [vmem:[%s459 + $0x78] sm:$0xff]
        %v3316 = vadd.f32 %v3300, %v3301
        %v3317 = vadd.f32 %v3316, %v3302
        %v3318 = vadd.f32 %v3317, %v3303
        %v3319 = vadd.f32 %v3318, %v3304
        %v3320 = vadd.f32 %v3319, %v3305
        %v3321 = vadd.f32 %v3320, %v3306
        %v3322 = vadd.f32 %v3321, %v3307
        %v3323 = vadd.f32 %v3322, %v3308
        %v3324 = vadd.f32 %v3323, %v3309
        %v3325 = vadd.f32 %v3324, %v3310
        %v3326 = vadd.f32 %v3325, %v3311
        %v3327 = vadd.f32 %v3326, %v3312
        %v3328 = vadd.f32 %v3327, %v3313
        %v3329 = vadd.f32 %v3328, %v3314
        %v3330 = vadd.f32 %v3329, %v3315
        %v3331 = vrot.slane %v3330, 4
        %v3332 = vadd.f32 %v3330, %v3331
        %v3333 = vrot.slane %v3332, 2
        %v3334 = vadd.f32 %v3332, %v3333
        %v3335 = vrot.slane %v3334, 1
        %v3336 = vadd.f32 %v3334, %v3335
        %v3337 = vmul.f32 %v3300, %v3300
        %v3338 = vmul.f32 %v3301, %v3301
        %v3339 = vmul.f32 %v3302, %v3302
        %v3340 = vmul.f32 %v3303, %v3303
        %v3341 = vmul.f32 %v3304, %v3304
        %v3342 = vmul.f32 %v3305, %v3305
        %v3343 = vmul.f32 %v3306, %v3306
        %v3344 = vmul.f32 %v3307, %v3307
        %v3345 = vmul.f32 %v3308, %v3308
        %v3346 = vmul.f32 %v3309, %v3309
        %v3347 = vmul.f32 %v3310, %v3310
        %v3348 = vmul.f32 %v3311, %v3311
        %v3349 = vmul.f32 %v3312, %v3312
        %v3350 = vmul.f32 %v3313, %v3313
        %v3351 = vmul.f32 %v3314, %v3314
        %v3352 = vmul.f32 %v3315, %v3315
        %v3353 = vadd.f32 %v3337, %v3338
        %v3354 = vadd.f32 %v3353, %v3339
        %v3355 = vadd.f32 %v3354, %v3340
        %v3356 = vadd.f32 %v3355, %v3341
        %v3357 = vadd.f32 %v3356, %v3342
        %v3358 = vadd.f32 %v3357, %v3343
        %v3359 = vadd.f32 %v3358, %v3344
        %v3360 = vadd.f32 %v3359, %v3345
        %v3361 = vadd.f32 %v3360, %v3346
        %v3362 = vadd.f32 %v3361, %v3347
        %v3363 = vadd.f32 %v3362, %v3348
        %v3364 = vadd.f32 %v3363, %v3349
        %v3365 = vadd.f32 %v3364, %v3350
        %v3366 = vadd.f32 %v3365, %v3351
        %v3367 = vadd.f32 %v3366, %v3352
        %v3368 = vrot.slane %v3367, 4
        %v3369 = vadd.f32 %v3367, %v3368
        %v3370 = vrot.slane %v3369, 2
        %v3371 = vadd.f32 %v3369, %v3370
        %v3372 = vrot.slane %v3371, 1
        %v3373 = vadd.f32 %v3371, %v3372
        %3374 = vst [vmem:[%s468] sm:$0xff] %v3336
        %3375 = vst [vmem:[%s476] sm:$0xff] %v3373
      $region44: #{fcn_decode_forward.7} parent=35 // pred_fallthru
        _
      %s3376 = smul.u32 8, %s24
      %p3377 = scmp.lt.s32.totalorder %s23, 1
      %s3378 = scalar_select %p3377, %s23, 1
      %p3379 = scmp.lt.s32.totalorder %s3376, 15
      %s3380 = scalar_select %p3379, %s3376, 15
      %s3381 = smul.addr %s3380, 2
      %s3382 = smul.addr %s3378, 32
      %s3383 = sadd.s32 %s3381, %s3382
      %s3384 = smul.addr %s3383, 8
      %s3385 = scalar_lea.vmem %s4, %s3384
      %p3386 = scmp.lt.s32.totalorder %s23, 1
      %s3387 = scalar_select %p3386, %s23, 1
      %p3388 = scmp.lt.s32.totalorder %s24, 1
      %s3389 = scalar_select %p3388, %s24, 1
      %s3390 = smul.addr %s3387, 2
      %s3391 = sadd.s32 %s3389, %s3390
      %s3392 = smul.addr %s3391, 8
      %s3393 = scalar_lea.vmem %s5, %s3392
      %p3394 = scmp.lt.s32.totalorder %s23, 1
      %s3395 = scalar_select %p3394, %s23, 1
      %p3396 = scmp.lt.s32.totalorder %s24, 1
      %s3397 = scalar_select %p3396, %s24, 1
      %s3398 = smul.addr %s3395, 2
      %s3399 = sadd.s32 %s3397, %s3398
      %s3400 = smul.addr %s3399, 8
      %s3401 = scalar_lea.vmem %s6, %s3400
      // Predicated region
      $region45: #{fcn_decode_forward.7} parent=35 // pred_check
        %p3402 = pneg %p173
      $region46: #{fcn_decode_forward.7} parent=35 // pred_check_branch
        %3404 = sbr.rel (%p3402) target = $region48
      $region47: #{fcn_decode_forward.7} parent=35 // pred_region
        %s3405 = smul.u32 8, %s24
      $region48: #{fcn_decode_forward.7} parent=35 // pred_fallthru
        _
      // Predicated region
      $region49: #{fcn_decode_forward.7} parent=35 // pred_check
        %p3406 = pneg %p201
      $region50: #{fcn_decode_forward.7} parent=35 // pred_check_branch
        %3408 = sbr.rel (%p3406) target = $region52
      $region51: #{fcn_decode_forward.7} parent=35 // pred_region
        _
      $region52: #{fcn_decode_forward.7} parent=35 // pred_fallthru
        _
      // Predicated region
      $region53: #{fcn_decode_forward.7} parent=35 // pred_check
        %p3409 = pneg %p229
      $region54: #{fcn_decode_forward.7} parent=35 // pred_check_branch
        %3411 = sbr.rel (%p3409) target = $region56
      $region55: #{fcn_decode_forward.7} parent=35 // pred_region
        _
      $region56: #{fcn_decode_forward.7} parent=35 // pred_fallthru
        _
    $region36: #{fcn_decode_forward.7} parent=5 // pred_fallthru
      _
    %p3412 = scmp.le.s32.totalorder 2, %s13
    // Predicated region
    $region57: #{fcn_decode_forward.7} parent=5 // pred_check
      %p3413 = pneg %p3412
    $region58: #{fcn_decode_forward.7} parent=5 // pred_check_branch
      %3415 = sbr.rel (%p3413) target = $region60
    $region59: #{fcn_decode_forward.7} parent=5 // pred_region
      %s3416 = ssub.s32 %s13, 2
      // Predicated region
      $region61: #{fcn_decode_forward.7} parent=59 // pred_check
        %p3417 = pneg %p179
      $region62: #{fcn_decode_forward.7} parent=59 // pred_check_branch
        %3419 = sbr.rel (%p3417) target = $region64
      $region63: #{fcn_decode_forward.7} parent=59 // pred_region
        %s3420 = smul.u32 8, %s27
        %p3421 = scmp.lt.s32.totalorder %s26, 1
        %s3422 = scalar_select %p3421, %s26, 1
        %p3423 = scmp.lt.s32.totalorder %s3420, 15
        %s3424 = scalar_select %p3423, %s3420, 15
        %s3425 = smul.addr %s3424, 2
        %s3426 = smul.addr %s3422, 32
        %s3427 = sadd.s32 %s3425, %s3426
        %s3428 = smul.addr %s3427, 8
        %s3429 = scalar_lea.vmem %s4, %s3428
      $region64: #{fcn_decode_forward.7} parent=59 // pred_fallthru
        _
      // Predicated region
      $region65: #{fcn_decode_forward.7} parent=59 // pred_check
        %p3430 = pneg %p207
      $region66: #{fcn_decode_forward.7} parent=59 // pred_check_branch
        %3432 = sbr.rel (%p3430) target = $region68
      $region67: #{fcn_decode_forward.7} parent=59 // pred_region
        %p3433 = scmp.lt.s32.totalorder %s26, 1
        %s3434 = scalar_select %p3433, %s26, 1
        %p3435 = scmp.lt.s32.totalorder %s27, 1
        %s3436 = scalar_select %p3435, %s27, 1
        %s3437 = smul.addr %s3434, 2
        %s3438 = sadd.s32 %s3436, %s3437
        %s3439 = smul.addr %s3438, 8
        %s3440 = scalar_lea.vmem %s5, %s3439
      $region68: #{fcn_decode_forward.7} parent=59 // pred_fallthru
        _
      // Predicated region
      $region69: #{fcn_decode_forward.7} parent=59 // pred_check
        %p3441 = pneg %p235
      $region70: #{fcn_decode_forward.7} parent=59 // pred_check_branch
        %3443 = sbr.rel (%p3441) target = $region72
      $region71: #{fcn_decode_forward.7} parent=59 // pred_region
        %p3444 = scmp.lt.s32.totalorder %s26, 1
        %s3445 = scalar_select %p3444, %s26, 1
        %p3446 = scmp.lt.s32.totalorder %s27, 1
        %s3447 = scalar_select %p3446, %s27, 1
        %s3448 = smul.addr %s3445, 2
        %s3449 = sadd.s32 %s3447, %s3448
        %s3450 = smul.addr %s3449, 8
        %s3451 = scalar_lea.vmem %s6, %s3450
      $region72: #{fcn_decode_forward.7} parent=59 // pred_fallthru
        _
    $region60: #{fcn_decode_forward.7} parent=5 // pred_fallthru
      _
  $region6: #{fcn_decode_forward.7} parent=0 // loop_footer
    %s17 = sadd.s32 1, %s13
  $region7: #{fcn_decode_forward.7} parent=0 // loop_footer_branch
    %12 = sbr.rel target = $region3
  $region8: #{fcn_decode_forward.7} parent=0 // loop_exit
    _

</llo_original>
